<compile_context>
chip_gen: v6e
topology: v6e:2x2x1
jax: 0.10.0
libtpu: 0.0.40
codegen_flags: <defaults>
</compile_context>

<pallas_src>
import functools

import jax
import jax.numpy as jnp
from jax.experimental import pallas as pl
from jax.experimental.pallas import tpu as pltpu


# ------------------------------ in-kernel helpers --------------------------- #

def _conv3x3_flat(x_f32, masks_ref, W, w_ref, b_ref):
    """3x3 'SAME' conv on a flat (H*W, Cin) channels-last activation of ONE image.

    Neighbours are fetched with pltpu.roll on the flattened row axis; out-of-image
    taps are zeroed with per-pixel border masks (any tap that wraps around the tile
    is also a border tap, so the wrap is harmless).  Shifts are factored: two +-1
    row rolls for dx, then two +-W rolls (sublane-aligned when W % 8 == 0) for dy on
    the 3*Cin slab.  All nine taps are fused into ONE bf16 MXU matmul of K = 9*Cin
    (f32 accumulation).  w_ref: (9*Cin, Cout) bf16 in (ky, kx, cin) row order.
    Returns (H*W, Cout) float32.
    """
    rows = x_f32.shape[0]
    m = masks_ref[...]                                # (rows, 4) f32
    my = {0: m[:, 0:1], 1: None, 2: m[:, 1:2]}        # y >= 1 | - | y <= H-2
    mx = {0: m[:, 2:3], 1: None, 2: m[:, 3:4]}        # x >= 1 | - | x <= W-2

    px = []
    for dx in range(3):
        off = dx - 1
        sh = x_f32 if off == 0 else pltpu.roll(x_f32, (-off) % rows, axis=0)
        px.append(sh if mx[dx] is None else sh * mx[dx])
    slab3 = jnp.concatenate(px, axis=-1)              # (rows, 3*Cin) f32

    py = []
    for dy in range(3):
        off = (dy - 1) * W
        sh = slab3 if off == 0 else pltpu.roll(slab3, (-off) % rows, axis=0)
        sh = sh if my[dy] is None else sh * my[dy]
        py.append(sh.astype(jnp.bfloat16))            # bf16 pieces -> bf16 slab9
    slab9 = jnp.concatenate(py, axis=-1)              # (rows, 9*Cin) bf16

    return jnp.dot(slab9, w_ref[...], preferred_element_type=jnp.float32) + b_ref[...]


def _partial_bn_stats(h_f32):
    """Per-grid-step per-channel sum and sum-of-squares -> (1, 1, Cout) each."""
    s = jnp.sum(h_f32, axis=0, keepdims=True)
    q = jnp.sum(h_f32 * h_f32, axis=0, keepdims=True)
    return s.reshape(1, 1, -1), q.reshape(1, 1, -1)


# ---------------------------------- kernels --------------------------------- #

def _k1_actnorm_invconv_conv1(C, W,
                              masks_ref, x1_ref, res_ref, an_loc_ref, an_scale_ref,
                              inv_wt_ref, w1_ref, b1_ref,
                              res_out_ref, h1_ref, s1_ref, q1_ref):
    # ActNorm: scale * (x + loc)       (its logdet term is a wrapper-side constant)
    res = an_scale_ref[...] * (res_ref[...] + an_loc_ref[...])
    # InvConv2dLU (1x1 conv): x @ W^T  (its logdet term is a wrapper-side constant)
    res = jnp.dot(res, inv_wt_ref[...], preferred_element_type=jnp.float32)
    res_out_ref[...] = res
    # first conv of AffineCoupling2.net on in_a = cat(input1, res[:, :C])
    in_a = jnp.concatenate([x1_ref[...], res[:, :C]], axis=-1)
    h = _conv3x3_flat(in_a, masks_ref, W, w1_ref, b1_ref)
    s, q = _partial_bn_stats(h)
    s1_ref[...] = s
    q1_ref[...] = q
    h1_ref[...] = h.astype(jnp.bfloat16)


def _k_bnrelu_conv3x3(W,
                      h_ref, masks_ref, a_ref, c_ref, w_ref, b_ref,
                      out_ref, s_ref, q_ref):
    # folded BatchNorm (global batch stats precomputed into scale a / shift c) + ReLU
    y = jnp.maximum(h_ref[...].astype(jnp.float32) * a_ref[...] + c_ref[...], 0.0)
    h = _conv3x3_flat(y, masks_ref, W, w_ref, b_ref)
    s, q = _partial_bn_stats(h)
    s_ref[...] = s
    q_ref[...] = q
    out_ref[...] = h.astype(jnp.bfloat16)


def _k4_bnrelu_conv1x1_coupling(C,
                                h3_ref, res_ref, a_ref, c_ref, w4_ref, b4_ref,
                                out2_ref, ld_ref):
    y = jnp.maximum(h3_ref[...].astype(jnp.float32) * a_ref[...] + c_ref[...], 0.0)
    net = jnp.dot(y.astype(jnp.bfloat16), w4_ref[...],
                  preferred_element_type=jnp.float32) + b4_ref[...]   # (HW, 4C) f32
    z = net[:, :2 * C] + 2.0
    t = net[:, 2 * C:]
    # numerically stable log(sigmoid(z))
    logs = jnp.minimum(z, 0.0) - jnp.log(1.0 + jnp.exp(-jnp.abs(z)))
    s = jnp.exp(logs)
    res = res_ref[...]
    out2_ref[:, :C] = res[:, :C]                      # res_a pass-through
    out2_ref[:, C:] = (res[:, C:] + t) * s            # out_b = (in_b + t) * s
    row = jnp.sum(logs, axis=1, keepdims=True)        # (HW, 1)
    ld_ref[...] = jnp.sum(row, axis=0, keepdims=True).reshape(1, 1, 1)


# ----------------------------------- wrapper -------------------------------- #

def _vmem_limit_bytes():
    """~48 MiB on v7x (64 MiB physical VMEM per TC), ~96 MiB on v5e/v6e (128 MiB)."""
    try:
        cap = int(pltpu.get_tpu_info().vmem_capacity_bytes)
    except Exception:
        cap = 64 * 1024 * 1024
    return min(int(cap * 3 // 4), 96 * 1024 * 1024)


def proflow_forward(input1_nchw, residual_nchw, params):
    """ProFlow.forward((input1, residual)); NCHW (torch layout) in and out."""
    B, C, H, W = input1_nchw.shape
    HW = H * W
    N = B * HW
    F = params["b1"].shape[-1]
    f32, bf16 = jnp.float32, jnp.bfloat16

    # channels-last, flattened: rows (= B*H*W) on sublanes, channels on lanes.
    x1 = jnp.transpose(input1_nchw, (0, 2, 3, 1)).astype(f32).reshape(N, C)
    res = jnp.transpose(residual_nchw, (0, 2, 3, 1)).astype(f32).reshape(N, 3 * C)

    # per-pixel 3x3 border masks for ONE image: [y>=1, y<=H-2, x>=1, x<=W-2].
    # Tiny (HW, 4) constant block; constant index_map keeps it VMEM-resident.
    yg = jnp.arange(H).reshape(H, 1)
    xg = jnp.arange(W).reshape(1, W)
    masks = jnp.stack([jnp.broadcast_to(yg >= 1, (H, W)),
                       jnp.broadcast_to(yg <= H - 2, (H, W)),
                       jnp.broadcast_to(xg >= 1, (H, W)),
                       jnp.broadcast_to(xg <= W - 2, (H, W))],
                      axis=-1).astype(f32).reshape(HW, 4)

    def kw(w):   # HWIO (3,3,Cin,Cout) -> 9-tap-fused (9*Cin, Cout) bf16 for the MXU
        return w.reshape(9 * w.shape[2], w.shape[3]).astype(bf16)

    cparams = pltpu.CompilerParams(dimension_semantics=("parallel",),
                                   vmem_limit_bytes=_vmem_limit_bytes())

    def rows(cols):                   # one image (H*W rows) per grid step
        return pl.BlockSpec((HW, cols), lambda i: (i, 0))

    def const(a):                     # weights / small params: resident across steps
        zero = (0,) * a.ndim
        return pl.BlockSpec(a.shape, lambda i: zero)

    def stat(cols):                   # per-step partial BN statistics
        return pl.BlockSpec((1, 1, cols), lambda i: (i, 0, 0))

    def bn_fold(s, q, g, be):         # two-phase BN: reduce per-step sums -> (a, c)
        mean = jnp.sum(s[:, 0, :], axis=0, keepdims=True) / N
        var = jnp.sum(q[:, 0, :], axis=0, keepdims=True) / N - mean * mean
        a = g * jax.lax.rsqrt(var + 1e-5)
        return a, be - mean * a

    # ---- kernel 1: ActNorm + InvConv2dLU + conv1 (+ BN1 partial stats) ------
    w1 = kw(params["w1"])
    res_post, h1, s1, q1 = pl.pallas_call(
        functools.partial(_k1_actnorm_invconv_conv1, C, W),
        grid=(B,),
        in_specs=[const(masks), rows(C), rows(3 * C),
                  const(params["an_loc"]), const(params["an_scale"]),
                  const(params["inv_wT"]), const(w1), const(params["b1"])],
        out_specs=(rows(3 * C), rows(F), stat(F), stat(F)),
        out_shape=(jax.ShapeDtypeStruct((N, 3 * C), f32),
                   jax.ShapeDtypeStruct((N, F), bf16),
                   jax.ShapeDtypeStruct((B, 1, F), f32),
                   jax.ShapeDtypeStruct((B, 1, F), f32)),
        compiler_params=cparams,
    )(masks, x1, res, params["an_loc"], params["an_scale"],
      params["inv_wT"], w1, params["b1"])
    a1, c1 = bn_fold(s1, q1, params["g1"], params["be1"])

    # ---- kernel 2: BN1 + ReLU + conv2 (+ BN2 partial stats) -----------------
    w2 = kw(params["w2"])
    h2, s2, q2 = pl.pallas_call(
        functools.partial(_k_bnrelu_conv3x3, W),
        grid=(B,),
        in_specs=[rows(F), const(masks), const(a1), const(c1),
                  const(w2), const(params["b2"])],
        out_specs=(rows(2 * F), stat(2 * F), stat(2 * F)),
        out_shape=(jax.ShapeDtypeStruct((N, 2 * F), bf16),
                   jax.ShapeDtypeStruct((B, 1, 2 * F), f32),
                   jax.ShapeDtypeStruct((B, 1, 2 * F), f32)),
        compiler_params=cparams,
    )(h1, masks, a1, c1, w2, params["b2"])
    a2, c2 = bn_fold(s2, q2, params["g2"], params["be2"])

    # ---- kernel 3: BN2 + ReLU + conv3 (+ BN3 partial stats) -----------------
    w3 = kw(params["w3"])
    h3, s3, q3 = pl.pallas_call(
        functools.partial(_k_bnrelu_conv3x3, W),
        grid=(B,),
        in_specs=[rows(2 * F), const(masks), const(a2), const(c2),
                  const(w3), const(params["b3"])],
        out_specs=(rows(4 * F), stat(4 * F), stat(4 * F)),
        out_shape=(jax.ShapeDtypeStruct((N, 4 * F), bf16),
                   jax.ShapeDtypeStruct((B, 1, 4 * F), f32),
                   jax.ShapeDtypeStruct((B, 1, 4 * F), f32)),
        compiler_params=cparams,
    )(h2, masks, a2, c2, w3, params["b3"])
    a3, c3 = bn_fold(s3, q3, params["g3"], params["be3"])

    # ---- kernel 4: BN3 + ReLU + 1x1 conv + affine coupling + per-sample det2 -
    w4 = params["w4"].astype(bf16)
    out2, ld = pl.pallas_call(
        functools.partial(_k4_bnrelu_conv1x1_coupling, C),
        grid=(B,),
        in_specs=[rows(4 * F), rows(3 * C), const(a3), const(c3),
                  const(w4), const(params["b4"])],
        out_specs=(rows(3 * C), pl.BlockSpec((1, 1, 1), lambda i: (i, 0, 0))),
        out_shape=(jax.ShapeDtypeStruct((N, 3 * C), f32),
                   jax.ShapeDtypeStruct((B, 1, 1), f32)),
        compiler_params=cparams,
    )(h3, res_post, a3, c3, w4, params["b4"])

    # ActNorm / InvConv logdet terms are data-independent scalars.
    logdet = ld[:, 0, 0] + HW * (jnp.sum(jnp.log(jnp.abs(params["an_scale"])))
                                 + jnp.sum(params["inv_ws"]))

    out2 = jnp.transpose(out2.reshape(B, H, W, 3 * C), (0, 3, 1, 2))
    # out1 is a verbatim pass-through of input1 (no kernel work / HBM copy needed).
    return (input1_nchw.astype(f32), out2), logdet


# ---------------------------- deterministic params -------------------------- #

def init_params(key, in_channel, filter_size=128):
    C = in_channel
    C3, C4 = 3 * C, 4 * C
    F = filter_size
    ks = jax.random.split(key, 16)

    # ActNorm (deterministic loc/scale; data-dependent init is module state, see TODO)
    an_loc = 0.1 * jax.random.normal(ks[0], (1, C3), jnp.float32)
    an_scale = jnp.exp(0.1 * jax.random.normal(ks[1], (1, C3), jnp.float32))

    # InvConv2dLU: weight = P (L_strict + I) (U_strict + diag(sign*exp(w_s))), P = I
    tril = jnp.tril(jnp.ones((C3, C3), jnp.float32), -1)
    triu = jnp.triu(jnp.ones((C3, C3), jnp.float32), 1)
    w_l = 0.1 * jax.random.normal(ks[2], (C3, C3), jnp.float32) * tril
    w_u = 0.1 * jax.random.normal(ks[3], (C3, C3), jnp.float32) * triu
    w_s = 0.1 * jax.random.normal(ks[4], (C3,), jnp.float32)          # log|s|
    eye = jnp.eye(C3, dtype=jnp.float32)
    weight = (eye + w_l) @ (w_u + jnp.diag(jnp.exp(w_s)))

    def conv_w(k, cin, cout):      # Conv2d weight ~ N(0, 0.05), HWIO (3,3,Cin,Cout)
        return 0.05 * jax.random.normal(k, (3, 3, cin, cout), jnp.float32)

    def bn(kg, kb, c):             # non-trivial gamma/beta so BN is really exercised
        return (1.0 + 0.1 * jax.random.normal(kg, (1, c), jnp.float32),
                0.1 * jax.random.normal(kb, (1, c), jnp.float32))

    g1, be1 = bn(ks[8], ks[9], F)
    g2, be2 = bn(ks[10], ks[11], 2 * F)
    g3, be3 = bn(ks[12], ks[13], 4 * F)

    # NOTE: AffineCoupling2.initialize_weights zeroes the final 1x1 conv; small
    # nonzero values are used here so the check exercises the full conv/BN chain.
    w4 = 0.02 * jax.random.normal(ks[14], (4 * F, C4), jnp.float32)
    b4 = 0.02 * jax.random.normal(ks[15], (1, C4), jnp.float32)

    return dict(
        an_loc=an_loc, an_scale=an_scale,
        inv_wT=weight.T, inv_ws=w_s.reshape(1, C3),
        w1=conv_w(ks[5], 2 * C, F), b1=jnp.zeros((1, F), jnp.float32),
        g1=g1, be1=be1,
        w2=conv_w(ks[6], F, 2 * F), b2=jnp.zeros((1, 2 * F), jnp.float32),
        g2=g2, be2=be2,
        w3=conv_w(ks[7], 2 * F, 4 * F), b3=jnp.zeros((1, 4 * F), jnp.float32),
        g3=g3, be3=be3,
        w4=w4, b4=b4,
    )


# ------------------------------ plain-JAX reference ------------------------- #

def proflow_reference(input1_nchw, residual_nchw, p):
    x1 = jnp.transpose(input1_nchw, (0, 2, 3, 1)).astype(jnp.float32)
    res = jnp.transpose(residual_nchw, (0, 2, 3, 1)).astype(jnp.float32)
    B, H, W, C = x1.shape
    scale = p["an_scale"].reshape(1, 1, 1, -1)
    loc = p["an_loc"].reshape(1, 1, 1, -1)
    res = scale * (res + loc)
    logdet = H * W * jnp.sum(jnp.log(jnp.abs(scale)))
    res = jnp.einsum("bhwi,io->bhwo", res, p["inv_wT"])
    logdet = logdet + H * W * jnp.sum(p["inv_ws"])
    xcat = jnp.concatenate([x1, res], axis=-1)
    in_a, in_b = xcat[..., :2 * C], xcat[..., 2 * C:]

    def conv3(x, w, b):
        y = jax.lax.conv_general_dilated(x, w, (1, 1), "SAME",
                                         dimension_numbers=("NHWC", "HWIO", "NHWC"))
        return y + b.reshape(1, 1, 1, -1)

    def bn_relu(x, g, be):
        m = jnp.mean(x, axis=(0, 1, 2), keepdims=True)
        v = jnp.mean((x - m) ** 2, axis=(0, 1, 2), keepdims=True)
        return jnp.maximum((x - m) / jnp.sqrt(v + 1e-5) * g.reshape(1, 1, 1, -1)
                           + be.reshape(1, 1, 1, -1), 0.0)

    h = bn_relu(conv3(in_a, p["w1"], p["b1"]), p["g1"], p["be1"])
    h = bn_relu(conv3(h, p["w2"], p["b2"]), p["g2"], p["be2"])
    h = bn_relu(conv3(h, p["w3"], p["b3"]), p["g3"], p["be3"])
    net_out = jnp.einsum("bhwi,io->bhwo", h, p["w4"]) + p["b4"].reshape(1, 1, 1, -1)
    log_s, t = net_out[..., :2 * C], net_out[..., 2 * C:]
    s = jax.nn.sigmoid(log_s + 2.0)
    out_b = (in_b + t) * s
    det2 = jnp.sum(jnp.log(s).reshape(B, -1), axis=1)
    out = jnp.concatenate([in_a, out_b], axis=-1)
    return (jnp.transpose(out[..., :C], (0, 3, 1, 2)),
            jnp.transpose(out[..., C:], (0, 3, 1, 2))), logdet + det2


# ------------------------------------ main ----------------------------------- #

if __name__ == "__main__":
    key = jax.random.PRNGKey(0)
    B, C, H, W = 2, 2, 8, 8            # ProFlow(in_channel=2): residual has 3C=6 channels
    k1, k2, kp = jax.random.split(key, 3)
    input1 = jax.random.normal(k1, (B, C, H, W), jnp.float32)        # NCHW like torch
    residual = jax.random.normal(k2, (B, 3 * C, H, W), jnp.float32)  # NCHW like torch
    params = init_params(kp, C, filter_size=128)

    fwd = jax.jit(proflow_forward)
    (out1, out2), logdet = fwd(input1, residual, params)
    jax.block_until_ready((out1, out2, logdet))

    (r1, r2), rld = proflow_reference(input1, residual, params)
    assert out1.shape == (B, C, H, W) and out2.shape == (B, 3 * C, H, W) and logdet.shape == (B,)
    assert jnp.allclose(out1, r1, rtol=2e-2, atol=2e-2)
    assert jnp.allclose(out2, r2, rtol=2e-2, atol=2e-2)
    # det2 sums H*W*2C log-sigmoid terms coming from bf16-operand matmuls -> give the
    # per-sample logdet a correspondingly sized absolute tolerance.
    assert jnp.allclose(logdet, rld, rtol=2e-2, atol=1e-1)

    print("KERNEL_OK")
</pallas_src>

<mosaic_0001>
module attributes {stable_mosaic.version = 11 : i64} {
  func.func @_k_bnrelu_conv3x3(%arg0: i32, %arg1: memref<64x128xbf16, #tpu.memory_space<vmem>>, %arg2: memref<64x4xf32, #tpu.memory_space<vmem>>, %arg3: memref<1x128xf32, #tpu.memory_space<vmem>>, %arg4: memref<1x128xf32, #tpu.memory_space<vmem>>, %arg5: memref<1152x256xbf16, #tpu.memory_space<vmem>>, %arg6: memref<1x256xf32, #tpu.memory_space<vmem>>, %arg7: memref<64x256xbf16, #tpu.memory_space<vmem>>, %arg8: memref<1x1x256xf32, #tpu.memory_space<vmem>>, %arg9: memref<1x1x256xf32, #tpu.memory_space<vmem>>) attributes {dimension_semantics = [#tpu.dimension_semantics<parallel>], iteration_bounds = array<i64: 2>, scalar_prefetch = 0 : i64, scratch_operands = 0 : i64, tpu.core_type = #tpu.core_type<tc>, window_params = [{transform_indices = @transform_0, window_bounds = array<i64: 64, 128>}, {pipeline_mode = #tpu.pipeline_mode<synchronous>, transform_indices = @transform_1, window_bounds = array<i64: 64, 4>}, {pipeline_mode = #tpu.pipeline_mode<synchronous>, transform_indices = @transform_2, window_bounds = array<i64: 1, 128>}, {pipeline_mode = #tpu.pipeline_mode<synchronous>, transform_indices = @transform_3, window_bounds = array<i64: 1, 128>}, {pipeline_mode = #tpu.pipeline_mode<synchronous>, transform_indices = @transform_4, window_bounds = array<i64: 1152, 256>}, {pipeline_mode = #tpu.pipeline_mode<synchronous>, transform_indices = @transform_5, window_bounds = array<i64: 1, 256>}, {transform_indices = @transform_6, window_bounds = array<i64: 64, 256>}, {transform_indices = @transform_7, window_bounds = array<i64: 1, 1, 256>}, {transform_indices = @transform_8, window_bounds = array<i64: 1, 1, 256>}]} {
    %c0 = arith.constant 0 : index
    %c0_0 = arith.constant 0 : index
    %0 = vector.load %arg1[%c0, %c0_0] : memref<64x128xbf16, #tpu.memory_space<vmem>>, vector<64x128xbf16>
    %1 = arith.extf %0 : vector<64x128xbf16> to vector<64x128xf32>
    %c0_1 = arith.constant 0 : index
    %c0_2 = arith.constant 0 : index
    %2 = vector.load %arg3[%c0_1, %c0_2] : memref<1x128xf32, #tpu.memory_space<vmem>>, vector<1x128xf32>
    %3 = vector.broadcast %2 : vector<1x128xf32> to vector<64x128xf32>
    %4 = arith.mulf %1, %3 : vector<64x128xf32>
    %c0_3 = arith.constant 0 : index
    %c0_4 = arith.constant 0 : index
    %5 = vector.load %arg4[%c0_3, %c0_4] : memref<1x128xf32, #tpu.memory_space<vmem>>, vector<1x128xf32>
    %6 = vector.broadcast %5 : vector<1x128xf32> to vector<64x128xf32>
    %7 = arith.addf %4, %6 : vector<64x128xf32>
    %cst = arith.constant 0.000000e+00 : f32
    %8 = vector.broadcast %cst : f32 to vector<64x128xf32>
    %9 = arith.maximumf %7, %8 : vector<64x128xf32>
    %c0_5 = arith.constant 0 : index
    %c0_6 = arith.constant 0 : index
    %10 = vector.load %arg2[%c0_5, %c0_6] : memref<64x4xf32, #tpu.memory_space<vmem>>, vector<64x4xf32>
    %11 = vector.extract_strided_slice %10 {offsets = [0, 0], sizes = [64, 1], strides = [1, 1]} : vector<64x4xf32> to vector<64x1xf32>
    %12 = vector.extract_strided_slice %10 {offsets = [0, 1], sizes = [64, 1], strides = [1, 1]} : vector<64x4xf32> to vector<64x1xf32>
    %13 = vector.extract_strided_slice %10 {offsets = [0, 2], sizes = [64, 1], strides = [1, 1]} : vector<64x4xf32> to vector<64x1xf32>
    %14 = vector.extract_strided_slice %10 {offsets = [0, 3], sizes = [64, 1], strides = [1, 1]} : vector<64x4xf32> to vector<64x1xf32>
    %c1_i32 = arith.constant 1 : i32
    %15 = tpu.dynamic_rotate %9 by %c1_i32 dim 0 : vector<64x128xf32>, i32 -> vector<64x128xf32>
    %16 = vector.broadcast %13 : vector<64x1xf32> to vector<64x128xf32>
    %17 = arith.mulf %15, %16 : vector<64x128xf32>
    %c63_i32 = arith.constant 63 : i32
    %18 = tpu.dynamic_rotate %9 by %c63_i32 dim 0 : vector<64x128xf32>, i32 -> vector<64x128xf32>
    %19 = vector.broadcast %14 : vector<64x1xf32> to vector<64x128xf32>
    %20 = arith.mulf %18, %19 : vector<64x128xf32>
    %21 = tpu.concatenate %17, %9, %20 in 1 : vector<64x128xf32>, vector<64x128xf32>, vector<64x128xf32> -> vector<64x384xf32>
    %c8_i32 = arith.constant 8 : i32
    %22 = tpu.dynamic_rotate %21 by %c8_i32 dim 0 : vector<64x384xf32>, i32 -> vector<64x384xf32>
    %23 = vector.broadcast %11 : vector<64x1xf32> to vector<64x384xf32>
    %24 = arith.mulf %22, %23 : vector<64x384xf32>
    %25 = arith.truncf %24 : vector<64x384xf32> to vector<64x384xbf16>
    %26 = arith.truncf %21 : vector<64x384xf32> to vector<64x384xbf16>
    %c56_i32 = arith.constant 56 : i32
    %27 = tpu.dynamic_rotate %21 by %c56_i32 dim 0 : vector<64x384xf32>, i32 -> vector<64x384xf32>
    %28 = vector.broadcast %12 : vector<64x1xf32> to vector<64x384xf32>
    %29 = arith.mulf %27, %28 : vector<64x384xf32>
    %30 = arith.truncf %29 : vector<64x384xf32> to vector<64x384xbf16>
    %31 = tpu.concatenate %25, %26, %30 in 1 : vector<64x384xbf16>, vector<64x384xbf16>, vector<64x384xbf16> -> vector<64x1152xbf16>
    %c0_7 = arith.constant 0 : index
    %c0_8 = arith.constant 0 : index
    %32 = vector.load %arg5[%c0_7, %c0_8] : memref<1152x256xbf16, #tpu.memory_space<vmem>>, vector<1152x256xbf16>
    %cst_9 = arith.constant dense<0.000000e+00> : vector<64x256xf32>
    %33 = tpu.matmul %31, %32, %cst_9 {dimension_numbers = #tpu.dot_dimension_numbers<[1], [0], [0], [1], [0, 0, 1, 1], [], []>} : vector<64x1152xbf16>, vector<1152x256xbf16>, vector<64x256xf32> -> vector<64x256xf32>
    %c0_10 = arith.constant 0 : index
    %c0_11 = arith.constant 0 : index
    %34 = vector.load %arg6[%c0_10, %c0_11] : memref<1x256xf32, #tpu.memory_space<vmem>>, vector<1x256xf32>
    %35 = vector.broadcast %34 : vector<1x256xf32> to vector<64x256xf32>
    %36 = arith.addf %33, %35 : vector<64x256xf32>
    %cst_12 = arith.constant dense<0.000000e+00> : vector<256xf32>
    %37 = vector.multi_reduction <add>, %36, %cst_12 [0] : vector<64x256xf32> to vector<256xf32>
    %38 = vector.shape_cast %37 : vector<256xf32> to vector<1x256xf32>
    %39 = arith.mulf %36, %36 : vector<64x256xf32>
    %cst_13 = arith.constant dense<0.000000e+00> : vector<256xf32>
    %40 = vector.multi_reduction <add>, %39, %cst_13 [0] : vector<64x256xf32> to vector<256xf32>
    %41 = vector.shape_cast %40 : vector<256xf32> to vector<1x256xf32>
    %42 = vector.shape_cast %38 : vector<1x256xf32> to vector<1x1x256xf32>
    %43 = vector.shape_cast %41 : vector<1x256xf32> to vector<1x1x256xf32>
    %c0_14 = arith.constant 0 : index
    %c0_15 = arith.constant 0 : index
    %c0_16 = arith.constant 0 : index
    %44 = vector.load %arg8[%c0_14, %c0_15, %c0_16] : memref<1x1x256xf32, #tpu.memory_space<vmem>>, vector<1x1x256xf32>
    tpu.vector_store %arg8[%c0_14, %c0_15, %c0_16], %42 {strides = array<i32>} : memref<1x1x256xf32, #tpu.memory_space<vmem>>, vector<1x1x256xf32>,
    %c0_17 = arith.constant 0 : index
    %c0_18 = arith.constant 0 : index
    %c0_19 = arith.constant 0 : index
    %45 = vector.load %arg9[%c0_17, %c0_18, %c0_19] : memref<1x1x256xf32, #tpu.memory_space<vmem>>, vector<1x1x256xf32>
    tpu.vector_store %arg9[%c0_17, %c0_18, %c0_19], %43 {strides = array<i32>} : memref<1x1x256xf32, #tpu.memory_space<vmem>>, vector<1x1x256xf32>,
    %46 = arith.truncf %36 : vector<64x256xf32> to vector<64x256xbf16>
    %c0_20 = arith.constant 0 : index
    %c0_21 = arith.constant 0 : index
    %47 = vector.load %arg7[%c0_20, %c0_21] : memref<64x256xbf16, #tpu.memory_space<vmem>>, vector<64x256xbf16>
    tpu.vector_store %arg7[%c0_20, %c0_21], %46 {strides = array<i32>} : memref<64x256xbf16, #tpu.memory_space<vmem>>, vector<64x256xbf16>,
    return
  }
  func.func @transform_0(%arg0: i32) -> (i32, i32) {
    %c0_i32 = arith.constant 0 : i32
    %c0_i32_0 = arith.constant 0 : i32
    return %arg0, %c0_i32 : i32, i32
  }
  func.func @transform_1(%arg0: i32) -> (i32, i32) {
    %c0_i32 = arith.constant 0 : i32
    %c0_i32_0 = arith.constant 0 : i32
    %c0_i32_1 = arith.constant 0 : i32
    return %c0_i32, %c0_i32_0 : i32, i32
  }
  func.func @transform_2(%arg0: i32) -> (i32, i32) {
    %c0_i32 = arith.constant 0 : i32
    %c0_i32_0 = arith.constant 0 : i32
    %c0_i32_1 = arith.constant 0 : i32
    return %c0_i32, %c0_i32_0 : i32, i32
  }
  func.func @transform_3(%arg0: i32) -> (i32, i32) {
    %c0_i32 = arith.constant 0 : i32
    %c0_i32_0 = arith.constant 0 : i32
    %c0_i32_1 = arith.constant 0 : i32
    return %c0_i32, %c0_i32_0 : i32, i32
  }
  func.func @transform_4(%arg0: i32) -> (i32, i32) {
    %c0_i32 = arith.constant 0 : i32
    %c0_i32_0 = arith.constant 0 : i32
    %c0_i32_1 = arith.constant 0 : i32
    return %c0_i32, %c0_i32_0 : i32, i32
  }
  func.func @transform_5(%arg0: i32) -> (i32, i32) {
    %c0_i32 = arith.constant 0 : i32
    %c0_i32_0 = arith.constant 0 : i32
    %c0_i32_1 = arith.constant 0 : i32
    return %c0_i32, %c0_i32_0 : i32, i32
  }
  func.func @transform_6(%arg0: i32) -> (i32, i32) {
    %c0_i32 = arith.constant 0 : i32
    %c0_i32_0 = arith.constant 0 : i32
    return %arg0, %c0_i32 : i32, i32
  }
  func.func @transform_7(%arg0: i32) -> (i32, i32, i32) {
    %c0_i32 = arith.constant 0 : i32
    %c0_i32_0 = arith.constant 0 : i32
    %c0_i32_1 = arith.constant 0 : i32
    return %arg0, %c0_i32, %c0_i32_0 : i32, i32, i32
  }
  func.func @transform_8(%arg0: i32) -> (i32, i32, i32) {
    %c0_i32 = arith.constant 0 : i32
    %c0_i32_0 = arith.constant 0 : i32
    %c0_i32_1 = arith.constant 0 : i32
    return %arg0, %c0_i32, %c0_i32_0 : i32, i32, i32
  }
}

module attributes {stable_mosaic.version = 11 : i64} {
  func.func @_k1_actnorm_invconv_conv1(%arg0: i32, %arg1: memref<64x4xf32, #tpu.memory_space<vmem>>, %arg2: memref<64x2xf32, #tpu.memory_space<vmem>>, %arg3: memref<64x6xf32, #tpu.memory_space<vmem>>, %arg4: memref<1x6xf32, #tpu.memory_space<vmem>>, %arg5: memref<1x6xf32, #tpu.memory_space<vmem>>, %arg6: memref<6x6xf32, #tpu.memory_space<vmem>>, %arg7: memref<36x128xbf16, #tpu.memory_space<vmem>>, %arg8: memref<1x128xf32, #tpu.memory_space<vmem>>, %arg9: memref<64x6xf32, #tpu.memory_space<vmem>>, %arg10: memref<64x128xbf16, #tpu.memory_space<vmem>>, %arg11: memref<1x1x128xf32, #tpu.memory_space<vmem>>, %arg12: memref<1x1x128xf32, #tpu.memory_space<vmem>>) attributes {dimension_semantics = [#tpu.dimension_semantics<parallel>], iteration_bounds = array<i64: 2>, scalar_prefetch = 0 : i64, scratch_operands = 0 : i64, tpu.core_type = #tpu.core_type<tc>, window_params = [{pipeline_mode = #tpu.pipeline_mode<synchronous>, transform_indices = @transform_0, window_bounds = array<i64: 64, 4>}, {transform_indices = @transform_1, window_bounds = array<i64: 64, 2>}, {transform_indices = @transform_2, window_bounds = array<i64: 64, 6>}, {pipeline_mode = #tpu.pipeline_mode<synchronous>, transform_indices = @transform_3, window_bounds = array<i64: 1, 6>}, {pipeline_mode = #tpu.pipeline_mode<synchronous>, transform_indices = @transform_4, window_bounds = array<i64: 1, 6>}, {pipeline_mode = #tpu.pipeline_mode<synchronous>, transform_indices = @transform_5, window_bounds = array<i64: 6, 6>}, {pipeline_mode = #tpu.pipeline_mode<synchronous>, transform_indices = @transform_6, window_bounds = array<i64: 36, 128>}, {pipeline_mode = #tpu.pipeline_mode<synchronous>, transform_indices = @transform_7, window_bounds = array<i64: 1, 128>}, {transform_indices = @transform_8, window_bounds = array<i64: 64, 6>}, {transform_indices = @transform_9, window_bounds = array<i64: 64, 128>}, {transform_indices = @transform_10, window_bounds = array<i64: 1, 1, 128>}, {transform_indices = @transform_11, window_bounds = array<i64: 1, 1, 128>}]} {
    %c0 = arith.constant 0 : index
    %c0_0 = arith.constant 0 : index
    %0 = vector.load %arg5[%c0, %c0_0] : memref<1x6xf32, #tpu.memory_space<vmem>>, vector<1x6xf32>
    %c0_1 = arith.constant 0 : index
    %c0_2 = arith.constant 0 : index
    %1 = vector.load %arg3[%c0_1, %c0_2] : memref<64x6xf32, #tpu.memory_space<vmem>>, vector<64x6xf32>
    %c0_3 = arith.constant 0 : index
    %c0_4 = arith.constant 0 : index
    %2 = vector.load %arg4[%c0_3, %c0_4] : memref<1x6xf32, #tpu.memory_space<vmem>>, vector<1x6xf32>
    %3 = vector.broadcast %2 : vector<1x6xf32> to vector<64x6xf32>
    %4 = arith.addf %1, %3 : vector<64x6xf32>
    %5 = vector.broadcast %0 : vector<1x6xf32> to vector<64x6xf32>
    %6 = arith.mulf %5, %4 : vector<64x6xf32>
    %c0_5 = arith.constant 0 : index
    %c0_6 = arith.constant 0 : index
    %7 = vector.load %arg6[%c0_5, %c0_6] : memref<6x6xf32, #tpu.memory_space<vmem>>, vector<6x6xf32>
    %cst = arith.constant dense<0.000000e+00> : vector<64x6xf32>
    %8 = tpu.matmul %6, %7, %cst {dimension_numbers = #tpu.dot_dimension_numbers<[1], [0], [0], [1], [0, 0, 1, 1], [], []>} : vector<64x6xf32>, vector<6x6xf32>, vector<64x6xf32> -> vector<64x6xf32>
    %c0_7 = arith.constant 0 : index
    %c0_8 = arith.constant 0 : index
    %9 = vector.load %arg9[%c0_7, %c0_8] : memref<64x6xf32, #tpu.memory_space<vmem>>, vector<64x6xf32>
    tpu.vector_store %arg9[%c0_7, %c0_8], %8 {strides = array<i32>} : memref<64x6xf32, #tpu.memory_space<vmem>>, vector<64x6xf32>,
    %c0_9 = arith.constant 0 : index
    %c0_10 = arith.constant 0 : index
    %10 = vector.load %arg2[%c0_9, %c0_10] : memref<64x2xf32, #tpu.memory_space<vmem>>, vector<64x2xf32>
    %11 = vector.extract_strided_slice %8 {offsets = [0, 0], sizes = [64, 2], strides = [1, 1]} : vector<64x6xf32> to vector<64x2xf32>
    %12 = tpu.concatenate %10, %11 in 1 : vector<64x2xf32>, vector<64x2xf32> -> vector<64x4xf32>
    %c0_11 = arith.constant 0 : index
    %c0_12 = arith.constant 0 : index
    %13 = vector.load %arg1[%c0_11, %c0_12] : memref<64x4xf32, #tpu.memory_space<vmem>>, vector<64x4xf32>
    %14 = vector.extract_strided_slice %13 {offsets = [0, 0], sizes = [64, 1], strides = [1, 1]} : vector<64x4xf32> to vector<64x1xf32>
    %15 = vector.extract_strided_slice %13 {offsets = [0, 1], sizes = [64, 1], strides = [1, 1]} : vector<64x4xf32> to vector<64x1xf32>
    %16 = vector.extract_strided_slice %13 {offsets = [0, 2], sizes = [64, 1], strides = [1, 1]} : vector<64x4xf32> to vector<64x1xf32>
    %17 = vector.extract_strided_slice %13 {offsets = [0, 3], sizes = [64, 1], strides = [1, 1]} : vector<64x4xf32> to vector<64x1xf32>
    %c1_i32 = arith.constant 1 : i32
    %18 = tpu.dynamic_rotate %12 by %c1_i32 dim 0 : vector<64x4xf32>, i32 -> vector<64x4xf32>
    %19 = vector.broadcast %16 : vector<64x1xf32> to vector<64x4xf32>
    %20 = arith.mulf %18, %19 : vector<64x4xf32>
    %c63_i32 = arith.constant 63 : i32
    %21 = tpu.dynamic_rotate %12 by %c63_i32 dim 0 : vector<64x4xf32>, i32 -> vector<64x4xf32>
    %22 = vector.broadcast %17 : vector<64x1xf32> to vector<64x4xf32>
    %23 = arith.mulf %21, %22 : vector<64x4xf32>
    %24 = tpu.concatenate %20, %12, %23 in 1 : vector<64x4xf32>, vector<64x4xf32>, vector<64x4xf32> -> vector<64x12xf32>
    %c8_i32 = arith.constant 8 : i32
    %25 = tpu.dynamic_rotate %24 by %c8_i32 dim 0 : vector<64x12xf32>, i32 -> vector<64x12xf32>
    %26 = vector.broadcast %14 : vector<64x1xf32> to vector<64x12xf32>
    %27 = arith.mulf %25, %26 : vector<64x12xf32>
    %28 = arith.truncf %27 : vector<64x12xf32> to vector<64x12xbf16>
    %29 = arith.truncf %24 : vector<64x12xf32> to vector<64x12xbf16>
    %c56_i32 = arith.constant 56 : i32
    %30 = tpu.dynamic_rotate %24 by %c56_i32 dim 0 : vector<64x12xf32>, i32 -> vector<64x12xf32>
    %31 = vector.broadcast %15 : vector<64x1xf32> to vector<64x12xf32>
    %32 = arith.mulf %30, %31 : vector<64x12xf32>
    %33 = arith.truncf %32 : vector<64x12xf32> to vector<64x12xbf16>
    %34 = tpu.concatenate %28, %29, %33 in 1 : vector<64x12xbf16>, vector<64x12xbf16>, vector<64x12xbf16> -> vector<64x36xbf16>
    %c0_13 = arith.constant 0 : index
    %c0_14 = arith.constant 0 : index
    %35 = vector.load %arg7[%c0_13, %c0_14] : memref<36x128xbf16, #tpu.memory_space<vmem>>, vector<36x128xbf16>
    %cst_15 = arith.constant dense<0.000000e+00> : vector<64x128xf32>
    %36 = tpu.matmul %34, %35, %cst_15 {dimension_numbers = #tpu.dot_dimension_numbers<[1], [0], [0], [1], [0, 0, 1, 1], [], []>} : vector<64x36xbf16>, vector<36x128xbf16>, vector<64x128xf32> -> vector<64x128xf32>
    %c0_16 = arith.constant 0 : index
    %c0_17 = arith.constant 0 : index
    %37 = vector.load %arg8[%c0_16, %c0_17] : memref<1x128xf32, #tpu.memory_space<vmem>>, vector<1x128xf32>
    %38 = vector.broadcast %37 : vector<1x128xf32> to vector<64x128xf32>
    %39 = arith.addf %36, %38 : vector<64x128xf32>
    %cst_18 = arith.constant dense<0.000000e+00> : vector<128xf32>
    %40 = vector.multi_reduction <add>, %39, %cst_18 [0] : vector<64x128xf32> to vector<128xf32>
    %41 = vector.shape_cast %40 : vector<128xf32> to vector<1x128xf32>
    %42 = arith.mulf %39, %39 : vector<64x128xf32>
    %cst_19 = arith.constant dense<0.000000e+00> : vector<128xf32>
    %43 = vector.multi_reduction <add>, %42, %cst_19 [0] : vector<64x128xf32> to vector<128xf32>
    %44 = vector.shape_cast %43 : vector<128xf32> to vector<1x128xf32>
    %45 = vector.shape_cast %41 : vector<1x128xf32> to vector<1x1x128xf32>
    %46 = vector.shape_cast %44 : vector<1x128xf32> to vector<1x1x128xf32>
    %c0_20 = arith.constant 0 : index
    %c0_21 = arith.constant 0 : index
    %c0_22 = arith.constant 0 : index
    %47 = vector.load %arg11[%c0_20, %c0_21, %c0_22] : memref<1x1x128xf32, #tpu.memory_space<vmem>>, vector<1x1x128xf32>
    tpu.vector_store %arg11[%c0_20, %c0_21, %c0_22], %45 {strides = array<i32>} : memref<1x1x128xf32, #tpu.memory_space<vmem>>, vector<1x1x128xf32>,
    %c0_23 = arith.constant 0 : index
    %c0_24 = arith.constant 0 : index
    %c0_25 = arith.constant 0 : index
    %48 = vector.load %arg12[%c0_23, %c0_24, %c0_25] : memref<1x1x128xf32, #tpu.memory_space<vmem>>, vector<1x1x128xf32>
    tpu.vector_store %arg12[%c0_23, %c0_24, %c0_25], %46 {strides = array<i32>} : memref<1x1x128xf32, #tpu.memory_space<vmem>>, vector<1x1x128xf32>,
    %49 = arith.truncf %39 : vector<64x128xf32> to vector<64x128xbf16>
    %c0_26 = arith.constant 0 : index
    %c0_27 = arith.constant 0 : index
    %50 = vector.load %arg10[%c0_26, %c0_27] : memref<64x128xbf16, #tpu.memory_space<vmem>>, vector<64x128xbf16>
    tpu.vector_store %arg10[%c0_26, %c0_27], %49 {strides = array<i32>} : memref<64x128xbf16, #tpu.memory_space<vmem>>, vector<64x128xbf16>,
    return
  }
  func.func @transform_0(%arg0: i32) -> (i32, i32) {
    %c0_i32 = arith.constant 0 : i32
    %c0_i32_0 = arith.constant 0 : i32
    %c0_i32_1 = arith.constant 0 : i32
    return %c0_i32, %c0_i32_0 : i32, i32
  }
  func.func @transform_1(%arg0: i32) -> (i32, i32) {
    %c0_i32 = arith.constant 0 : i32
    %c0_i32_0 = arith.constant 0 : i32
    return %arg0, %c0_i32 : i32, i32
  }
  func.func @transform_2(%arg0: i32) -> (i32, i32) {
    %c0_i32 = arith.constant 0 : i32
    %c0_i32_0 = arith.constant 0 : i32
    return %arg0, %c0_i32 : i32, i32
  }
  func.func @transform_3(%arg0: i32) -> (i32, i32) {
    %c0_i32 = arith.constant 0 : i32
    %c0_i32_0 = arith.constant 0 : i32
    %c0_i32_1 = arith.constant 0 : i32
    return %c0_i32, %c0_i32_0 : i32, i32
  }
  func.func @transform_4(%arg0: i32) -> (i32, i32) {
    %c0_i32 = arith.constant 0 : i32
    %c0_i32_0 = arith.constant 0 : i32
    %c0_i32_1 = arith.constant 0 : i32
    return %c0_i32, %c0_i32_0 : i32, i32
  }
  func.func @transform_5(%arg0: i32) -> (i32, i32) {
    %c0_i32 = arith.constant 0 : i32
    %c0_i32_0 = arith.constant 0 : i32
    %c0_i32_1 = arith.constant 0 : i32
    return %c0_i32, %c0_i32_0 : i32, i32
  }
  func.func @transform_6(%arg0: i32) -> (i32, i32) {
    %c0_i32 = arith.constant 0 : i32
    %c0_i32_0 = arith.constant 0 : i32
    %c0_i32_1 = arith.constant 0 : i32
    return %c0_i32, %c0_i32_0 : i32, i32
  }
  func.func @transform_7(%arg0: i32) -> (i32, i32) {
    %c0_i32 = arith.constant 0 : i32
    %c0_i32_0 = arith.constant 0 : i32
    %c0_i32_1 = arith.constant 0 : i32
    return %c0_i32, %c0_i32_0 : i32, i32
  }
  func.func @transform_8(%arg0: i32) -> (i32, i32) {
    %c0_i32 = arith.constant 0 : i32
    %c0_i32_0 = arith.constant 0 : i32
    return %arg0, %c0_i32 : i32, i32
  }
  func.func @transform_9(%arg0: i32) -> (i32, i32) {
    %c0_i32 = arith.constant 0 : i32
    %c0_i32_0 = arith.constant 0 : i32
    return %arg0, %c0_i32 : i32, i32
  }
  func.func @transform_10(%arg0: i32) -> (i32, i32, i32) {
    %c0_i32 = arith.constant 0 : i32
    %c0_i32_0 = arith.constant 0 : i32
    %c0_i32_1 = arith.constant 0 : i32
    return %arg0, %c0_i32, %c0_i32_0 : i32, i32, i32
  }
  func.func @transform_11(%arg0: i32) -> (i32, i32, i32) {
    %c0_i32 = arith.constant 0 : i32
    %c0_i32_0 = arith.constant 0 : i32
    %c0_i32_1 = arith.constant 0 : i32
    return %arg0, %c0_i32, %c0_i32_0 : i32, i32, i32
  }
}

module attributes {stable_mosaic.version = 11 : i64} {
  func.func @_k_bnrelu_conv3x3(%arg0: i32, %arg1: memref<64x256xbf16, #tpu.memory_space<vmem>>, %arg2: memref<64x4xf32, #tpu.memory_space<vmem>>, %arg3: memref<1x256xf32, #tpu.memory_space<vmem>>, %arg4: memref<1x256xf32, #tpu.memory_space<vmem>>, %arg5: memref<2304x512xbf16, #tpu.memory_space<vmem>>, %arg6: memref<1x512xf32, #tpu.memory_space<vmem>>, %arg7: memref<64x512xbf16, #tpu.memory_space<vmem>>, %arg8: memref<1x1x512xf32, #tpu.memory_space<vmem>>, %arg9: memref<1x1x512xf32, #tpu.memory_space<vmem>>) attributes {dimension_semantics = [#tpu.dimension_semantics<parallel>], iteration_bounds = array<i64: 2>, scalar_prefetch = 0 : i64, scratch_operands = 0 : i64, tpu.core_type = #tpu.core_type<tc>, window_params = [{transform_indices = @transform_0, window_bounds = array<i64: 64, 256>}, {pipeline_mode = #tpu.pipeline_mode<synchronous>, transform_indices = @transform_1, window_bounds = array<i64: 64, 4>}, {pipeline_mode = #tpu.pipeline_mode<synchronous>, transform_indices = @transform_2, window_bounds = array<i64: 1, 256>}, {pipeline_mode = #tpu.pipeline_mode<synchronous>, transform_indices = @transform_3, window_bounds = array<i64: 1, 256>}, {pipeline_mode = #tpu.pipeline_mode<synchronous>, transform_indices = @transform_4, window_bounds = array<i64: 2304, 512>}, {pipeline_mode = #tpu.pipeline_mode<synchronous>, transform_indices = @transform_5, window_bounds = array<i64: 1, 512>}, {transform_indices = @transform_6, window_bounds = array<i64: 64, 512>}, {transform_indices = @transform_7, window_bounds = array<i64: 1, 1, 512>}, {transform_indices = @transform_8, window_bounds = array<i64: 1, 1, 512>}]} {
    %c0 = arith.constant 0 : index
    %c0_0 = arith.constant 0 : index
    %0 = vector.load %arg1[%c0, %c0_0] : memref<64x256xbf16, #tpu.memory_space<vmem>>, vector<64x256xbf16>
    %1 = arith.extf %0 : vector<64x256xbf16> to vector<64x256xf32>
    %c0_1 = arith.constant 0 : index
    %c0_2 = arith.constant 0 : index
    %2 = vector.load %arg3[%c0_1, %c0_2] : memref<1x256xf32, #tpu.memory_space<vmem>>, vector<1x256xf32>
    %3 = vector.broadcast %2 : vector<1x256xf32> to vector<64x256xf32>
    %4 = arith.mulf %1, %3 : vector<64x256xf32>
    %c0_3 = arith.constant 0 : index
    %c0_4 = arith.constant 0 : index
    %5 = vector.load %arg4[%c0_3, %c0_4] : memref<1x256xf32, #tpu.memory_space<vmem>>, vector<1x256xf32>
    %6 = vector.broadcast %5 : vector<1x256xf32> to vector<64x256xf32>
    %7 = arith.addf %4, %6 : vector<64x256xf32>
    %cst = arith.constant 0.000000e+00 : f32
    %8 = vector.broadcast %cst : f32 to vector<64x256xf32>
    %9 = arith.maximumf %7, %8 : vector<64x256xf32>
    %c0_5 = arith.constant 0 : index
    %c0_6 = arith.constant 0 : index
    %10 = vector.load %arg2[%c0_5, %c0_6] : memref<64x4xf32, #tpu.memory_space<vmem>>, vector<64x4xf32>
    %11 = vector.extract_strided_slice %10 {offsets = [0, 0], sizes = [64, 1], strides = [1, 1]} : vector<64x4xf32> to vector<64x1xf32>
    %12 = vector.extract_strided_slice %10 {offsets = [0, 1], sizes = [64, 1], strides = [1, 1]} : vector<64x4xf32> to vector<64x1xf32>
    %13 = vector.extract_strided_slice %10 {offsets = [0, 2], sizes = [64, 1], strides = [1, 1]} : vector<64x4xf32> to vector<64x1xf32>
    %14 = vector.extract_strided_slice %10 {offsets = [0, 3], sizes = [64, 1], strides = [1, 1]} : vector<64x4xf32> to vector<64x1xf32>
    %c1_i32 = arith.constant 1 : i32
    %15 = tpu.dynamic_rotate %9 by %c1_i32 dim 0 : vector<64x256xf32>, i32 -> vector<64x256xf32>
    %16 = vector.broadcast %13 : vector<64x1xf32> to vector<64x256xf32>
    %17 = arith.mulf %15, %16 : vector<64x256xf32>
    %c63_i32 = arith.constant 63 : i32
    %18 = tpu.dynamic_rotate %9 by %c63_i32 dim 0 : vector<64x256xf32>, i32 -> vector<64x256xf32>
    %19 = vector.broadcast %14 : vector<64x1xf32> to vector<64x256xf32>
    %20 = arith.mulf %18, %19 : vector<64x256xf32>
    %21 = tpu.concatenate %17, %9, %20 in 1 : vector<64x256xf32>, vector<64x256xf32>, vector<64x256xf32> -> vector<64x768xf32>
    %c8_i32 = arith.constant 8 : i32
    %22 = tpu.dynamic_rotate %21 by %c8_i32 dim 0 : vector<64x768xf32>, i32 -> vector<64x768xf32>
    %23 = vector.broadcast %11 : vector<64x1xf32> to vector<64x768xf32>
    %24 = arith.mulf %22, %23 : vector<64x768xf32>
    %25 = arith.truncf %24 : vector<64x768xf32> to vector<64x768xbf16>
    %26 = arith.truncf %21 : vector<64x768xf32> to vector<64x768xbf16>
    %c56_i32 = arith.constant 56 : i32
    %27 = tpu.dynamic_rotate %21 by %c56_i32 dim 0 : vector<64x768xf32>, i32 -> vector<64x768xf32>
    %28 = vector.broadcast %12 : vector<64x1xf32> to vector<64x768xf32>
    %29 = arith.mulf %27, %28 : vector<64x768xf32>
    %30 = arith.truncf %29 : vector<64x768xf32> to vector<64x768xbf16>
    %31 = tpu.concatenate %25, %26, %30 in 1 : vector<64x768xbf16>, vector<64x768xbf16>, vector<64x768xbf16> -> vector<64x2304xbf16>
    %c0_7 = arith.constant 0 : index
    %c0_8 = arith.constant 0 : index
    %32 = vector.load %arg5[%c0_7, %c0_8] : memref<2304x512xbf16, #tpu.memory_space<vmem>>, vector<2304x512xbf16>
    %cst_9 = arith.constant dense<0.000000e+00> : vector<64x512xf32>
    %33 = tpu.matmul %31, %32, %cst_9 {dimension_numbers = #tpu.dot_dimension_numbers<[1], [0], [0], [1], [0, 0, 1, 1], [], []>} : vector<64x2304xbf16>, vector<2304x512xbf16>, vector<64x512xf32> -> vector<64x512xf32>
    %c0_10 = arith.constant 0 : index
    %c0_11 = arith.constant 0 : index
    %34 = vector.load %arg6[%c0_10, %c0_11] : memref<1x512xf32, #tpu.memory_space<vmem>>, vector<1x512xf32>
    %35 = vector.broadcast %34 : vector<1x512xf32> to vector<64x512xf32>
    %36 = arith.addf %33, %35 : vector<64x512xf32>
    %cst_12 = arith.constant dense<0.000000e+00> : vector<512xf32>
    %37 = vector.multi_reduction <add>, %36, %cst_12 [0] : vector<64x512xf32> to vector<512xf32>
    %38 = vector.shape_cast %37 : vector<512xf32> to vector<1x512xf32>
    %39 = arith.mulf %36, %36 : vector<64x512xf32>
    %cst_13 = arith.constant dense<0.000000e+00> : vector<512xf32>
    %40 = vector.multi_reduction <add>, %39, %cst_13 [0] : vector<64x512xf32> to vector<512xf32>
    %41 = vector.shape_cast %40 : vector<512xf32> to vector<1x512xf32>
    %42 = vector.shape_cast %38 : vector<1x512xf32> to vector<1x1x512xf32>
    %43 = vector.shape_cast %41 : vector<1x512xf32> to vector<1x1x512xf32>
    %c0_14 = arith.constant 0 : index
    %c0_15 = arith.constant 0 : index
    %c0_16 = arith.constant 0 : index
    %44 = vector.load %arg8[%c0_14, %c0_15, %c0_16] : memref<1x1x512xf32, #tpu.memory_space<vmem>>, vector<1x1x512xf32>
    tpu.vector_store %arg8[%c0_14, %c0_15, %c0_16], %42 {strides = array<i32>} : memref<1x1x512xf32, #tpu.memory_space<vmem>>, vector<1x1x512xf32>,
    %c0_17 = arith.constant 0 : index
    %c0_18 = arith.constant 0 : index
    %c0_19 = arith.constant 0 : index
    %45 = vector.load %arg9[%c0_17, %c0_18, %c0_19] : memref<1x1x512xf32, #tpu.memory_space<vmem>>, vector<1x1x512xf32>
    tpu.vector_store %arg9[%c0_17, %c0_18, %c0_19], %43 {strides = array<i32>} : memref<1x1x512xf32, #tpu.memory_space<vmem>>, vector<1x1x512xf32>,
    %46 = arith.truncf %36 : vector<64x512xf32> to vector<64x512xbf16>
    %c0_20 = arith.constant 0 : index
    %c0_21 = arith.constant 0 : index
    %47 = vector.load %arg7[%c0_20, %c0_21] : memref<64x512xbf16, #tpu.memory_space<vmem>>, vector<64x512xbf16>
    tpu.vector_store %arg7[%c0_20, %c0_21], %46 {strides = array<i32>} : memref<64x512xbf16, #tpu.memory_space<vmem>>, vector<64x512xbf16>,
    return
  }
  func.func @transform_0(%arg0: i32) -> (i32, i32) {
    %c0_i32 = arith.constant 0 : i32
    %c0_i32_0 = arith.constant 0 : i32
    return %arg0, %c0_i32 : i32, i32
  }
  func.func @transform_1(%arg0: i32) -> (i32, i32) {
    %c0_i32 = arith.constant 0 : i32
    %c0_i32_0 = arith.constant 0 : i32
    %c0_i32_1 = arith.constant 0 : i32
    return %c0_i32, %c0_i32_0 : i32, i32
  }
  func.func @transform_2(%arg0: i32) -> (i32, i32) {
    %c0_i32 = arith.constant 0 : i32
    %c0_i32_0 = arith.constant 0 : i32
    %c0_i32_1 = arith.constant 0 : i32
    return %c0_i32, %c0_i32_0 : i32, i32
  }
  func.func @transform_3(%arg0: i32) -> (i32, i32) {
    %c0_i32 = arith.constant 0 : i32
    %c0_i32_0 = arith.constant 0 : i32
    %c0_i32_1 = arith.constant 0 : i32
    return %c0_i32, %c0_i32_0 : i32, i32
  }
  func.func @transform_4(%arg0: i32) -> (i32, i32) {
    %c0_i32 = arith.constant 0 : i32
    %c0_i32_0 = arith.constant 0 : i32
    %c0_i32_1 = arith.constant 0 : i32
    return %c0_i32, %c0_i32_0 : i32, i32
  }
  func.func @transform_5(%arg0: i32) -> (i32, i32) {
    %c0_i32 = arith.constant 0 : i32
    %c0_i32_0 = arith.constant 0 : i32
    %c0_i32_1 = arith.constant 0 : i32
    return %c0_i32, %c0_i32_0 : i32, i32
  }
  func.func @transform_6(%arg0: i32) -> (i32, i32) {
    %c0_i32 = arith.constant 0 : i32
    %c0_i32_0 = arith.constant 0 : i32
    return %arg0, %c0_i32 : i32, i32
  }
  func.func @transform_7(%arg0: i32) -> (i32, i32, i32) {
    %c0_i32 = arith.constant 0 : i32
    %c0_i32_0 = arith.constant 0 : i32
    %c0_i32_1 = arith.constant 0 : i32
    return %arg0, %c0_i32, %c0_i32_0 : i32, i32, i32
  }
  func.func @transform_8(%arg0: i32) -> (i32, i32, i32) {
    %c0_i32 = arith.constant 0 : i32
    %c0_i32_0 = arith.constant 0 : i32
    %c0_i32_1 = arith.constant 0 : i32
    return %arg0, %c0_i32, %c0_i32_0 : i32, i32, i32
  }
}

module attributes {stable_mosaic.version = 11 : i64} {
  func.func @_k4_bnrelu_conv1x1_coupling(%arg0: i32, %arg1: memref<64x512xbf16, #tpu.memory_space<vmem>>, %arg2: memref<64x6xf32, #tpu.memory_space<vmem>>, %arg3: memref<1x512xf32, #tpu.memory_space<vmem>>, %arg4: memref<1x512xf32, #tpu.memory_space<vmem>>, %arg5: memref<512x8xbf16, #tpu.memory_space<vmem>>, %arg6: memref<1x8xf32, #tpu.memory_space<vmem>>, %arg7: memref<64x6xf32, #tpu.memory_space<vmem>>, %arg8: memref<1x1x1xf32, #tpu.memory_space<vmem>>) attributes {dimension_semantics = [#tpu.dimension_semantics<parallel>], iteration_bounds = array<i64: 2>, scalar_prefetch = 0 : i64, scratch_operands = 0 : i64, tpu.core_type = #tpu.core_type<tc>, window_params = [{transform_indices = @transform_0, window_bounds = array<i64: 64, 512>}, {transform_indices = @transform_1, window_bounds = array<i64: 64, 6>}, {pipeline_mode = #tpu.pipeline_mode<synchronous>, transform_indices = @transform_2, window_bounds = array<i64: 1, 512>}, {pipeline_mode = #tpu.pipeline_mode<synchronous>, transform_indices = @transform_3, window_bounds = array<i64: 1, 512>}, {pipeline_mode = #tpu.pipeline_mode<synchronous>, transform_indices = @transform_4, window_bounds = array<i64: 512, 8>}, {pipeline_mode = #tpu.pipeline_mode<synchronous>, transform_indices = @transform_5, window_bounds = array<i64: 1, 8>}, {transform_indices = @transform_6, window_bounds = array<i64: 64, 6>}, {transform_indices = @transform_7, window_bounds = array<i64: 1, 1, 1>}]} {
    %c0 = arith.constant 0 : index
    %c0_0 = arith.constant 0 : index
    %0 = vector.load %arg1[%c0, %c0_0] : memref<64x512xbf16, #tpu.memory_space<vmem>>, vector<64x512xbf16>
    %1 = arith.extf %0 : vector<64x512xbf16> to vector<64x512xf32>
    %c0_1 = arith.constant 0 : index
    %c0_2 = arith.constant 0 : index
    %2 = vector.load %arg3[%c0_1, %c0_2] : memref<1x512xf32, #tpu.memory_space<vmem>>, vector<1x512xf32>
    %3 = vector.broadcast %2 : vector<1x512xf32> to vector<64x512xf32>
    %4 = arith.mulf %1, %3 : vector<64x512xf32>
    %c0_3 = arith.constant 0 : index
    %c0_4 = arith.constant 0 : index
    %5 = vector.load %arg4[%c0_3, %c0_4] : memref<1x512xf32, #tpu.memory_space<vmem>>, vector<1x512xf32>
    %6 = vector.broadcast %5 : vector<1x512xf32> to vector<64x512xf32>
    %7 = arith.addf %4, %6 : vector<64x512xf32>
    %cst = arith.constant 0.000000e+00 : f32
    %8 = vector.broadcast %cst : f32 to vector<64x512xf32>
    %9 = arith.maximumf %7, %8 : vector<64x512xf32>
    %10 = arith.truncf %9 : vector<64x512xf32> to vector<64x512xbf16>
    %c0_5 = arith.constant 0 : index
    %c0_6 = arith.constant 0 : index
    %11 = vector.load %arg5[%c0_5, %c0_6] : memref<512x8xbf16, #tpu.memory_space<vmem>>, vector<512x8xbf16>
    %cst_7 = arith.constant dense<0.000000e+00> : vector<64x8xf32>
    %12 = tpu.matmul %10, %11, %cst_7 {dimension_numbers = #tpu.dot_dimension_numbers<[1], [0], [0], [1], [0, 0, 1, 1], [], []>} : vector<64x512xbf16>, vector<512x8xbf16>, vector<64x8xf32> -> vector<64x8xf32>
    %c0_8 = arith.constant 0 : index
    %c0_9 = arith.constant 0 : index
    %13 = vector.load %arg6[%c0_8, %c0_9] : memref<1x8xf32, #tpu.memory_space<vmem>>, vector<1x8xf32>
    %14 = vector.broadcast %13 : vector<1x8xf32> to vector<64x8xf32>
    %15 = arith.addf %12, %14 : vector<64x8xf32>
    %16 = vector.extract_strided_slice %15 {offsets = [0, 0], sizes = [64, 4], strides = [1, 1]} : vector<64x8xf32> to vector<64x4xf32>
    %cst_10 = arith.constant 2.000000e+00 : f32
    %17 = vector.broadcast %cst_10 : f32 to vector<64x4xf32>
    %18 = arith.addf %16, %17 : vector<64x4xf32>
    %19 = vector.extract_strided_slice %15 {offsets = [0, 4], sizes = [64, 4], strides = [1, 1]} : vector<64x8xf32> to vector<64x4xf32>
    %cst_11 = arith.constant 0.000000e+00 : f32
    %20 = vector.broadcast %cst_11 : f32 to vector<64x4xf32>
    %21 = arith.minimumf %18, %20 : vector<64x4xf32>
    %22 = math.absf %18 : vector<64x4xf32>
    %cst_12 = arith.constant 0.000000e+00 : f32
    %23 = vector.broadcast %cst_12 : f32 to vector<64x4xf32>
    %24 = arith.subf %23, %22 : vector<64x4xf32>
    %25 = math.exp %24 : vector<64x4xf32>
    %cst_13 = arith.constant 1.000000e+00 : f32
    %26 = vector.broadcast %cst_13 : f32 to vector<64x4xf32>
    %27 = arith.addf %26, %25 : vector<64x4xf32>
    %28 = math.log %27 : vector<64x4xf32>
    %29 = arith.subf %21, %28 : vector<64x4xf32>
    %30 = math.exp %29 : vector<64x4xf32>
    %c0_14 = arith.constant 0 : index
    %c0_15 = arith.constant 0 : index
    %31 = vector.load %arg2[%c0_14, %c0_15] : memref<64x6xf32, #tpu.memory_space<vmem>>, vector<64x6xf32>
    %32 = vector.extract_strided_slice %31 {offsets = [0, 0], sizes = [64, 2], strides = [1, 1]} : vector<64x6xf32> to vector<64x2xf32>
    %c0_16 = arith.constant 0 : index
    %c0_17 = arith.constant 0 : index
    %33 = vector.load %arg7[%c0_16, %c0_17] : memref<64x6xf32, #tpu.memory_space<vmem>>, vector<64x2xf32>
    tpu.vector_store %arg7[%c0_16, %c0_17], %32 {strides = array<i32>} : memref<64x6xf32, #tpu.memory_space<vmem>>, vector<64x2xf32>,
    %34 = vector.extract_strided_slice %31 {offsets = [0, 2], sizes = [64, 4], strides = [1, 1]} : vector<64x6xf32> to vector<64x4xf32>
    %35 = arith.addf %34, %19 : vector<64x4xf32>
    %36 = arith.mulf %35, %30 : vector<64x4xf32>
    %c0_18 = arith.constant 0 : index
    %c2 = arith.constant 2 : index
    %37 = vector.load %arg7[%c0_18, %c2] : memref<64x6xf32, #tpu.memory_space<vmem>>, vector<64x4xf32>
    tpu.vector_store %arg7[%c0_18, %c2], %36 {strides = array<i32>} : memref<64x6xf32, #tpu.memory_space<vmem>>, vector<64x4xf32>,
    %cst_19 = arith.constant dense<0.000000e+00> : vector<64xf32>
    %38 = vector.multi_reduction <add>, %29, %cst_19 [1] : vector<64x4xf32> to vector<64xf32>
    %39 = vector.shape_cast %38 : vector<64xf32> to vector<64x1xf32>
    %cst_20 = arith.constant dense<0.000000e+00> : vector<1xf32>
    %40 = vector.multi_reduction <add>, %39, %cst_20 [0] : vector<64x1xf32> to vector<1xf32>
    %41 = vector.shape_cast %40 : vector<1xf32> to vector<1x1xf32>
    %42 = vector.shape_cast %41 : vector<1x1xf32> to vector<1x1x1xf32>
    %c0_21 = arith.constant 0 : index
    %c0_22 = arith.constant 0 : index
    %c0_23 = arith.constant 0 : index
    %43 = vector.load %arg8[%c0_21, %c0_22, %c0_23] : memref<1x1x1xf32, #tpu.memory_space<vmem>>, vector<1x1x1xf32>
    tpu.vector_store %arg8[%c0_21, %c0_22, %c0_23], %42 {strides = array<i32>} : memref<1x1x1xf32, #tpu.memory_space<vmem>>, vector<1x1x1xf32>,
    return
  }
  func.func @transform_0(%arg0: i32) -> (i32, i32) {
    %c0_i32 = arith.constant 0 : i32
    %c0_i32_0 = arith.constant 0 : i32
    return %arg0, %c0_i32 : i32, i32
  }
  func.func @transform_1(%arg0: i32) -> (i32, i32) {
    %c0_i32 = arith.constant 0 : i32
    %c0_i32_0 = arith.constant 0 : i32
    return %arg0, %c0_i32 : i32, i32
  }
  func.func @transform_2(%arg0: i32) -> (i32, i32) {
    %c0_i32 = arith.constant 0 : i32
    %c0_i32_0 = arith.constant 0 : i32
    %c0_i32_1 = arith.constant 0 : i32
    return %c0_i32, %c0_i32_0 : i32, i32
  }
  func.func @transform_3(%arg0: i32) -> (i32, i32) {
    %c0_i32 = arith.constant 0 : i32
    %c0_i32_0 = arith.constant 0 : i32
    %c0_i32_1 = arith.constant 0 : i32
    return %c0_i32, %c0_i32_0 : i32, i32
  }
  func.func @transform_4(%arg0: i32) -> (i32, i32) {
    %c0_i32 = arith.constant 0 : i32
    %c0_i32_0 = arith.constant 0 : i32
    %c0_i32_1 = arith.constant 0 : i32
    return %c0_i32, %c0_i32_0 : i32, i32
  }
  func.func @transform_5(%arg0: i32) -> (i32, i32) {
    %c0_i32 = arith.constant 0 : i32
    %c0_i32_0 = arith.constant 0 : i32
    %c0_i32_1 = arith.constant 0 : i32
    return %c0_i32, %c0_i32_0 : i32, i32
  }
  func.func @transform_6(%arg0: i32) -> (i32, i32) {
    %c0_i32 = arith.constant 0 : i32
    %c0_i32_0 = arith.constant 0 : i32
    return %arg0, %c0_i32 : i32, i32
  }
  func.func @transform_7(%arg0: i32) -> (i32, i32, i32) {
    %c0_i32 = arith.constant 0 : i32
    %c0_i32_0 = arith.constant 0 : i32
    %c0_i32_1 = arith.constant 0 : i32
    return %arg0, %c0_i32, %c0_i32_0 : i32, i32, i32
  }
}

</mosaic_0001>

<llo_original>
// kernel: proflow_forward.4
$region0: #{proflow_forward.4}
  #allocation0 [shape = 'u32[]', space=smem, size = 0x4, offset = 0x4, fixed_abs, tag = 'smem constant byte address 0x4 - core index']
  #allocation1 [shape = 'u32[144,128]{1,0:T(1,128)}', space=vmem, size = 0x12000, scoped, tag = 'internal scratch']
  %s0 = inlined_call_operand.vmem [shape: f32[64,4], index: 0, kind: input, shape index: {}]
  %s1 = inlined_call_operand.vmem [shape: f32[128,2], index: 1, kind: input, shape index: {}]
  %s2 = inlined_call_operand.vmem [shape: f32[128,6], index: 2, kind: input, shape index: {}]
  %s3 = inlined_call_operand.hbm [shape: f32[1,6], index: 3, kind: input, shape index: {}]
  %s4 = inlined_call_operand.hbm [shape: f32[1,6], index: 4, kind: input, shape index: {}]
  %s5 = inlined_call_operand.hbm [shape: f32[6,6], index: 5, kind: input, shape index: {}]
  %s6 = inlined_call_operand.vmem [shape: bf16[36,128], index: 6, kind: input, shape index: {}]
  %s7 = inlined_call_operand.hbm [shape: f32[1,128], index: 7, kind: input, shape index: {}]
  %s8 = inlined_call_operand.vmem [shape: f32[128,6], index: 8, kind: output, shape index: {0}]
  %s9 = inlined_call_operand.vmem [shape: bf16[128,128], index: 9, kind: output, shape index: {1}]
  %s10 = inlined_call_operand.vmem [shape: f32[2,1,128], index: 10, kind: output, shape index: {2}]
  %s11 = inlined_call_operand.vmem [shape: f32[2,1,128], index: 11, kind: output, shape index: {3}]
  %12 = xla_tuple %s8, %s9, %s10, %s11
  %s13 = sld [smem:[#allocation0]]
  $region105: #{proflow_forward.4} parent=0
    _
  %s15 = ssub.s32 1, %s13
  %s16 = scalar_select 0, %s15, %s13
  $region1: #{proflow_forward.4} parent=0
    #allocation2 [shape = 'u8[512]{0}', space=vmem, size = 0x400, scoped, tag = 'input window, operand 3, single buffered']
    #allocation3 [shape = 's32[2]{0}', space=sflag, size = 0x8, scoped, tag = 'scoped memory for proflow_forward.4']
    #allocation4 [shape = 'u8[512]{0}', space=vmem, size = 0x400, scoped, tag = 'input window, operand 4, single buffered']
    #allocation5 [shape = 's32[1]{0}', space=sflag, size = 0x4, scoped, tag = 'scoped memory for proflow_forward.4']
    #allocation6 [shape = 'u8[4096]{0}', space=vmem, size = 0x1000, scoped, tag = 'input window, operand 5, single buffered']
    #allocation7 [shape = 'u8[512]{0}', space=vmem, size = 0x400, scoped, tag = 'input window, operand 7, single buffered']
    #allocation8 [shape = 's32[1]{0}', space=sflag, size = 0x4, scoped, tag = 'scoped memory for proflow_forward.4']
    %17 = vsyncpa [#allocation3], 0
    %18 = vsyncpa [#allocation5], 0
    %19 = vsyncpa [#allocation8], 0
    loop: start=0, step=1, limit=4
    $region2: #{proflow_forward.4} parent=1 // loop_pre_header
      _
    $region3: #{proflow_forward.4} parent=1 // loop_header
      %s21 = sphi 0, %s25
      %p22 = scmp.ge.s32.totalorder %s21, 4
      %s29 = sphi 0, %s29
      %s31 = sphi 0, %s29
      %s32 = sphi 0, %s31
      %s46 = sphi 0, %s32
      %s52 = sphi 0, %s54
      %s55 = sphi 0, %s52
      %s56 = sphi 0, %s55
      %s72 = sphi 0, %s56
      %s78 = sphi 0, %s80
      %s81 = sphi 0, %s78
      %s82 = sphi 0, %s81
      %s98 = sphi 0, %s82
      %s102 = sphi 0, %s102
      %s104 = sphi 0, %s102
      %s105 = sphi 0, %s104
      %s119 = sphi 0, %s105
      %s123 = sphi 0, %s123
      %s125 = sphi 0, %s123
      %s126 = sphi 0, %s125
      %s140 = sphi 0, %s126
      %s144 = sphi 0, %s144
      %s146 = sphi 0, %s144
      %s147 = sphi 0, %s146
      %s161 = sphi 0, %s147
      %s165 = sphi 0, %s165
      %s167 = sphi 0, %s165
      %s168 = sphi 0, %s167
      %s182 = sphi 0, %s168
      %s186 = sphi 0, %s186
      %s188 = sphi 0, %s186
      %s189 = sphi 0, %s188
      %s203 = sphi 0, %s189
      %s209 = sphi 0, %s211
      %s212 = sphi 0, %s209
      %s213 = sphi 0, %s212
      %s229 = sphi 0, %s213
      %s235 = sphi 0, %s237
      %s238 = sphi 0, %s235
      %s239 = sphi 0, %s238
      %s255 = sphi 0, %s239
      %s261 = sphi 0, %s263
      %s264 = sphi 0, %s261
      %s265 = sphi 0, %s264
      %s281 = sphi 0, %s265
      %s287 = sphi 0, %s289
      %s290 = sphi 0, %s287
      %s291 = sphi 0, %s290
      %s307 = sphi 0, %s291
    $region4: #{proflow_forward.4} parent=1 // loop_header_branch
      %24 = sbr.rel (%p22) target = $region8
    $region5: #{proflow_forward.4} parent=1 // loop_body
      %s26 = ssub.s32 %s21, 1
      %s27 = ssub.s32 %s21, 2
      %s28 = sadd.s32 %s21, 1
      %s30 = sadd.s32 %s29, 1
      %p33 = scmp.eq.s32.totalorder %s21, 1
      %p34 = scmp.ne.s32.totalorder %s29, %s31
      %p35 = scmp.eq.s32.totalorder %s21, 0
      %p36 = por %p34, %p35
      %p37 = scmp.ne.s32.totalorder %s29, %s31
      %p38 = scmp.eq.s32.totalorder %s26, 1
      %p39 = por %p37, %p38
      %p40 = scmp.ne.s32.totalorder %s31, %s32
      %p41 = scmp.eq.s32.totalorder %s26, 0
      %p42 = por %p40, %p41
      %p43 = scmp.ne.s32.totalorder %s31, %s32
      %p44 = scmp.eq.s32.totalorder %s27, 1
      %p45 = por %p43, %p44
      %p47 = scmp.ne.s32.totalorder %s32, %s46
      %p48 = scmp.eq.s32.totalorder %s27, 0
      %p49 = por %p47, %p48
      %s50 = ssub.s32 %s21, %s28
      %p51 = scmp.eq.s32.totalorder %s50, 0
      %s53 = sadd.s32 %s52, 1
      %s54 = scalar_select %p51, %s52, %s53
      %p57 = pneg %p51
      %p58 = scmp.eq.s32.totalorder %s21, 1
      %p59 = por %p57, %p58
      %p60 = scmp.ne.s32.totalorder %s52, %s55
      %p61 = scmp.eq.s32.totalorder %s21, 0
      %p62 = por %p60, %p61
      %p63 = scmp.ne.s32.totalorder %s52, %s55
      %p64 = scmp.eq.s32.totalorder %s26, 1
      %p65 = por %p63, %p64
      %p66 = scmp.ne.s32.totalorder %s55, %s56
      %p67 = scmp.eq.s32.totalorder %s26, 0
      %p68 = por %p66, %p67
      %p69 = scmp.ne.s32.totalorder %s55, %s56
      %p70 = scmp.eq.s32.totalorder %s27, 1
      %p71 = por %p69, %p70
      %p73 = scmp.ne.s32.totalorder %s56, %s72
      %p74 = scmp.eq.s32.totalorder %s27, 0
      %p75 = por %p73, %p74
      %s76 = ssub.s32 %s21, %s28
      %p77 = scmp.eq.s32.totalorder %s76, 0
      %s79 = sadd.s32 %s78, 1
      %s80 = scalar_select %p77, %s78, %s79
      %p83 = pneg %p77
      %p84 = scmp.eq.s32.totalorder %s21, 1
      %p85 = por %p83, %p84
      %p86 = scmp.ne.s32.totalorder %s78, %s81
      %p87 = scmp.eq.s32.totalorder %s21, 0
      %p88 = por %p86, %p87
      %p89 = scmp.ne.s32.totalorder %s78, %s81
      %p90 = scmp.eq.s32.totalorder %s26, 1
      %p91 = por %p89, %p90
      %p92 = scmp.ne.s32.totalorder %s81, %s82
      %p93 = scmp.eq.s32.totalorder %s26, 0
      %p94 = por %p92, %p93
      %p95 = scmp.ne.s32.totalorder %s81, %s82
      %p96 = scmp.eq.s32.totalorder %s27, 1
      %p97 = por %p95, %p96
      %p99 = scmp.ne.s32.totalorder %s82, %s98
      %p100 = scmp.eq.s32.totalorder %s27, 0
      %p101 = por %p99, %p100
      %s103 = sadd.s32 %s102, 1
      %p106 = scmp.eq.s32.totalorder %s21, 1
      %p107 = scmp.ne.s32.totalorder %s102, %s104
      %p108 = scmp.eq.s32.totalorder %s21, 0
      %p109 = por %p107, %p108
      %p110 = scmp.ne.s32.totalorder %s102, %s104
      %p111 = scmp.eq.s32.totalorder %s26, 1
      %p112 = por %p110, %p111
      %p113 = scmp.ne.s32.totalorder %s104, %s105
      %p114 = scmp.eq.s32.totalorder %s26, 0
      %p115 = por %p113, %p114
      %p116 = scmp.ne.s32.totalorder %s104, %s105
      %p117 = scmp.eq.s32.totalorder %s27, 1
      %p118 = por %p116, %p117
      %p120 = scmp.ne.s32.totalorder %s105, %s119
      %p121 = scmp.eq.s32.totalorder %s27, 0
      %p122 = por %p120, %p121
      %s124 = sadd.s32 %s123, 1
      %p127 = scmp.eq.s32.totalorder %s21, 1
      %p128 = scmp.ne.s32.totalorder %s123, %s125
      %p129 = scmp.eq.s32.totalorder %s21, 0
      %p130 = por %p128, %p129
      %p131 = scmp.ne.s32.totalorder %s123, %s125
      %p132 = scmp.eq.s32.totalorder %s26, 1
      %p133 = por %p131, %p132
      %p134 = scmp.ne.s32.totalorder %s125, %s126
      %p135 = scmp.eq.s32.totalorder %s26, 0
      %p136 = por %p134, %p135
      %p137 = scmp.ne.s32.totalorder %s125, %s126
      %p138 = scmp.eq.s32.totalorder %s27, 1
      %p139 = por %p137, %p138
      %p141 = scmp.ne.s32.totalorder %s126, %s140
      %p142 = scmp.eq.s32.totalorder %s27, 0
      %p143 = por %p141, %p142
      %s145 = sadd.s32 %s144, 1
      %p148 = scmp.eq.s32.totalorder %s21, 1
      %p149 = scmp.ne.s32.totalorder %s144, %s146
      %p150 = scmp.eq.s32.totalorder %s21, 0
      %p151 = por %p149, %p150
      %p152 = scmp.ne.s32.totalorder %s144, %s146
      %p153 = scmp.eq.s32.totalorder %s26, 1
      %p154 = por %p152, %p153
      %p155 = scmp.ne.s32.totalorder %s146, %s147
      %p156 = scmp.eq.s32.totalorder %s26, 0
      %p157 = por %p155, %p156
      %p158 = scmp.ne.s32.totalorder %s146, %s147
      %p159 = scmp.eq.s32.totalorder %s27, 1
      %p160 = por %p158, %p159
      %p162 = scmp.ne.s32.totalorder %s147, %s161
      %p163 = scmp.eq.s32.totalorder %s27, 0
      %p164 = por %p162, %p163
      %s166 = sadd.s32 %s165, 1
      %p169 = scmp.eq.s32.totalorder %s21, 1
      %p170 = scmp.ne.s32.totalorder %s165, %s167
      %p171 = scmp.eq.s32.totalorder %s21, 0
      %p172 = por %p170, %p171
      %p173 = scmp.ne.s32.totalorder %s165, %s167
      %p174 = scmp.eq.s32.totalorder %s26, 1
      %p175 = por %p173, %p174
      %p176 = scmp.ne.s32.totalorder %s167, %s168
      %p177 = scmp.eq.s32.totalorder %s26, 0
      %p178 = por %p176, %p177
      %p179 = scmp.ne.s32.totalorder %s167, %s168
      %p180 = scmp.eq.s32.totalorder %s27, 1
      %p181 = por %p179, %p180
      %p183 = scmp.ne.s32.totalorder %s168, %s182
      %p184 = scmp.eq.s32.totalorder %s27, 0
      %p185 = por %p183, %p184
      %s187 = sadd.s32 %s186, 1
      %p190 = scmp.eq.s32.totalorder %s21, 1
      %p191 = scmp.ne.s32.totalorder %s186, %s188
      %p192 = scmp.eq.s32.totalorder %s21, 0
      %p193 = por %p191, %p192
      %p194 = scmp.ne.s32.totalorder %s186, %s188
      %p195 = scmp.eq.s32.totalorder %s26, 1
      %p196 = por %p194, %p195
      %p197 = scmp.ne.s32.totalorder %s188, %s189
      %p198 = scmp.eq.s32.totalorder %s26, 0
      %p199 = por %p197, %p198
      %p200 = scmp.ne.s32.totalorder %s188, %s189
      %p201 = scmp.eq.s32.totalorder %s27, 1
      %p202 = por %p200, %p201
      %p204 = scmp.ne.s32.totalorder %s189, %s203
      %p205 = scmp.eq.s32.totalorder %s27, 0
      %p206 = por %p204, %p205
      %s207 = ssub.s32 %s21, %s28
      %p208 = scmp.eq.s32.totalorder %s207, 0
      %s210 = sadd.s32 %s209, 1
      %s211 = scalar_select %p208, %s209, %s210
      %p214 = pneg %p208
      %p215 = scmp.eq.s32.totalorder %s21, 1
      %p216 = por %p214, %p215
      %p217 = scmp.ne.s32.totalorder %s209, %s212
      %p218 = scmp.eq.s32.totalorder %s21, 0
      %p219 = por %p217, %p218
      %p220 = scmp.ne.s32.totalorder %s209, %s212
      %p221 = scmp.eq.s32.totalorder %s26, 1
      %p222 = por %p220, %p221
      %p223 = scmp.ne.s32.totalorder %s212, %s213
      %p224 = scmp.eq.s32.totalorder %s26, 0
      %p225 = por %p223, %p224
      %p226 = scmp.ne.s32.totalorder %s212, %s213
      %p227 = scmp.eq.s32.totalorder %s27, 1
      %p228 = por %p226, %p227
      %p230 = scmp.ne.s32.totalorder %s213, %s229
      %p231 = scmp.eq.s32.totalorder %s27, 0
      %p232 = por %p230, %p231
      %s233 = ssub.s32 %s21, %s28
      %p234 = scmp.eq.s32.totalorder %s233, 0
      %s236 = sadd.s32 %s235, 1
      %s237 = scalar_select %p234, %s235, %s236
      %p240 = pneg %p234
      %p241 = scmp.eq.s32.totalorder %s21, 1
      %p242 = por %p240, %p241
      %p243 = scmp.ne.s32.totalorder %s235, %s238
      %p244 = scmp.eq.s32.totalorder %s21, 0
      %p245 = por %p243, %p244
      %p246 = scmp.ne.s32.totalorder %s235, %s238
      %p247 = scmp.eq.s32.totalorder %s26, 1
      %p248 = por %p246, %p247
      %p249 = scmp.ne.s32.totalorder %s238, %s239
      %p250 = scmp.eq.s32.totalorder %s26, 0
      %p251 = por %p249, %p250
      %p252 = scmp.ne.s32.totalorder %s238, %s239
      %p253 = scmp.eq.s32.totalorder %s27, 1
      %p254 = por %p252, %p253
      %p256 = scmp.ne.s32.totalorder %s239, %s255
      %p257 = scmp.eq.s32.totalorder %s27, 0
      %p258 = por %p256, %p257
      %s259 = ssub.s32 %s21, %s28
      %p260 = scmp.eq.s32.totalorder %s259, 0
      %s262 = sadd.s32 %s261, 1
      %s263 = scalar_select %p260, %s261, %s262
      %p266 = pneg %p260
      %p267 = scmp.eq.s32.totalorder %s21, 1
      %p268 = por %p266, %p267
      %p269 = scmp.ne.s32.totalorder %s261, %s264
      %p270 = scmp.eq.s32.totalorder %s21, 0
      %p271 = por %p269, %p270
      %p272 = scmp.ne.s32.totalorder %s261, %s264
      %p273 = scmp.eq.s32.totalorder %s26, 1
      %p274 = por %p272, %p273
      %p275 = scmp.ne.s32.totalorder %s264, %s265
      %p276 = scmp.eq.s32.totalorder %s26, 0
      %p277 = por %p275, %p276
      %p278 = scmp.ne.s32.totalorder %s264, %s265
      %p279 = scmp.eq.s32.totalorder %s27, 1
      %p280 = por %p278, %p279
      %p282 = scmp.ne.s32.totalorder %s265, %s281
      %p283 = scmp.eq.s32.totalorder %s27, 0
      %p284 = por %p282, %p283
      %s285 = ssub.s32 %s21, %s28
      %p286 = scmp.eq.s32.totalorder %s285, 0
      %s288 = sadd.s32 %s287, 1
      %s289 = scalar_select %p286, %s287, %s288
      %p292 = pneg %p286
      %p293 = scmp.eq.s32.totalorder %s21, 1
      %p294 = por %p292, %p293
      %p295 = scmp.ne.s32.totalorder %s287, %s290
      %p296 = scmp.eq.s32.totalorder %s21, 0
      %p297 = por %p295, %p296
      %p298 = scmp.ne.s32.totalorder %s287, %s290
      %p299 = scmp.eq.s32.totalorder %s26, 1
      %p300 = por %p298, %p299
      %p301 = scmp.ne.s32.totalorder %s290, %s291
      %p302 = scmp.eq.s32.totalorder %s26, 0
      %p303 = por %p301, %p302
      %p304 = scmp.ne.s32.totalorder %s290, %s291
      %p305 = scmp.eq.s32.totalorder %s27, 1
      %p306 = por %p304, %p305
      %p308 = scmp.ne.s32.totalorder %s291, %s307
      %p309 = scmp.eq.s32.totalorder %s27, 0
      %p310 = por %p308, %p309
      %p311 = scmp.le.s32.totalorder 1, %s21
      %p312 = scmp.lt.s32.totalorder %s21, 3
      %p313 = pnand %p311, %p312
      %p314 = pneg %p313
      // Predicated region
      $region9: #{proflow_forward.4} parent=5 // pred_check
        _
      $region10: #{proflow_forward.4} parent=5 // pred_check_branch
        %316 = sbr.rel (%p313) target = $region12
      $region11: #{proflow_forward.4} parent=5 // pred_region
        %s317 = ssub.s32 %s21, 1
        // Predicated region
        $region13: #{proflow_forward.4} parent=11 // pred_check
          %p318 = pneg %p42
        $region14: #{proflow_forward.4} parent=11 // pred_check_branch
          %320 = sbr.rel (%p318) target = $region16
        $region15: #{proflow_forward.4} parent=11 // pred_region
          _
        $region16: #{proflow_forward.4} parent=11 // pred_fallthru
          _
        // Predicated region
        $region17: #{proflow_forward.4} parent=11 // pred_check
          %p321 = pneg %p115
        $region18: #{proflow_forward.4} parent=11 // pred_check_branch
          %323 = sbr.rel (%p321) target = $region20
        $region19: #{proflow_forward.4} parent=11 // pred_region
          %s325 = ssub.s32 16, 16
          %326 = vsyncadd [#allocation3], %s325
          %s328 = sshll.u32 [#allocation2], 4
          %s329 = int_to_ptr.vmem [resolvable:$true] %s328
          %331 = dma.hbm_to_vmem [thread:$0]  %s3, 16, %s329, [#allocation3]
        $region20: #{proflow_forward.4} parent=11 // pred_fallthru
          _
        // Predicated region
        $region21: #{proflow_forward.4} parent=11 // pred_check
          %p332 = pneg %p136
        $region22: #{proflow_forward.4} parent=11 // pred_check_branch
          %334 = sbr.rel (%p332) target = $region24
        $region23: #{proflow_forward.4} parent=11 // pred_region
          %s336 = ssub.s32 16, 16
          %337 = vsyncadd [#allocation5], %s336
          %s339 = sshll.u32 [#allocation4], 4
          %s340 = int_to_ptr.vmem [resolvable:$true] %s339
          %342 = dma.hbm_to_vmem [thread:$0]  %s4, 16, %s340, [#allocation5]
        $region24: #{proflow_forward.4} parent=11 // pred_fallthru
          _
        // Predicated region
        $region25: #{proflow_forward.4} parent=11 // pred_check
          %p343 = pneg %p157
        $region26: #{proflow_forward.4} parent=11 // pred_check_branch
          %345 = sbr.rel (%p343) target = $region28
        $region27: #{proflow_forward.4} parent=11 // pred_region
          %s347 = ssub.s32 128, 128
          %348 = vsyncadd [#allocation5], %s347
          %s350 = sshll.u32 [#allocation6], 4
          %s351 = int_to_ptr.vmem [resolvable:$true] %s350
          %353 = dma.hbm_to_vmem [thread:$0]  %s5, 128, %s351, [#allocation5]
        $region28: #{proflow_forward.4} parent=11 // pred_fallthru
          _
        // Predicated region
        $region29: #{proflow_forward.4} parent=11 // pred_check
          %p354 = pneg %p178
        $region30: #{proflow_forward.4} parent=11 // pred_check_branch
          %356 = sbr.rel (%p354) target = $region32
        $region31: #{proflow_forward.4} parent=11 // pred_region
          _
        $region32: #{proflow_forward.4} parent=11 // pred_fallthru
          _
        // Predicated region
        $region33: #{proflow_forward.4} parent=11 // pred_check
          %p357 = pneg %p199
        $region34: #{proflow_forward.4} parent=11 // pred_check_branch
          %359 = sbr.rel (%p357) target = $region36
        $region35: #{proflow_forward.4} parent=11 // pred_region
          %s361 = ssub.s32 16, 16
          %362 = vsyncadd [#allocation8], %s361
          %s364 = sshll.u32 [#allocation7], 4
          %s365 = int_to_ptr.vmem [resolvable:$true] %s364
          %367 = dma.hbm_to_vmem [thread:$0]  %s7, 16, %s365, [#allocation8]
        $region36: #{proflow_forward.4} parent=11 // pred_fallthru
          _
      $region12: #{proflow_forward.4} parent=5 // pred_fallthru
        _
      %p368 = scmp.lt.s32.totalorder %s21, 2
      // Predicated region
      $region37: #{proflow_forward.4} parent=5 // pred_check
        %p369 = pneg %p368
      $region38: #{proflow_forward.4} parent=5 // pred_check_branch
        %371 = sbr.rel (%p369) target = $region40
      $region39: #{proflow_forward.4} parent=5 // pred_region
        // Predicated region
        $region41: #{proflow_forward.4} parent=39 // pred_check
          %p372 = pneg %p62
        $region42: #{proflow_forward.4} parent=39 // pred_check_branch
          %374 = sbr.rel (%p372) target = $region44
        $region43: #{proflow_forward.4} parent=39 // pred_region
          %s375 = smul.u32 8, %s21
          %p376 = scmp.lt.s32.totalorder %s375, 15
          %s377 = scalar_select %p376, %s375, 15
          %s378 = smul.addr %s377, 8
          %s379 = scalar_lea.vmem %s1, %s378
          %s380 = smul.u32 8, %s21
        $region44: #{proflow_forward.4} parent=39 // pred_fallthru
          _
        // Predicated region
        $region45: #{proflow_forward.4} parent=39 // pred_check
          %p381 = pneg %p88
        $region46: #{proflow_forward.4} parent=39 // pred_check_branch
          %383 = sbr.rel (%p381) target = $region48
        $region47: #{proflow_forward.4} parent=39 // pred_region
          %s384 = smul.u32 8, %s21
          %p385 = scmp.lt.s32.totalorder %s384, 15
          %s386 = scalar_select %p385, %s384, 15
          %s387 = smul.addr %s386, 8
          %s388 = scalar_lea.vmem %s2, %s387
          %s389 = smul.u32 8, %s21
        $region48: #{proflow_forward.4} parent=39 // pred_fallthru
          _
      $region40: #{proflow_forward.4} parent=5 // pred_fallthru
        _
      %p390 = scmp.le.s32.totalorder 1, %s21
      %p391 = scmp.lt.s32.totalorder %s21, 3
      %p392 = pnand %p390, %p391
      %p393 = pneg %p392
      // Predicated region
      $region49: #{proflow_forward.4} parent=5 // pred_check
        _
      $region50: #{proflow_forward.4} parent=5 // pred_check_branch
        %395 = sbr.rel (%p392) target = $region52
      $region51: #{proflow_forward.4} parent=5 // pred_region
        %s396 = ssub.s32 %s21, 1
        // Predicated region
        $region53: #{proflow_forward.4} parent=51 // pred_check
          %p397 = pneg %p115
        $region54: #{proflow_forward.4} parent=51 // pred_check_branch
          %399 = sbr.rel (%p397) target = $region56
        $region55: #{proflow_forward.4} parent=51 // pred_region
          %400 = dma.done [#allocation3], 16
        $region56: #{proflow_forward.4} parent=51 // pred_fallthru
          _
        // Predicated region
        $region57: #{proflow_forward.4} parent=51 // pred_check
          %p401 = pneg %p136
        $region58: #{proflow_forward.4} parent=51 // pred_check_branch
          %403 = sbr.rel (%p401) target = $region60
        $region59: #{proflow_forward.4} parent=51 // pred_region
          %404 = dma.done [#allocation5], 16
        $region60: #{proflow_forward.4} parent=51 // pred_fallthru
          _
        // Predicated region
        $region61: #{proflow_forward.4} parent=51 // pred_check
          %p405 = pneg %p157
        $region62: #{proflow_forward.4} parent=51 // pred_check_branch
          %407 = sbr.rel (%p405) target = $region64
        $region63: #{proflow_forward.4} parent=51 // pred_region
          %408 = dma.done [#allocation5], 128
        $region64: #{proflow_forward.4} parent=51 // pred_fallthru
          _
        // Predicated region
        $region65: #{proflow_forward.4} parent=51 // pred_check
          %p409 = pneg %p199
        $region66: #{proflow_forward.4} parent=51 // pred_check_branch
          %411 = sbr.rel (%p409) target = $region68
        $region67: #{proflow_forward.4} parent=51 // pred_region
          %412 = dma.done [#allocation8], 16
        $region68: #{proflow_forward.4} parent=51 // pred_fallthru
          _
        %p413 = pneg %p42
        %p414 = pneg %p39
        %s415 = smul.u32 8, %s26
        %p416 = scmp.lt.s32.totalorder %s415, 15
        %s417 = scalar_select %p416, %s415, 15
        %s418 = smul.addr %s417, 8
        %s419 = scalar_lea.vmem %s1, %s418
        %p420 = pneg %p68
        %p421 = pneg %p65
        %s422 = smul.u32 8, %s26
        %p423 = scmp.lt.s32.totalorder %s422, 15
        %s424 = scalar_select %p423, %s422, 15
        %s425 = smul.addr %s424, 8
        %s426 = scalar_lea.vmem %s2, %s425
        %p427 = pneg %p94
        %p428 = pneg %p91
        %p429 = pneg %p115
        %p430 = pneg %p112
        %p431 = pneg %p136
        %p432 = pneg %p133
        %p433 = pneg %p157
        %p434 = pneg %p154
        %p435 = pneg %p178
        %p436 = pneg %p175
        %p437 = pneg %p199
        %p438 = pneg %p196
        %p439 = pneg %p225
        %p440 = pneg %p222
        %s441 = smul.u32 8, %s26
        %p442 = scmp.lt.s32.totalorder %s441, 15
        %s443 = scalar_select %p442, %s441, 15
        %s444 = smul.addr %s443, 8
        %s445 = scalar_lea.vmem %s8, %s444
        %p446 = pneg %p251
        %p447 = pneg %p248
        %s448 = smul.u32 8, %s26
        %p449 = scmp.lt.s32.totalorder %s448, 15
        %s450 = scalar_select %p449, %s448, 15
        %s451 = smul.addr %s450, 4
        %s452 = scalar_lea.vmem %s9, %s451
        %p453 = pneg %p277
        %p454 = pneg %p274
        %p455 = scmp.lt.s32.totalorder %s26, 1
        %s456 = scalar_select %p455, %s26, 1
        %s457 = scalar_lea.vmem %s10, %s456
        %p458 = pneg %p303
        %p459 = pneg %p300
        %p460 = scmp.lt.s32.totalorder %s26, 1
        %s461 = scalar_select %p460, %s26, 1
        %s462 = scalar_lea.vmem %s11, %s461
        %s463 = smul.u32 8, %s26
        %p464 = scmp.lt.s32.totalorder %s463, 15
        %s465 = scalar_select %p464, %s463, 15
        %s466 = smul.addr %s465, 8
        %s467 = scalar_lea.vmem %s1, %s466
        %s468 = smul.u32 8, %s26
        %s469 = smul.u32 8, %s26
        %p470 = scmp.lt.s32.totalorder %s469, 15
        %s471 = scalar_select %p470, %s469, 15
        %s472 = smul.addr %s471, 8
        %s473 = scalar_lea.vmem %s2, %s472
        %s474 = smul.u32 8, %s26
        %s475 = smul.u32 8, %s26
        %p476 = scmp.lt.s32.totalorder %s475, 15
        %s477 = scalar_select %p476, %s475, 15
        %s478 = smul.addr %s477, 8
        %s479 = scalar_lea.vmem %s8, %s478
        %s480 = smul.u32 8, %s26
        %s481 = smul.u32 8, %s26
        %p482 = scmp.lt.s32.totalorder %s481, 15
        %s483 = scalar_select %p482, %s481, 15
        %s484 = smul.addr %s483, 4
        %s485 = scalar_lea.vmem %s9, %s484
        %s486 = smul.u32 8, %s26
        %p487 = scmp.lt.s32.totalorder %s26, 1
        %s488 = scalar_select %p487, %s26, 1
        %s489 = scalar_lea.vmem %s10, %s488
        %p490 = scmp.lt.s32.totalorder %s26, 1
        %s491 = scalar_select %p490, %s26, 1
        %s492 = scalar_lea.vmem %s11, %s491
        %v494 = vld [vmem:[#allocation4] sm:$0x1]
        %v495 = vld [vmem:[%s473] sm:$0xff]
        %v496 = vld [vmem:[%s473 + $0x8] sm:$0xff]
        %v497 = vld [vmem:[%s473 + $0x10] sm:$0xff]
        %v498 = vld [vmem:[%s473 + $0x18] sm:$0xff]
        %v499 = vld [vmem:[%s473 + $0x20] sm:$0xff]
        %v500 = vld [vmem:[%s473 + $0x28] sm:$0xff]
        %v501 = vld [vmem:[%s473 + $0x30] sm:$0xff]
        %v502 = vld [vmem:[%s473 + $0x38] sm:$0xff]
        %v503 = vld [vmem:[#allocation2] sm:$0x1]
        %v505 = vlaneseq
        %v506 = vshrl.u32 %v505, 7
        %v507 = vsub.s32 0, %v506
        %v508 = vrot.slane %v503, %v507
        %v510 = vadd.f32 %v495, %v508
        %v511 = vadd.f32 %v496, %v508
        %v512 = vadd.f32 %v497, %v508
        %v513 = vadd.f32 %v498, %v508
        %v514 = vadd.f32 %v499, %v508
        %v515 = vadd.f32 %v500, %v508
        %v516 = vadd.f32 %v501, %v508
        %v517 = vadd.f32 %v502, %v508
        %v519 = vlaneseq
        %v520 = vshrl.u32 %v519, 7
        %v521 = vsub.s32 0, %v520
        %v522 = vrot.slane %v494, %v521
        %v524 = vmul.f32 %v522, %v510
        %v525 = vmul.f32 %v522, %v511
        %v526 = vmul.f32 %v522, %v512
        %v527 = vmul.f32 %v522, %v513
        %v528 = vmul.f32 %v522, %v514
        %v529 = vmul.f32 %v522, %v515
        %v530 = vmul.f32 %v522, %v516
        %v531 = vmul.f32 %v522, %v517
        %v532 = vld [vmem:[#allocation6] sm:$0x3f]
        %vm533 = vcmask 48128
        %v535 = vsel %vm533, %v524, 0
        %v538 = vsel %vm533, %v525, 0
        %v541 = vsel %vm533, %v526, 0
        %v544 = vsel %vm533, %v527, 0
        %v547 = vsel %vm533, %v528, 0
        %v550 = vsel %vm533, %v529, 0
        %v553 = vsel %vm533, %v530, 0
        %v556 = vsel %vm533, %v531, 0
        %vm558 = vcmask 1045504
        %v560 = vsel %vm558, %v532, 0
        %562 = vmatprep.subr.mxu0 0.0
        %563 = vmatpush1.msra.mxu0 0.0
        %564 = vmatprep.subr.mxu0 0.0
        %565 = vmatpush1.msra.mxu0 0.0
        %566 = vmatprep.subr.mxu0 0.0
        %567 = vmatpush1.msra.mxu0 0.0
        %568 = vmatprep.subr.mxu0 0.0
        %569 = vmatpush1.msra.mxu0 0.0
        %570 = vmatprep.subr.mxu0 0.0
        %571 = vmatpush1.msra.mxu0 0.0
        %572 = vmatprep.subr.mxu0 0.0
        %573 = vmatpush1.msra.mxu0 0.0
        %574 = vmatprep.subr.mxu0 0.0
        %575 = vmatpush1.msra.mxu0 0.0
        %576 = vmatprep.subr.mxu0 0.0
        %577 = vmatpush1.msra.mxu0 0.0
        %578 = vmatprep.subr.mxu0 0.0
        %579 = vmatpush1.msra.mxu0 0.0
        %580 = vmatprep.subr.mxu0 0.0
        %581 = vmatpush1.msra.mxu0 0.0
        %582 = vmatprep.subr.mxu0 0.0
        %583 = vmatpush1.msra.mxu0 0.0
        %584 = vmatprep.subr.mxu0 0.0
        %585 = vmatpush1.msra.mxu0 0.0
        %586 = vmatprep.subr.mxu0 0.0
        %587 = vmatpush1.msra.mxu0 0.0
        %588 = vmatprep.subr.mxu0 0.0
        %589 = vmatpush1.msra.mxu0 0.0
        %590 = vmatprep.subr.mxu0 0.0
        %591 = vmatpush1.msra.mxu0 0.0
        %592 = vmatprep.subr.mxu0 0.0
        %593 = vmatpush1.msra.mxu0 %v560
        %594 = vmatprep.subr.mxu0 0.0
        %595 = vmatpush2.msra.mxu0 0.0
        %596 = vmatprep.subr.mxu0 0.0
        %597 = vmatpush2.msra.mxu0 0.0
        %598 = vmatprep.subr.mxu0 0.0
        %599 = vmatpush2.msra.mxu0 0.0
        %600 = vmatprep.subr.mxu0 0.0
        %601 = vmatpush2.msra.mxu0 0.0
        %602 = vmatprep.subr.mxu0 0.0
        %603 = vmatpush2.msra.mxu0 0.0
        %604 = vmatprep.subr.mxu0 0.0
        %605 = vmatpush2.msra.mxu0 0.0
        %606 = vmatprep.subr.mxu0 0.0
        %607 = vmatpush2.msra.mxu0 0.0
        %608 = vmatprep.subr.mxu0 0.0
        %609 = vmatpush2.msra.mxu0 0.0
        %610 = vmatprep.subr.mxu0 0.0
        %611 = vmatpush2.msra.mxu0 0.0
        %612 = vmatprep.subr.mxu0 0.0
        %613 = vmatpush2.msra.mxu0 0.0
        %614 = vmatprep.subr.mxu0 0.0
        %615 = vmatpush2.msra.mxu0 0.0
        %616 = vmatprep.subr.mxu0 0.0
        %617 = vmatpush2.msra.mxu0 0.0
        %618 = vmatprep.subr.mxu0 0.0
        %619 = vmatpush2.msra.mxu0 0.0
        %620 = vmatprep.subr.mxu0 0.0
        %621 = vmatpush2.msra.mxu0 0.0
        %622 = vmatprep.subr.mxu0 0.0
        %623 = vmatpush2.msra.mxu0 0.0
        %624 = vmatprep.subr.mxu0 0.0
        %625 = vmatpush2.msra.mxu0 0.0
        %626 = vmatprep.mubr.f32.mxu0 0.0
        %627 = vmatmul.mubr.f32.gmra.mxu0 %v535
        %v628 = vpop.f32.mrf.mxu0
        %v629 = vadd.f32 0.0, %v628
        %v630 = vpop.f32.mrf.mxu0
        %631 = vmatprep.mubr.f32.mxu0 0.0
        %632 = vmatmul.mubr.f32.gmra.mxu0 %v538
        %v633 = vpop.f32.mrf.mxu0
        %v634 = vadd.f32 0.0, %v633
        %v635 = vpop.f32.mrf.mxu0
        %636 = vmatprep.mubr.f32.mxu0 0.0
        %637 = vmatmul.mubr.f32.gmra.mxu0 %v541
        %v638 = vpop.f32.mrf.mxu0
        %v639 = vadd.f32 0.0, %v638
        %v640 = vpop.f32.mrf.mxu0
        %641 = vmatprep.mubr.f32.mxu0 0.0
        %642 = vmatmul.mubr.f32.gmra.mxu0 %v544
        %v643 = vpop.f32.mrf.mxu0
        %v644 = vadd.f32 0.0, %v643
        %v645 = vpop.f32.mrf.mxu0
        %646 = vmatprep.mubr.f32.mxu0 0.0
        %647 = vmatmul.mubr.f32.gmra.mxu0 %v547
        %v648 = vpop.f32.mrf.mxu0
        %v649 = vadd.f32 0.0, %v648
        %v650 = vpop.f32.mrf.mxu0
        %651 = vmatprep.mubr.f32.mxu0 0.0
        %652 = vmatmul.mubr.f32.gmra.mxu0 %v550
        %v653 = vpop.f32.mrf.mxu0
        %v654 = vadd.f32 0.0, %v653
        %v655 = vpop.f32.mrf.mxu0
        %656 = vmatprep.mubr.f32.mxu0 0.0
        %657 = vmatmul.mubr.f32.gmra.mxu0 %v553
        %v658 = vpop.f32.mrf.mxu0
        %v659 = vadd.f32 0.0, %v658
        %v660 = vpop.f32.mrf.mxu0
        %661 = vmatprep.mubr.f32.mxu0 0.0
        %662 = vmatmul.mubr.f32.gmra.mxu0 %v556
        %v663 = vpop.f32.mrf.mxu0
        %v664 = vadd.f32 0.0, %v663
        %v665 = vpop.f32.mrf.mxu0
        %666 = vdwg.mxu0
        %667 = vst.msk [vmem:[%s479] sm:$0xff] %vm533, %v629
        %668 = vst.msk [vmem:[%s479 + $0x8] sm:$0xff] %vm533, %v634
        %669 = vst.msk [vmem:[%s479 + $0x10] sm:$0xff] %vm533, %v639
        %670 = vst.msk [vmem:[%s479 + $0x18] sm:$0xff] %vm533, %v644
        %671 = vst.msk [vmem:[%s479 + $0x20] sm:$0xff] %vm533, %v649
        %672 = vst.msk [vmem:[%s479 + $0x28] sm:$0xff] %vm533, %v654
        %673 = vst.msk [vmem:[%s479 + $0x30] sm:$0xff] %vm533, %v659
        %674 = vst.msk [vmem:[%s479 + $0x38] sm:$0xff] %vm533, %v664
        %v675 = vld [vmem:[%s467] sm:$0xff]
        %v676 = vld [vmem:[%s467 + $0x8] sm:$0xff]
        %v677 = vld [vmem:[%s467 + $0x10] sm:$0xff]
        %v678 = vld [vmem:[%s467 + $0x18] sm:$0xff]
        %v679 = vld [vmem:[%s467 + $0x20] sm:$0xff]
        %v680 = vld [vmem:[%s467 + $0x28] sm:$0xff]
        %v681 = vld [vmem:[%s467 + $0x30] sm:$0xff]
        %v682 = vld [vmem:[%s467 + $0x38] sm:$0xff]
        %691 = vrot.lane.b32.xlu0 %v629, 2
        %v692 = vpop.permute.xlu0 %691
        %693 = vrot.lane.b32.xlu0 %v634, 2
        %v694 = vpop.permute.xlu0 %693
        %695 = vrot.lane.b32.xlu0 %v639, 2
        %v696 = vpop.permute.xlu0 %695
        %697 = vrot.lane.b32.xlu0 %v644, 2
        %v698 = vpop.permute.xlu0 %697
        %699 = vrot.lane.b32.xlu0 %v649, 2
        %v700 = vpop.permute.xlu0 %699
        %701 = vrot.lane.b32.xlu0 %v654, 2
        %v702 = vpop.permute.xlu0 %701
        %703 = vrot.lane.b32.xlu0 %v659, 2
        %v704 = vpop.permute.xlu0 %703
        %705 = vrot.lane.b32.xlu0 %v664, 2
        %v706 = vpop.permute.xlu0 %705
        %vm715 = vcmask 15360
        %v716 = vsel %vm715, %v675, %v692
        %v717 = vsel %vm715, %v676, %v694
        %v718 = vsel %vm715, %v677, %v696
        %v719 = vsel %vm715, %v678, %v698
        %v720 = vsel %vm715, %v679, %v700
        %v721 = vsel %vm715, %v680, %v702
        %v722 = vsel %vm715, %v681, %v704
        %v723 = vsel %vm715, %v682, %v706
        %v724 = vld [vmem:[%s0] sm:$0xff]
        %v725 = vld [vmem:[%s0 + $0x8] sm:$0xff]
        %v726 = vld [vmem:[%s0 + $0x10] sm:$0xff]
        %v727 = vld [vmem:[%s0 + $0x18] sm:$0xff]
        %v728 = vld [vmem:[%s0 + $0x20] sm:$0xff]
        %v729 = vld [vmem:[%s0 + $0x28] sm:$0xff]
        %v730 = vld [vmem:[%s0 + $0x30] sm:$0xff]
        %v731 = vld [vmem:[%s0 + $0x38] sm:$0xff]
        %v732 = vrot.slane %v716, 7
        %v733 = vrot.slane %v717, 7
        %v734 = vrot.slane %v718, 7
        %v735 = vrot.slane %v719, 7
        %v736 = vrot.slane %v720, 7
        %v737 = vrot.slane %v721, 7
        %v738 = vrot.slane %v722, 7
        %v739 = vrot.slane %v723, 7
        %v740 = vlaneseq
        %v741 = vshrl.u32 %v740, 7
        %vm742 = vcmp.lt.s32.totalorder %v741, 1
        %v743 = vsel %vm742, %v738, %v739
        %v744 = vsel %vm742, %v737, %v738
        %v745 = vsel %vm742, %v736, %v737
        %v746 = vsel %vm742, %v735, %v736
        %v747 = vsel %vm742, %v734, %v735
        %v748 = vsel %vm742, %v733, %v734
        %v749 = vsel %vm742, %v732, %v733
        %v750 = vsel %vm742, %v739, %v732
        %752 = vset.pattern.permute.xlu0 2
        %753 = vperm.xlu0 %752, %v724
        %v754 = vpop.permute.xlu0 %753
        %757 = vset.pattern.permute.xlu0 2
        %758 = vperm.xlu0 %757, %v725
        %v759 = vpop.permute.xlu0 %758
        %762 = vset.pattern.permute.xlu0 2
        %763 = vperm.xlu0 %762, %v726
        %v764 = vpop.permute.xlu0 %763
        %767 = vset.pattern.permute.xlu0 2
        %768 = vperm.xlu0 %767, %v727
        %v769 = vpop.permute.xlu0 %768
        %772 = vset.pattern.permute.xlu0 2
        %773 = vperm.xlu0 %772, %v728
        %v774 = vpop.permute.xlu0 %773
        %777 = vset.pattern.permute.xlu0 2
        %778 = vperm.xlu0 %777, %v729
        %v779 = vpop.permute.xlu0 %778
        %782 = vset.pattern.permute.xlu0 2
        %783 = vperm.xlu0 %782, %v730
        %v784 = vpop.permute.xlu0 %783
        %787 = vset.pattern.permute.xlu0 2
        %788 = vperm.xlu0 %787, %v731
        %v789 = vpop.permute.xlu0 %788
        %v791 = vmul.f32 %v750, %v754
        %v792 = vmul.f32 %v749, %v759
        %v793 = vmul.f32 %v748, %v764
        %v794 = vmul.f32 %v747, %v769
        %v795 = vmul.f32 %v746, %v774
        %v796 = vmul.f32 %v745, %v779
        %v797 = vmul.f32 %v744, %v784
        %v798 = vmul.f32 %v743, %v789
        %v799 = vrot.slane %v716, 1
        %v800 = vrot.slane %v717, 1
        %v801 = vrot.slane %v718, 1
        %v802 = vrot.slane %v719, 1
        %v803 = vrot.slane %v720, 1
        %v804 = vrot.slane %v721, 1
        %v805 = vrot.slane %v722, 1
        %v806 = vrot.slane %v723, 1
        %vm807 = vcmp.lt.s32.totalorder %v741, 7
        %v808 = vsel %vm807, %v805, %v806
        %v809 = vsel %vm807, %v804, %v805
        %v810 = vsel %vm807, %v803, %v804
        %v811 = vsel %vm807, %v802, %v803
        %v812 = vsel %vm807, %v801, %v802
        %v813 = vsel %vm807, %v800, %v801
        %v814 = vsel %vm807, %v799, %v800
        %v815 = vsel %vm807, %v806, %v799
        %816 = vset.pattern.permute.xlu0 3
        %817 = vperm.xlu0 %816, %v724
        %v818 = vpop.permute.xlu0 %817
        %820 = vset.pattern.permute.xlu0 3
        %821 = vperm.xlu0 %820, %v725
        %v822 = vpop.permute.xlu0 %821
        %824 = vset.pattern.permute.xlu0 3
        %825 = vperm.xlu0 %824, %v726
        %v826 = vpop.permute.xlu0 %825
        %828 = vset.pattern.permute.xlu0 3
        %829 = vperm.xlu0 %828, %v727
        %v830 = vpop.permute.xlu0 %829
        %832 = vset.pattern.permute.xlu0 3
        %833 = vperm.xlu0 %832, %v728
        %v834 = vpop.permute.xlu0 %833
        %836 = vset.pattern.permute.xlu0 3
        %837 = vperm.xlu0 %836, %v729
        %v838 = vpop.permute.xlu0 %837
        %840 = vset.pattern.permute.xlu0 3
        %841 = vperm.xlu0 %840, %v730
        %v842 = vpop.permute.xlu0 %841
        %844 = vset.pattern.permute.xlu0 3
        %845 = vperm.xlu0 %844, %v731
        %v846 = vpop.permute.xlu0 %845
        %v848 = vmul.f32 %v814, %v818
        %v849 = vmul.f32 %v813, %v822
        %v850 = vmul.f32 %v812, %v826
        %v851 = vmul.f32 %v811, %v830
        %v852 = vmul.f32 %v810, %v834
        %v853 = vmul.f32 %v809, %v838
        %v854 = vmul.f32 %v808, %v842
        %v855 = vmul.f32 %v815, %v846
        %864 = vrot.lane.b32.xlu0 %v716, 4
        %v865 = vpop.permute.xlu0 %864
        %866 = vrot.lane.b32.xlu0 %v717, 4
        %v867 = vpop.permute.xlu0 %866
        %868 = vrot.lane.b32.xlu0 %v718, 4
        %v869 = vpop.permute.xlu0 %868
        %870 = vrot.lane.b32.xlu0 %v719, 4
        %v871 = vpop.permute.xlu0 %870
        %872 = vrot.lane.b32.xlu0 %v720, 4
        %v873 = vpop.permute.xlu0 %872
        %874 = vrot.lane.b32.xlu0 %v721, 4
        %v875 = vpop.permute.xlu0 %874
        %876 = vrot.lane.b32.xlu0 %v722, 4
        %v877 = vpop.permute.xlu0 %876
        %878 = vrot.lane.b32.xlu0 %v723, 4
        %v879 = vpop.permute.xlu0 %878
        %896 = vrot.lane.b32.xlu0 %v848, 8
        %v897 = vpop.permute.xlu0 %896
        %898 = vrot.lane.b32.xlu0 %v849, 8
        %v899 = vpop.permute.xlu0 %898
        %900 = vrot.lane.b32.xlu0 %v850, 8
        %v901 = vpop.permute.xlu0 %900
        %902 = vrot.lane.b32.xlu0 %v851, 8
        %v903 = vpop.permute.xlu0 %902
        %904 = vrot.lane.b32.xlu0 %v852, 8
        %v905 = vpop.permute.xlu0 %904
        %906 = vrot.lane.b32.xlu0 %v853, 8
        %v907 = vpop.permute.xlu0 %906
        %908 = vrot.lane.b32.xlu0 %v854, 8
        %v909 = vpop.permute.xlu0 %908
        %910 = vrot.lane.b32.xlu0 %v855, 8
        %v911 = vpop.permute.xlu0 %910
        %vm920 = vcmask 31744
        %v921 = vsel %vm920, %v791, %v865
        %v922 = vsel %vm920, %v792, %v867
        %v923 = vsel %vm920, %v793, %v869
        %v924 = vsel %vm920, %v794, %v871
        %v925 = vsel %vm920, %v795, %v873
        %v926 = vsel %vm920, %v796, %v875
        %v927 = vsel %vm920, %v797, %v877
        %v928 = vsel %vm920, %v798, %v879
        %vm929 = vcmask 64512
        %v930 = vsel %vm929, %v921, %v897
        %v931 = vsel %vm929, %v922, %v899
        %v932 = vsel %vm929, %v923, %v901
        %v933 = vsel %vm929, %v924, %v903
        %v934 = vsel %vm929, %v925, %v905
        %v935 = vsel %vm929, %v926, %v907
        %v936 = vsel %vm929, %v927, %v909
        %v937 = vsel %vm929, %v928, %v911
        %938 = vset.pattern.permute.xlu0 0
        %939 = vperm.xlu0 %938, %v724
        %v940 = vpop.permute.xlu0 %939
        %942 = vset.pattern.permute.xlu0 0
        %943 = vperm.xlu0 %942, %v725
        %v944 = vpop.permute.xlu0 %943
        %946 = vset.pattern.permute.xlu0 0
        %947 = vperm.xlu0 %946, %v726
        %v948 = vpop.permute.xlu0 %947
        %950 = vset.pattern.permute.xlu0 0
        %951 = vperm.xlu0 %950, %v727
        %v952 = vpop.permute.xlu0 %951
        %954 = vset.pattern.permute.xlu0 0
        %955 = vperm.xlu0 %954, %v728
        %v956 = vpop.permute.xlu0 %955
        %958 = vset.pattern.permute.xlu0 0
        %959 = vperm.xlu0 %958, %v729
        %v960 = vpop.permute.xlu0 %959
        %962 = vset.pattern.permute.xlu0 0
        %963 = vperm.xlu0 %962, %v730
        %v964 = vpop.permute.xlu0 %963
        %966 = vset.pattern.permute.xlu0 0
        %967 = vperm.xlu0 %966, %v731
        %v968 = vpop.permute.xlu0 %967
        %v970 = vmul.f32 %v937, %v940
        %v971 = vmul.f32 %v930, %v944
        %v972 = vmul.f32 %v931, %v948
        %v973 = vmul.f32 %v932, %v952
        %v974 = vmul.f32 %v933, %v956
        %v975 = vmul.f32 %v934, %v960
        %v976 = vmul.f32 %v935, %v964
        %v977 = vmul.f32 %v936, %v968
        %v978 = vpack.c.bf16 %v971, %v970
        %v979 = vpack.c.bf16 %v973, %v972
        %v980 = vpack.c.bf16 %v975, %v974
        %v981 = vpack.c.bf16 %v977, %v976
        %v982 = vpack.c.bf16 %v931, %v930
        %v983 = vpack.c.bf16 %v933, %v932
        %v984 = vpack.c.bf16 %v935, %v934
        %v985 = vpack.c.bf16 %v937, %v936
        %986 = vset.pattern.permute.xlu0 1
        %987 = vperm.xlu0 %986, %v724
        %v988 = vpop.permute.xlu0 %987
        %990 = vset.pattern.permute.xlu0 1
        %991 = vperm.xlu0 %990, %v725
        %v992 = vpop.permute.xlu0 %991
        %994 = vset.pattern.permute.xlu0 1
        %995 = vperm.xlu0 %994, %v726
        %v996 = vpop.permute.xlu0 %995
        %998 = vset.pattern.permute.xlu0 1
        %999 = vperm.xlu0 %998, %v727
        %v1000 = vpop.permute.xlu0 %999
        %1002 = vset.pattern.permute.xlu0 1
        %1003 = vperm.xlu0 %1002, %v728
        %v1004 = vpop.permute.xlu0 %1003
        %1006 = vset.pattern.permute.xlu0 1
        %1007 = vperm.xlu0 %1006, %v729
        %v1008 = vpop.permute.xlu0 %1007
        %1010 = vset.pattern.permute.xlu0 1
        %1011 = vperm.xlu0 %1010, %v730
        %v1012 = vpop.permute.xlu0 %1011
        %1014 = vset.pattern.permute.xlu0 1
        %1015 = vperm.xlu0 %1014, %v731
        %v1016 = vpop.permute.xlu0 %1015
        %v1018 = vmul.f32 %v931, %v988
        %v1019 = vmul.f32 %v932, %v992
        %v1020 = vmul.f32 %v933, %v996
        %v1021 = vmul.f32 %v934, %v1000
        %v1022 = vmul.f32 %v935, %v1004
        %v1023 = vmul.f32 %v936, %v1008
        %v1024 = vmul.f32 %v937, %v1012
        %v1025 = vmul.f32 %v930, %v1016
        %v1026 = vpack.c.bf16 %v1019, %v1018
        %v1027 = vpack.c.bf16 %v1021, %v1020
        %v1028 = vpack.c.bf16 %v1023, %v1022
        %v1029 = vpack.c.bf16 %v1025, %v1024
        %1034 = vrot.lane.b32.xlu0 %v982, 12
        %v1035 = vpop.permute.xlu0 %1034
        %1036 = vrot.lane.b32.xlu0 %v983, 12
        %v1037 = vpop.permute.xlu0 %1036
        %1038 = vrot.lane.b32.xlu0 %v984, 12
        %v1039 = vpop.permute.xlu0 %1038
        %1040 = vrot.lane.b32.xlu0 %v985, 12
        %v1041 = vpop.permute.xlu0 %1040
        %1046 = vrot.lane.b32.xlu0 %v1026, 24
        %v1047 = vpop.permute.xlu0 %1046
        %1048 = vrot.lane.b32.xlu0 %v1027, 24
        %v1049 = vpop.permute.xlu0 %1048
        %1050 = vrot.lane.b32.xlu0 %v1028, 24
        %v1051 = vpop.permute.xlu0 %1050
        %1052 = vrot.lane.b32.xlu0 %v1029, 24
        %v1053 = vpop.permute.xlu0 %1052
        %vm1054 = vcmask 97280
        %v1057 = vsel %vm1054, %v978, %v1035
        %v1060 = vsel %vm1054, %v979, %v1037
        %v1063 = vsel %vm1054, %v980, %v1039
        %v1066 = vsel %vm1054, %v981, %v1041
        %vm1067 = vcmask 195584
        %v1069 = vsel %vm1067, %v1057, %v1047
        %v1071 = vsel %vm1067, %v1060, %v1049
        %v1073 = vsel %vm1067, %v1063, %v1051
        %v1075 = vsel %vm1067, %v1066, %v1053
        %v1076 = vld [vmem:[%s6] sm:$0xf]
        %v1077 = vld [vmem:[%s6 + $0x4] sm:$0xf]
        %v1078 = vld [vmem:[%s6 + $0x8] sm:$0xf]
        %v1079 = vld [vmem:[%s6 + $0xc] sm:$0xf]
        %v1080 = vld [vmem:[%s6 + $0x10] sm:$0x3]
        %v1081 = vld [vmem:[#allocation7] sm:$0x1]
        %v1083 = vlaneseq
        %v1084 = vshrl.u32 %v1083, 7
        %v1085 = vsub.s32 0, %v1084
        %v1086 = vrot.slane %v1081, %v1085
        %v1093 = vunpack.c.l.b16 %v1076
        %v1094 = vunpack.c.l.b16 %v1077
        %v1095 = vunpack.c.l.b16 %v1078
        %v1096 = vunpack.c.l.b16 %v1079
        %v1097 = vunpack.c.l.b16 %v1080
        %v1098 = vpack.c.b16 %v1094, %v1093
        %v1099 = vpack.c.b16 %v1096, %v1095
        %v1100 = vpack.c.b16 %v1097, %v1097
        %vm1103 = vcmask 293888
        %v1104 = vsel %vm1103, %v1069, 0
        %v1106 = vsel %vm1103, %v1071, 0
        %v1108 = vsel %vm1103, %v1073, 0
        %v1110 = vsel %vm1103, %v1075, 0
        %vm1112 = vcmask 1041408
        %v1114 = vsel %vm1112, %v1100, 0
        %1116 = vmatprep.subr.bf16.mxu0 0
        %1117 = vmatpush1.bf16.msra.mxu0 0
        %1118 = vmatprep.subr.bf16.mxu0 0
        %1119 = vmatpush1.bf16.msra.mxu0 0
        %1120 = vmatprep.subr.bf16.mxu0 0
        %1121 = vmatpush1.bf16.msra.mxu0 0
        %1122 = vmatprep.subr.bf16.mxu0 0
        %1123 = vmatpush1.bf16.msra.mxu0 0
        %1124 = vmatprep.subr.bf16.mxu0 0
        %1125 = vmatpush1.bf16.msra.mxu0 0
        %1126 = vmatprep.subr.bf16.mxu0 0
        %1127 = vmatpush1.bf16.msra.mxu0 %v1114
        %1128 = vmatprep.subr.bf16.mxu0 0
        %1129 = vmatpush1.bf16.msra.mxu0 %v1099
        %1130 = vmatprep.subr.bf16.mxu0 0
        %1131 = vmatpush1.bf16.msra.mxu0 %v1098
        %1132 = vmatprep.subr.bf16.mxu0 0
        %1133 = vmatpush2.bf16.msra.mxu0 0
        %1134 = vmatprep.subr.bf16.mxu0 0
        %1135 = vmatpush2.bf16.msra.mxu0 0
        %1136 = vmatprep.subr.bf16.mxu0 0
        %1137 = vmatpush2.bf16.msra.mxu0 0
        %1138 = vmatprep.subr.bf16.mxu0 0
        %1139 = vmatpush2.bf16.msra.mxu0 0
        %1140 = vmatprep.subr.bf16.mxu0 0
        %1141 = vmatpush2.bf16.msra.mxu0 0
        %1142 = vmatprep.subr.bf16.mxu0 0
        %1143 = vmatpush2.bf16.msra.mxu0 0
        %1144 = vmatprep.subr.bf16.mxu0 0
        %1145 = vmatpush2.bf16.msra.mxu0 0
        %1146 = vmatprep.subr.bf16.mxu0 0
        %1147 = vmatpush2.bf16.msra.mxu0 0
        %1148 = vmatprep.mubr.bf16.mxu0 0
        %1149 = vmatmul.mubr.bf16.gmra.mxu0 %v1104
        %v1150 = vpop.f32.mrf.mxu0
        %v1151 = vadd.f32 %v1086, %v1150
        %v1152 = vpop.f32.mrf.mxu0
        %v1153 = vpop.f32.mrf.mxu0
        %v1154 = vadd.f32 %v1086, %v1153
        %v1155 = vpop.f32.mrf.mxu0
        %1156 = vmatprep.mubr.bf16.mxu0 0
        %1157 = vmatmul.mubr.bf16.gmra.mxu0 %v1106
        %v1158 = vpop.f32.mrf.mxu0
        %v1159 = vadd.f32 %v1086, %v1158
        %v1160 = vpop.f32.mrf.mxu0
        %v1161 = vpop.f32.mrf.mxu0
        %v1162 = vadd.f32 %v1086, %v1161
        %v1163 = vpop.f32.mrf.mxu0
        %1164 = vmatprep.mubr.bf16.mxu0 0
        %1165 = vmatmul.mubr.bf16.gmra.mxu0 %v1108
        %v1166 = vpop.f32.mrf.mxu0
        %v1167 = vadd.f32 %v1086, %v1166
        %v1168 = vpop.f32.mrf.mxu0
        %v1169 = vpop.f32.mrf.mxu0
        %v1170 = vadd.f32 %v1086, %v1169
        %v1171 = vpop.f32.mrf.mxu0
        %1172 = vmatprep.mubr.bf16.mxu0 0
        %1173 = vmatmul.mubr.bf16.gmra.mxu0 %v1110
        %v1174 = vpop.f32.mrf.mxu0
        %v1175 = vadd.f32 %v1086, %v1174
        %v1176 = vpop.f32.mrf.mxu0
        %v1177 = vpop.f32.mrf.mxu0
        %v1178 = vadd.f32 %v1086, %v1177
        %v1179 = vpop.f32.mrf.mxu0
        %1180 = vdwg.mxu0
        %v1181 = vadd.f32 %v1151, %v1154
        %v1182 = vadd.f32 %v1181, %v1159
        %v1183 = vadd.f32 %v1182, %v1162
        %v1184 = vadd.f32 %v1183, %v1167
        %v1185 = vadd.f32 %v1184, %v1170
        %v1186 = vadd.f32 %v1185, %v1175
        %v1187 = vadd.f32 %v1186, %v1178
        %v1188 = vrot.slane %v1187, 4
        %v1189 = vadd.f32 %v1187, %v1188
        %v1190 = vrot.slane %v1189, 2
        %v1191 = vadd.f32 %v1189, %v1190
        %v1192 = vrot.slane %v1191, 1
        %v1193 = vadd.f32 %v1191, %v1192
        %v1194 = vmul.f32 %v1151, %v1151
        %v1195 = vmul.f32 %v1154, %v1154
        %v1196 = vmul.f32 %v1159, %v1159
        %v1197 = vmul.f32 %v1162, %v1162
        %v1198 = vmul.f32 %v1167, %v1167
        %v1199 = vmul.f32 %v1170, %v1170
        %v1200 = vmul.f32 %v1175, %v1175
        %v1201 = vmul.f32 %v1178, %v1178
        %v1202 = vadd.f32 %v1194, %v1195
        %v1203 = vadd.f32 %v1202, %v1196
        %v1204 = vadd.f32 %v1203, %v1197
        %v1205 = vadd.f32 %v1204, %v1198
        %v1206 = vadd.f32 %v1205, %v1199
        %v1207 = vadd.f32 %v1206, %v1200
        %v1208 = vadd.f32 %v1207, %v1201
        %v1209 = vrot.slane %v1208, 4
        %v1210 = vadd.f32 %v1208, %v1209
        %v1211 = vrot.slane %v1210, 2
        %v1212 = vadd.f32 %v1210, %v1211
        %v1213 = vrot.slane %v1212, 1
        %v1214 = vadd.f32 %v1212, %v1213
        %1215 = vst [vmem:[%s489] sm:$0x1] %v1193
        %1216 = vst [vmem:[%s492] sm:$0x1] %v1214
        %v1217 = vpack.c.bf16 %v1154, %v1151
        %v1218 = vpack.c.bf16 %v1162, %v1159
        %v1219 = vpack.c.bf16 %v1170, %v1167
        %v1220 = vpack.c.bf16 %v1178, %v1175
        %v1225 = vunpack.c.l.b16 %v1217
        %v1226 = vunpack.c.h.b16 %v1217
        %v1227 = vunpack.c.l.b16 %v1218
        %v1228 = vunpack.c.h.b16 %v1218
        %v1229 = vunpack.c.l.b16 %v1219
        %v1230 = vunpack.c.h.b16 %v1219
        %v1231 = vunpack.c.l.b16 %v1220
        %v1232 = vunpack.c.h.b16 %v1220
        %v1233 = vpack.c.b16 %v1225, %v1225
        %v1234 = vpack.c.b16 %v1226, %v1226
        %v1235 = vpack.c.b16 %v1227, %v1227
        %v1236 = vpack.c.b16 %v1228, %v1228
        %v1237 = vpack.c.b16 %v1229, %v1229
        %v1238 = vpack.c.b16 %v1230, %v1230
        %v1239 = vpack.c.b16 %v1231, %v1231
        %v1240 = vpack.c.b16 %v1232, %v1232
        %1249 = vst [vmem:[%s485] sm:$0xf] %v1233
        %1250 = vst [vmem:[%s485 + $0x4] sm:$0xf] %v1234
        %1251 = vst [vmem:[%s485 + $0x8] sm:$0xf] %v1235
        %1252 = vst [vmem:[%s485 + $0xc] sm:$0xf] %v1236
        %1253 = vst [vmem:[%s485 + $0x10] sm:$0xf] %v1237
        %1254 = vst [vmem:[%s485 + $0x14] sm:$0xf] %v1238
        %1255 = vst [vmem:[%s485 + $0x18] sm:$0xf] %v1239
        %1256 = vst [vmem:[%s485 + $0x1c] sm:$0xf] %v1240
        %s1257 = smul.u32 8, %s26
        %p1258 = scmp.lt.s32.totalorder %s1257, 15
        %s1259 = scalar_select %p1258, %s1257, 15
        %s1260 = smul.addr %s1259, 8
        %s1261 = scalar_lea.vmem %s8, %s1260
        %s1262 = smul.u32 8, %s26
        %p1263 = scmp.lt.s32.totalorder %s1262, 15
        %s1264 = scalar_select %p1263, %s1262, 15
        %s1265 = smul.addr %s1264, 4
        %s1266 = scalar_lea.vmem %s9, %s1265
        %p1267 = scmp.lt.s32.totalorder %s26, 1
        %s1268 = scalar_select %p1267, %s26, 1
        %s1269 = scalar_lea.vmem %s10, %s1268
        %p1270 = scmp.lt.s32.totalorder %s26, 1
        %s1271 = scalar_select %p1270, %s26, 1
        %s1272 = scalar_lea.vmem %s11, %s1271
        // Predicated region
        $region69: #{proflow_forward.4} parent=51 // pred_check
          %p1273 = pneg %p222
        $region70: #{proflow_forward.4} parent=51 // pred_check_branch
          %1275 = sbr.rel (%p1273) target = $region72
        $region71: #{proflow_forward.4} parent=51 // pred_region
          %s1276 = smul.u32 8, %s26
        $region72: #{proflow_forward.4} parent=51 // pred_fallthru
          _
        // Predicated region
        $region73: #{proflow_forward.4} parent=51 // pred_check
          %p1277 = pneg %p248
        $region74: #{proflow_forward.4} parent=51 // pred_check_branch
          %1279 = sbr.rel (%p1277) target = $region76
        $region75: #{proflow_forward.4} parent=51 // pred_region
          %s1280 = smul.u32 8, %s26
        $region76: #{proflow_forward.4} parent=51 // pred_fallthru
          _
        // Predicated region
        $region77: #{proflow_forward.4} parent=51 // pred_check
          %p1281 = pneg %p274
        $region78: #{proflow_forward.4} parent=51 // pred_check_branch
          %1283 = sbr.rel (%p1281) target = $region80
        $region79: #{proflow_forward.4} parent=51 // pred_region
          _
        $region80: #{proflow_forward.4} parent=51 // pred_fallthru
          _
        // Predicated region
        $region81: #{proflow_forward.4} parent=51 // pred_check
          %p1284 = pneg %p300
        $region82: #{proflow_forward.4} parent=51 // pred_check_branch
          %1286 = sbr.rel (%p1284) target = $region84
        $region83: #{proflow_forward.4} parent=51 // pred_region
          _
        $region84: #{proflow_forward.4} parent=51 // pred_fallthru
          _
      $region52: #{proflow_forward.4} parent=5 // pred_fallthru
        _
      %p1287 = scmp.le.s32.totalorder 2, %s21
      // Predicated region
      $region85: #{proflow_forward.4} parent=5 // pred_check
        %p1288 = pneg %p1287
      $region86: #{proflow_forward.4} parent=5 // pred_check_branch
        %1290 = sbr.rel (%p1288) target = $region88
      $region87: #{proflow_forward.4} parent=5 // pred_region
        %s1291 = ssub.s32 %s21, 2
        // Predicated region
        $region89: #{proflow_forward.4} parent=87 // pred_check
          %p1292 = pneg %p228
        $region90: #{proflow_forward.4} parent=87 // pred_check_branch
          %1294 = sbr.rel (%p1292) target = $region92
        $region91: #{proflow_forward.4} parent=87 // pred_region
          %s1295 = smul.u32 8, %s27
          %p1296 = scmp.lt.s32.totalorder %s1295, 15
          %s1297 = scalar_select %p1296, %s1295, 15
          %s1298 = smul.addr %s1297, 8
          %s1299 = scalar_lea.vmem %s8, %s1298
        $region92: #{proflow_forward.4} parent=87 // pred_fallthru
          _
        // Predicated region
        $region93: #{proflow_forward.4} parent=87 // pred_check
          %p1300 = pneg %p254
        $region94: #{proflow_forward.4} parent=87 // pred_check_branch
          %1302 = sbr.rel (%p1300) target = $region96
        $region95: #{proflow_forward.4} parent=87 // pred_region
          %s1303 = smul.u32 8, %s27
          %p1304 = scmp.lt.s32.totalorder %s1303, 15
          %s1305 = scalar_select %p1304, %s1303, 15
          %s1306 = smul.addr %s1305, 4
          %s1307 = scalar_lea.vmem %s9, %s1306
        $region96: #{proflow_forward.4} parent=87 // pred_fallthru
          _
        // Predicated region
        $region97: #{proflow_forward.4} parent=87 // pred_check
          %p1308 = pneg %p280
        $region98: #{proflow_forward.4} parent=87 // pred_check_branch
          %1310 = sbr.rel (%p1308) target = $region100
        $region99: #{proflow_forward.4} parent=87 // pred_region
          %p1311 = scmp.lt.s32.totalorder %s27, 1
          %s1312 = scalar_select %p1311, %s27, 1
          %s1313 = scalar_lea.vmem %s10, %s1312
        $region100: #{proflow_forward.4} parent=87 // pred_fallthru
          _
        // Predicated region
        $region101: #{proflow_forward.4} parent=87 // pred_check
          %p1314 = pneg %p306
        $region102: #{proflow_forward.4} parent=87 // pred_check_branch
          %1316 = sbr.rel (%p1314) target = $region104
        $region103: #{proflow_forward.4} parent=87 // pred_region
          %p1317 = scmp.lt.s32.totalorder %s27, 1
          %s1318 = scalar_select %p1317, %s27, 1
          %s1319 = scalar_lea.vmem %s11, %s1318
        $region104: #{proflow_forward.4} parent=87 // pred_fallthru
          _
      $region88: #{proflow_forward.4} parent=5 // pred_fallthru
        _
    $region6: #{proflow_forward.4} parent=1 // loop_footer
      %s25 = sadd.s32 1, %s21
    $region7: #{proflow_forward.4} parent=1 // loop_footer_branch
      %20 = sbr.rel target = $region3
    $region8: #{proflow_forward.4} parent=1 // loop_exit
      _
    %1320 = vsyncpa [#allocation3], 1
    %s1321 = scalar_lea.sflag [#allocation3], 1
    %1322 = vsyncpa %s1321, 1
    %1323 = vsyncpa [#allocation5], 1
    %1324 = vsyncpa [#allocation8], 1

// kernel: proflow_forward.5
$region0: #{proflow_forward.5}
  #allocation0 [shape = 'u32[]', space=smem, size = 0x4, offset = 0x4, fixed_abs, tag = 'smem constant byte address 0x4 - core index']
  #allocation1 [shape = 'u32[144,128]{1,0:T(1,128)}', space=vmem, size = 0x12000, scoped, tag = 'internal scratch']
  %s0 = inlined_call_operand.vmem [shape: bf16[128,128], index: 0, kind: input, shape index: {}]
  %s1 = inlined_call_operand.vmem [shape: f32[64,4], index: 1, kind: input, shape index: {}]
  %s2 = inlined_call_operand.vmem [shape: f32[1,128], index: 2, kind: input, shape index: {}]
  %s3 = inlined_call_operand.vmem [shape: f32[1,128], index: 3, kind: input, shape index: {}]
  %s4 = inlined_call_operand.vmem [shape: bf16[1152,256], index: 4, kind: input, shape index: {}]
  %s5 = inlined_call_operand.hbm [shape: f32[1,256], index: 5, kind: input, shape index: {}]
  %s6 = inlined_call_operand.vmem [shape: bf16[128,256], index: 6, kind: output, shape index: {0}]
  %s7 = inlined_call_operand.vmem [shape: f32[2,1,256], index: 7, kind: output, shape index: {1}]
  %s8 = inlined_call_operand.vmem [shape: f32[2,1,256], index: 8, kind: output, shape index: {2}]
  %9 = xla_tuple %s6, %s7, %s8
  %s10 = sld [smem:[#allocation0]]
  $region77: #{proflow_forward.5} parent=0
    _
  %s12 = ssub.s32 1, %s10
  %s13 = scalar_select 0, %s12, %s10
  $region1: #{proflow_forward.5} parent=0
    #allocation2 [shape = 'u8[1024]{0}', space=vmem, size = 0x400, scoped, tag = 'input window, operand 5, single buffered']
    #allocation3 [shape = 's32[2]{0}', space=sflag, size = 0x8, scoped, tag = 'scoped memory for proflow_forward.5']
    %14 = vsyncpa [#allocation3], 0
    loop: start=0, step=1, limit=4
    $region2: #{proflow_forward.5} parent=1 // loop_pre_header
      _
    $region3: #{proflow_forward.5} parent=1 // loop_header
      %s16 = sphi 0, %s20
      %p17 = scmp.ge.s32.totalorder %s16, 4
      %s26 = sphi 0, %s28
      %s29 = sphi 0, %s26
      %s30 = sphi 0, %s29
      %s46 = sphi 0, %s30
      %s50 = sphi 0, %s50
      %s52 = sphi 0, %s50
      %s53 = sphi 0, %s52
      %s67 = sphi 0, %s53
      %s71 = sphi 0, %s71
      %s73 = sphi 0, %s71
      %s74 = sphi 0, %s73
      %s88 = sphi 0, %s74
      %s92 = sphi 0, %s92
      %s94 = sphi 0, %s92
      %s95 = sphi 0, %s94
      %s109 = sphi 0, %s95
      %s113 = sphi 0, %s113
      %s115 = sphi 0, %s113
      %s116 = sphi 0, %s115
      %s130 = sphi 0, %s116
      %s134 = sphi 0, %s134
      %s136 = sphi 0, %s134
      %s137 = sphi 0, %s136
      %s151 = sphi 0, %s137
      %s157 = sphi 0, %s159
      %s160 = sphi 0, %s157
      %s161 = sphi 0, %s160
      %s177 = sphi 0, %s161
      %s183 = sphi 0, %s185
      %s186 = sphi 0, %s183
      %s187 = sphi 0, %s186
      %s203 = sphi 0, %s187
      %s209 = sphi 0, %s211
      %s212 = sphi 0, %s209
      %s213 = sphi 0, %s212
      %s229 = sphi 0, %s213
    $region4: #{proflow_forward.5} parent=1 // loop_header_branch
      %19 = sbr.rel (%p17) target = $region8
    $region5: #{proflow_forward.5} parent=1 // loop_body
      %s21 = ssub.s32 %s16, 1
      %s22 = ssub.s32 %s16, 2
      %s23 = sadd.s32 %s16, 1
      %s24 = ssub.s32 %s16, %s23
      %p25 = scmp.eq.s32.totalorder %s24, 0
      %s27 = sadd.s32 %s26, 1
      %s28 = scalar_select %p25, %s26, %s27
      %p31 = pneg %p25
      %p32 = scmp.eq.s32.totalorder %s16, 1
      %p33 = por %p31, %p32
      %p34 = scmp.ne.s32.totalorder %s26, %s29
      %p35 = scmp.eq.s32.totalorder %s16, 0
      %p36 = por %p34, %p35
      %p37 = scmp.ne.s32.totalorder %s26, %s29
      %p38 = scmp.eq.s32.totalorder %s21, 1
      %p39 = por %p37, %p38
      %p40 = scmp.ne.s32.totalorder %s29, %s30
      %p41 = scmp.eq.s32.totalorder %s21, 0
      %p42 = por %p40, %p41
      %p43 = scmp.ne.s32.totalorder %s29, %s30
      %p44 = scmp.eq.s32.totalorder %s22, 1
      %p45 = por %p43, %p44
      %p47 = scmp.ne.s32.totalorder %s30, %s46
      %p48 = scmp.eq.s32.totalorder %s22, 0
      %p49 = por %p47, %p48
      %s51 = sadd.s32 %s50, 1
      %p54 = scmp.eq.s32.totalorder %s16, 1
      %p55 = scmp.ne.s32.totalorder %s50, %s52
      %p56 = scmp.eq.s32.totalorder %s16, 0
      %p57 = por %p55, %p56
      %p58 = scmp.ne.s32.totalorder %s50, %s52
      %p59 = scmp.eq.s32.totalorder %s21, 1
      %p60 = por %p58, %p59
      %p61 = scmp.ne.s32.totalorder %s52, %s53
      %p62 = scmp.eq.s32.totalorder %s21, 0
      %p63 = por %p61, %p62
      %p64 = scmp.ne.s32.totalorder %s52, %s53
      %p65 = scmp.eq.s32.totalorder %s22, 1
      %p66 = por %p64, %p65
      %p68 = scmp.ne.s32.totalorder %s53, %s67
      %p69 = scmp.eq.s32.totalorder %s22, 0
      %p70 = por %p68, %p69
      %s72 = sadd.s32 %s71, 1
      %p75 = scmp.eq.s32.totalorder %s16, 1
      %p76 = scmp.ne.s32.totalorder %s71, %s73
      %p77 = scmp.eq.s32.totalorder %s16, 0
      %p78 = por %p76, %p77
      %p79 = scmp.ne.s32.totalorder %s71, %s73
      %p80 = scmp.eq.s32.totalorder %s21, 1
      %p81 = por %p79, %p80
      %p82 = scmp.ne.s32.totalorder %s73, %s74
      %p83 = scmp.eq.s32.totalorder %s21, 0
      %p84 = por %p82, %p83
      %p85 = scmp.ne.s32.totalorder %s73, %s74
      %p86 = scmp.eq.s32.totalorder %s22, 1
      %p87 = por %p85, %p86
      %p89 = scmp.ne.s32.totalorder %s74, %s88
      %p90 = scmp.eq.s32.totalorder %s22, 0
      %p91 = por %p89, %p90
      %s93 = sadd.s32 %s92, 1
      %p96 = scmp.eq.s32.totalorder %s16, 1
      %p97 = scmp.ne.s32.totalorder %s92, %s94
      %p98 = scmp.eq.s32.totalorder %s16, 0
      %p99 = por %p97, %p98
      %p100 = scmp.ne.s32.totalorder %s92, %s94
      %p101 = scmp.eq.s32.totalorder %s21, 1
      %p102 = por %p100, %p101
      %p103 = scmp.ne.s32.totalorder %s94, %s95
      %p104 = scmp.eq.s32.totalorder %s21, 0
      %p105 = por %p103, %p104
      %p106 = scmp.ne.s32.totalorder %s94, %s95
      %p107 = scmp.eq.s32.totalorder %s22, 1
      %p108 = por %p106, %p107
      %p110 = scmp.ne.s32.totalorder %s95, %s109
      %p111 = scmp.eq.s32.totalorder %s22, 0
      %p112 = por %p110, %p111
      %s114 = sadd.s32 %s113, 1
      %p117 = scmp.eq.s32.totalorder %s16, 1
      %p118 = scmp.ne.s32.totalorder %s113, %s115
      %p119 = scmp.eq.s32.totalorder %s16, 0
      %p120 = por %p118, %p119
      %p121 = scmp.ne.s32.totalorder %s113, %s115
      %p122 = scmp.eq.s32.totalorder %s21, 1
      %p123 = por %p121, %p122
      %p124 = scmp.ne.s32.totalorder %s115, %s116
      %p125 = scmp.eq.s32.totalorder %s21, 0
      %p126 = por %p124, %p125
      %p127 = scmp.ne.s32.totalorder %s115, %s116
      %p128 = scmp.eq.s32.totalorder %s22, 1
      %p129 = por %p127, %p128
      %p131 = scmp.ne.s32.totalorder %s116, %s130
      %p132 = scmp.eq.s32.totalorder %s22, 0
      %p133 = por %p131, %p132
      %s135 = sadd.s32 %s134, 1
      %p138 = scmp.eq.s32.totalorder %s16, 1
      %p139 = scmp.ne.s32.totalorder %s134, %s136
      %p140 = scmp.eq.s32.totalorder %s16, 0
      %p141 = por %p139, %p140
      %p142 = scmp.ne.s32.totalorder %s134, %s136
      %p143 = scmp.eq.s32.totalorder %s21, 1
      %p144 = por %p142, %p143
      %p145 = scmp.ne.s32.totalorder %s136, %s137
      %p146 = scmp.eq.s32.totalorder %s21, 0
      %p147 = por %p145, %p146
      %p148 = scmp.ne.s32.totalorder %s136, %s137
      %p149 = scmp.eq.s32.totalorder %s22, 1
      %p150 = por %p148, %p149
      %p152 = scmp.ne.s32.totalorder %s137, %s151
      %p153 = scmp.eq.s32.totalorder %s22, 0
      %p154 = por %p152, %p153
      %s155 = ssub.s32 %s16, %s23
      %p156 = scmp.eq.s32.totalorder %s155, 0
      %s158 = sadd.s32 %s157, 1
      %s159 = scalar_select %p156, %s157, %s158
      %p162 = pneg %p156
      %p163 = scmp.eq.s32.totalorder %s16, 1
      %p164 = por %p162, %p163
      %p165 = scmp.ne.s32.totalorder %s157, %s160
      %p166 = scmp.eq.s32.totalorder %s16, 0
      %p167 = por %p165, %p166
      %p168 = scmp.ne.s32.totalorder %s157, %s160
      %p169 = scmp.eq.s32.totalorder %s21, 1
      %p170 = por %p168, %p169
      %p171 = scmp.ne.s32.totalorder %s160, %s161
      %p172 = scmp.eq.s32.totalorder %s21, 0
      %p173 = por %p171, %p172
      %p174 = scmp.ne.s32.totalorder %s160, %s161
      %p175 = scmp.eq.s32.totalorder %s22, 1
      %p176 = por %p174, %p175
      %p178 = scmp.ne.s32.totalorder %s161, %s177
      %p179 = scmp.eq.s32.totalorder %s22, 0
      %p180 = por %p178, %p179
      %s181 = ssub.s32 %s16, %s23
      %p182 = scmp.eq.s32.totalorder %s181, 0
      %s184 = sadd.s32 %s183, 1
      %s185 = scalar_select %p182, %s183, %s184
      %p188 = pneg %p182
      %p189 = scmp.eq.s32.totalorder %s16, 1
      %p190 = por %p188, %p189
      %p191 = scmp.ne.s32.totalorder %s183, %s186
      %p192 = scmp.eq.s32.totalorder %s16, 0
      %p193 = por %p191, %p192
      %p194 = scmp.ne.s32.totalorder %s183, %s186
      %p195 = scmp.eq.s32.totalorder %s21, 1
      %p196 = por %p194, %p195
      %p197 = scmp.ne.s32.totalorder %s186, %s187
      %p198 = scmp.eq.s32.totalorder %s21, 0
      %p199 = por %p197, %p198
      %p200 = scmp.ne.s32.totalorder %s186, %s187
      %p201 = scmp.eq.s32.totalorder %s22, 1
      %p202 = por %p200, %p201
      %p204 = scmp.ne.s32.totalorder %s187, %s203
      %p205 = scmp.eq.s32.totalorder %s22, 0
      %p206 = por %p204, %p205
      %s207 = ssub.s32 %s16, %s23
      %p208 = scmp.eq.s32.totalorder %s207, 0
      %s210 = sadd.s32 %s209, 1
      %s211 = scalar_select %p208, %s209, %s210
      %p214 = pneg %p208
      %p215 = scmp.eq.s32.totalorder %s16, 1
      %p216 = por %p214, %p215
      %p217 = scmp.ne.s32.totalorder %s209, %s212
      %p218 = scmp.eq.s32.totalorder %s16, 0
      %p219 = por %p217, %p218
      %p220 = scmp.ne.s32.totalorder %s209, %s212
      %p221 = scmp.eq.s32.totalorder %s21, 1
      %p222 = por %p220, %p221
      %p223 = scmp.ne.s32.totalorder %s212, %s213
      %p224 = scmp.eq.s32.totalorder %s21, 0
      %p225 = por %p223, %p224
      %p226 = scmp.ne.s32.totalorder %s212, %s213
      %p227 = scmp.eq.s32.totalorder %s22, 1
      %p228 = por %p226, %p227
      %p230 = scmp.ne.s32.totalorder %s213, %s229
      %p231 = scmp.eq.s32.totalorder %s22, 0
      %p232 = por %p230, %p231
      %p233 = scmp.le.s32.totalorder 1, %s16
      %p234 = scmp.lt.s32.totalorder %s16, 3
      %p235 = pnand %p233, %p234
      %p236 = pneg %p235
      // Predicated region
      $region9: #{proflow_forward.5} parent=5 // pred_check
        _
      $region10: #{proflow_forward.5} parent=5 // pred_check_branch
        %238 = sbr.rel (%p235) target = $region12
      $region11: #{proflow_forward.5} parent=5 // pred_region
        %s239 = ssub.s32 %s16, 1
        // Predicated region
        $region13: #{proflow_forward.5} parent=11 // pred_check
          %p240 = pneg %p63
        $region14: #{proflow_forward.5} parent=11 // pred_check_branch
          %242 = sbr.rel (%p240) target = $region16
        $region15: #{proflow_forward.5} parent=11 // pred_region
          _
        $region16: #{proflow_forward.5} parent=11 // pred_fallthru
          _
        // Predicated region
        $region17: #{proflow_forward.5} parent=11 // pred_check
          %p243 = pneg %p84
        $region18: #{proflow_forward.5} parent=11 // pred_check_branch
          %245 = sbr.rel (%p243) target = $region20
        $region19: #{proflow_forward.5} parent=11 // pred_region
          _
        $region20: #{proflow_forward.5} parent=11 // pred_fallthru
          _
        // Predicated region
        $region21: #{proflow_forward.5} parent=11 // pred_check
          %p246 = pneg %p105
        $region22: #{proflow_forward.5} parent=11 // pred_check_branch
          %248 = sbr.rel (%p246) target = $region24
        $region23: #{proflow_forward.5} parent=11 // pred_region
          _
        $region24: #{proflow_forward.5} parent=11 // pred_fallthru
          _
        // Predicated region
        $region25: #{proflow_forward.5} parent=11 // pred_check
          %p249 = pneg %p126
        $region26: #{proflow_forward.5} parent=11 // pred_check_branch
          %251 = sbr.rel (%p249) target = $region28
        $region27: #{proflow_forward.5} parent=11 // pred_region
          _
        $region28: #{proflow_forward.5} parent=11 // pred_fallthru
          _
        // Predicated region
        $region29: #{proflow_forward.5} parent=11 // pred_check
          %p252 = pneg %p147
        $region30: #{proflow_forward.5} parent=11 // pred_check_branch
          %254 = sbr.rel (%p252) target = $region32
        $region31: #{proflow_forward.5} parent=11 // pred_region
          %s256 = ssub.s32 32, 32
          %257 = vsyncadd [#allocation3], %s256
          %s259 = sshll.u32 [#allocation2], 4
          %s260 = int_to_ptr.vmem [resolvable:$true] %s259
          %262 = dma.hbm_to_vmem [thread:$0]  %s5, 32, %s260, [#allocation3]
        $region32: #{proflow_forward.5} parent=11 // pred_fallthru
          _
      $region12: #{proflow_forward.5} parent=5 // pred_fallthru
        _
      %p263 = scmp.lt.s32.totalorder %s16, 2
      // Predicated region
      $region33: #{proflow_forward.5} parent=5 // pred_check
        %p264 = pneg %p263
      $region34: #{proflow_forward.5} parent=5 // pred_check_branch
        %266 = sbr.rel (%p264) target = $region36
      $region35: #{proflow_forward.5} parent=5 // pred_region
        // Predicated region
        $region37: #{proflow_forward.5} parent=35 // pred_check
          %p267 = pneg %p36
        $region38: #{proflow_forward.5} parent=35 // pred_check_branch
          %269 = sbr.rel (%p267) target = $region40
        $region39: #{proflow_forward.5} parent=35 // pred_region
          %s270 = smul.u32 8, %s16
          %p271 = scmp.lt.s32.totalorder %s270, 15
          %s272 = scalar_select %p271, %s270, 15
          %s273 = smul.addr %s272, 4
          %s274 = scalar_lea.vmem %s0, %s273
          %s275 = smul.u32 8, %s16
        $region40: #{proflow_forward.5} parent=35 // pred_fallthru
          _
      $region36: #{proflow_forward.5} parent=5 // pred_fallthru
        _
      %p276 = scmp.le.s32.totalorder 1, %s16
      %p277 = scmp.lt.s32.totalorder %s16, 3
      %p278 = pnand %p276, %p277
      %p279 = pneg %p278
      // Predicated region
      $region41: #{proflow_forward.5} parent=5 // pred_check
        _
      $region42: #{proflow_forward.5} parent=5 // pred_check_branch
        %281 = sbr.rel (%p278) target = $region44
      $region43: #{proflow_forward.5} parent=5 // pred_region
        %s282 = ssub.s32 %s16, 1
        // Predicated region
        $region45: #{proflow_forward.5} parent=43 // pred_check
          %p283 = pneg %p147
        $region46: #{proflow_forward.5} parent=43 // pred_check_branch
          %285 = sbr.rel (%p283) target = $region48
        $region47: #{proflow_forward.5} parent=43 // pred_region
          %286 = dma.done [#allocation3], 32
        $region48: #{proflow_forward.5} parent=43 // pred_fallthru
          _
        %s287 = smul.u32 8, %s21
        %p288 = scmp.lt.s32.totalorder %s287, 15
        %s289 = scalar_select %p288, %s287, 15
        %s290 = smul.addr %s289, 4
        %s291 = scalar_lea.vmem %s0, %s290
        %p292 = pneg %p42
        %p293 = pneg %p39
        %p294 = pneg %p63
        %p295 = pneg %p60
        %p296 = pneg %p84
        %p297 = pneg %p81
        %p298 = pneg %p105
        %p299 = pneg %p102
        %p300 = pneg %p126
        %p301 = pneg %p123
        %p302 = pneg %p147
        %p303 = pneg %p144
        %p304 = pneg %p173
        %p305 = pneg %p170
        %s306 = smul.u32 8, %s21
        %p307 = scmp.lt.s32.totalorder %s306, 15
        %s308 = scalar_select %p307, %s306, 15
        %s309 = smul.addr %s308, 2
        %s310 = smul.addr %s309, 4
        %s311 = scalar_lea.vmem %s6, %s310
        %p312 = pneg %p199
        %p313 = pneg %p196
        %p314 = scmp.lt.s32.totalorder %s21, 1
        %s315 = scalar_select %p314, %s21, 1
        %s316 = smul.addr %s315, 2
        %s317 = scalar_lea.vmem %s7, %s316
        %p318 = pneg %p225
        %p319 = pneg %p222
        %p320 = scmp.lt.s32.totalorder %s21, 1
        %s321 = scalar_select %p320, %s21, 1
        %s322 = smul.addr %s321, 2
        %s323 = scalar_lea.vmem %s8, %s322
        %s324 = smul.u32 8, %s21
        %p325 = scmp.lt.s32.totalorder %s324, 15
        %s326 = scalar_select %p325, %s324, 15
        %s327 = smul.addr %s326, 4
        %s328 = scalar_lea.vmem %s0, %s327
        %s329 = smul.u32 8, %s21
        %s330 = smul.u32 8, %s21
        %p331 = scmp.lt.s32.totalorder %s330, 15
        %s332 = scalar_select %p331, %s330, 15
        %s333 = smul.addr %s332, 2
        %s334 = smul.addr %s333, 4
        %s335 = scalar_lea.vmem %s6, %s334
        %s336 = smul.u32 8, %s21
        %p337 = scmp.lt.s32.totalorder %s21, 1
        %s338 = scalar_select %p337, %s21, 1
        %s339 = smul.addr %s338, 2
        %s340 = scalar_lea.vmem %s7, %s339
        %p341 = scmp.lt.s32.totalorder %s21, 1
        %s342 = scalar_select %p341, %s21, 1
        %s343 = smul.addr %s342, 2
        %s344 = scalar_lea.vmem %s8, %s343
        %v346 = vld [vmem:[%s328] sm:$0xf]
        %v347 = vld [vmem:[%s328 + $0x4] sm:$0xf]
        %v348 = vld [vmem:[%s328 + $0x8] sm:$0xf]
        %v349 = vld [vmem:[%s328 + $0xc] sm:$0xf]
        %v350 = vld [vmem:[%s328 + $0x10] sm:$0xf]
        %v351 = vld [vmem:[%s328 + $0x14] sm:$0xf]
        %v352 = vld [vmem:[%s328 + $0x18] sm:$0xf]
        %v353 = vld [vmem:[%s328 + $0x1c] sm:$0xf]
        %v354 = vunpack.c.l.bf16 %v346
        %v355 = vunpack.c.l.bf16 %v347
        %v356 = vunpack.c.l.bf16 %v348
        %v357 = vunpack.c.l.bf16 %v349
        %v358 = vunpack.c.l.bf16 %v350
        %v359 = vunpack.c.l.bf16 %v351
        %v360 = vunpack.c.l.bf16 %v352
        %v361 = vunpack.c.l.bf16 %v353
        %v362 = vld [vmem:[%s2] sm:$0x1]
        %v364 = vlaneseq
        %v365 = vshrl.u32 %v364, 7
        %v366 = vsub.s32 0, %v365
        %v367 = vrot.slane %v362, %v366
        %v369 = vmul.f32 %v354, %v367
        %v370 = vmul.f32 %v355, %v367
        %v371 = vmul.f32 %v356, %v367
        %v372 = vmul.f32 %v357, %v367
        %v373 = vmul.f32 %v358, %v367
        %v374 = vmul.f32 %v359, %v367
        %v375 = vmul.f32 %v360, %v367
        %v376 = vmul.f32 %v361, %v367
        %v377 = vld [vmem:[%s3] sm:$0x1]
        %v379 = vlaneseq
        %v380 = vshrl.u32 %v379, 7
        %v381 = vsub.s32 0, %v380
        %v382 = vrot.slane %v377, %v381
        %v384 = vadd.f32 %v369, %v382
        %v385 = vadd.f32 %v370, %v382
        %v386 = vadd.f32 %v371, %v382
        %v387 = vadd.f32 %v372, %v382
        %v388 = vadd.f32 %v373, %v382
        %v389 = vadd.f32 %v374, %v382
        %v390 = vadd.f32 %v375, %v382
        %v391 = vadd.f32 %v376, %v382
        %v392 = vmax.f32 %v384, 0.0
        %v393 = vmax.f32 %v385, 0.0
        %v394 = vmax.f32 %v386, 0.0
        %v395 = vmax.f32 %v387, 0.0
        %v396 = vmax.f32 %v388, 0.0
        %v397 = vmax.f32 %v389, 0.0
        %v398 = vmax.f32 %v390, 0.0
        %v399 = vmax.f32 %v391, 0.0
        %v400 = vld [vmem:[%s1] sm:$0xff]
        %v401 = vld [vmem:[%s1 + $0x8] sm:$0xff]
        %v402 = vld [vmem:[%s1 + $0x10] sm:$0xff]
        %v403 = vld [vmem:[%s1 + $0x18] sm:$0xff]
        %v404 = vld [vmem:[%s1 + $0x20] sm:$0xff]
        %v405 = vld [vmem:[%s1 + $0x28] sm:$0xff]
        %v406 = vld [vmem:[%s1 + $0x30] sm:$0xff]
        %v407 = vld [vmem:[%s1 + $0x38] sm:$0xff]
        %v408 = vrot.slane %v392, 7
        %v409 = vrot.slane %v393, 7
        %v410 = vrot.slane %v394, 7
        %v411 = vrot.slane %v395, 7
        %v412 = vrot.slane %v396, 7
        %v413 = vrot.slane %v397, 7
        %v414 = vrot.slane %v398, 7
        %v415 = vrot.slane %v399, 7
        %v416 = vlaneseq
        %v417 = vshrl.u32 %v416, 7
        %vm418 = vcmp.lt.s32.totalorder %v417, 1
        %v419 = vsel %vm418, %v414, %v415
        %v420 = vsel %vm418, %v413, %v414
        %v421 = vsel %vm418, %v412, %v413
        %v422 = vsel %vm418, %v411, %v412
        %v423 = vsel %vm418, %v410, %v411
        %v424 = vsel %vm418, %v409, %v410
        %v425 = vsel %vm418, %v408, %v409
        %v426 = vsel %vm418, %v415, %v408
        %428 = vset.pattern.permute.xlu0 2
        %429 = vperm.xlu0 %428, %v400
        %v430 = vpop.permute.xlu0 %429
        %433 = vset.pattern.permute.xlu0 2
        %434 = vperm.xlu0 %433, %v401
        %v435 = vpop.permute.xlu0 %434
        %438 = vset.pattern.permute.xlu0 2
        %439 = vperm.xlu0 %438, %v402
        %v440 = vpop.permute.xlu0 %439
        %443 = vset.pattern.permute.xlu0 2
        %444 = vperm.xlu0 %443, %v403
        %v445 = vpop.permute.xlu0 %444
        %448 = vset.pattern.permute.xlu0 2
        %449 = vperm.xlu0 %448, %v404
        %v450 = vpop.permute.xlu0 %449
        %453 = vset.pattern.permute.xlu0 2
        %454 = vperm.xlu0 %453, %v405
        %v455 = vpop.permute.xlu0 %454
        %458 = vset.pattern.permute.xlu0 2
        %459 = vperm.xlu0 %458, %v406
        %v460 = vpop.permute.xlu0 %459
        %463 = vset.pattern.permute.xlu0 2
        %464 = vperm.xlu0 %463, %v407
        %v465 = vpop.permute.xlu0 %464
        %v467 = vmul.f32 %v426, %v430
        %v468 = vmul.f32 %v425, %v435
        %v469 = vmul.f32 %v424, %v440
        %v470 = vmul.f32 %v423, %v445
        %v471 = vmul.f32 %v422, %v450
        %v472 = vmul.f32 %v421, %v455
        %v473 = vmul.f32 %v420, %v460
        %v474 = vmul.f32 %v419, %v465
        %v475 = vrot.slane %v392, 1
        %v476 = vrot.slane %v393, 1
        %v477 = vrot.slane %v394, 1
        %v478 = vrot.slane %v395, 1
        %v479 = vrot.slane %v396, 1
        %v480 = vrot.slane %v397, 1
        %v481 = vrot.slane %v398, 1
        %v482 = vrot.slane %v399, 1
        %vm483 = vcmp.lt.s32.totalorder %v417, 7
        %v484 = vsel %vm483, %v481, %v482
        %v485 = vsel %vm483, %v480, %v481
        %v486 = vsel %vm483, %v479, %v480
        %v487 = vsel %vm483, %v478, %v479
        %v488 = vsel %vm483, %v477, %v478
        %v489 = vsel %vm483, %v476, %v477
        %v490 = vsel %vm483, %v475, %v476
        %v491 = vsel %vm483, %v482, %v475
        %492 = vset.pattern.permute.xlu0 3
        %493 = vperm.xlu0 %492, %v400
        %v494 = vpop.permute.xlu0 %493
        %496 = vset.pattern.permute.xlu0 3
        %497 = vperm.xlu0 %496, %v401
        %v498 = vpop.permute.xlu0 %497
        %500 = vset.pattern.permute.xlu0 3
        %501 = vperm.xlu0 %500, %v402
        %v502 = vpop.permute.xlu0 %501
        %504 = vset.pattern.permute.xlu0 3
        %505 = vperm.xlu0 %504, %v403
        %v506 = vpop.permute.xlu0 %505
        %508 = vset.pattern.permute.xlu0 3
        %509 = vperm.xlu0 %508, %v404
        %v510 = vpop.permute.xlu0 %509
        %512 = vset.pattern.permute.xlu0 3
        %513 = vperm.xlu0 %512, %v405
        %v514 = vpop.permute.xlu0 %513
        %516 = vset.pattern.permute.xlu0 3
        %517 = vperm.xlu0 %516, %v406
        %v518 = vpop.permute.xlu0 %517
        %520 = vset.pattern.permute.xlu0 3
        %521 = vperm.xlu0 %520, %v407
        %v522 = vpop.permute.xlu0 %521
        %v524 = vmul.f32 %v490, %v494
        %v525 = vmul.f32 %v489, %v498
        %v526 = vmul.f32 %v488, %v502
        %v527 = vmul.f32 %v487, %v506
        %v528 = vmul.f32 %v486, %v510
        %v529 = vmul.f32 %v485, %v514
        %v530 = vmul.f32 %v484, %v518
        %v531 = vmul.f32 %v491, %v522
        %532 = vset.pattern.permute.xlu0 0
        %533 = vperm.xlu0 %532, %v400
        %v534 = vpop.permute.xlu0 %533
        %536 = vset.pattern.permute.xlu0 0
        %537 = vperm.xlu0 %536, %v401
        %v538 = vpop.permute.xlu0 %537
        %540 = vset.pattern.permute.xlu0 0
        %541 = vperm.xlu0 %540, %v402
        %v542 = vpop.permute.xlu0 %541
        %544 = vset.pattern.permute.xlu0 0
        %545 = vperm.xlu0 %544, %v403
        %v546 = vpop.permute.xlu0 %545
        %548 = vset.pattern.permute.xlu0 0
        %549 = vperm.xlu0 %548, %v404
        %v550 = vpop.permute.xlu0 %549
        %552 = vset.pattern.permute.xlu0 0
        %553 = vperm.xlu0 %552, %v405
        %v554 = vpop.permute.xlu0 %553
        %556 = vset.pattern.permute.xlu0 0
        %557 = vperm.xlu0 %556, %v406
        %v558 = vpop.permute.xlu0 %557
        %560 = vset.pattern.permute.xlu0 0
        %561 = vperm.xlu0 %560, %v407
        %v562 = vpop.permute.xlu0 %561
        %v564 = vmul.f32 %v474, %v534
        %v565 = vmul.f32 %v399, %v534
        %v566 = vmul.f32 %v531, %v534
        %v567 = vmul.f32 %v467, %v538
        %v568 = vmul.f32 %v392, %v538
        %v569 = vmul.f32 %v524, %v538
        %v570 = vmul.f32 %v468, %v542
        %v571 = vmul.f32 %v393, %v542
        %v572 = vmul.f32 %v525, %v542
        %v573 = vmul.f32 %v469, %v546
        %v574 = vmul.f32 %v394, %v546
        %v575 = vmul.f32 %v526, %v546
        %v576 = vmul.f32 %v470, %v550
        %v577 = vmul.f32 %v395, %v550
        %v578 = vmul.f32 %v527, %v550
        %v579 = vmul.f32 %v471, %v554
        %v580 = vmul.f32 %v396, %v554
        %v581 = vmul.f32 %v528, %v554
        %v582 = vmul.f32 %v472, %v558
        %v583 = vmul.f32 %v397, %v558
        %v584 = vmul.f32 %v529, %v558
        %v585 = vmul.f32 %v473, %v562
        %v586 = vmul.f32 %v398, %v562
        %v587 = vmul.f32 %v530, %v562
        %v588 = vpack.c.bf16 %v567, %v564
        %v589 = vpack.c.bf16 %v568, %v565
        %v590 = vpack.c.bf16 %v569, %v566
        %v591 = vpack.c.bf16 %v573, %v570
        %v592 = vpack.c.bf16 %v574, %v571
        %v593 = vpack.c.bf16 %v575, %v572
        %v594 = vpack.c.bf16 %v579, %v576
        %v595 = vpack.c.bf16 %v580, %v577
        %v596 = vpack.c.bf16 %v581, %v578
        %v597 = vpack.c.bf16 %v585, %v582
        %v598 = vpack.c.bf16 %v586, %v583
        %v599 = vpack.c.bf16 %v587, %v584
        %v600 = vpack.c.bf16 %v468, %v467
        %v601 = vpack.c.bf16 %v393, %v392
        %v602 = vpack.c.bf16 %v525, %v524
        %v603 = vpack.c.bf16 %v470, %v469
        %v604 = vpack.c.bf16 %v395, %v394
        %v605 = vpack.c.bf16 %v527, %v526
        %v606 = vpack.c.bf16 %v472, %v471
        %v607 = vpack.c.bf16 %v397, %v396
        %v608 = vpack.c.bf16 %v529, %v528
        %v609 = vpack.c.bf16 %v474, %v473
        %v610 = vpack.c.bf16 %v399, %v398
        %v611 = vpack.c.bf16 %v531, %v530
        %612 = vset.pattern.permute.xlu0 1
        %613 = vperm.xlu0 %612, %v400
        %v614 = vpop.permute.xlu0 %613
        %616 = vset.pattern.permute.xlu0 1
        %617 = vperm.xlu0 %616, %v401
        %v618 = vpop.permute.xlu0 %617
        %620 = vset.pattern.permute.xlu0 1
        %621 = vperm.xlu0 %620, %v402
        %v622 = vpop.permute.xlu0 %621
        %624 = vset.pattern.permute.xlu0 1
        %625 = vperm.xlu0 %624, %v403
        %v626 = vpop.permute.xlu0 %625
        %628 = vset.pattern.permute.xlu0 1
        %629 = vperm.xlu0 %628, %v404
        %v630 = vpop.permute.xlu0 %629
        %632 = vset.pattern.permute.xlu0 1
        %633 = vperm.xlu0 %632, %v405
        %v634 = vpop.permute.xlu0 %633
        %636 = vset.pattern.permute.xlu0 1
        %637 = vperm.xlu0 %636, %v406
        %v638 = vpop.permute.xlu0 %637
        %640 = vset.pattern.permute.xlu0 1
        %641 = vperm.xlu0 %640, %v407
        %v642 = vpop.permute.xlu0 %641
        %v644 = vmul.f32 %v468, %v614
        %v645 = vmul.f32 %v393, %v614
        %v646 = vmul.f32 %v525, %v614
        %v647 = vmul.f32 %v469, %v618
        %v648 = vmul.f32 %v394, %v618
        %v649 = vmul.f32 %v526, %v618
        %v650 = vmul.f32 %v470, %v622
        %v651 = vmul.f32 %v395, %v622
        %v652 = vmul.f32 %v527, %v622
        %v653 = vmul.f32 %v471, %v626
        %v654 = vmul.f32 %v396, %v626
        %v655 = vmul.f32 %v528, %v626
        %v656 = vmul.f32 %v472, %v630
        %v657 = vmul.f32 %v397, %v630
        %v658 = vmul.f32 %v529, %v630
        %v659 = vmul.f32 %v473, %v634
        %v660 = vmul.f32 %v398, %v634
        %v661 = vmul.f32 %v530, %v634
        %v662 = vmul.f32 %v474, %v638
        %v663 = vmul.f32 %v399, %v638
        %v664 = vmul.f32 %v531, %v638
        %v665 = vmul.f32 %v467, %v642
        %v666 = vmul.f32 %v392, %v642
        %v667 = vmul.f32 %v524, %v642
        %v668 = vpack.c.bf16 %v647, %v644
        %v669 = vpack.c.bf16 %v648, %v645
        %v670 = vpack.c.bf16 %v649, %v646
        %v671 = vpack.c.bf16 %v653, %v650
        %v672 = vpack.c.bf16 %v654, %v651
        %v673 = vpack.c.bf16 %v655, %v652
        %v674 = vpack.c.bf16 %v659, %v656
        %v675 = vpack.c.bf16 %v660, %v657
        %v676 = vpack.c.bf16 %v661, %v658
        %v677 = vpack.c.bf16 %v665, %v662
        %v678 = vpack.c.bf16 %v666, %v663
        %v679 = vpack.c.bf16 %v667, %v664
        %v680 = vld [vmem:[%s4] sm:$0xff]
        %v681 = vld [vmem:[%s4 + $0x8] sm:$0xff]
        %v682 = vld [vmem:[%s4 + $0x10] sm:$0xff]
        %v683 = vld [vmem:[%s4 + $0x18] sm:$0xff]
        %v684 = vld [vmem:[%s4 + $0x20] sm:$0xff]
        %v685 = vld [vmem:[%s4 + $0x28] sm:$0xff]
        %v686 = vld [vmem:[%s4 + $0x30] sm:$0xff]
        %v687 = vld [vmem:[%s4 + $0x38] sm:$0xff]
        %v688 = vld [vmem:[%s4 + $0x40] sm:$0xff]
        %v689 = vld [vmem:[%s4 + $0x48] sm:$0xff]
        %v690 = vld [vmem:[%s4 + $0x50] sm:$0xff]
        %v691 = vld [vmem:[%s4 + $0x58] sm:$0xff]
        %v692 = vld [vmem:[%s4 + $0x60] sm:$0xff]
        %v693 = vld [vmem:[%s4 + $0x68] sm:$0xff]
        %v694 = vld [vmem:[%s4 + $0x70] sm:$0xff]
        %v695 = vld [vmem:[%s4 + $0x78] sm:$0xff]
        %v696 = vld [vmem:[%s4 + $0x80] sm:$0xff]
        %v697 = vld [vmem:[%s4 + $0x88] sm:$0xff]
        %v698 = vld [vmem:[%s4 + $0x90] sm:$0xff]
        %v699 = vld [vmem:[%s4 + $0x98] sm:$0xff]
        %v700 = vld [vmem:[%s4 + $0xa0] sm:$0xff]
        %v701 = vld [vmem:[%s4 + $0xa8] sm:$0xff]
        %v702 = vld [vmem:[%s4 + $0xb0] sm:$0xff]
        %v703 = vld [vmem:[%s4 + $0xb8] sm:$0xff]
        %v704 = vld [vmem:[%s4 + $0xc0] sm:$0xff]
        %v705 = vld [vmem:[%s4 + $0xc8] sm:$0xff]
        %v706 = vld [vmem:[%s4 + $0xd0] sm:$0xff]
        %v707 = vld [vmem:[%s4 + $0xd8] sm:$0xff]
        %v708 = vld [vmem:[%s4 + $0xe0] sm:$0xff]
        %v709 = vld [vmem:[%s4 + $0xe8] sm:$0xff]
        %v710 = vld [vmem:[%s4 + $0xf0] sm:$0xff]
        %v711 = vld [vmem:[%s4 + $0xf8] sm:$0xff]
        %v712 = vld [vmem:[%s4 + $0x100] sm:$0xff]
        %v713 = vld [vmem:[%s4 + $0x108] sm:$0xff]
        %v714 = vld [vmem:[%s4 + $0x110] sm:$0xff]
        %v715 = vld [vmem:[%s4 + $0x118] sm:$0xff]
        %v716 = vld [vmem:[%s4 + $0x120] sm:$0xff]
        %v717 = vld [vmem:[%s4 + $0x128] sm:$0xff]
        %v718 = vld [vmem:[%s4 + $0x130] sm:$0xff]
        %v719 = vld [vmem:[%s4 + $0x138] sm:$0xff]
        %v720 = vld [vmem:[%s4 + $0x140] sm:$0xff]
        %v721 = vld [vmem:[%s4 + $0x148] sm:$0xff]
        %v722 = vld [vmem:[%s4 + $0x150] sm:$0xff]
        %v723 = vld [vmem:[%s4 + $0x158] sm:$0xff]
        %v724 = vld [vmem:[%s4 + $0x160] sm:$0xff]
        %v725 = vld [vmem:[%s4 + $0x168] sm:$0xff]
        %v726 = vld [vmem:[%s4 + $0x170] sm:$0xff]
        %v727 = vld [vmem:[%s4 + $0x178] sm:$0xff]
        %v728 = vld [vmem:[%s4 + $0x180] sm:$0xff]
        %v729 = vld [vmem:[%s4 + $0x188] sm:$0xff]
        %v730 = vld [vmem:[%s4 + $0x190] sm:$0xff]
        %v731 = vld [vmem:[%s4 + $0x198] sm:$0xff]
        %v732 = vld [vmem:[%s4 + $0x1a0] sm:$0xff]
        %v733 = vld [vmem:[%s4 + $0x1a8] sm:$0xff]
        %v734 = vld [vmem:[%s4 + $0x1b0] sm:$0xff]
        %v735 = vld [vmem:[%s4 + $0x1b8] sm:$0xff]
        %v736 = vld [vmem:[%s4 + $0x1c0] sm:$0xff]
        %v737 = vld [vmem:[%s4 + $0x1c8] sm:$0xff]
        %v738 = vld [vmem:[%s4 + $0x1d0] sm:$0xff]
        %v739 = vld [vmem:[%s4 + $0x1d8] sm:$0xff]
        %v740 = vld [vmem:[%s4 + $0x1e0] sm:$0xff]
        %v741 = vld [vmem:[%s4 + $0x1e8] sm:$0xff]
        %v742 = vld [vmem:[%s4 + $0x1f0] sm:$0xff]
        %v743 = vld [vmem:[%s4 + $0x1f8] sm:$0xff]
        %v744 = vld [vmem:[%s4 + $0x200] sm:$0xff]
        %v745 = vld [vmem:[%s4 + $0x208] sm:$0xff]
        %v746 = vld [vmem:[%s4 + $0x210] sm:$0xff]
        %v747 = vld [vmem:[%s4 + $0x218] sm:$0xff]
        %v748 = vld [vmem:[%s4 + $0x220] sm:$0xff]
        %v749 = vld [vmem:[%s4 + $0x228] sm:$0xff]
        %v750 = vld [vmem:[%s4 + $0x230] sm:$0xff]
        %v751 = vld [vmem:[%s4 + $0x238] sm:$0xff]
        %v752 = vld [vmem:[%s4 + $0x240] sm:$0xff]
        %v753 = vld [vmem:[%s4 + $0x248] sm:$0xff]
        %v754 = vld [vmem:[%s4 + $0x250] sm:$0xff]
        %v755 = vld [vmem:[%s4 + $0x258] sm:$0xff]
        %v756 = vld [vmem:[%s4 + $0x260] sm:$0xff]
        %v757 = vld [vmem:[%s4 + $0x268] sm:$0xff]
        %v758 = vld [vmem:[%s4 + $0x270] sm:$0xff]
        %v759 = vld [vmem:[%s4 + $0x278] sm:$0xff]
        %v760 = vld [vmem:[%s4 + $0x280] sm:$0xff]
        %v761 = vld [vmem:[%s4 + $0x288] sm:$0xff]
        %v762 = vld [vmem:[%s4 + $0x290] sm:$0xff]
        %v763 = vld [vmem:[%s4 + $0x298] sm:$0xff]
        %v764 = vld [vmem:[%s4 + $0x2a0] sm:$0xff]
        %v765 = vld [vmem:[%s4 + $0x2a8] sm:$0xff]
        %v766 = vld [vmem:[%s4 + $0x2b0] sm:$0xff]
        %v767 = vld [vmem:[%s4 + $0x2b8] sm:$0xff]
        %v768 = vld [vmem:[%s4 + $0x2c0] sm:$0xff]
        %v769 = vld [vmem:[%s4 + $0x2c8] sm:$0xff]
        %v770 = vld [vmem:[%s4 + $0x2d0] sm:$0xff]
        %v771 = vld [vmem:[%s4 + $0x2d8] sm:$0xff]
        %v772 = vld [vmem:[%s4 + $0x2e0] sm:$0xff]
        %v773 = vld [vmem:[%s4 + $0x2e8] sm:$0xff]
        %v774 = vld [vmem:[%s4 + $0x2f0] sm:$0xff]
        %v775 = vld [vmem:[%s4 + $0x2f8] sm:$0xff]
        %v776 = vld [vmem:[%s4 + $0x300] sm:$0xff]
        %v777 = vld [vmem:[%s4 + $0x308] sm:$0xff]
        %v778 = vld [vmem:[%s4 + $0x310] sm:$0xff]
        %v779 = vld [vmem:[%s4 + $0x318] sm:$0xff]
        %v780 = vld [vmem:[%s4 + $0x320] sm:$0xff]
        %v781 = vld [vmem:[%s4 + $0x328] sm:$0xff]
        %v782 = vld [vmem:[%s4 + $0x330] sm:$0xff]
        %v783 = vld [vmem:[%s4 + $0x338] sm:$0xff]
        %v784 = vld [vmem:[%s4 + $0x340] sm:$0xff]
        %v785 = vld [vmem:[%s4 + $0x348] sm:$0xff]
        %v786 = vld [vmem:[%s4 + $0x350] sm:$0xff]
        %v787 = vld [vmem:[%s4 + $0x358] sm:$0xff]
        %v788 = vld [vmem:[%s4 + $0x360] sm:$0xff]
        %v789 = vld [vmem:[%s4 + $0x368] sm:$0xff]
        %v790 = vld [vmem:[%s4 + $0x370] sm:$0xff]
        %v791 = vld [vmem:[%s4 + $0x378] sm:$0xff]
        %v792 = vld [vmem:[%s4 + $0x380] sm:$0xff]
        %v793 = vld [vmem:[%s4 + $0x388] sm:$0xff]
        %v794 = vld [vmem:[%s4 + $0x390] sm:$0xff]
        %v795 = vld [vmem:[%s4 + $0x398] sm:$0xff]
        %v796 = vld [vmem:[%s4 + $0x3a0] sm:$0xff]
        %v797 = vld [vmem:[%s4 + $0x3a8] sm:$0xff]
        %v798 = vld [vmem:[%s4 + $0x3b0] sm:$0xff]
        %v799 = vld [vmem:[%s4 + $0x3b8] sm:$0xff]
        %v800 = vld [vmem:[%s4 + $0x3c0] sm:$0xff]
        %v801 = vld [vmem:[%s4 + $0x3c8] sm:$0xff]
        %v802 = vld [vmem:[%s4 + $0x3d0] sm:$0xff]
        %v803 = vld [vmem:[%s4 + $0x3d8] sm:$0xff]
        %v804 = vld [vmem:[%s4 + $0x3e0] sm:$0xff]
        %v805 = vld [vmem:[%s4 + $0x3e8] sm:$0xff]
        %v806 = vld [vmem:[%s4 + $0x3f0] sm:$0xff]
        %v807 = vld [vmem:[%s4 + $0x3f8] sm:$0xff]
        %v808 = vld [vmem:[%s4 + $0x400] sm:$0xff]
        %v809 = vld [vmem:[%s4 + $0x408] sm:$0xff]
        %v810 = vld [vmem:[%s4 + $0x410] sm:$0xff]
        %v811 = vld [vmem:[%s4 + $0x418] sm:$0xff]
        %v812 = vld [vmem:[%s4 + $0x420] sm:$0xff]
        %v813 = vld [vmem:[%s4 + $0x428] sm:$0xff]
        %v814 = vld [vmem:[%s4 + $0x430] sm:$0xff]
        %v815 = vld [vmem:[%s4 + $0x438] sm:$0xff]
        %v816 = vld [vmem:[%s4 + $0x440] sm:$0xff]
        %v817 = vld [vmem:[%s4 + $0x448] sm:$0xff]
        %v818 = vld [vmem:[%s4 + $0x450] sm:$0xff]
        %v819 = vld [vmem:[%s4 + $0x458] sm:$0xff]
        %v820 = vld [vmem:[%s4 + $0x460] sm:$0xff]
        %v821 = vld [vmem:[%s4 + $0x468] sm:$0xff]
        %v822 = vld [vmem:[%s4 + $0x470] sm:$0xff]
        %v823 = vld [vmem:[%s4 + $0x478] sm:$0xff]
        %v824 = vld [vmem:[#allocation2] sm:$0x3]
        %v826 = vlaneseq
        %v827 = vshrl.u32 %v826, 7
        %v828 = vsub.s32 0, %v827
        %v829 = vrot.slane %v824, %v828
        %v830 = vlaneseq
        %v831 = vshrl.u32 %v830, 7
        %v832 = vsub.s32 1, %v831
        %v833 = vrot.slane %v824, %v832
        %v980 = vunpack.c.l.b16 %v680
        %v981 = vunpack.c.h.b16 %v680
        %v982 = vunpack.c.l.b16 %v681
        %v983 = vunpack.c.h.b16 %v681
        %v984 = vunpack.c.l.b16 %v682
        %v985 = vunpack.c.h.b16 %v682
        %v986 = vunpack.c.l.b16 %v683
        %v987 = vunpack.c.h.b16 %v683
        %v988 = vunpack.c.l.b16 %v684
        %v989 = vunpack.c.h.b16 %v684
        %v990 = vunpack.c.l.b16 %v685
        %v991 = vunpack.c.h.b16 %v685
        %v992 = vunpack.c.l.b16 %v686
        %v993 = vunpack.c.h.b16 %v686
        %v994 = vunpack.c.l.b16 %v687
        %v995 = vunpack.c.h.b16 %v687
        %v996 = vunpack.c.l.b16 %v688
        %v997 = vunpack.c.h.b16 %v688
        %v998 = vunpack.c.l.b16 %v689
        %v999 = vunpack.c.h.b16 %v689
        %v1000 = vunpack.c.l.b16 %v690
        %v1001 = vunpack.c.h.b16 %v690
        %v1002 = vunpack.c.l.b16 %v691
        %v1003 = vunpack.c.h.b16 %v691
        %v1004 = vunpack.c.l.b16 %v692
        %v1005 = vunpack.c.h.b16 %v692
        %v1006 = vunpack.c.l.b16 %v693
        %v1007 = vunpack.c.h.b16 %v693
        %v1008 = vunpack.c.l.b16 %v694
        %v1009 = vunpack.c.h.b16 %v694
        %v1010 = vunpack.c.l.b16 %v695
        %v1011 = vunpack.c.h.b16 %v695
        %v1012 = vunpack.c.l.b16 %v696
        %v1013 = vunpack.c.h.b16 %v696
        %v1014 = vunpack.c.l.b16 %v697
        %v1015 = vunpack.c.h.b16 %v697
        %v1016 = vunpack.c.l.b16 %v698
        %v1017 = vunpack.c.h.b16 %v698
        %v1018 = vunpack.c.l.b16 %v699
        %v1019 = vunpack.c.h.b16 %v699
        %v1020 = vunpack.c.l.b16 %v700
        %v1021 = vunpack.c.h.b16 %v700
        %v1022 = vunpack.c.l.b16 %v701
        %v1023 = vunpack.c.h.b16 %v701
        %v1024 = vunpack.c.l.b16 %v702
        %v1025 = vunpack.c.h.b16 %v702
        %v1026 = vunpack.c.l.b16 %v703
        %v1027 = vunpack.c.h.b16 %v703
        %v1028 = vunpack.c.l.b16 %v704
        %v1029 = vunpack.c.h.b16 %v704
        %v1030 = vunpack.c.l.b16 %v705
        %v1031 = vunpack.c.h.b16 %v705
        %v1032 = vunpack.c.l.b16 %v706
        %v1033 = vunpack.c.h.b16 %v706
        %v1034 = vunpack.c.l.b16 %v707
        %v1035 = vunpack.c.h.b16 %v707
        %v1036 = vunpack.c.l.b16 %v708
        %v1037 = vunpack.c.h.b16 %v708
        %v1038 = vunpack.c.l.b16 %v709
        %v1039 = vunpack.c.h.b16 %v709
        %v1040 = vunpack.c.l.b16 %v710
        %v1041 = vunpack.c.h.b16 %v710
        %v1042 = vunpack.c.l.b16 %v711
        %v1043 = vunpack.c.h.b16 %v711
        %v1044 = vunpack.c.l.b16 %v712
        %v1045 = vunpack.c.h.b16 %v712
        %v1046 = vunpack.c.l.b16 %v713
        %v1047 = vunpack.c.h.b16 %v713
        %v1048 = vunpack.c.l.b16 %v714
        %v1049 = vunpack.c.h.b16 %v714
        %v1050 = vunpack.c.l.b16 %v715
        %v1051 = vunpack.c.h.b16 %v715
        %v1052 = vunpack.c.l.b16 %v716
        %v1053 = vunpack.c.h.b16 %v716
        %v1054 = vunpack.c.l.b16 %v717
        %v1055 = vunpack.c.h.b16 %v717
        %v1056 = vunpack.c.l.b16 %v718
        %v1057 = vunpack.c.h.b16 %v718
        %v1058 = vunpack.c.l.b16 %v719
        %v1059 = vunpack.c.h.b16 %v719
        %v1060 = vunpack.c.l.b16 %v720
        %v1061 = vunpack.c.h.b16 %v720
        %v1062 = vunpack.c.l.b16 %v721
        %v1063 = vunpack.c.h.b16 %v721
        %v1064 = vunpack.c.l.b16 %v722
        %v1065 = vunpack.c.h.b16 %v722
        %v1066 = vunpack.c.l.b16 %v723
        %v1067 = vunpack.c.h.b16 %v723
        %v1068 = vunpack.c.l.b16 %v724
        %v1069 = vunpack.c.h.b16 %v724
        %v1070 = vunpack.c.l.b16 %v725
        %v1071 = vunpack.c.h.b16 %v725
        %v1072 = vunpack.c.l.b16 %v726
        %v1073 = vunpack.c.h.b16 %v726
        %v1074 = vunpack.c.l.b16 %v727
        %v1075 = vunpack.c.h.b16 %v727
        %v1076 = vunpack.c.l.b16 %v728
        %v1077 = vunpack.c.h.b16 %v728
        %v1078 = vunpack.c.l.b16 %v729
        %v1079 = vunpack.c.h.b16 %v729
        %v1080 = vunpack.c.l.b16 %v730
        %v1081 = vunpack.c.h.b16 %v730
        %v1082 = vunpack.c.l.b16 %v731
        %v1083 = vunpack.c.h.b16 %v731
        %v1084 = vunpack.c.l.b16 %v732
        %v1085 = vunpack.c.h.b16 %v732
        %v1086 = vunpack.c.l.b16 %v733
        %v1087 = vunpack.c.h.b16 %v733
        %v1088 = vunpack.c.l.b16 %v734
        %v1089 = vunpack.c.h.b16 %v734
        %v1090 = vunpack.c.l.b16 %v735
        %v1091 = vunpack.c.h.b16 %v735
        %v1092 = vunpack.c.l.b16 %v736
        %v1093 = vunpack.c.h.b16 %v736
        %v1094 = vunpack.c.l.b16 %v737
        %v1095 = vunpack.c.h.b16 %v737
        %v1096 = vunpack.c.l.b16 %v738
        %v1097 = vunpack.c.h.b16 %v738
        %v1098 = vunpack.c.l.b16 %v739
        %v1099 = vunpack.c.h.b16 %v739
        %v1100 = vunpack.c.l.b16 %v740
        %v1101 = vunpack.c.h.b16 %v740
        %v1102 = vunpack.c.l.b16 %v741
        %v1103 = vunpack.c.h.b16 %v741
        %v1104 = vunpack.c.l.b16 %v742
        %v1105 = vunpack.c.h.b16 %v742
        %v1106 = vunpack.c.l.b16 %v743
        %v1107 = vunpack.c.h.b16 %v743
        %v1108 = vunpack.c.l.b16 %v744
        %v1109 = vunpack.c.h.b16 %v744
        %v1110 = vunpack.c.l.b16 %v745
        %v1111 = vunpack.c.h.b16 %v745
        %v1112 = vunpack.c.l.b16 %v746
        %v1113 = vunpack.c.h.b16 %v746
        %v1114 = vunpack.c.l.b16 %v747
        %v1115 = vunpack.c.h.b16 %v747
        %v1116 = vunpack.c.l.b16 %v748
        %v1117 = vunpack.c.h.b16 %v748
        %v1118 = vunpack.c.l.b16 %v749
        %v1119 = vunpack.c.h.b16 %v749
        %v1120 = vunpack.c.l.b16 %v750
        %v1121 = vunpack.c.h.b16 %v750
        %v1122 = vunpack.c.l.b16 %v751
        %v1123 = vunpack.c.h.b16 %v751
        %v1124 = vunpack.c.l.b16 %v752
        %v1125 = vunpack.c.h.b16 %v752
        %v1126 = vunpack.c.l.b16 %v753
        %v1127 = vunpack.c.h.b16 %v753
        %v1128 = vunpack.c.l.b16 %v754
        %v1129 = vunpack.c.h.b16 %v754
        %v1130 = vunpack.c.l.b16 %v755
        %v1131 = vunpack.c.h.b16 %v755
        %v1132 = vunpack.c.l.b16 %v756
        %v1133 = vunpack.c.h.b16 %v756
        %v1134 = vunpack.c.l.b16 %v757
        %v1135 = vunpack.c.h.b16 %v757
        %v1136 = vunpack.c.l.b16 %v758
        %v1137 = vunpack.c.h.b16 %v758
        %v1138 = vunpack.c.l.b16 %v759
        %v1139 = vunpack.c.h.b16 %v759
        %v1140 = vunpack.c.l.b16 %v760
        %v1141 = vunpack.c.h.b16 %v760
        %v1142 = vunpack.c.l.b16 %v761
        %v1143 = vunpack.c.h.b16 %v761
        %v1144 = vunpack.c.l.b16 %v762
        %v1145 = vunpack.c.h.b16 %v762
        %v1146 = vunpack.c.l.b16 %v763
        %v1147 = vunpack.c.h.b16 %v763
        %v1148 = vunpack.c.l.b16 %v764
        %v1149 = vunpack.c.h.b16 %v764
        %v1150 = vunpack.c.l.b16 %v765
        %v1151 = vunpack.c.h.b16 %v765
        %v1152 = vunpack.c.l.b16 %v766
        %v1153 = vunpack.c.h.b16 %v766
        %v1154 = vunpack.c.l.b16 %v767
        %v1155 = vunpack.c.h.b16 %v767
        %v1156 = vunpack.c.l.b16 %v768
        %v1157 = vunpack.c.h.b16 %v768
        %v1158 = vunpack.c.l.b16 %v769
        %v1159 = vunpack.c.h.b16 %v769
        %v1160 = vunpack.c.l.b16 %v770
        %v1161 = vunpack.c.h.b16 %v770
        %v1162 = vunpack.c.l.b16 %v771
        %v1163 = vunpack.c.h.b16 %v771
        %v1164 = vunpack.c.l.b16 %v772
        %v1165 = vunpack.c.h.b16 %v772
        %v1166 = vunpack.c.l.b16 %v773
        %v1167 = vunpack.c.h.b16 %v773
        %v1168 = vunpack.c.l.b16 %v774
        %v1169 = vunpack.c.h.b16 %v774
        %v1170 = vunpack.c.l.b16 %v775
        %v1171 = vunpack.c.h.b16 %v775
        %v1172 = vunpack.c.l.b16 %v776
        %v1173 = vunpack.c.h.b16 %v776
        %v1174 = vunpack.c.l.b16 %v777
        %v1175 = vunpack.c.h.b16 %v777
        %v1176 = vunpack.c.l.b16 %v778
        %v1177 = vunpack.c.h.b16 %v778
        %v1178 = vunpack.c.l.b16 %v779
        %v1179 = vunpack.c.h.b16 %v779
        %v1180 = vunpack.c.l.b16 %v780
        %v1181 = vunpack.c.h.b16 %v780
        %v1182 = vunpack.c.l.b16 %v781
        %v1183 = vunpack.c.h.b16 %v781
        %v1184 = vunpack.c.l.b16 %v782
        %v1185 = vunpack.c.h.b16 %v782
        %v1186 = vunpack.c.l.b16 %v783
        %v1187 = vunpack.c.h.b16 %v783
        %v1188 = vunpack.c.l.b16 %v784
        %v1189 = vunpack.c.h.b16 %v784
        %v1190 = vunpack.c.l.b16 %v785
        %v1191 = vunpack.c.h.b16 %v785
        %v1192 = vunpack.c.l.b16 %v786
        %v1193 = vunpack.c.h.b16 %v786
        %v1194 = vunpack.c.l.b16 %v787
        %v1195 = vunpack.c.h.b16 %v787
        %v1196 = vunpack.c.l.b16 %v788
        %v1197 = vunpack.c.h.b16 %v788
        %v1198 = vunpack.c.l.b16 %v789
        %v1199 = vunpack.c.h.b16 %v789
        %v1200 = vunpack.c.l.b16 %v790
        %v1201 = vunpack.c.h.b16 %v790
        %v1202 = vunpack.c.l.b16 %v791
        %v1203 = vunpack.c.h.b16 %v791
        %v1204 = vunpack.c.l.b16 %v792
        %v1205 = vunpack.c.h.b16 %v792
        %v1206 = vunpack.c.l.b16 %v793
        %v1207 = vunpack.c.h.b16 %v793
        %v1208 = vunpack.c.l.b16 %v794
        %v1209 = vunpack.c.h.b16 %v794
        %v1210 = vunpack.c.l.b16 %v795
        %v1211 = vunpack.c.h.b16 %v795
        %v1212 = vunpack.c.l.b16 %v796
        %v1213 = vunpack.c.h.b16 %v796
        %v1214 = vunpack.c.l.b16 %v797
        %v1215 = vunpack.c.h.b16 %v797
        %v1216 = vunpack.c.l.b16 %v798
        %v1217 = vunpack.c.h.b16 %v798
        %v1218 = vunpack.c.l.b16 %v799
        %v1219 = vunpack.c.h.b16 %v799
        %v1220 = vunpack.c.l.b16 %v800
        %v1221 = vunpack.c.h.b16 %v800
        %v1222 = vunpack.c.l.b16 %v801
        %v1223 = vunpack.c.h.b16 %v801
        %v1224 = vunpack.c.l.b16 %v802
        %v1225 = vunpack.c.h.b16 %v802
        %v1226 = vunpack.c.l.b16 %v803
        %v1227 = vunpack.c.h.b16 %v803
        %v1228 = vunpack.c.l.b16 %v804
        %v1229 = vunpack.c.h.b16 %v804
        %v1230 = vunpack.c.l.b16 %v805
        %v1231 = vunpack.c.h.b16 %v805
        %v1232 = vunpack.c.l.b16 %v806
        %v1233 = vunpack.c.h.b16 %v806
        %v1234 = vunpack.c.l.b16 %v807
        %v1235 = vunpack.c.h.b16 %v807
        %v1236 = vunpack.c.l.b16 %v808
        %v1237 = vunpack.c.h.b16 %v808
        %v1238 = vunpack.c.l.b16 %v809
        %v1239 = vunpack.c.h.b16 %v809
        %v1240 = vunpack.c.l.b16 %v810
        %v1241 = vunpack.c.h.b16 %v810
        %v1242 = vunpack.c.l.b16 %v811
        %v1243 = vunpack.c.h.b16 %v811
        %v1244 = vunpack.c.l.b16 %v812
        %v1245 = vunpack.c.h.b16 %v812
        %v1246 = vunpack.c.l.b16 %v813
        %v1247 = vunpack.c.h.b16 %v813
        %v1248 = vunpack.c.l.b16 %v814
        %v1249 = vunpack.c.h.b16 %v814
        %v1250 = vunpack.c.l.b16 %v815
        %v1251 = vunpack.c.h.b16 %v815
        %v1252 = vunpack.c.l.b16 %v816
        %v1253 = vunpack.c.h.b16 %v816
        %v1254 = vunpack.c.l.b16 %v817
        %v1255 = vunpack.c.h.b16 %v817
        %v1256 = vunpack.c.l.b16 %v818
        %v1257 = vunpack.c.h.b16 %v818
        %v1258 = vunpack.c.l.b16 %v819
        %v1259 = vunpack.c.h.b16 %v819
        %v1260 = vunpack.c.l.b16 %v820
        %v1261 = vunpack.c.h.b16 %v820
        %v1262 = vunpack.c.l.b16 %v821
        %v1263 = vunpack.c.h.b16 %v821
        %v1264 = vunpack.c.l.b16 %v822
        %v1265 = vunpack.c.h.b16 %v822
        %v1266 = vunpack.c.l.b16 %v823
        %v1267 = vunpack.c.h.b16 %v823
        %v1268 = vpack.c.b16 %v982, %v980
        %v1269 = vpack.c.b16 %v983, %v981
        %v1270 = vpack.c.b16 %v986, %v984
        %v1271 = vpack.c.b16 %v987, %v985
        %v1272 = vpack.c.b16 %v990, %v988
        %v1273 = vpack.c.b16 %v991, %v989
        %v1274 = vpack.c.b16 %v994, %v992
        %v1275 = vpack.c.b16 %v995, %v993
        %v1276 = vpack.c.b16 %v998, %v996
        %v1277 = vpack.c.b16 %v999, %v997
        %v1278 = vpack.c.b16 %v1002, %v1000
        %v1279 = vpack.c.b16 %v1003, %v1001
        %v1280 = vpack.c.b16 %v1006, %v1004
        %v1281 = vpack.c.b16 %v1007, %v1005
        %v1282 = vpack.c.b16 %v1010, %v1008
        %v1283 = vpack.c.b16 %v1011, %v1009
        %v1284 = vpack.c.b16 %v1014, %v1012
        %v1285 = vpack.c.b16 %v1015, %v1013
        %v1286 = vpack.c.b16 %v1018, %v1016
        %v1287 = vpack.c.b16 %v1019, %v1017
        %v1288 = vpack.c.b16 %v1022, %v1020
        %v1289 = vpack.c.b16 %v1023, %v1021
        %v1290 = vpack.c.b16 %v1026, %v1024
        %v1291 = vpack.c.b16 %v1027, %v1025
        %v1292 = vpack.c.b16 %v1030, %v1028
        %v1293 = vpack.c.b16 %v1031, %v1029
        %v1294 = vpack.c.b16 %v1034, %v1032
        %v1295 = vpack.c.b16 %v1035, %v1033
        %v1296 = vpack.c.b16 %v1038, %v1036
        %v1297 = vpack.c.b16 %v1039, %v1037
        %v1298 = vpack.c.b16 %v1042, %v1040
        %v1299 = vpack.c.b16 %v1043, %v1041
        %v1300 = vpack.c.b16 %v1046, %v1044
        %v1301 = vpack.c.b16 %v1047, %v1045
        %v1302 = vpack.c.b16 %v1050, %v1048
        %v1303 = vpack.c.b16 %v1051, %v1049
        %v1304 = vpack.c.b16 %v1054, %v1052
        %v1305 = vpack.c.b16 %v1055, %v1053
        %v1306 = vpack.c.b16 %v1058, %v1056
        %v1307 = vpack.c.b16 %v1059, %v1057
        %v1308 = vpack.c.b16 %v1062, %v1060
        %v1309 = vpack.c.b16 %v1063, %v1061
        %v1310 = vpack.c.b16 %v1066, %v1064
        %v1311 = vpack.c.b16 %v1067, %v1065
        %v1312 = vpack.c.b16 %v1070, %v1068
        %v1313 = vpack.c.b16 %v1071, %v1069
        %v1314 = vpack.c.b16 %v1074, %v1072
        %v1315 = vpack.c.b16 %v1075, %v1073
        %v1316 = vpack.c.b16 %v1078, %v1076
        %v1317 = vpack.c.b16 %v1079, %v1077
        %v1318 = vpack.c.b16 %v1082, %v1080
        %v1319 = vpack.c.b16 %v1083, %v1081
        %v1320 = vpack.c.b16 %v1086, %v1084
        %v1321 = vpack.c.b16 %v1087, %v1085
        %v1322 = vpack.c.b16 %v1090, %v1088
        %v1323 = vpack.c.b16 %v1091, %v1089
        %v1324 = vpack.c.b16 %v1094, %v1092
        %v1325 = vpack.c.b16 %v1095, %v1093
        %v1326 = vpack.c.b16 %v1098, %v1096
        %v1327 = vpack.c.b16 %v1099, %v1097
        %v1328 = vpack.c.b16 %v1102, %v1100
        %v1329 = vpack.c.b16 %v1103, %v1101
        %v1330 = vpack.c.b16 %v1106, %v1104
        %v1331 = vpack.c.b16 %v1107, %v1105
        %v1332 = vpack.c.b16 %v1110, %v1108
        %v1333 = vpack.c.b16 %v1111, %v1109
        %v1334 = vpack.c.b16 %v1114, %v1112
        %v1335 = vpack.c.b16 %v1115, %v1113
        %v1336 = vpack.c.b16 %v1118, %v1116
        %v1337 = vpack.c.b16 %v1119, %v1117
        %v1338 = vpack.c.b16 %v1122, %v1120
        %v1339 = vpack.c.b16 %v1123, %v1121
        %v1340 = vpack.c.b16 %v1126, %v1124
        %v1341 = vpack.c.b16 %v1127, %v1125
        %v1342 = vpack.c.b16 %v1130, %v1128
        %v1343 = vpack.c.b16 %v1131, %v1129
        %v1344 = vpack.c.b16 %v1134, %v1132
        %v1345 = vpack.c.b16 %v1135, %v1133
        %v1346 = vpack.c.b16 %v1138, %v1136
        %v1347 = vpack.c.b16 %v1139, %v1137
        %v1348 = vpack.c.b16 %v1142, %v1140
        %v1349 = vpack.c.b16 %v1143, %v1141
        %v1350 = vpack.c.b16 %v1146, %v1144
        %v1351 = vpack.c.b16 %v1147, %v1145
        %v1352 = vpack.c.b16 %v1150, %v1148
        %v1353 = vpack.c.b16 %v1151, %v1149
        %v1354 = vpack.c.b16 %v1154, %v1152
        %v1355 = vpack.c.b16 %v1155, %v1153
        %v1356 = vpack.c.b16 %v1158, %v1156
        %v1357 = vpack.c.b16 %v1159, %v1157
        %v1358 = vpack.c.b16 %v1162, %v1160
        %v1359 = vpack.c.b16 %v1163, %v1161
        %v1360 = vpack.c.b16 %v1166, %v1164
        %v1361 = vpack.c.b16 %v1167, %v1165
        %v1362 = vpack.c.b16 %v1170, %v1168
        %v1363 = vpack.c.b16 %v1171, %v1169
        %v1364 = vpack.c.b16 %v1174, %v1172
        %v1365 = vpack.c.b16 %v1175, %v1173
        %v1366 = vpack.c.b16 %v1178, %v1176
        %v1367 = vpack.c.b16 %v1179, %v1177
        %v1368 = vpack.c.b16 %v1182, %v1180
        %v1369 = vpack.c.b16 %v1183, %v1181
        %v1370 = vpack.c.b16 %v1186, %v1184
        %v1371 = vpack.c.b16 %v1187, %v1185
        %v1372 = vpack.c.b16 %v1190, %v1188
        %v1373 = vpack.c.b16 %v1191, %v1189
        %v1374 = vpack.c.b16 %v1194, %v1192
        %v1375 = vpack.c.b16 %v1195, %v1193
        %v1376 = vpack.c.b16 %v1198, %v1196
        %v1377 = vpack.c.b16 %v1199, %v1197
        %v1378 = vpack.c.b16 %v1202, %v1200
        %v1379 = vpack.c.b16 %v1203, %v1201
        %v1380 = vpack.c.b16 %v1206, %v1204
        %v1381 = vpack.c.b16 %v1207, %v1205
        %v1382 = vpack.c.b16 %v1210, %v1208
        %v1383 = vpack.c.b16 %v1211, %v1209
        %v1384 = vpack.c.b16 %v1214, %v1212
        %v1385 = vpack.c.b16 %v1215, %v1213
        %v1386 = vpack.c.b16 %v1218, %v1216
        %v1387 = vpack.c.b16 %v1219, %v1217
        %v1388 = vpack.c.b16 %v1222, %v1220
        %v1389 = vpack.c.b16 %v1223, %v1221
        %v1390 = vpack.c.b16 %v1226, %v1224
        %v1391 = vpack.c.b16 %v1227, %v1225
        %v1392 = vpack.c.b16 %v1230, %v1228
        %v1393 = vpack.c.b16 %v1231, %v1229
        %v1394 = vpack.c.b16 %v1234, %v1232
        %v1395 = vpack.c.b16 %v1235, %v1233
        %v1396 = vpack.c.b16 %v1238, %v1236
        %v1397 = vpack.c.b16 %v1239, %v1237
        %v1398 = vpack.c.b16 %v1242, %v1240
        %v1399 = vpack.c.b16 %v1243, %v1241
        %v1400 = vpack.c.b16 %v1246, %v1244
        %v1401 = vpack.c.b16 %v1247, %v1245
        %v1402 = vpack.c.b16 %v1250, %v1248
        %v1403 = vpack.c.b16 %v1251, %v1249
        %v1404 = vpack.c.b16 %v1254, %v1252
        %v1405 = vpack.c.b16 %v1255, %v1253
        %v1406 = vpack.c.b16 %v1258, %v1256
        %v1407 = vpack.c.b16 %v1259, %v1257
        %v1408 = vpack.c.b16 %v1262, %v1260
        %v1409 = vpack.c.b16 %v1263, %v1261
        %v1410 = vpack.c.b16 %v1266, %v1264
        %v1411 = vpack.c.b16 %v1267, %v1265
        %1556 = vmatprep.subr.bf16.mxu0 %v1283
        %1557 = vmatpush1.bf16.msra.mxu0 %v1282
        %1558 = vmatprep.subr.bf16.mxu0 %v1281
        %1559 = vmatpush1.bf16.msra.mxu0 %v1280
        %1560 = vmatprep.subr.bf16.mxu0 %v1279
        %1561 = vmatpush1.bf16.msra.mxu0 %v1278
        %1562 = vmatprep.subr.bf16.mxu0 %v1277
        %1563 = vmatpush1.bf16.msra.mxu0 %v1276
        %1564 = vmatprep.subr.bf16.mxu0 %v1275
        %1565 = vmatpush1.bf16.msra.mxu0 %v1274
        %1566 = vmatprep.subr.bf16.mxu0 %v1273
        %1567 = vmatpush1.bf16.msra.mxu0 %v1272
        %1568 = vmatprep.subr.bf16.mxu0 %v1271
        %1569 = vmatpush1.bf16.msra.mxu0 %v1270
        %1570 = vmatprep.subr.bf16.mxu0 %v1269
        %1571 = vmatpush1.bf16.msra.mxu0 %v1268
        %1572 = vmatprep.subr.bf16.mxu0 %v1299
        %1573 = vmatpush2.bf16.msra.mxu0 %v1298
        %1574 = vmatprep.subr.bf16.mxu0 %v1297
        %1575 = vmatpush2.bf16.msra.mxu0 %v1296
        %1576 = vmatprep.subr.bf16.mxu0 %v1295
        %1577 = vmatpush2.bf16.msra.mxu0 %v1294
        %1578 = vmatprep.subr.bf16.mxu0 %v1293
        %1579 = vmatpush2.bf16.msra.mxu0 %v1292
        %1580 = vmatprep.subr.bf16.mxu0 %v1291
        %1581 = vmatpush2.bf16.msra.mxu0 %v1290
        %1582 = vmatprep.subr.bf16.mxu0 %v1289
        %1583 = vmatpush2.bf16.msra.mxu0 %v1288
        %1584 = vmatprep.subr.bf16.mxu0 %v1287
        %1585 = vmatpush2.bf16.msra.mxu0 %v1286
        %1586 = vmatprep.subr.bf16.mxu0 %v1285
        %1587 = vmatpush2.bf16.msra.mxu0 %v1284
        %1588 = vmatprep.mubr.bf16.mxu0 %v589
        %1589 = vmatmul.mubr.bf16.gmra.mxu0 %v588
        %v1590 = vpop.f32.mrf.mxu0
        %v1591 = vadd.f32 %v829, %v1590
        %v1592 = vpop.f32.mrf.mxu0
        %v1593 = vadd.f32 %v833, %v1592
        %v1594 = vpop.f32.mrf.mxu0
        %v1595 = vadd.f32 %v829, %v1594
        %v1596 = vpop.f32.mrf.mxu0
        %v1597 = vadd.f32 %v833, %v1596
        %1598 = vmatprep.mubr.bf16.mxu0 %v592
        %1599 = vmatmul.mubr.bf16.gmra.mxu0 %v591
        %v1600 = vpop.f32.mrf.mxu0
        %v1601 = vadd.f32 %v829, %v1600
        %v1602 = vpop.f32.mrf.mxu0
        %v1603 = vadd.f32 %v833, %v1602
        %v1604 = vpop.f32.mrf.mxu0
        %v1605 = vadd.f32 %v829, %v1604
        %v1606 = vpop.f32.mrf.mxu0
        %v1607 = vadd.f32 %v833, %v1606
        %1608 = vmatprep.mubr.bf16.mxu0 %v595
        %1609 = vmatmul.mubr.bf16.gmra.mxu0 %v594
        %v1610 = vpop.f32.mrf.mxu0
        %v1611 = vadd.f32 %v829, %v1610
        %v1612 = vpop.f32.mrf.mxu0
        %v1613 = vadd.f32 %v833, %v1612
        %v1614 = vpop.f32.mrf.mxu0
        %v1615 = vadd.f32 %v829, %v1614
        %v1616 = vpop.f32.mrf.mxu0
        %v1617 = vadd.f32 %v833, %v1616
        %1618 = vmatprep.mubr.bf16.mxu0 %v598
        %1619 = vmatmul.mubr.bf16.gmra.mxu0 %v597
        %v1620 = vpop.f32.mrf.mxu0
        %v1621 = vadd.f32 %v829, %v1620
        %v1622 = vpop.f32.mrf.mxu0
        %v1623 = vadd.f32 %v833, %v1622
        %v1624 = vpop.f32.mrf.mxu0
        %v1625 = vadd.f32 %v829, %v1624
        %v1626 = vpop.f32.mrf.mxu0
        %v1627 = vadd.f32 %v833, %v1626
        %1628 = vdwg.mxu0
        %1629 = vmatprep.subr.bf16.mxu0 %v1315
        %1630 = vmatpush1.bf16.msra.mxu0 %v1314
        %1631 = vmatprep.subr.bf16.mxu0 %v1313
        %1632 = vmatpush1.bf16.msra.mxu0 %v1312
        %1633 = vmatprep.subr.bf16.mxu0 %v1311
        %1634 = vmatpush1.bf16.msra.mxu0 %v1310
        %1635 = vmatprep.subr.bf16.mxu0 %v1309
        %1636 = vmatpush1.bf16.msra.mxu0 %v1308
        %1637 = vmatprep.subr.bf16.mxu0 %v1307
        %1638 = vmatpush1.bf16.msra.mxu0 %v1306
        %1639 = vmatprep.subr.bf16.mxu0 %v1305
        %1640 = vmatpush1.bf16.msra.mxu0 %v1304
        %1641 = vmatprep.subr.bf16.mxu0 %v1303
        %1642 = vmatpush1.bf16.msra.mxu0 %v1302
        %1643 = vmatprep.subr.bf16.mxu0 %v1301
        %1644 = vmatpush1.bf16.msra.mxu0 %v1300
        %1645 = vmatprep.subr.bf16.mxu0 %v1331
        %1646 = vmatpush2.bf16.msra.mxu0 %v1330
        %1647 = vmatprep.subr.bf16.mxu0 %v1329
        %1648 = vmatpush2.bf16.msra.mxu0 %v1328
        %1649 = vmatprep.subr.bf16.mxu0 %v1327
        %1650 = vmatpush2.bf16.msra.mxu0 %v1326
        %1651 = vmatprep.subr.bf16.mxu0 %v1325
        %1652 = vmatpush2.bf16.msra.mxu0 %v1324
        %1653 = vmatprep.subr.bf16.mxu0 %v1323
        %1654 = vmatpush2.bf16.msra.mxu0 %v1322
        %1655 = vmatprep.subr.bf16.mxu0 %v1321
        %1656 = vmatpush2.bf16.msra.mxu0 %v1320
        %1657 = vmatprep.subr.bf16.mxu0 %v1319
        %1658 = vmatpush2.bf16.msra.mxu0 %v1318
        %1659 = vmatprep.subr.bf16.mxu0 %v1317
        %1660 = vmatpush2.bf16.msra.mxu0 %v1316
        %1661 = vmatprep.mubr.bf16.mxu0 %v600
        %1662 = vmatmul.mubr.bf16.gmra.mxu0 %v590
        %v1663 = vpop.f32.mrf.mxu0
        %v1664 = vadd.f32 %v1591, %v1663
        %v1665 = vpop.f32.mrf.mxu0
        %v1666 = vadd.f32 %v1593, %v1665
        %v1667 = vpop.f32.mrf.mxu0
        %v1668 = vadd.f32 %v1595, %v1667
        %v1669 = vpop.f32.mrf.mxu0
        %v1670 = vadd.f32 %v1597, %v1669
        %1671 = vmatprep.mubr.bf16.mxu0 %v603
        %1672 = vmatmul.mubr.bf16.gmra.mxu0 %v593
        %v1673 = vpop.f32.mrf.mxu0
        %v1674 = vadd.f32 %v1601, %v1673
        %v1675 = vpop.f32.mrf.mxu0
        %v1676 = vadd.f32 %v1603, %v1675
        %v1677 = vpop.f32.mrf.mxu0
        %v1678 = vadd.f32 %v1605, %v1677
        %v1679 = vpop.f32.mrf.mxu0
        %v1680 = vadd.f32 %v1607, %v1679
        %1681 = vmatprep.mubr.bf16.mxu0 %v606
        %1682 = vmatmul.mubr.bf16.gmra.mxu0 %v596
        %v1683 = vpop.f32.mrf.mxu0
        %v1684 = vadd.f32 %v1611, %v1683
        %v1685 = vpop.f32.mrf.mxu0
        %v1686 = vadd.f32 %v1613, %v1685
        %v1687 = vpop.f32.mrf.mxu0
        %v1688 = vadd.f32 %v1615, %v1687
        %v1689 = vpop.f32.mrf.mxu0
        %v1690 = vadd.f32 %v1617, %v1689
        %1691 = vmatprep.mubr.bf16.mxu0 %v609
        %1692 = vmatmul.mubr.bf16.gmra.mxu0 %v599
        %v1693 = vpop.f32.mrf.mxu0
        %v1694 = vadd.f32 %v1621, %v1693
        %v1695 = vpop.f32.mrf.mxu0
        %v1696 = vadd.f32 %v1623, %v1695
        %v1697 = vpop.f32.mrf.mxu0
        %v1698 = vadd.f32 %v1625, %v1697
        %v1699 = vpop.f32.mrf.mxu0
        %v1700 = vadd.f32 %v1627, %v1699
        %1701 = vdwg.mxu0
        %1702 = vmatprep.subr.bf16.mxu0 %v1347
        %1703 = vmatpush1.bf16.msra.mxu0 %v1346
        %1704 = vmatprep.subr.bf16.mxu0 %v1345
        %1705 = vmatpush1.bf16.msra.mxu0 %v1344
        %1706 = vmatprep.subr.bf16.mxu0 %v1343
        %1707 = vmatpush1.bf16.msra.mxu0 %v1342
        %1708 = vmatprep.subr.bf16.mxu0 %v1341
        %1709 = vmatpush1.bf16.msra.mxu0 %v1340
        %1710 = vmatprep.subr.bf16.mxu0 %v1339
        %1711 = vmatpush1.bf16.msra.mxu0 %v1338
        %1712 = vmatprep.subr.bf16.mxu0 %v1337
        %1713 = vmatpush1.bf16.msra.mxu0 %v1336
        %1714 = vmatprep.subr.bf16.mxu0 %v1335
        %1715 = vmatpush1.bf16.msra.mxu0 %v1334
        %1716 = vmatprep.subr.bf16.mxu0 %v1333
        %1717 = vmatpush1.bf16.msra.mxu0 %v1332
        %1718 = vmatprep.subr.bf16.mxu0 %v1363
        %1719 = vmatpush2.bf16.msra.mxu0 %v1362
        %1720 = vmatprep.subr.bf16.mxu0 %v1361
        %1721 = vmatpush2.bf16.msra.mxu0 %v1360
        %1722 = vmatprep.subr.bf16.mxu0 %v1359
        %1723 = vmatpush2.bf16.msra.mxu0 %v1358
        %1724 = vmatprep.subr.bf16.mxu0 %v1357
        %1725 = vmatpush2.bf16.msra.mxu0 %v1356
        %1726 = vmatprep.subr.bf16.mxu0 %v1355
        %1727 = vmatpush2.bf16.msra.mxu0 %v1354
        %1728 = vmatprep.subr.bf16.mxu0 %v1353
        %1729 = vmatpush2.bf16.msra.mxu0 %v1352
        %1730 = vmatprep.subr.bf16.mxu0 %v1351
        %1731 = vmatpush2.bf16.msra.mxu0 %v1350
        %1732 = vmatprep.subr.bf16.mxu0 %v1349
        %1733 = vmatpush2.bf16.msra.mxu0 %v1348
        %1734 = vmatprep.mubr.bf16.mxu0 %v602
        %1735 = vmatmul.mubr.bf16.gmra.mxu0 %v601
        %v1736 = vpop.f32.mrf.mxu0
        %v1737 = vadd.f32 %v1664, %v1736
        %v1738 = vpop.f32.mrf.mxu0
        %v1739 = vadd.f32 %v1666, %v1738
        %v1740 = vpop.f32.mrf.mxu0
        %v1741 = vadd.f32 %v1668, %v1740
        %v1742 = vpop.f32.mrf.mxu0
        %v1743 = vadd.f32 %v1670, %v1742
        %1744 = vmatprep.mubr.bf16.mxu0 %v605
        %1745 = vmatmul.mubr.bf16.gmra.mxu0 %v604
        %v1746 = vpop.f32.mrf.mxu0
        %v1747 = vadd.f32 %v1674, %v1746
        %v1748 = vpop.f32.mrf.mxu0
        %v1749 = vadd.f32 %v1676, %v1748
        %v1750 = vpop.f32.mrf.mxu0
        %v1751 = vadd.f32 %v1678, %v1750
        %v1752 = vpop.f32.mrf.mxu0
        %v1753 = vadd.f32 %v1680, %v1752
        %1754 = vmatprep.mubr.bf16.mxu0 %v608
        %1755 = vmatmul.mubr.bf16.gmra.mxu0 %v607
        %v1756 = vpop.f32.mrf.mxu0
        %v1757 = vadd.f32 %v1684, %v1756
        %v1758 = vpop.f32.mrf.mxu0
        %v1759 = vadd.f32 %v1686, %v1758
        %v1760 = vpop.f32.mrf.mxu0
        %v1761 = vadd.f32 %v1688, %v1760
        %v1762 = vpop.f32.mrf.mxu0
        %v1763 = vadd.f32 %v1690, %v1762
        %1764 = vmatprep.mubr.bf16.mxu0 %v611
        %1765 = vmatmul.mubr.bf16.gmra.mxu0 %v610
        %v1766 = vpop.f32.mrf.mxu0
        %v1767 = vadd.f32 %v1694, %v1766
        %v1768 = vpop.f32.mrf.mxu0
        %v1769 = vadd.f32 %v1696, %v1768
        %v1770 = vpop.f32.mrf.mxu0
        %v1771 = vadd.f32 %v1698, %v1770
        %v1772 = vpop.f32.mrf.mxu0
        %v1773 = vadd.f32 %v1700, %v1772
        %1774 = vdwg.mxu0
        %1775 = vmatprep.subr.bf16.mxu0 %v1379
        %1776 = vmatpush1.bf16.msra.mxu0 %v1378
        %1777 = vmatprep.subr.bf16.mxu0 %v1377
        %1778 = vmatpush1.bf16.msra.mxu0 %v1376
        %1779 = vmatprep.subr.bf16.mxu0 %v1375
        %1780 = vmatpush1.bf16.msra.mxu0 %v1374
        %1781 = vmatprep.subr.bf16.mxu0 %v1373
        %1782 = vmatpush1.bf16.msra.mxu0 %v1372
        %1783 = vmatprep.subr.bf16.mxu0 %v1371
        %1784 = vmatpush1.bf16.msra.mxu0 %v1370
        %1785 = vmatprep.subr.bf16.mxu0 %v1369
        %1786 = vmatpush1.bf16.msra.mxu0 %v1368
        %1787 = vmatprep.subr.bf16.mxu0 %v1367
        %1788 = vmatpush1.bf16.msra.mxu0 %v1366
        %1789 = vmatprep.subr.bf16.mxu0 %v1365
        %1790 = vmatpush1.bf16.msra.mxu0 %v1364
        %1791 = vmatprep.subr.bf16.mxu0 %v1395
        %1792 = vmatpush2.bf16.msra.mxu0 %v1394
        %1793 = vmatprep.subr.bf16.mxu0 %v1393
        %1794 = vmatpush2.bf16.msra.mxu0 %v1392
        %1795 = vmatprep.subr.bf16.mxu0 %v1391
        %1796 = vmatpush2.bf16.msra.mxu0 %v1390
        %1797 = vmatprep.subr.bf16.mxu0 %v1389
        %1798 = vmatpush2.bf16.msra.mxu0 %v1388
        %1799 = vmatprep.subr.bf16.mxu0 %v1387
        %1800 = vmatpush2.bf16.msra.mxu0 %v1386
        %1801 = vmatprep.subr.bf16.mxu0 %v1385
        %1802 = vmatpush2.bf16.msra.mxu0 %v1384
        %1803 = vmatprep.subr.bf16.mxu0 %v1383
        %1804 = vmatpush2.bf16.msra.mxu0 %v1382
        %1805 = vmatprep.subr.bf16.mxu0 %v1381
        %1806 = vmatpush2.bf16.msra.mxu0 %v1380
        %1807 = vmatprep.mubr.bf16.mxu0 %v669
        %1808 = vmatmul.mubr.bf16.gmra.mxu0 %v668
        %v1809 = vpop.f32.mrf.mxu0
        %v1810 = vadd.f32 %v1737, %v1809
        %v1811 = vpop.f32.mrf.mxu0
        %v1812 = vadd.f32 %v1739, %v1811
        %v1813 = vpop.f32.mrf.mxu0
        %v1814 = vadd.f32 %v1741, %v1813
        %v1815 = vpop.f32.mrf.mxu0
        %v1816 = vadd.f32 %v1743, %v1815
        %1817 = vmatprep.mubr.bf16.mxu0 %v672
        %1818 = vmatmul.mubr.bf16.gmra.mxu0 %v671
        %v1819 = vpop.f32.mrf.mxu0
        %v1820 = vadd.f32 %v1747, %v1819
        %v1821 = vpop.f32.mrf.mxu0
        %v1822 = vadd.f32 %v1749, %v1821
        %v1823 = vpop.f32.mrf.mxu0
        %v1824 = vadd.f32 %v1751, %v1823
        %v1825 = vpop.f32.mrf.mxu0
        %v1826 = vadd.f32 %v1753, %v1825
        %1827 = vmatprep.mubr.bf16.mxu0 %v675
        %1828 = vmatmul.mubr.bf16.gmra.mxu0 %v674
        %v1829 = vpop.f32.mrf.mxu0
        %v1830 = vadd.f32 %v1757, %v1829
        %v1831 = vpop.f32.mrf.mxu0
        %v1832 = vadd.f32 %v1759, %v1831
        %v1833 = vpop.f32.mrf.mxu0
        %v1834 = vadd.f32 %v1761, %v1833
        %v1835 = vpop.f32.mrf.mxu0
        %v1836 = vadd.f32 %v1763, %v1835
        %1837 = vmatprep.mubr.bf16.mxu0 %v678
        %1838 = vmatmul.mubr.bf16.gmra.mxu0 %v677
        %v1839 = vpop.f32.mrf.mxu0
        %v1840 = vadd.f32 %v1767, %v1839
        %v1841 = vpop.f32.mrf.mxu0
        %v1842 = vadd.f32 %v1769, %v1841
        %v1843 = vpop.f32.mrf.mxu0
        %v1844 = vadd.f32 %v1771, %v1843
        %v1845 = vpop.f32.mrf.mxu0
        %v1846 = vadd.f32 %v1773, %v1845
        %1847 = vdwg.mxu0
        %1848 = vmatprep.subr.bf16.mxu0 %v1411
        %1849 = vmatpush1.bf16.msra.mxu0 %v1410
        %1850 = vmatprep.subr.bf16.mxu0 %v1409
        %1851 = vmatpush1.bf16.msra.mxu0 %v1408
        %1852 = vmatprep.subr.bf16.mxu0 %v1407
        %1853 = vmatpush1.bf16.msra.mxu0 %v1406
        %1854 = vmatprep.subr.bf16.mxu0 %v1405
        %1855 = vmatpush1.bf16.msra.mxu0 %v1404
        %1856 = vmatprep.subr.bf16.mxu0 %v1403
        %1857 = vmatpush1.bf16.msra.mxu0 %v1402
        %1858 = vmatprep.subr.bf16.mxu0 %v1401
        %1859 = vmatpush1.bf16.msra.mxu0 %v1400
        %1860 = vmatprep.subr.bf16.mxu0 %v1399
        %1861 = vmatpush1.bf16.msra.mxu0 %v1398
        %1862 = vmatprep.subr.bf16.mxu0 %v1397
        %1863 = vmatpush1.bf16.msra.mxu0 %v1396
        %1864 = vmatprep.subr.bf16.mxu0 0
        %1865 = vmatpush2.bf16.msra.mxu0 0
        %1866 = vmatprep.subr.bf16.mxu0 0
        %1867 = vmatpush2.bf16.msra.mxu0 0
        %1868 = vmatprep.subr.bf16.mxu0 0
        %1869 = vmatpush2.bf16.msra.mxu0 0
        %1870 = vmatprep.subr.bf16.mxu0 0
        %1871 = vmatpush2.bf16.msra.mxu0 0
        %1872 = vmatprep.subr.bf16.mxu0 0
        %1873 = vmatpush2.bf16.msra.mxu0 0
        %1874 = vmatprep.subr.bf16.mxu0 0
        %1875 = vmatpush2.bf16.msra.mxu0 0
        %1876 = vmatprep.subr.bf16.mxu0 0
        %1877 = vmatpush2.bf16.msra.mxu0 0
        %1878 = vmatprep.subr.bf16.mxu0 0
        %1879 = vmatpush2.bf16.msra.mxu0 0
        %1880 = vmatprep.mubr.bf16.mxu0 0
        %1881 = vmatmul.mubr.bf16.gmra.mxu0 %v670
        %v1882 = vpop.f32.mrf.mxu0
        %v1883 = vadd.f32 %v1810, %v1882
        %v1884 = vpop.f32.mrf.mxu0
        %v1885 = vadd.f32 %v1812, %v1884
        %v1886 = vpop.f32.mrf.mxu0
        %v1887 = vadd.f32 %v1814, %v1886
        %v1888 = vpop.f32.mrf.mxu0
        %v1889 = vadd.f32 %v1816, %v1888
        %1890 = vmatprep.mubr.bf16.mxu0 0
        %1891 = vmatmul.mubr.bf16.gmra.mxu0 %v673
        %v1892 = vpop.f32.mrf.mxu0
        %v1893 = vadd.f32 %v1820, %v1892
        %v1894 = vpop.f32.mrf.mxu0
        %v1895 = vadd.f32 %v1822, %v1894
        %v1896 = vpop.f32.mrf.mxu0
        %v1897 = vadd.f32 %v1824, %v1896
        %v1898 = vpop.f32.mrf.mxu0
        %v1899 = vadd.f32 %v1826, %v1898
        %1900 = vmatprep.mubr.bf16.mxu0 0
        %1901 = vmatmul.mubr.bf16.gmra.mxu0 %v676
        %v1902 = vpop.f32.mrf.mxu0
        %v1903 = vadd.f32 %v1830, %v1902
        %v1904 = vpop.f32.mrf.mxu0
        %v1905 = vadd.f32 %v1832, %v1904
        %v1906 = vpop.f32.mrf.mxu0
        %v1907 = vadd.f32 %v1834, %v1906
        %v1908 = vpop.f32.mrf.mxu0
        %v1909 = vadd.f32 %v1836, %v1908
        %1910 = vmatprep.mubr.bf16.mxu0 0
        %1911 = vmatmul.mubr.bf16.gmra.mxu0 %v679
        %v1912 = vpop.f32.mrf.mxu0
        %v1913 = vadd.f32 %v1840, %v1912
        %v1914 = vpop.f32.mrf.mxu0
        %v1915 = vadd.f32 %v1842, %v1914
        %v1916 = vpop.f32.mrf.mxu0
        %v1917 = vadd.f32 %v1844, %v1916
        %v1918 = vpop.f32.mrf.mxu0
        %v1919 = vadd.f32 %v1846, %v1918
        %1920 = vdwg.mxu0
        %v1921 = vadd.f32 %v1883, %v1887
        %v1922 = vadd.f32 %v1921, %v1893
        %v1923 = vadd.f32 %v1922, %v1897
        %v1924 = vadd.f32 %v1923, %v1903
        %v1925 = vadd.f32 %v1924, %v1907
        %v1926 = vadd.f32 %v1925, %v1913
        %v1927 = vadd.f32 %v1926, %v1917
        %v1928 = vrot.slane %v1927, 4
        %v1929 = vadd.f32 %v1927, %v1928
        %v1930 = vrot.slane %v1929, 2
        %v1931 = vadd.f32 %v1929, %v1930
        %v1932 = vrot.slane %v1931, 1
        %v1933 = vadd.f32 %v1931, %v1932
        %v1934 = vadd.f32 %v1885, %v1889
        %v1935 = vadd.f32 %v1934, %v1895
        %v1936 = vadd.f32 %v1935, %v1899
        %v1937 = vadd.f32 %v1936, %v1905
        %v1938 = vadd.f32 %v1937, %v1909
        %v1939 = vadd.f32 %v1938, %v1915
        %v1940 = vadd.f32 %v1939, %v1919
        %v1941 = vrot.slane %v1940, 4
        %v1942 = vadd.f32 %v1940, %v1941
        %v1943 = vrot.slane %v1942, 2
        %v1944 = vadd.f32 %v1942, %v1943
        %v1945 = vrot.slane %v1944, 1
        %v1946 = vadd.f32 %v1944, %v1945
        %v1947 = vmul.f32 %v1883, %v1883
        %v1948 = vmul.f32 %v1885, %v1885
        %v1949 = vmul.f32 %v1887, %v1887
        %v1950 = vmul.f32 %v1889, %v1889
        %v1951 = vmul.f32 %v1893, %v1893
        %v1952 = vmul.f32 %v1895, %v1895
        %v1953 = vmul.f32 %v1897, %v1897
        %v1954 = vmul.f32 %v1899, %v1899
        %v1955 = vmul.f32 %v1903, %v1903
        %v1956 = vmul.f32 %v1905, %v1905
        %v1957 = vmul.f32 %v1907, %v1907
        %v1958 = vmul.f32 %v1909, %v1909
        %v1959 = vmul.f32 %v1913, %v1913
        %v1960 = vmul.f32 %v1915, %v1915
        %v1961 = vmul.f32 %v1917, %v1917
        %v1962 = vmul.f32 %v1919, %v1919
        %v1963 = vadd.f32 %v1947, %v1949
        %v1964 = vadd.f32 %v1963, %v1951
        %v1965 = vadd.f32 %v1964, %v1953
        %v1966 = vadd.f32 %v1965, %v1955
        %v1967 = vadd.f32 %v1966, %v1957
        %v1968 = vadd.f32 %v1967, %v1959
        %v1969 = vadd.f32 %v1968, %v1961
        %v1970 = vrot.slane %v1969, 4
        %v1971 = vadd.f32 %v1969, %v1970
        %v1972 = vrot.slane %v1971, 2
        %v1973 = vadd.f32 %v1971, %v1972
        %v1974 = vrot.slane %v1973, 1
        %v1975 = vadd.f32 %v1973, %v1974
        %v1976 = vadd.f32 %v1948, %v1950
        %v1977 = vadd.f32 %v1976, %v1952
        %v1978 = vadd.f32 %v1977, %v1954
        %v1979 = vadd.f32 %v1978, %v1956
        %v1980 = vadd.f32 %v1979, %v1958
        %v1981 = vadd.f32 %v1980, %v1960
        %v1982 = vadd.f32 %v1981, %v1962
        %v1983 = vrot.slane %v1982, 4
        %v1984 = vadd.f32 %v1982, %v1983
        %v1985 = vrot.slane %v1984, 2
        %v1986 = vadd.f32 %v1984, %v1985
        %v1987 = vrot.slane %v1986, 1
        %v1988 = vadd.f32 %v1986, %v1987
        %v1991 = vcombine.low %v1933, %v1946
        %v1993 = vunpack.c.l.s4 1966171168
        %v1994 = vunpack.c.0.s8 %v1993
        %v1995 = vlaneseq
        %v1996 = vshrl.u32 %v1995, 7
        %v1997 = vsub.s32 %v1994, %v1996
        %v1998 = vrot.slane %v1991, %v1997
        %v2000 = vunpack.c.l.s4 1966171168
        %v2001 = vunpack.c.0.s8 %v2000
        %v2002 = vlaneseq
        %v2003 = vshrl.u32 %v2002, 7
        %v2004 = vsub.s32 %v2001, %v2003
        %v2005 = vrot.slane %v1998, %v2004
        %v2007 = vlaneseq
        %vm2008 = vcmp.ge.s32.totalorder %v2007, 0
        %vm2009 = vcmp.lt.s32.totalorder %v2007, 256
        %vm2010 = vmand %vm2008, %vm2009
        %2011 = vst.msk [vmem:[%s340] sm:$0x3] %vm2010, %v2005
        %v2014 = vcombine.low %v1975, %v1988
        %v2016 = vunpack.c.l.s4 1966171168
        %v2017 = vunpack.c.0.s8 %v2016
        %v2018 = vlaneseq
        %v2019 = vshrl.u32 %v2018, 7
        %v2020 = vsub.s32 %v2017, %v2019
        %v2021 = vrot.slane %v2014, %v2020
        %v2023 = vunpack.c.l.s4 1966171168
        %v2024 = vunpack.c.0.s8 %v2023
        %v2025 = vlaneseq
        %v2026 = vshrl.u32 %v2025, 7
        %v2027 = vsub.s32 %v2024, %v2026
        %v2028 = vrot.slane %v2021, %v2027
        %2030 = vst.msk [vmem:[%s344] sm:$0x3] %vm2010, %v2028
        %v2031 = vpack.c.bf16 %v1887, %v1883
        %v2032 = vpack.c.bf16 %v1889, %v1885
        %v2033 = vpack.c.bf16 %v1897, %v1893
        %v2034 = vpack.c.bf16 %v1899, %v1895
        %v2035 = vpack.c.bf16 %v1907, %v1903
        %v2036 = vpack.c.bf16 %v1909, %v1905
        %v2037 = vpack.c.bf16 %v1917, %v1913
        %v2038 = vpack.c.bf16 %v1919, %v1915
        %v2047 = vunpack.c.l.b16 %v2031
        %v2048 = vunpack.c.l.b16 %v2032
        %v2049 = vunpack.c.h.b16 %v2031
        %v2050 = vunpack.c.h.b16 %v2032
        %v2051 = vunpack.c.l.b16 %v2033
        %v2052 = vunpack.c.l.b16 %v2034
        %v2053 = vunpack.c.h.b16 %v2033
        %v2054 = vunpack.c.h.b16 %v2034
        %v2055 = vunpack.c.l.b16 %v2035
        %v2056 = vunpack.c.l.b16 %v2036
        %v2057 = vunpack.c.h.b16 %v2035
        %v2058 = vunpack.c.h.b16 %v2036
        %v2059 = vunpack.c.l.b16 %v2037
        %v2060 = vunpack.c.l.b16 %v2038
        %v2061 = vunpack.c.h.b16 %v2037
        %v2062 = vunpack.c.h.b16 %v2038
        %v2063 = vpack.c.b16 %v2048, %v2047
        %v2064 = vpack.c.b16 %v2050, %v2049
        %v2065 = vpack.c.b16 %v2052, %v2051
        %v2066 = vpack.c.b16 %v2054, %v2053
        %v2067 = vpack.c.b16 %v2056, %v2055
        %v2068 = vpack.c.b16 %v2058, %v2057
        %v2069 = vpack.c.b16 %v2060, %v2059
        %v2070 = vpack.c.b16 %v2062, %v2061
        %2079 = vst [vmem:[%s335] sm:$0xff] %v2063
        %2080 = vst [vmem:[%s335 + $0x8] sm:$0xff] %v2064
        %2081 = vst [vmem:[%s335 + $0x10] sm:$0xff] %v2065
        %2082 = vst [vmem:[%s335 + $0x18] sm:$0xff] %v2066
        %2083 = vst [vmem:[%s335 + $0x20] sm:$0xff] %v2067
        %2084 = vst [vmem:[%s335 + $0x28] sm:$0xff] %v2068
        %2085 = vst [vmem:[%s335 + $0x30] sm:$0xff] %v2069
        %2086 = vst [vmem:[%s335 + $0x38] sm:$0xff] %v2070
        %s2087 = smul.u32 8, %s21
        %p2088 = scmp.lt.s32.totalorder %s2087, 15
        %s2089 = scalar_select %p2088, %s2087, 15
        %s2090 = smul.addr %s2089, 2
        %s2091 = smul.addr %s2090, 4
        %s2092 = scalar_lea.vmem %s6, %s2091
        %p2093 = scmp.lt.s32.totalorder %s21, 1
        %s2094 = scalar_select %p2093, %s21, 1
        %s2095 = smul.addr %s2094, 2
        %s2096 = scalar_lea.vmem %s7, %s2095
        %p2097 = scmp.lt.s32.totalorder %s21, 1
        %s2098 = scalar_select %p2097, %s21, 1
        %s2099 = smul.addr %s2098, 2
        %s2100 = scalar_lea.vmem %s8, %s2099
        // Predicated region
        $region49: #{proflow_forward.5} parent=43 // pred_check
          %p2101 = pneg %p170
        $region50: #{proflow_forward.5} parent=43 // pred_check_branch
          %2103 = sbr.rel (%p2101) target = $region52
        $region51: #{proflow_forward.5} parent=43 // pred_region
          %s2104 = smul.u32 8, %s21
        $region52: #{proflow_forward.5} parent=43 // pred_fallthru
          _
        // Predicated region
        $region53: #{proflow_forward.5} parent=43 // pred_check
          %p2105 = pneg %p196
        $region54: #{proflow_forward.5} parent=43 // pred_check_branch
          %2107 = sbr.rel (%p2105) target = $region56
        $region55: #{proflow_forward.5} parent=43 // pred_region
          _
        $region56: #{proflow_forward.5} parent=43 // pred_fallthru
          _
        // Predicated region
        $region57: #{proflow_forward.5} parent=43 // pred_check
          %p2108 = pneg %p222
        $region58: #{proflow_forward.5} parent=43 // pred_check_branch
          %2110 = sbr.rel (%p2108) target = $region60
        $region59: #{proflow_forward.5} parent=43 // pred_region
          _
        $region60: #{proflow_forward.5} parent=43 // pred_fallthru
          _
      $region44: #{proflow_forward.5} parent=5 // pred_fallthru
        _
      %p2111 = scmp.le.s32.totalorder 2, %s16
      // Predicated region
      $region61: #{proflow_forward.5} parent=5 // pred_check
        %p2112 = pneg %p2111
      $region62: #{proflow_forward.5} parent=5 // pred_check_branch
        %2114 = sbr.rel (%p2112) target = $region64
      $region63: #{proflow_forward.5} parent=5 // pred_region
        %s2115 = ssub.s32 %s16, 2
        // Predicated region
        $region65: #{proflow_forward.5} parent=63 // pred_check
          %p2116 = pneg %p176
        $region66: #{proflow_forward.5} parent=63 // pred_check_branch
          %2118 = sbr.rel (%p2116) target = $region68
        $region67: #{proflow_forward.5} parent=63 // pred_region
          %s2119 = smul.u32 8, %s22
          %p2120 = scmp.lt.s32.totalorder %s2119, 15
          %s2121 = scalar_select %p2120, %s2119, 15
          %s2122 = smul.addr %s2121, 2
          %s2123 = smul.addr %s2122, 4
          %s2124 = scalar_lea.vmem %s6, %s2123
        $region68: #{proflow_forward.5} parent=63 // pred_fallthru
          _
        // Predicated region
        $region69: #{proflow_forward.5} parent=63 // pred_check
          %p2125 = pneg %p202
        $region70: #{proflow_forward.5} parent=63 // pred_check_branch
          %2127 = sbr.rel (%p2125) target = $region72
        $region71: #{proflow_forward.5} parent=63 // pred_region
          %p2128 = scmp.lt.s32.totalorder %s22, 1
          %s2129 = scalar_select %p2128, %s22, 1
          %s2130 = smul.addr %s2129, 2
          %s2131 = scalar_lea.vmem %s7, %s2130
        $region72: #{proflow_forward.5} parent=63 // pred_fallthru
          _
        // Predicated region
        $region73: #{proflow_forward.5} parent=63 // pred_check
          %p2132 = pneg %p228
        $region74: #{proflow_forward.5} parent=63 // pred_check_branch
          %2134 = sbr.rel (%p2132) target = $region76
        $region75: #{proflow_forward.5} parent=63 // pred_region
          %p2135 = scmp.lt.s32.totalorder %s22, 1
          %s2136 = scalar_select %p2135, %s22, 1
          %s2137 = smul.addr %s2136, 2
          %s2138 = scalar_lea.vmem %s8, %s2137
        $region76: #{proflow_forward.5} parent=63 // pred_fallthru
          _
      $region64: #{proflow_forward.5} parent=5 // pred_fallthru
        _
    $region6: #{proflow_forward.5} parent=1 // loop_footer
      %s20 = sadd.s32 1, %s16
    $region7: #{proflow_forward.5} parent=1 // loop_footer_branch
      %15 = sbr.rel target = $region3
    $region8: #{proflow_forward.5} parent=1 // loop_exit
      _
    %2139 = vsyncpa [#allocation3], 1
    %s2140 = scalar_lea.sflag [#allocation3], 1
    %2141 = vsyncpa %s2140, 1

// kernel: proflow_forward.7
$region0: #{proflow_forward.7}
  #allocation0 [shape = 'u32[]', space=smem, size = 0x4, offset = 0x4, fixed_abs, tag = 'smem constant byte address 0x4 - core index']
  #allocation1 [shape = 'u32[144,128]{1,0:T(1,128)}', space=vmem, size = 0x12000, scoped, tag = 'internal scratch']
  %s0 = inlined_call_operand.vmem [shape: bf16[128,512], index: 0, kind: input, shape index: {}]
  %s1 = inlined_call_operand.vmem [shape: f32[128,6], index: 1, kind: input, shape index: {}]
  %s2 = inlined_call_operand.vmem [shape: f32[1,512], index: 2, kind: input, shape index: {}]
  %s3 = inlined_call_operand.vmem [shape: f32[1,512], index: 3, kind: input, shape index: {}]
  %s4 = inlined_call_operand.vmem [shape: bf16[512,8], index: 4, kind: input, shape index: {}]
  %s5 = inlined_call_operand.vmem [shape: f32[1,8], index: 5, kind: input, shape index: {}]
  %s6 = inlined_call_operand.vmem [shape: f32[128,6], index: 6, kind: output, shape index: {0}]
  %s7 = inlined_call_operand.vmem [shape: f32[2,1,1], index: 7, kind: output, shape index: {1}]
  %8 = xla_tuple %s6, %s7
  %s9 = sld [smem:[#allocation0]]
  $region65: #{proflow_forward.7} parent=0
    _
  %s11 = ssub.s32 1, %s9
  %s12 = scalar_select 0, %s11, %s9
  loop: start=0, step=1, limit=4
  $region2: #{proflow_forward.7} parent=0 // loop_pre_header
    _
  $region3: #{proflow_forward.7} parent=0 // loop_header
    %s14 = sphi 0, %s18
    %p15 = scmp.ge.s32.totalorder %s14, 4
    %s24 = sphi 0, %s26
    %s27 = sphi 0, %s24
    %s28 = sphi 0, %s27
    %s44 = sphi 0, %s28
    %s50 = sphi 0, %s52
    %s53 = sphi 0, %s50
    %s54 = sphi 0, %s53
    %s70 = sphi 0, %s54
    %s74 = sphi 0, %s74
    %s76 = sphi 0, %s74
    %s77 = sphi 0, %s76
    %s91 = sphi 0, %s77
    %s95 = sphi 0, %s95
    %s97 = sphi 0, %s95
    %s98 = sphi 0, %s97
    %s112 = sphi 0, %s98
    %s116 = sphi 0, %s116
    %s118 = sphi 0, %s116
    %s119 = sphi 0, %s118
    %s133 = sphi 0, %s119
    %s137 = sphi 0, %s137
    %s139 = sphi 0, %s137
    %s140 = sphi 0, %s139
    %s154 = sphi 0, %s140
    %s160 = sphi 0, %s162
    %s163 = sphi 0, %s160
    %s164 = sphi 0, %s163
    %s180 = sphi 0, %s164
    %s186 = sphi 0, %s188
    %s189 = sphi 0, %s186
    %s190 = sphi 0, %s189
    %s206 = sphi 0, %s190
  $region4: #{proflow_forward.7} parent=0 // loop_header_branch
    %17 = sbr.rel (%p15) target = $region8
  $region5: #{proflow_forward.7} parent=0 // loop_body
    %s19 = ssub.s32 %s14, 1
    %s20 = ssub.s32 %s14, 2
    %s21 = sadd.s32 %s14, 1
    %s22 = ssub.s32 %s14, %s21
    %p23 = scmp.eq.s32.totalorder %s22, 0
    %s25 = sadd.s32 %s24, 1
    %s26 = scalar_select %p23, %s24, %s25
    %p29 = pneg %p23
    %p30 = scmp.eq.s32.totalorder %s14, 1
    %p31 = por %p29, %p30
    %p32 = scmp.ne.s32.totalorder %s24, %s27
    %p33 = scmp.eq.s32.totalorder %s14, 0
    %p34 = por %p32, %p33
    %p35 = scmp.ne.s32.totalorder %s24, %s27
    %p36 = scmp.eq.s32.totalorder %s19, 1
    %p37 = por %p35, %p36
    %p38 = scmp.ne.s32.totalorder %s27, %s28
    %p39 = scmp.eq.s32.totalorder %s19, 0
    %p40 = por %p38, %p39
    %p41 = scmp.ne.s32.totalorder %s27, %s28
    %p42 = scmp.eq.s32.totalorder %s20, 1
    %p43 = por %p41, %p42
    %p45 = scmp.ne.s32.totalorder %s28, %s44
    %p46 = scmp.eq.s32.totalorder %s20, 0
    %p47 = por %p45, %p46
    %s48 = ssub.s32 %s14, %s21
    %p49 = scmp.eq.s32.totalorder %s48, 0
    %s51 = sadd.s32 %s50, 1
    %s52 = scalar_select %p49, %s50, %s51
    %p55 = pneg %p49
    %p56 = scmp.eq.s32.totalorder %s14, 1
    %p57 = por %p55, %p56
    %p58 = scmp.ne.s32.totalorder %s50, %s53
    %p59 = scmp.eq.s32.totalorder %s14, 0
    %p60 = por %p58, %p59
    %p61 = scmp.ne.s32.totalorder %s50, %s53
    %p62 = scmp.eq.s32.totalorder %s19, 1
    %p63 = por %p61, %p62
    %p64 = scmp.ne.s32.totalorder %s53, %s54
    %p65 = scmp.eq.s32.totalorder %s19, 0
    %p66 = por %p64, %p65
    %p67 = scmp.ne.s32.totalorder %s53, %s54
    %p68 = scmp.eq.s32.totalorder %s20, 1
    %p69 = por %p67, %p68
    %p71 = scmp.ne.s32.totalorder %s54, %s70
    %p72 = scmp.eq.s32.totalorder %s20, 0
    %p73 = por %p71, %p72
    %s75 = sadd.s32 %s74, 1
    %p78 = scmp.eq.s32.totalorder %s14, 1
    %p79 = scmp.ne.s32.totalorder %s74, %s76
    %p80 = scmp.eq.s32.totalorder %s14, 0
    %p81 = por %p79, %p80
    %p82 = scmp.ne.s32.totalorder %s74, %s76
    %p83 = scmp.eq.s32.totalorder %s19, 1
    %p84 = por %p82, %p83
    %p85 = scmp.ne.s32.totalorder %s76, %s77
    %p86 = scmp.eq.s32.totalorder %s19, 0
    %p87 = por %p85, %p86
    %p88 = scmp.ne.s32.totalorder %s76, %s77
    %p89 = scmp.eq.s32.totalorder %s20, 1
    %p90 = por %p88, %p89
    %p92 = scmp.ne.s32.totalorder %s77, %s91
    %p93 = scmp.eq.s32.totalorder %s20, 0
    %p94 = por %p92, %p93
    %s96 = sadd.s32 %s95, 1
    %p99 = scmp.eq.s32.totalorder %s14, 1
    %p100 = scmp.ne.s32.totalorder %s95, %s97
    %p101 = scmp.eq.s32.totalorder %s14, 0
    %p102 = por %p100, %p101
    %p103 = scmp.ne.s32.totalorder %s95, %s97
    %p104 = scmp.eq.s32.totalorder %s19, 1
    %p105 = por %p103, %p104
    %p106 = scmp.ne.s32.totalorder %s97, %s98
    %p107 = scmp.eq.s32.totalorder %s19, 0
    %p108 = por %p106, %p107
    %p109 = scmp.ne.s32.totalorder %s97, %s98
    %p110 = scmp.eq.s32.totalorder %s20, 1
    %p111 = por %p109, %p110
    %p113 = scmp.ne.s32.totalorder %s98, %s112
    %p114 = scmp.eq.s32.totalorder %s20, 0
    %p115 = por %p113, %p114
    %s117 = sadd.s32 %s116, 1
    %p120 = scmp.eq.s32.totalorder %s14, 1
    %p121 = scmp.ne.s32.totalorder %s116, %s118
    %p122 = scmp.eq.s32.totalorder %s14, 0
    %p123 = por %p121, %p122
    %p124 = scmp.ne.s32.totalorder %s116, %s118
    %p125 = scmp.eq.s32.totalorder %s19, 1
    %p126 = por %p124, %p125
    %p127 = scmp.ne.s32.totalorder %s118, %s119
    %p128 = scmp.eq.s32.totalorder %s19, 0
    %p129 = por %p127, %p128
    %p130 = scmp.ne.s32.totalorder %s118, %s119
    %p131 = scmp.eq.s32.totalorder %s20, 1
    %p132 = por %p130, %p131
    %p134 = scmp.ne.s32.totalorder %s119, %s133
    %p135 = scmp.eq.s32.totalorder %s20, 0
    %p136 = por %p134, %p135
    %s138 = sadd.s32 %s137, 1
    %p141 = scmp.eq.s32.totalorder %s14, 1
    %p142 = scmp.ne.s32.totalorder %s137, %s139
    %p143 = scmp.eq.s32.totalorder %s14, 0
    %p144 = por %p142, %p143
    %p145 = scmp.ne.s32.totalorder %s137, %s139
    %p146 = scmp.eq.s32.totalorder %s19, 1
    %p147 = por %p145, %p146
    %p148 = scmp.ne.s32.totalorder %s139, %s140
    %p149 = scmp.eq.s32.totalorder %s19, 0
    %p150 = por %p148, %p149
    %p151 = scmp.ne.s32.totalorder %s139, %s140
    %p152 = scmp.eq.s32.totalorder %s20, 1
    %p153 = por %p151, %p152
    %p155 = scmp.ne.s32.totalorder %s140, %s154
    %p156 = scmp.eq.s32.totalorder %s20, 0
    %p157 = por %p155, %p156
    %s158 = ssub.s32 %s14, %s21
    %p159 = scmp.eq.s32.totalorder %s158, 0
    %s161 = sadd.s32 %s160, 1
    %s162 = scalar_select %p159, %s160, %s161
    %p165 = pneg %p159
    %p166 = scmp.eq.s32.totalorder %s14, 1
    %p167 = por %p165, %p166
    %p168 = scmp.ne.s32.totalorder %s160, %s163
    %p169 = scmp.eq.s32.totalorder %s14, 0
    %p170 = por %p168, %p169
    %p171 = scmp.ne.s32.totalorder %s160, %s163
    %p172 = scmp.eq.s32.totalorder %s19, 1
    %p173 = por %p171, %p172
    %p174 = scmp.ne.s32.totalorder %s163, %s164
    %p175 = scmp.eq.s32.totalorder %s19, 0
    %p176 = por %p174, %p175
    %p177 = scmp.ne.s32.totalorder %s163, %s164
    %p178 = scmp.eq.s32.totalorder %s20, 1
    %p179 = por %p177, %p178
    %p181 = scmp.ne.s32.totalorder %s164, %s180
    %p182 = scmp.eq.s32.totalorder %s20, 0
    %p183 = por %p181, %p182
    %s184 = ssub.s32 %s14, %s21
    %p185 = scmp.eq.s32.totalorder %s184, 0
    %s187 = sadd.s32 %s186, 1
    %s188 = scalar_select %p185, %s186, %s187
    %p191 = pneg %p185
    %p192 = scmp.eq.s32.totalorder %s14, 1
    %p193 = por %p191, %p192
    %p194 = scmp.ne.s32.totalorder %s186, %s189
    %p195 = scmp.eq.s32.totalorder %s14, 0
    %p196 = por %p194, %p195
    %p197 = scmp.ne.s32.totalorder %s186, %s189
    %p198 = scmp.eq.s32.totalorder %s19, 1
    %p199 = por %p197, %p198
    %p200 = scmp.ne.s32.totalorder %s189, %s190
    %p201 = scmp.eq.s32.totalorder %s19, 0
    %p202 = por %p200, %p201
    %p203 = scmp.ne.s32.totalorder %s189, %s190
    %p204 = scmp.eq.s32.totalorder %s20, 1
    %p205 = por %p203, %p204
    %p207 = scmp.ne.s32.totalorder %s190, %s206
    %p208 = scmp.eq.s32.totalorder %s20, 0
    %p209 = por %p207, %p208
    %p210 = scmp.le.s32.totalorder 1, %s14
    %p211 = scmp.lt.s32.totalorder %s14, 3
    %p212 = pnand %p210, %p211
    %p213 = pneg %p212
    // Predicated region
    $region9: #{proflow_forward.7} parent=5 // pred_check
      _
    $region10: #{proflow_forward.7} parent=5 // pred_check_branch
      %215 = sbr.rel (%p212) target = $region12
    $region11: #{proflow_forward.7} parent=5 // pred_region
      %s216 = ssub.s32 %s14, 1
      // Predicated region
      $region13: #{proflow_forward.7} parent=11 // pred_check
        %p217 = pneg %p87
      $region14: #{proflow_forward.7} parent=11 // pred_check_branch
        %219 = sbr.rel (%p217) target = $region16
      $region15: #{proflow_forward.7} parent=11 // pred_region
        _
      $region16: #{proflow_forward.7} parent=11 // pred_fallthru
        _
      // Predicated region
      $region17: #{proflow_forward.7} parent=11 // pred_check
        %p220 = pneg %p108
      $region18: #{proflow_forward.7} parent=11 // pred_check_branch
        %222 = sbr.rel (%p220) target = $region20
      $region19: #{proflow_forward.7} parent=11 // pred_region
        _
      $region20: #{proflow_forward.7} parent=11 // pred_fallthru
        _
      // Predicated region
      $region21: #{proflow_forward.7} parent=11 // pred_check
        %p223 = pneg %p129
      $region22: #{proflow_forward.7} parent=11 // pred_check_branch
        %225 = sbr.rel (%p223) target = $region24
      $region23: #{proflow_forward.7} parent=11 // pred_region
        _
      $region24: #{proflow_forward.7} parent=11 // pred_fallthru
        _
      // Predicated region
      $region25: #{proflow_forward.7} parent=11 // pred_check
        %p226 = pneg %p150
      $region26: #{proflow_forward.7} parent=11 // pred_check_branch
        %228 = sbr.rel (%p226) target = $region28
      $region27: #{proflow_forward.7} parent=11 // pred_region
        _
      $region28: #{proflow_forward.7} parent=11 // pred_fallthru
        _
    $region12: #{proflow_forward.7} parent=5 // pred_fallthru
      _
    %p229 = scmp.lt.s32.totalorder %s14, 2
    // Predicated region
    $region29: #{proflow_forward.7} parent=5 // pred_check
      %p230 = pneg %p229
    $region30: #{proflow_forward.7} parent=5 // pred_check_branch
      %232 = sbr.rel (%p230) target = $region32
    $region31: #{proflow_forward.7} parent=5 // pred_region
      // Predicated region
      $region33: #{proflow_forward.7} parent=31 // pred_check
        %p233 = pneg %p34
      $region34: #{proflow_forward.7} parent=31 // pred_check_branch
        %235 = sbr.rel (%p233) target = $region36
      $region35: #{proflow_forward.7} parent=31 // pred_region
        %s236 = smul.u32 8, %s14
        %p237 = scmp.lt.s32.totalorder %s236, 15
        %s238 = scalar_select %p237, %s236, 15
        %s239 = smul.addr %s238, 4
        %s240 = smul.addr %s239, 4
        %s241 = scalar_lea.vmem %s0, %s240
        %s242 = smul.u32 8, %s14
      $region36: #{proflow_forward.7} parent=31 // pred_fallthru
        _
      // Predicated region
      $region37: #{proflow_forward.7} parent=31 // pred_check
        %p243 = pneg %p60
      $region38: #{proflow_forward.7} parent=31 // pred_check_branch
        %245 = sbr.rel (%p243) target = $region40
      $region39: #{proflow_forward.7} parent=31 // pred_region
        %s246 = smul.u32 8, %s14
        %p247 = scmp.lt.s32.totalorder %s246, 15
        %s248 = scalar_select %p247, %s246, 15
        %s249 = smul.addr %s248, 8
        %s250 = scalar_lea.vmem %s1, %s249
        %s251 = smul.u32 8, %s14
      $region40: #{proflow_forward.7} parent=31 // pred_fallthru
        _
    $region32: #{proflow_forward.7} parent=5 // pred_fallthru
      _
    %p252 = scmp.le.s32.totalorder 1, %s14
    %p253 = scmp.lt.s32.totalorder %s14, 3
    %p254 = pnand %p252, %p253
    %p255 = pneg %p254
    // Predicated region
    $region41: #{proflow_forward.7} parent=5 // pred_check
      _
    $region42: #{proflow_forward.7} parent=5 // pred_check_branch
      %257 = sbr.rel (%p254) target = $region44
    $region43: #{proflow_forward.7} parent=5 // pred_region
      %s258 = ssub.s32 %s14, 1
      %s259 = smul.u32 8, %s19
      %p260 = scmp.lt.s32.totalorder %s259, 15
      %s261 = scalar_select %p260, %s259, 15
      %s262 = smul.addr %s261, 4
      %s263 = smul.addr %s262, 4
      %s264 = scalar_lea.vmem %s0, %s263
      %p265 = pneg %p40
      %p266 = pneg %p37
      %s267 = smul.u32 8, %s19
      %p268 = scmp.lt.s32.totalorder %s267, 15
      %s269 = scalar_select %p268, %s267, 15
      %s270 = smul.addr %s269, 8
      %s271 = scalar_lea.vmem %s1, %s270
      %p272 = pneg %p66
      %p273 = pneg %p63
      %p274 = pneg %p87
      %p275 = pneg %p84
      %p276 = pneg %p108
      %p277 = pneg %p105
      %p278 = pneg %p129
      %p279 = pneg %p126
      %p280 = pneg %p150
      %p281 = pneg %p147
      %p282 = pneg %p176
      %p283 = pneg %p173
      %s284 = smul.u32 8, %s19
      %p285 = scmp.lt.s32.totalorder %s284, 15
      %s286 = scalar_select %p285, %s284, 15
      %s287 = smul.addr %s286, 8
      %s288 = scalar_lea.vmem %s6, %s287
      %p289 = pneg %p202
      %p290 = pneg %p199
      %p291 = scmp.lt.s32.totalorder %s19, 1
      %s292 = scalar_select %p291, %s19, 1
      %s293 = scalar_lea.vmem %s7, %s292
      %s294 = smul.u32 8, %s19
      %p295 = scmp.lt.s32.totalorder %s294, 15
      %s296 = scalar_select %p295, %s294, 15
      %s297 = smul.addr %s296, 4
      %s298 = smul.addr %s297, 4
      %s299 = scalar_lea.vmem %s0, %s298
      %s300 = smul.u32 8, %s19
      %s301 = smul.u32 8, %s19
      %p302 = scmp.lt.s32.totalorder %s301, 15
      %s303 = scalar_select %p302, %s301, 15
      %s304 = smul.addr %s303, 8
      %s305 = scalar_lea.vmem %s1, %s304
      %s306 = smul.u32 8, %s19
      %s307 = smul.u32 8, %s19
      %p308 = scmp.lt.s32.totalorder %s307, 15
      %s309 = scalar_select %p308, %s307, 15
      %s310 = smul.addr %s309, 8
      %s311 = scalar_lea.vmem %s6, %s310
      %s312 = smul.u32 8, %s19
      %p313 = scmp.lt.s32.totalorder %s19, 1
      %s314 = scalar_select %p313, %s19, 1
      %s315 = scalar_lea.vmem %s7, %s314
      %v317 = vld [vmem:[%s299] sm:$0xff]
      %v318 = vld [vmem:[%s299 + $0x8] sm:$0xff]
      %v319 = vld [vmem:[%s299 + $0x10] sm:$0xff]
      %v320 = vld [vmem:[%s299 + $0x18] sm:$0xff]
      %v321 = vld [vmem:[%s299 + $0x20] sm:$0xff]
      %v322 = vld [vmem:[%s299 + $0x28] sm:$0xff]
      %v323 = vld [vmem:[%s299 + $0x30] sm:$0xff]
      %v324 = vld [vmem:[%s299 + $0x38] sm:$0xff]
      %v325 = vld [vmem:[%s299 + $0x40] sm:$0xff]
      %v326 = vld [vmem:[%s299 + $0x48] sm:$0xff]
      %v327 = vld [vmem:[%s299 + $0x50] sm:$0xff]
      %v328 = vld [vmem:[%s299 + $0x58] sm:$0xff]
      %v329 = vld [vmem:[%s299 + $0x60] sm:$0xff]
      %v330 = vld [vmem:[%s299 + $0x68] sm:$0xff]
      %v331 = vld [vmem:[%s299 + $0x70] sm:$0xff]
      %v332 = vld [vmem:[%s299 + $0x78] sm:$0xff]
      %v333 = vunpack.c.l.bf16 %v317
      %v334 = vunpack.c.h.bf16 %v317
      %v335 = vunpack.c.l.bf16 %v318
      %v336 = vunpack.c.h.bf16 %v318
      %v337 = vunpack.c.l.bf16 %v319
      %v338 = vunpack.c.h.bf16 %v319
      %v339 = vunpack.c.l.bf16 %v320
      %v340 = vunpack.c.h.bf16 %v320
      %v341 = vunpack.c.l.bf16 %v321
      %v342 = vunpack.c.h.bf16 %v321
      %v343 = vunpack.c.l.bf16 %v322
      %v344 = vunpack.c.h.bf16 %v322
      %v345 = vunpack.c.l.bf16 %v323
      %v346 = vunpack.c.h.bf16 %v323
      %v347 = vunpack.c.l.bf16 %v324
      %v348 = vunpack.c.h.bf16 %v324
      %v349 = vunpack.c.l.bf16 %v325
      %v350 = vunpack.c.h.bf16 %v325
      %v351 = vunpack.c.l.bf16 %v326
      %v352 = vunpack.c.h.bf16 %v326
      %v353 = vunpack.c.l.bf16 %v327
      %v354 = vunpack.c.h.bf16 %v327
      %v355 = vunpack.c.l.bf16 %v328
      %v356 = vunpack.c.h.bf16 %v328
      %v357 = vunpack.c.l.bf16 %v329
      %v358 = vunpack.c.h.bf16 %v329
      %v359 = vunpack.c.l.bf16 %v330
      %v360 = vunpack.c.h.bf16 %v330
      %v361 = vunpack.c.l.bf16 %v331
      %v362 = vunpack.c.h.bf16 %v331
      %v363 = vunpack.c.l.bf16 %v332
      %v364 = vunpack.c.h.bf16 %v332
      %v365 = vld [vmem:[%s2] sm:$0xf]
      %v367 = vlaneseq
      %v368 = vshrl.u32 %v367, 7
      %v369 = vsub.s32 0, %v368
      %v370 = vrot.slane %v365, %v369
      %v371 = vlaneseq
      %v372 = vshrl.u32 %v371, 7
      %v373 = vsub.s32 1, %v372
      %v374 = vrot.slane %v365, %v373
      %v375 = vlaneseq
      %v376 = vshrl.u32 %v375, 7
      %v377 = vsub.s32 2, %v376
      %v378 = vrot.slane %v365, %v377
      %v379 = vlaneseq
      %v380 = vshrl.u32 %v379, 7
      %v381 = vsub.s32 3, %v380
      %v382 = vrot.slane %v365, %v381
      %v387 = vmul.f32 %v333, %v370
      %v388 = vmul.f32 %v334, %v374
      %v389 = vmul.f32 %v335, %v378
      %v390 = vmul.f32 %v336, %v382
      %v391 = vmul.f32 %v337, %v370
      %v392 = vmul.f32 %v338, %v374
      %v393 = vmul.f32 %v339, %v378
      %v394 = vmul.f32 %v340, %v382
      %v395 = vmul.f32 %v341, %v370
      %v396 = vmul.f32 %v342, %v374
      %v397 = vmul.f32 %v343, %v378
      %v398 = vmul.f32 %v344, %v382
      %v399 = vmul.f32 %v345, %v370
      %v400 = vmul.f32 %v346, %v374
      %v401 = vmul.f32 %v347, %v378
      %v402 = vmul.f32 %v348, %v382
      %v403 = vmul.f32 %v349, %v370
      %v404 = vmul.f32 %v350, %v374
      %v405 = vmul.f32 %v351, %v378
      %v406 = vmul.f32 %v352, %v382
      %v407 = vmul.f32 %v353, %v370
      %v408 = vmul.f32 %v354, %v374
      %v409 = vmul.f32 %v355, %v378
      %v410 = vmul.f32 %v356, %v382
      %v411 = vmul.f32 %v357, %v370
      %v412 = vmul.f32 %v358, %v374
      %v413 = vmul.f32 %v359, %v378
      %v414 = vmul.f32 %v360, %v382
      %v415 = vmul.f32 %v361, %v370
      %v416 = vmul.f32 %v362, %v374
      %v417 = vmul.f32 %v363, %v378
      %v418 = vmul.f32 %v364, %v382
      %v419 = vld [vmem:[%s3] sm:$0xf]
      %v421 = vlaneseq
      %v422 = vshrl.u32 %v421, 7
      %v423 = vsub.s32 0, %v422
      %v424 = vrot.slane %v419, %v423
      %v425 = vlaneseq
      %v426 = vshrl.u32 %v425, 7
      %v427 = vsub.s32 1, %v426
      %v428 = vrot.slane %v419, %v427
      %v429 = vlaneseq
      %v430 = vshrl.u32 %v429, 7
      %v431 = vsub.s32 2, %v430
      %v432 = vrot.slane %v419, %v431
      %v433 = vlaneseq
      %v434 = vshrl.u32 %v433, 7
      %v435 = vsub.s32 3, %v434
      %v436 = vrot.slane %v419, %v435
      %v441 = vadd.f32 %v387, %v424
      %v442 = vadd.f32 %v388, %v428
      %v443 = vadd.f32 %v389, %v432
      %v444 = vadd.f32 %v390, %v436
      %v445 = vadd.f32 %v391, %v424
      %v446 = vadd.f32 %v392, %v428
      %v447 = vadd.f32 %v393, %v432
      %v448 = vadd.f32 %v394, %v436
      %v449 = vadd.f32 %v395, %v424
      %v450 = vadd.f32 %v396, %v428
      %v451 = vadd.f32 %v397, %v432
      %v452 = vadd.f32 %v398, %v436
      %v453 = vadd.f32 %v399, %v424
      %v454 = vadd.f32 %v400, %v428
      %v455 = vadd.f32 %v401, %v432
      %v456 = vadd.f32 %v402, %v436
      %v457 = vadd.f32 %v403, %v424
      %v458 = vadd.f32 %v404, %v428
      %v459 = vadd.f32 %v405, %v432
      %v460 = vadd.f32 %v406, %v436
      %v461 = vadd.f32 %v407, %v424
      %v462 = vadd.f32 %v408, %v428
      %v463 = vadd.f32 %v409, %v432
      %v464 = vadd.f32 %v410, %v436
      %v465 = vadd.f32 %v411, %v424
      %v466 = vadd.f32 %v412, %v428
      %v467 = vadd.f32 %v413, %v432
      %v468 = vadd.f32 %v414, %v436
      %v469 = vadd.f32 %v415, %v424
      %v470 = vadd.f32 %v416, %v428
      %v471 = vadd.f32 %v417, %v432
      %v472 = vadd.f32 %v418, %v436
      %v473 = vmax.f32 %v441, 0.0
      %v474 = vmax.f32 %v442, 0.0
      %v475 = vmax.f32 %v443, 0.0
      %v476 = vmax.f32 %v444, 0.0
      %v477 = vmax.f32 %v445, 0.0
      %v478 = vmax.f32 %v446, 0.0
      %v479 = vmax.f32 %v447, 0.0
      %v480 = vmax.f32 %v448, 0.0
      %v481 = vmax.f32 %v449, 0.0
      %v482 = vmax.f32 %v450, 0.0
      %v483 = vmax.f32 %v451, 0.0
      %v484 = vmax.f32 %v452, 0.0
      %v485 = vmax.f32 %v453, 0.0
      %v486 = vmax.f32 %v454, 0.0
      %v487 = vmax.f32 %v455, 0.0
      %v488 = vmax.f32 %v456, 0.0
      %v489 = vmax.f32 %v457, 0.0
      %v490 = vmax.f32 %v458, 0.0
      %v491 = vmax.f32 %v459, 0.0
      %v492 = vmax.f32 %v460, 0.0
      %v493 = vmax.f32 %v461, 0.0
      %v494 = vmax.f32 %v462, 0.0
      %v495 = vmax.f32 %v463, 0.0
      %v496 = vmax.f32 %v464, 0.0
      %v497 = vmax.f32 %v465, 0.0
      %v498 = vmax.f32 %v466, 0.0
      %v499 = vmax.f32 %v467, 0.0
      %v500 = vmax.f32 %v468, 0.0
      %v501 = vmax.f32 %v469, 0.0
      %v502 = vmax.f32 %v470, 0.0
      %v503 = vmax.f32 %v471, 0.0
      %v504 = vmax.f32 %v472, 0.0
      %v505 = vpack.c.bf16 %v477, %v473
      %v506 = vpack.c.bf16 %v478, %v474
      %v507 = vpack.c.bf16 %v479, %v475
      %v508 = vpack.c.bf16 %v480, %v476
      %v509 = vpack.c.bf16 %v485, %v481
      %v510 = vpack.c.bf16 %v486, %v482
      %v511 = vpack.c.bf16 %v487, %v483
      %v512 = vpack.c.bf16 %v488, %v484
      %v513 = vpack.c.bf16 %v493, %v489
      %v514 = vpack.c.bf16 %v494, %v490
      %v515 = vpack.c.bf16 %v495, %v491
      %v516 = vpack.c.bf16 %v496, %v492
      %v517 = vpack.c.bf16 %v501, %v497
      %v518 = vpack.c.bf16 %v502, %v498
      %v519 = vpack.c.bf16 %v503, %v499
      %v520 = vpack.c.bf16 %v504, %v500
      %v521 = vld [vmem:[%s4] sm:$0xf]
      %v522 = vld [vmem:[%s4 + $0x4] sm:$0xf]
      %v523 = vld [vmem:[%s4 + $0x8] sm:$0xf]
      %v524 = vld [vmem:[%s4 + $0xc] sm:$0xf]
      %v525 = vld [vmem:[%s4 + $0x10] sm:$0xf]
      %v526 = vld [vmem:[%s4 + $0x14] sm:$0xf]
      %v527 = vld [vmem:[%s4 + $0x18] sm:$0xf]
      %v528 = vld [vmem:[%s4 + $0x1c] sm:$0xf]
      %v529 = vld [vmem:[%s4 + $0x20] sm:$0xf]
      %v530 = vld [vmem:[%s4 + $0x24] sm:$0xf]
      %v531 = vld [vmem:[%s4 + $0x28] sm:$0xf]
      %v532 = vld [vmem:[%s4 + $0x2c] sm:$0xf]
      %v533 = vld [vmem:[%s4 + $0x30] sm:$0xf]
      %v534 = vld [vmem:[%s4 + $0x34] sm:$0xf]
      %v535 = vld [vmem:[%s4 + $0x38] sm:$0xf]
      %v536 = vld [vmem:[%s4 + $0x3c] sm:$0xf]
      %v537 = vld [vmem:[%s4 + $0x40] sm:$0xf]
      %v538 = vld [vmem:[%s4 + $0x44] sm:$0xf]
      %v539 = vld [vmem:[%s4 + $0x48] sm:$0xf]
      %v540 = vld [vmem:[%s4 + $0x4c] sm:$0xf]
      %v541 = vld [vmem:[%s4 + $0x50] sm:$0xf]
      %v542 = vld [vmem:[%s4 + $0x54] sm:$0xf]
      %v543 = vld [vmem:[%s4 + $0x58] sm:$0xf]
      %v544 = vld [vmem:[%s4 + $0x5c] sm:$0xf]
      %v545 = vld [vmem:[%s4 + $0x60] sm:$0xf]
      %v546 = vld [vmem:[%s4 + $0x64] sm:$0xf]
      %v547 = vld [vmem:[%s4 + $0x68] sm:$0xf]
      %v548 = vld [vmem:[%s4 + $0x6c] sm:$0xf]
      %v549 = vld [vmem:[%s4 + $0x70] sm:$0xf]
      %v550 = vld [vmem:[%s4 + $0x74] sm:$0xf]
      %v551 = vld [vmem:[%s4 + $0x78] sm:$0xf]
      %v552 = vld [vmem:[%s4 + $0x7c] sm:$0xf]
      %v553 = vld [vmem:[%s4 + $0x80] sm:$0xf]
      %v554 = vld [vmem:[%s4 + $0x84] sm:$0xf]
      %v555 = vld [vmem:[%s4 + $0x88] sm:$0xf]
      %v556 = vld [vmem:[%s4 + $0x8c] sm:$0xf]
      %v557 = vld [vmem:[%s4 + $0x90] sm:$0xf]
      %v558 = vld [vmem:[%s4 + $0x94] sm:$0xf]
      %v559 = vld [vmem:[%s4 + $0x98] sm:$0xf]
      %v560 = vld [vmem:[%s4 + $0x9c] sm:$0xf]
      %v561 = vld [vmem:[%s4 + $0xa0] sm:$0xf]
      %v562 = vld [vmem:[%s4 + $0xa4] sm:$0xf]
      %v563 = vld [vmem:[%s4 + $0xa8] sm:$0xf]
      %v564 = vld [vmem:[%s4 + $0xac] sm:$0xf]
      %v565 = vld [vmem:[%s4 + $0xb0] sm:$0xf]
      %v566 = vld [vmem:[%s4 + $0xb4] sm:$0xf]
      %v567 = vld [vmem:[%s4 + $0xb8] sm:$0xf]
      %v568 = vld [vmem:[%s4 + $0xbc] sm:$0xf]
      %v569 = vld [vmem:[%s4 + $0xc0] sm:$0xf]
      %v570 = vld [vmem:[%s4 + $0xc4] sm:$0xf]
      %v571 = vld [vmem:[%s4 + $0xc8] sm:$0xf]
      %v572 = vld [vmem:[%s4 + $0xcc] sm:$0xf]
      %v573 = vld [vmem:[%s4 + $0xd0] sm:$0xf]
      %v574 = vld [vmem:[%s4 + $0xd4] sm:$0xf]
      %v575 = vld [vmem:[%s4 + $0xd8] sm:$0xf]
      %v576 = vld [vmem:[%s4 + $0xdc] sm:$0xf]
      %v577 = vld [vmem:[%s4 + $0xe0] sm:$0xf]
      %v578 = vld [vmem:[%s4 + $0xe4] sm:$0xf]
      %v579 = vld [vmem:[%s4 + $0xe8] sm:$0xf]
      %v580 = vld [vmem:[%s4 + $0xec] sm:$0xf]
      %v581 = vld [vmem:[%s4 + $0xf0] sm:$0xf]
      %v582 = vld [vmem:[%s4 + $0xf4] sm:$0xf]
      %v583 = vld [vmem:[%s4 + $0xf8] sm:$0xf]
      %v584 = vld [vmem:[%s4 + $0xfc] sm:$0xf]
      %v585 = vld [vmem:[%s5] sm:$0x1]
      %v587 = vlaneseq
      %v588 = vshrl.u32 %v587, 7
      %v589 = vsub.s32 0, %v588
      %v590 = vrot.slane %v585, %v589
      %v656 = vunpack.c.l.b16 %v521
      %v657 = vunpack.c.l.b16 %v522
      %v658 = vunpack.c.l.b16 %v523
      %v659 = vunpack.c.l.b16 %v524
      %v660 = vunpack.c.l.b16 %v525
      %v661 = vunpack.c.l.b16 %v526
      %v662 = vunpack.c.l.b16 %v527
      %v663 = vunpack.c.l.b16 %v528
      %v664 = vunpack.c.l.b16 %v529
      %v665 = vunpack.c.l.b16 %v530
      %v666 = vunpack.c.l.b16 %v531
      %v667 = vunpack.c.l.b16 %v532
      %v668 = vunpack.c.l.b16 %v533
      %v669 = vunpack.c.l.b16 %v534
      %v670 = vunpack.c.l.b16 %v535
      %v671 = vunpack.c.l.b16 %v536
      %v672 = vunpack.c.l.b16 %v537
      %v673 = vunpack.c.l.b16 %v538
      %v674 = vunpack.c.l.b16 %v539
      %v675 = vunpack.c.l.b16 %v540
      %v676 = vunpack.c.l.b16 %v541
      %v677 = vunpack.c.l.b16 %v542
      %v678 = vunpack.c.l.b16 %v543
      %v679 = vunpack.c.l.b16 %v544
      %v680 = vunpack.c.l.b16 %v545
      %v681 = vunpack.c.l.b16 %v546
      %v682 = vunpack.c.l.b16 %v547
      %v683 = vunpack.c.l.b16 %v548
      %v684 = vunpack.c.l.b16 %v549
      %v685 = vunpack.c.l.b16 %v550
      %v686 = vunpack.c.l.b16 %v551
      %v687 = vunpack.c.l.b16 %v552
      %v688 = vunpack.c.l.b16 %v553
      %v689 = vunpack.c.l.b16 %v554
      %v690 = vunpack.c.l.b16 %v555
      %v691 = vunpack.c.l.b16 %v556
      %v692 = vunpack.c.l.b16 %v557
      %v693 = vunpack.c.l.b16 %v558
      %v694 = vunpack.c.l.b16 %v559
      %v695 = vunpack.c.l.b16 %v560
      %v696 = vunpack.c.l.b16 %v561
      %v697 = vunpack.c.l.b16 %v562
      %v698 = vunpack.c.l.b16 %v563
      %v699 = vunpack.c.l.b16 %v564
      %v700 = vunpack.c.l.b16 %v565
      %v701 = vunpack.c.l.b16 %v566
      %v702 = vunpack.c.l.b16 %v567
      %v703 = vunpack.c.l.b16 %v568
      %v704 = vunpack.c.l.b16 %v569
      %v705 = vunpack.c.l.b16 %v570
      %v706 = vunpack.c.l.b16 %v571
      %v707 = vunpack.c.l.b16 %v572
      %v708 = vunpack.c.l.b16 %v573
      %v709 = vunpack.c.l.b16 %v574
      %v710 = vunpack.c.l.b16 %v575
      %v711 = vunpack.c.l.b16 %v576
      %v712 = vunpack.c.l.b16 %v577
      %v713 = vunpack.c.l.b16 %v578
      %v714 = vunpack.c.l.b16 %v579
      %v715 = vunpack.c.l.b16 %v580
      %v716 = vunpack.c.l.b16 %v581
      %v717 = vunpack.c.l.b16 %v582
      %v718 = vunpack.c.l.b16 %v583
      %v719 = vunpack.c.l.b16 %v584
      %v720 = vpack.c.b16 %v657, %v656
      %v721 = vpack.c.b16 %v659, %v658
      %v722 = vpack.c.b16 %v661, %v660
      %v723 = vpack.c.b16 %v663, %v662
      %v724 = vpack.c.b16 %v665, %v664
      %v725 = vpack.c.b16 %v667, %v666
      %v726 = vpack.c.b16 %v669, %v668
      %v727 = vpack.c.b16 %v671, %v670
      %v728 = vpack.c.b16 %v673, %v672
      %v729 = vpack.c.b16 %v675, %v674
      %v730 = vpack.c.b16 %v677, %v676
      %v731 = vpack.c.b16 %v679, %v678
      %v732 = vpack.c.b16 %v681, %v680
      %v733 = vpack.c.b16 %v683, %v682
      %v734 = vpack.c.b16 %v685, %v684
      %v735 = vpack.c.b16 %v687, %v686
      %v736 = vpack.c.b16 %v689, %v688
      %v737 = vpack.c.b16 %v691, %v690
      %v738 = vpack.c.b16 %v693, %v692
      %v739 = vpack.c.b16 %v695, %v694
      %v740 = vpack.c.b16 %v697, %v696
      %v741 = vpack.c.b16 %v699, %v698
      %v742 = vpack.c.b16 %v701, %v700
      %v743 = vpack.c.b16 %v703, %v702
      %v744 = vpack.c.b16 %v705, %v704
      %v745 = vpack.c.b16 %v707, %v706
      %v746 = vpack.c.b16 %v709, %v708
      %v747 = vpack.c.b16 %v711, %v710
      %v748 = vpack.c.b16 %v713, %v712
      %v749 = vpack.c.b16 %v715, %v714
      %v750 = vpack.c.b16 %v717, %v716
      %v751 = vpack.c.b16 %v719, %v718
      %784 = vmatprep.subr.bf16.mxu0 0
      %785 = vmatpush1.bf16.msra.mxu0 %v727
      %786 = vmatprep.subr.bf16.mxu0 0
      %787 = vmatpush1.bf16.msra.mxu0 %v726
      %788 = vmatprep.subr.bf16.mxu0 0
      %789 = vmatpush1.bf16.msra.mxu0 %v725
      %790 = vmatprep.subr.bf16.mxu0 0
      %791 = vmatpush1.bf16.msra.mxu0 %v724
      %792 = vmatprep.subr.bf16.mxu0 0
      %793 = vmatpush1.bf16.msra.mxu0 %v723
      %794 = vmatprep.subr.bf16.mxu0 0
      %795 = vmatpush1.bf16.msra.mxu0 %v722
      %796 = vmatprep.subr.bf16.mxu0 0
      %797 = vmatpush1.bf16.msra.mxu0 %v721
      %798 = vmatprep.subr.bf16.mxu0 0
      %799 = vmatpush1.bf16.msra.mxu0 %v720
      %800 = vmatprep.subr.bf16.mxu0 0
      %801 = vmatpush2.bf16.msra.mxu0 %v735
      %802 = vmatprep.subr.bf16.mxu0 0
      %803 = vmatpush2.bf16.msra.mxu0 %v734
      %804 = vmatprep.subr.bf16.mxu0 0
      %805 = vmatpush2.bf16.msra.mxu0 %v733
      %806 = vmatprep.subr.bf16.mxu0 0
      %807 = vmatpush2.bf16.msra.mxu0 %v732
      %808 = vmatprep.subr.bf16.mxu0 0
      %809 = vmatpush2.bf16.msra.mxu0 %v731
      %810 = vmatprep.subr.bf16.mxu0 0
      %811 = vmatpush2.bf16.msra.mxu0 %v730
      %812 = vmatprep.subr.bf16.mxu0 0
      %813 = vmatpush2.bf16.msra.mxu0 %v729
      %814 = vmatprep.subr.bf16.mxu0 0
      %815 = vmatpush2.bf16.msra.mxu0 %v728
      %816 = vmatprep.mubr.bf16.mxu0 %v506
      %817 = vmatmul.mubr.bf16.gmra.mxu0 %v505
      %v818 = vpop.f32.mrf.mxu0
      %v819 = vadd.f32 %v590, %v818
      %v820 = vpop.f32.mrf.mxu0
      %v821 = vpop.f32.mrf.mxu0
      %v822 = vadd.f32 %v590, %v821
      %v823 = vpop.f32.mrf.mxu0
      %824 = vmatprep.mubr.bf16.mxu0 %v510
      %825 = vmatmul.mubr.bf16.gmra.mxu0 %v509
      %v826 = vpop.f32.mrf.mxu0
      %v827 = vadd.f32 %v590, %v826
      %v828 = vpop.f32.mrf.mxu0
      %v829 = vpop.f32.mrf.mxu0
      %v830 = vadd.f32 %v590, %v829
      %v831 = vpop.f32.mrf.mxu0
      %832 = vmatprep.mubr.bf16.mxu0 %v514
      %833 = vmatmul.mubr.bf16.gmra.mxu0 %v513
      %v834 = vpop.f32.mrf.mxu0
      %v835 = vadd.f32 %v590, %v834
      %v836 = vpop.f32.mrf.mxu0
      %v837 = vpop.f32.mrf.mxu0
      %v838 = vadd.f32 %v590, %v837
      %v839 = vpop.f32.mrf.mxu0
      %840 = vmatprep.mubr.bf16.mxu0 %v518
      %841 = vmatmul.mubr.bf16.gmra.mxu0 %v517
      %v842 = vpop.f32.mrf.mxu0
      %v843 = vadd.f32 %v590, %v842
      %v844 = vpop.f32.mrf.mxu0
      %v845 = vpop.f32.mrf.mxu0
      %v846 = vadd.f32 %v590, %v845
      %v847 = vpop.f32.mrf.mxu0
      %848 = vdwg.mxu0
      %849 = vmatprep.subr.bf16.mxu0 0
      %850 = vmatpush1.bf16.msra.mxu0 %v743
      %851 = vmatprep.subr.bf16.mxu0 0
      %852 = vmatpush1.bf16.msra.mxu0 %v742
      %853 = vmatprep.subr.bf16.mxu0 0
      %854 = vmatpush1.bf16.msra.mxu0 %v741
      %855 = vmatprep.subr.bf16.mxu0 0
      %856 = vmatpush1.bf16.msra.mxu0 %v740
      %857 = vmatprep.subr.bf16.mxu0 0
      %858 = vmatpush1.bf16.msra.mxu0 %v739
      %859 = vmatprep.subr.bf16.mxu0 0
      %860 = vmatpush1.bf16.msra.mxu0 %v738
      %861 = vmatprep.subr.bf16.mxu0 0
      %862 = vmatpush1.bf16.msra.mxu0 %v737
      %863 = vmatprep.subr.bf16.mxu0 0
      %864 = vmatpush1.bf16.msra.mxu0 %v736
      %865 = vmatprep.subr.bf16.mxu0 0
      %866 = vmatpush2.bf16.msra.mxu0 %v751
      %867 = vmatprep.subr.bf16.mxu0 0
      %868 = vmatpush2.bf16.msra.mxu0 %v750
      %869 = vmatprep.subr.bf16.mxu0 0
      %870 = vmatpush2.bf16.msra.mxu0 %v749
      %871 = vmatprep.subr.bf16.mxu0 0
      %872 = vmatpush2.bf16.msra.mxu0 %v748
      %873 = vmatprep.subr.bf16.mxu0 0
      %874 = vmatpush2.bf16.msra.mxu0 %v747
      %875 = vmatprep.subr.bf16.mxu0 0
      %876 = vmatpush2.bf16.msra.mxu0 %v746
      %877 = vmatprep.subr.bf16.mxu0 0
      %878 = vmatpush2.bf16.msra.mxu0 %v745
      %879 = vmatprep.subr.bf16.mxu0 0
      %880 = vmatpush2.bf16.msra.mxu0 %v744
      %881 = vmatprep.mubr.bf16.mxu0 %v508
      %882 = vmatmul.mubr.bf16.gmra.mxu0 %v507
      %v883 = vpop.f32.mrf.mxu0
      %v884 = vadd.f32 %v819, %v883
      %v885 = vpop.f32.mrf.mxu0
      %v886 = vpop.f32.mrf.mxu0
      %v887 = vadd.f32 %v822, %v886
      %v888 = vpop.f32.mrf.mxu0
      %889 = vmatprep.mubr.bf16.mxu0 %v512
      %890 = vmatmul.mubr.bf16.gmra.mxu0 %v511
      %v891 = vpop.f32.mrf.mxu0
      %v892 = vadd.f32 %v827, %v891
      %v893 = vpop.f32.mrf.mxu0
      %v894 = vpop.f32.mrf.mxu0
      %v895 = vadd.f32 %v830, %v894
      %v896 = vpop.f32.mrf.mxu0
      %897 = vmatprep.mubr.bf16.mxu0 %v516
      %898 = vmatmul.mubr.bf16.gmra.mxu0 %v515
      %v899 = vpop.f32.mrf.mxu0
      %v900 = vadd.f32 %v835, %v899
      %v901 = vpop.f32.mrf.mxu0
      %v902 = vpop.f32.mrf.mxu0
      %v903 = vadd.f32 %v838, %v902
      %v904 = vpop.f32.mrf.mxu0
      %905 = vmatprep.mubr.bf16.mxu0 %v520
      %906 = vmatmul.mubr.bf16.gmra.mxu0 %v519
      %v907 = vpop.f32.mrf.mxu0
      %v908 = vadd.f32 %v843, %v907
      %v909 = vpop.f32.mrf.mxu0
      %v910 = vpop.f32.mrf.mxu0
      %v911 = vadd.f32 %v846, %v910
      %v912 = vpop.f32.mrf.mxu0
      %913 = vdwg.mxu0
      %v914 = vadd.f32 %v884, 2.0
      %v915 = vadd.f32 %v887, 2.0
      %v916 = vadd.f32 %v892, 2.0
      %v917 = vadd.f32 %v895, 2.0
      %v918 = vadd.f32 %v900, 2.0
      %v919 = vadd.f32 %v903, 2.0
      %v920 = vadd.f32 %v908, 2.0
      %v921 = vadd.f32 %v911, 2.0
      %v922 = vmin.f32 %v914, 0.0
      %v923 = vmin.f32 %v915, 0.0
      %v924 = vmin.f32 %v916, 0.0
      %v925 = vmin.f32 %v917, 0.0
      %v926 = vmin.f32 %v918, 0.0
      %v927 = vmin.f32 %v919, 0.0
      %v928 = vmin.f32 %v920, 0.0
      %v929 = vmin.f32 %v921, 0.0
      %v930 = vand.u32 2147483647, %v914
      %v931 = vand.u32 2147483647, %v915
      %v932 = vand.u32 2147483647, %v916
      %v933 = vand.u32 2147483647, %v917
      %v934 = vand.u32 2147483647, %v918
      %v935 = vand.u32 2147483647, %v919
      %v936 = vand.u32 2147483647, %v920
      %v937 = vand.u32 2147483647, %v921
      %v938 = vsub.f32 0.0, %v930
      %v939 = vsub.f32 0.0, %v931
      %v940 = vsub.f32 0.0, %v932
      %v941 = vsub.f32 0.0, %v933
      %v942 = vsub.f32 0.0, %v934
      %v943 = vsub.f32 0.0, %v935
      %v944 = vsub.f32 0.0, %v936
      %v945 = vsub.f32 0.0, %v937
      %v946 = vmul.f32 %v938, 1.442695
      %v947 = vpow.pop %v946
      %v948 = vmul.f32 %v939, 1.442695
      %v949 = vpow.pop %v948
      %v950 = vmul.f32 %v940, 1.442695
      %v951 = vpow.pop %v950
      %v952 = vmul.f32 %v941, 1.442695
      %v953 = vpow.pop %v952
      %v954 = vmul.f32 %v942, 1.442695
      %v955 = vpow.pop %v954
      %v956 = vmul.f32 %v943, 1.442695
      %v957 = vpow.pop %v956
      %v958 = vmul.f32 %v944, 1.442695
      %v959 = vpow.pop %v958
      %v960 = vmul.f32 %v945, 1.442695
      %v961 = vpow.pop %v960
      %v962 = vadd.f32 %v947, 1.0
      %v963 = vadd.f32 %v949, 1.0
      %v964 = vadd.f32 %v951, 1.0
      %v965 = vadd.f32 %v953, 1.0
      %v966 = vadd.f32 %v955, 1.0
      %v967 = vadd.f32 %v957, 1.0
      %v968 = vadd.f32 %v959, 1.0
      %v969 = vadd.f32 %v961, 1.0
      %v970 = vlog2.pop %v962
      %v971 = vmul.f32 %v970, 0.6931472
      %v972 = vlog2.pop %v963
      %v973 = vmul.f32 %v972, 0.6931472
      %v974 = vlog2.pop %v964
      %v975 = vmul.f32 %v974, 0.6931472
      %v976 = vlog2.pop %v965
      %v977 = vmul.f32 %v976, 0.6931472
      %v978 = vlog2.pop %v966
      %v979 = vmul.f32 %v978, 0.6931472
      %v980 = vlog2.pop %v967
      %v981 = vmul.f32 %v980, 0.6931472
      %v982 = vlog2.pop %v968
      %v983 = vmul.f32 %v982, 0.6931472
      %v984 = vlog2.pop %v969
      %v985 = vmul.f32 %v984, 0.6931472
      %v986 = vsub.f32 %v922, %v971
      %v987 = vsub.f32 %v923, %v973
      %v988 = vsub.f32 %v924, %v975
      %v989 = vsub.f32 %v925, %v977
      %v990 = vsub.f32 %v926, %v979
      %v991 = vsub.f32 %v927, %v981
      %v992 = vsub.f32 %v928, %v983
      %v993 = vsub.f32 %v929, %v985
      %v994 = vmul.f32 %v986, 1.442695
      %v995 = vpow.pop %v994
      %v996 = vmul.f32 %v987, 1.442695
      %v997 = vpow.pop %v996
      %v998 = vmul.f32 %v988, 1.442695
      %v999 = vpow.pop %v998
      %v1000 = vmul.f32 %v989, 1.442695
      %v1001 = vpow.pop %v1000
      %v1002 = vmul.f32 %v990, 1.442695
      %v1003 = vpow.pop %v1002
      %v1004 = vmul.f32 %v991, 1.442695
      %v1005 = vpow.pop %v1004
      %v1006 = vmul.f32 %v992, 1.442695
      %v1007 = vpow.pop %v1006
      %v1008 = vmul.f32 %v993, 1.442695
      %v1009 = vpow.pop %v1008
      %v1010 = vld [vmem:[%s305] sm:$0xff]
      %v1011 = vld [vmem:[%s305 + $0x8] sm:$0xff]
      %v1012 = vld [vmem:[%s305 + $0x10] sm:$0xff]
      %v1013 = vld [vmem:[%s305 + $0x18] sm:$0xff]
      %v1014 = vld [vmem:[%s305 + $0x20] sm:$0xff]
      %v1015 = vld [vmem:[%s305 + $0x28] sm:$0xff]
      %v1016 = vld [vmem:[%s305 + $0x30] sm:$0xff]
      %v1017 = vld [vmem:[%s305 + $0x38] sm:$0xff]
      %vm1018 = vcmask 15360
      %1019 = vst.msk [vmem:[%s311] sm:$0xff] %vm1018, %v1010
      %1020 = vst.msk [vmem:[%s311 + $0x8] sm:$0xff] %vm1018, %v1011
      %1021 = vst.msk [vmem:[%s311 + $0x10] sm:$0xff] %vm1018, %v1012
      %1022 = vst.msk [vmem:[%s311 + $0x18] sm:$0xff] %vm1018, %v1013
      %1023 = vst.msk [vmem:[%s311 + $0x20] sm:$0xff] %vm1018, %v1014
      %1024 = vst.msk [vmem:[%s311 + $0x28] sm:$0xff] %vm1018, %v1015
      %1025 = vst.msk [vmem:[%s311 + $0x30] sm:$0xff] %vm1018, %v1016
      %1026 = vst.msk [vmem:[%s311 + $0x38] sm:$0xff] %vm1018, %v1017
      %1035 = vrot.lane.b32.xlu0 %v884, 126
      %v1036 = vpop.permute.xlu0 %1035
      %1037 = vrot.lane.b32.xlu0 %v887, 126
      %v1038 = vpop.permute.xlu0 %1037
      %1039 = vrot.lane.b32.xlu0 %v892, 126
      %v1040 = vpop.permute.xlu0 %1039
      %1041 = vrot.lane.b32.xlu0 %v895, 126
      %v1042 = vpop.permute.xlu0 %1041
      %1043 = vrot.lane.b32.xlu0 %v900, 126
      %v1044 = vpop.permute.xlu0 %1043
      %1045 = vrot.lane.b32.xlu0 %v903, 126
      %v1046 = vpop.permute.xlu0 %1045
      %1047 = vrot.lane.b32.xlu0 %v908, 126
      %v1048 = vpop.permute.xlu0 %1047
      %1049 = vrot.lane.b32.xlu0 %v911, 126
      %v1050 = vpop.permute.xlu0 %1049
      %v1059 = vadd.f32 %v1010, %v1036
      %v1060 = vadd.f32 %v1011, %v1038
      %v1061 = vadd.f32 %v1012, %v1040
      %v1062 = vadd.f32 %v1013, %v1042
      %v1063 = vadd.f32 %v1014, %v1044
      %v1064 = vadd.f32 %v1015, %v1046
      %v1065 = vadd.f32 %v1016, %v1048
      %v1066 = vadd.f32 %v1017, %v1050
      %1075 = vrot.lane.b32.xlu0 %v995, 2
      %v1076 = vpop.permute.xlu0 %1075
      %1077 = vrot.lane.b32.xlu0 %v997, 2
      %v1078 = vpop.permute.xlu0 %1077
      %1079 = vrot.lane.b32.xlu0 %v999, 2
      %v1080 = vpop.permute.xlu0 %1079
      %1081 = vrot.lane.b32.xlu0 %v1001, 2
      %v1082 = vpop.permute.xlu0 %1081
      %1083 = vrot.lane.b32.xlu0 %v1003, 2
      %v1084 = vpop.permute.xlu0 %1083
      %1085 = vrot.lane.b32.xlu0 %v1005, 2
      %v1086 = vpop.permute.xlu0 %1085
      %1087 = vrot.lane.b32.xlu0 %v1007, 2
      %v1088 = vpop.permute.xlu0 %1087
      %1089 = vrot.lane.b32.xlu0 %v1009, 2
      %v1090 = vpop.permute.xlu0 %1089
      %v1099 = vmul.f32 %v1059, %v1076
      %v1100 = vmul.f32 %v1060, %v1078
      %v1101 = vmul.f32 %v1061, %v1080
      %v1102 = vmul.f32 %v1062, %v1082
      %v1103 = vmul.f32 %v1063, %v1084
      %v1104 = vmul.f32 %v1064, %v1086
      %v1105 = vmul.f32 %v1065, %v1088
      %v1106 = vmul.f32 %v1066, %v1090
      %vm1107 = vcmask 48144
      %1108 = vst.msk [vmem:[%s311] sm:$0xff] %vm1107, %v1099
      %1109 = vst.msk [vmem:[%s311 + $0x8] sm:$0xff] %vm1107, %v1100
      %1110 = vst.msk [vmem:[%s311 + $0x10] sm:$0xff] %vm1107, %v1101
      %1111 = vst.msk [vmem:[%s311 + $0x18] sm:$0xff] %vm1107, %v1102
      %1112 = vst.msk [vmem:[%s311 + $0x20] sm:$0xff] %vm1107, %v1103
      %1113 = vst.msk [vmem:[%s311 + $0x28] sm:$0xff] %vm1107, %v1104
      %1114 = vst.msk [vmem:[%s311 + $0x30] sm:$0xff] %vm1107, %v1105
      %1115 = vst.msk [vmem:[%s311 + $0x38] sm:$0xff] %vm1107, %v1106
      %vm1116 = vcmask 31744
      %v1117 = vsel %vm1116, %v986, 0.0
      %1118 = vadd.xlane.f32.xlu0 %v1117
      %v1119 = vpop.xlane.xlu0 %1118
      %v1120 = vsel %vm1116, %v987, 0.0
      %1121 = vadd.xlane.f32.xlu0 %v1120
      %v1122 = vpop.xlane.xlu0 %1121
      %v1123 = vsel %vm1116, %v988, 0.0
      %1124 = vadd.xlane.f32.xlu0 %v1123
      %v1125 = vpop.xlane.xlu0 %1124
      %v1126 = vsel %vm1116, %v989, 0.0
      %1127 = vadd.xlane.f32.xlu0 %v1126
      %v1128 = vpop.xlane.xlu0 %1127
      %v1129 = vsel %vm1116, %v990, 0.0
      %1130 = vadd.xlane.f32.xlu0 %v1129
      %v1131 = vpop.xlane.xlu0 %1130
      %v1132 = vsel %vm1116, %v991, 0.0
      %1133 = vadd.xlane.f32.xlu0 %v1132
      %v1134 = vpop.xlane.xlu0 %1133
      %v1135 = vsel %vm1116, %v992, 0.0
      %1136 = vadd.xlane.f32.xlu0 %v1135
      %v1137 = vpop.xlane.xlu0 %1136
      %v1138 = vsel %vm1116, %v993, 0.0
      %1139 = vadd.xlane.f32.xlu0 %v1138
      %v1140 = vpop.xlane.xlu0 %1139
      %v1141 = vadd.f32 %v1119, %v1122
      %v1142 = vadd.f32 %v1141, %v1125
      %v1143 = vadd.f32 %v1142, %v1128
      %v1144 = vadd.f32 %v1143, %v1131
      %v1145 = vadd.f32 %v1144, %v1134
      %v1146 = vadd.f32 %v1145, %v1137
      %v1147 = vadd.f32 %v1146, %v1140
      %v1148 = vrot.slane %v1147, 4
      %v1149 = vadd.f32 %v1147, %v1148
      %v1150 = vrot.slane %v1149, 2
      %v1151 = vadd.f32 %v1149, %v1150
      %v1152 = vrot.slane %v1151, 1
      %v1153 = vadd.f32 %v1151, %v1152
      %vm1154 = vcmask 0
      %1155 = vst.msk [vmem:[%s315] sm:$0x1] %vm1154, %v1153
      %s1156 = smul.u32 8, %s19
      %p1157 = scmp.lt.s32.totalorder %s1156, 15
      %s1158 = scalar_select %p1157, %s1156, 15
      %s1159 = smul.addr %s1158, 8
      %s1160 = scalar_lea.vmem %s6, %s1159
      %p1161 = scmp.lt.s32.totalorder %s19, 1
      %s1162 = scalar_select %p1161, %s19, 1
      %s1163 = scalar_lea.vmem %s7, %s1162
      // Predicated region
      $region45: #{proflow_forward.7} parent=43 // pred_check
        %p1164 = pneg %p173
      $region46: #{proflow_forward.7} parent=43 // pred_check_branch
        %1166 = sbr.rel (%p1164) target = $region48
      $region47: #{proflow_forward.7} parent=43 // pred_region
        %s1167 = smul.u32 8, %s19
      $region48: #{proflow_forward.7} parent=43 // pred_fallthru
        _
      // Predicated region
      $region49: #{proflow_forward.7} parent=43 // pred_check
        %p1168 = pneg %p199
      $region50: #{proflow_forward.7} parent=43 // pred_check_branch
        %1170 = sbr.rel (%p1168) target = $region52
      $region51: #{proflow_forward.7} parent=43 // pred_region
        _
      $region52: #{proflow_forward.7} parent=43 // pred_fallthru
        _
    $region44: #{proflow_forward.7} parent=5 // pred_fallthru
      _
    %p1171 = scmp.le.s32.totalorder 2, %s14
    // Predicated region
    $region53: #{proflow_forward.7} parent=5 // pred_check
      %p1172 = pneg %p1171
    $region54: #{proflow_forward.7} parent=5 // pred_check_branch
      %1174 = sbr.rel (%p1172) target = $region56
    $region55: #{proflow_forward.7} parent=5 // pred_region
      %s1175 = ssub.s32 %s14, 2
      // Predicated region
      $region57: #{proflow_forward.7} parent=55 // pred_check
        %p1176 = pneg %p179
      $region58: #{proflow_forward.7} parent=55 // pred_check_branch
        %1178 = sbr.rel (%p1176) target = $region60
      $region59: #{proflow_forward.7} parent=55 // pred_region
        %s1179 = smul.u32 8, %s20
        %p1180 = scmp.lt.s32.totalorder %s1179, 15
        %s1181 = scalar_select %p1180, %s1179, 15
        %s1182 = smul.addr %s1181, 8
        %s1183 = scalar_lea.vmem %s6, %s1182
      $region60: #{proflow_forward.7} parent=55 // pred_fallthru
        _
      // Predicated region
      $region61: #{proflow_forward.7} parent=55 // pred_check
        %p1184 = pneg %p205
      $region62: #{proflow_forward.7} parent=55 // pred_check_branch
        %1186 = sbr.rel (%p1184) target = $region64
      $region63: #{proflow_forward.7} parent=55 // pred_region
        %p1187 = scmp.lt.s32.totalorder %s20, 1
        %s1188 = scalar_select %p1187, %s20, 1
        %s1189 = scalar_lea.vmem %s7, %s1188
      $region64: #{proflow_forward.7} parent=55 // pred_fallthru
        _
    $region56: #{proflow_forward.7} parent=5 // pred_fallthru
      _
  $region6: #{proflow_forward.7} parent=0 // loop_footer
    %s18 = sadd.s32 1, %s14
  $region7: #{proflow_forward.7} parent=0 // loop_footer_branch
    %13 = sbr.rel target = $region3
  $region8: #{proflow_forward.7} parent=0 // loop_exit
    _

// kernel: proflow_forward.6
$region0: #{proflow_forward.6}
  #allocation0 [shape = 'u32[]', space=smem, size = 0x4, offset = 0x4, fixed_abs, tag = 'smem constant byte address 0x4 - core index']
  #allocation1 [shape = 'u32[144,128]{1,0:T(1,128)}', space=vmem, size = 0x12000, scoped, tag = 'internal scratch']
  %s0 = inlined_call_operand.vmem [shape: bf16[128,256], index: 0, kind: input, shape index: {}]
  %s1 = inlined_call_operand.vmem [shape: f32[64,4], index: 1, kind: input, shape index: {}]
  %s2 = inlined_call_operand.vmem [shape: f32[1,256], index: 2, kind: input, shape index: {}]
  %s3 = inlined_call_operand.vmem [shape: f32[1,256], index: 3, kind: input, shape index: {}]
  %s4 = inlined_call_operand.vmem [shape: bf16[2304,512], index: 4, kind: input, shape index: {}]
  %s5 = inlined_call_operand.vmem [shape: f32[1,512], index: 5, kind: input, shape index: {}]
  %s6 = inlined_call_operand.vmem [shape: bf16[128,512], index: 6, kind: output, shape index: {0}]
  %s7 = inlined_call_operand.vmem [shape: f32[2,1,512], index: 7, kind: output, shape index: {1}]
  %s8 = inlined_call_operand.vmem [shape: f32[2,1,512], index: 8, kind: output, shape index: {2}]
  %9 = xla_tuple %s6, %s7, %s8
  %s10 = sld [smem:[#allocation0]]
  $region73: #{proflow_forward.6} parent=0
    _
  %s12 = ssub.s32 1, %s10
  %s13 = scalar_select 0, %s12, %s10
  loop: start=0, step=1, limit=4
  $region2: #{proflow_forward.6} parent=0 // loop_pre_header
    _
  $region3: #{proflow_forward.6} parent=0 // loop_header
    %s15 = sphi 0, %s19
    %p16 = scmp.ge.s32.totalorder %s15, 4
    %s25 = sphi 0, %s27
    %s28 = sphi 0, %s25
    %s29 = sphi 0, %s28
    %s45 = sphi 0, %s29
    %s49 = sphi 0, %s49
    %s51 = sphi 0, %s49
    %s52 = sphi 0, %s51
    %s66 = sphi 0, %s52
    %s70 = sphi 0, %s70
    %s72 = sphi 0, %s70
    %s73 = sphi 0, %s72
    %s87 = sphi 0, %s73
    %s91 = sphi 0, %s91
    %s93 = sphi 0, %s91
    %s94 = sphi 0, %s93
    %s108 = sphi 0, %s94
    %s112 = sphi 0, %s112
    %s114 = sphi 0, %s112
    %s115 = sphi 0, %s114
    %s129 = sphi 0, %s115
    %s133 = sphi 0, %s133
    %s135 = sphi 0, %s133
    %s136 = sphi 0, %s135
    %s150 = sphi 0, %s136
    %s156 = sphi 0, %s158
    %s159 = sphi 0, %s156
    %s160 = sphi 0, %s159
    %s176 = sphi 0, %s160
    %s182 = sphi 0, %s184
    %s185 = sphi 0, %s182
    %s186 = sphi 0, %s185
    %s202 = sphi 0, %s186
    %s208 = sphi 0, %s210
    %s211 = sphi 0, %s208
    %s212 = sphi 0, %s211
    %s228 = sphi 0, %s212
  $region4: #{proflow_forward.6} parent=0 // loop_header_branch
    %18 = sbr.rel (%p16) target = $region8
  $region5: #{proflow_forward.6} parent=0 // loop_body
    %s20 = ssub.s32 %s15, 1
    %s21 = ssub.s32 %s15, 2
    %s22 = sadd.s32 %s15, 1
    %s23 = ssub.s32 %s15, %s22
    %p24 = scmp.eq.s32.totalorder %s23, 0
    %s26 = sadd.s32 %s25, 1
    %s27 = scalar_select %p24, %s25, %s26
    %p30 = pneg %p24
    %p31 = scmp.eq.s32.totalorder %s15, 1
    %p32 = por %p30, %p31
    %p33 = scmp.ne.s32.totalorder %s25, %s28
    %p34 = scmp.eq.s32.totalorder %s15, 0
    %p35 = por %p33, %p34
    %p36 = scmp.ne.s32.totalorder %s25, %s28
    %p37 = scmp.eq.s32.totalorder %s20, 1
    %p38 = por %p36, %p37
    %p39 = scmp.ne.s32.totalorder %s28, %s29
    %p40 = scmp.eq.s32.totalorder %s20, 0
    %p41 = por %p39, %p40
    %p42 = scmp.ne.s32.totalorder %s28, %s29
    %p43 = scmp.eq.s32.totalorder %s21, 1
    %p44 = por %p42, %p43
    %p46 = scmp.ne.s32.totalorder %s29, %s45
    %p47 = scmp.eq.s32.totalorder %s21, 0
    %p48 = por %p46, %p47
    %s50 = sadd.s32 %s49, 1
    %p53 = scmp.eq.s32.totalorder %s15, 1
    %p54 = scmp.ne.s32.totalorder %s49, %s51
    %p55 = scmp.eq.s32.totalorder %s15, 0
    %p56 = por %p54, %p55
    %p57 = scmp.ne.s32.totalorder %s49, %s51
    %p58 = scmp.eq.s32.totalorder %s20, 1
    %p59 = por %p57, %p58
    %p60 = scmp.ne.s32.totalorder %s51, %s52
    %p61 = scmp.eq.s32.totalorder %s20, 0
    %p62 = por %p60, %p61
    %p63 = scmp.ne.s32.totalorder %s51, %s52
    %p64 = scmp.eq.s32.totalorder %s21, 1
    %p65 = por %p63, %p64
    %p67 = scmp.ne.s32.totalorder %s52, %s66
    %p68 = scmp.eq.s32.totalorder %s21, 0
    %p69 = por %p67, %p68
    %s71 = sadd.s32 %s70, 1
    %p74 = scmp.eq.s32.totalorder %s15, 1
    %p75 = scmp.ne.s32.totalorder %s70, %s72
    %p76 = scmp.eq.s32.totalorder %s15, 0
    %p77 = por %p75, %p76
    %p78 = scmp.ne.s32.totalorder %s70, %s72
    %p79 = scmp.eq.s32.totalorder %s20, 1
    %p80 = por %p78, %p79
    %p81 = scmp.ne.s32.totalorder %s72, %s73
    %p82 = scmp.eq.s32.totalorder %s20, 0
    %p83 = por %p81, %p82
    %p84 = scmp.ne.s32.totalorder %s72, %s73
    %p85 = scmp.eq.s32.totalorder %s21, 1
    %p86 = por %p84, %p85
    %p88 = scmp.ne.s32.totalorder %s73, %s87
    %p89 = scmp.eq.s32.totalorder %s21, 0
    %p90 = por %p88, %p89
    %s92 = sadd.s32 %s91, 1
    %p95 = scmp.eq.s32.totalorder %s15, 1
    %p96 = scmp.ne.s32.totalorder %s91, %s93
    %p97 = scmp.eq.s32.totalorder %s15, 0
    %p98 = por %p96, %p97
    %p99 = scmp.ne.s32.totalorder %s91, %s93
    %p100 = scmp.eq.s32.totalorder %s20, 1
    %p101 = por %p99, %p100
    %p102 = scmp.ne.s32.totalorder %s93, %s94
    %p103 = scmp.eq.s32.totalorder %s20, 0
    %p104 = por %p102, %p103
    %p105 = scmp.ne.s32.totalorder %s93, %s94
    %p106 = scmp.eq.s32.totalorder %s21, 1
    %p107 = por %p105, %p106
    %p109 = scmp.ne.s32.totalorder %s94, %s108
    %p110 = scmp.eq.s32.totalorder %s21, 0
    %p111 = por %p109, %p110
    %s113 = sadd.s32 %s112, 1
    %p116 = scmp.eq.s32.totalorder %s15, 1
    %p117 = scmp.ne.s32.totalorder %s112, %s114
    %p118 = scmp.eq.s32.totalorder %s15, 0
    %p119 = por %p117, %p118
    %p120 = scmp.ne.s32.totalorder %s112, %s114
    %p121 = scmp.eq.s32.totalorder %s20, 1
    %p122 = por %p120, %p121
    %p123 = scmp.ne.s32.totalorder %s114, %s115
    %p124 = scmp.eq.s32.totalorder %s20, 0
    %p125 = por %p123, %p124
    %p126 = scmp.ne.s32.totalorder %s114, %s115
    %p127 = scmp.eq.s32.totalorder %s21, 1
    %p128 = por %p126, %p127
    %p130 = scmp.ne.s32.totalorder %s115, %s129
    %p131 = scmp.eq.s32.totalorder %s21, 0
    %p132 = por %p130, %p131
    %s134 = sadd.s32 %s133, 1
    %p137 = scmp.eq.s32.totalorder %s15, 1
    %p138 = scmp.ne.s32.totalorder %s133, %s135
    %p139 = scmp.eq.s32.totalorder %s15, 0
    %p140 = por %p138, %p139
    %p141 = scmp.ne.s32.totalorder %s133, %s135
    %p142 = scmp.eq.s32.totalorder %s20, 1
    %p143 = por %p141, %p142
    %p144 = scmp.ne.s32.totalorder %s135, %s136
    %p145 = scmp.eq.s32.totalorder %s20, 0
    %p146 = por %p144, %p145
    %p147 = scmp.ne.s32.totalorder %s135, %s136
    %p148 = scmp.eq.s32.totalorder %s21, 1
    %p149 = por %p147, %p148
    %p151 = scmp.ne.s32.totalorder %s136, %s150
    %p152 = scmp.eq.s32.totalorder %s21, 0
    %p153 = por %p151, %p152
    %s154 = ssub.s32 %s15, %s22
    %p155 = scmp.eq.s32.totalorder %s154, 0
    %s157 = sadd.s32 %s156, 1
    %s158 = scalar_select %p155, %s156, %s157
    %p161 = pneg %p155
    %p162 = scmp.eq.s32.totalorder %s15, 1
    %p163 = por %p161, %p162
    %p164 = scmp.ne.s32.totalorder %s156, %s159
    %p165 = scmp.eq.s32.totalorder %s15, 0
    %p166 = por %p164, %p165
    %p167 = scmp.ne.s32.totalorder %s156, %s159
    %p168 = scmp.eq.s32.totalorder %s20, 1
    %p169 = por %p167, %p168
    %p170 = scmp.ne.s32.totalorder %s159, %s160
    %p171 = scmp.eq.s32.totalorder %s20, 0
    %p172 = por %p170, %p171
    %p173 = scmp.ne.s32.totalorder %s159, %s160
    %p174 = scmp.eq.s32.totalorder %s21, 1
    %p175 = por %p173, %p174
    %p177 = scmp.ne.s32.totalorder %s160, %s176
    %p178 = scmp.eq.s32.totalorder %s21, 0
    %p179 = por %p177, %p178
    %s180 = ssub.s32 %s15, %s22
    %p181 = scmp.eq.s32.totalorder %s180, 0
    %s183 = sadd.s32 %s182, 1
    %s184 = scalar_select %p181, %s182, %s183
    %p187 = pneg %p181
    %p188 = scmp.eq.s32.totalorder %s15, 1
    %p189 = por %p187, %p188
    %p190 = scmp.ne.s32.totalorder %s182, %s185
    %p191 = scmp.eq.s32.totalorder %s15, 0
    %p192 = por %p190, %p191
    %p193 = scmp.ne.s32.totalorder %s182, %s185
    %p194 = scmp.eq.s32.totalorder %s20, 1
    %p195 = por %p193, %p194
    %p196 = scmp.ne.s32.totalorder %s185, %s186
    %p197 = scmp.eq.s32.totalorder %s20, 0
    %p198 = por %p196, %p197
    %p199 = scmp.ne.s32.totalorder %s185, %s186
    %p200 = scmp.eq.s32.totalorder %s21, 1
    %p201 = por %p199, %p200
    %p203 = scmp.ne.s32.totalorder %s186, %s202
    %p204 = scmp.eq.s32.totalorder %s21, 0
    %p205 = por %p203, %p204
    %s206 = ssub.s32 %s15, %s22
    %p207 = scmp.eq.s32.totalorder %s206, 0
    %s209 = sadd.s32 %s208, 1
    %s210 = scalar_select %p207, %s208, %s209
    %p213 = pneg %p207
    %p214 = scmp.eq.s32.totalorder %s15, 1
    %p215 = por %p213, %p214
    %p216 = scmp.ne.s32.totalorder %s208, %s211
    %p217 = scmp.eq.s32.totalorder %s15, 0
    %p218 = por %p216, %p217
    %p219 = scmp.ne.s32.totalorder %s208, %s211
    %p220 = scmp.eq.s32.totalorder %s20, 1
    %p221 = por %p219, %p220
    %p222 = scmp.ne.s32.totalorder %s211, %s212
    %p223 = scmp.eq.s32.totalorder %s20, 0
    %p224 = por %p222, %p223
    %p225 = scmp.ne.s32.totalorder %s211, %s212
    %p226 = scmp.eq.s32.totalorder %s21, 1
    %p227 = por %p225, %p226
    %p229 = scmp.ne.s32.totalorder %s212, %s228
    %p230 = scmp.eq.s32.totalorder %s21, 0
    %p231 = por %p229, %p230
    %p232 = scmp.le.s32.totalorder 1, %s15
    %p233 = scmp.lt.s32.totalorder %s15, 3
    %p234 = pnand %p232, %p233
    %p235 = pneg %p234
    // Predicated region
    $region9: #{proflow_forward.6} parent=5 // pred_check
      _
    $region10: #{proflow_forward.6} parent=5 // pred_check_branch
      %237 = sbr.rel (%p234) target = $region12
    $region11: #{proflow_forward.6} parent=5 // pred_region
      %s238 = ssub.s32 %s15, 1
      // Predicated region
      $region13: #{proflow_forward.6} parent=11 // pred_check
        %p239 = pneg %p62
      $region14: #{proflow_forward.6} parent=11 // pred_check_branch
        %241 = sbr.rel (%p239) target = $region16
      $region15: #{proflow_forward.6} parent=11 // pred_region
        _
      $region16: #{proflow_forward.6} parent=11 // pred_fallthru
        _
      // Predicated region
      $region17: #{proflow_forward.6} parent=11 // pred_check
        %p242 = pneg %p83
      $region18: #{proflow_forward.6} parent=11 // pred_check_branch
        %244 = sbr.rel (%p242) target = $region20
      $region19: #{proflow_forward.6} parent=11 // pred_region
        _
      $region20: #{proflow_forward.6} parent=11 // pred_fallthru
        _
      // Predicated region
      $region21: #{proflow_forward.6} parent=11 // pred_check
        %p245 = pneg %p104
      $region22: #{proflow_forward.6} parent=11 // pred_check_branch
        %247 = sbr.rel (%p245) target = $region24
      $region23: #{proflow_forward.6} parent=11 // pred_region
        _
      $region24: #{proflow_forward.6} parent=11 // pred_fallthru
        _
      // Predicated region
      $region25: #{proflow_forward.6} parent=11 // pred_check
        %p248 = pneg %p125
      $region26: #{proflow_forward.6} parent=11 // pred_check_branch
        %250 = sbr.rel (%p248) target = $region28
      $region27: #{proflow_forward.6} parent=11 // pred_region
        _
      $region28: #{proflow_forward.6} parent=11 // pred_fallthru
        _
      // Predicated region
      $region29: #{proflow_forward.6} parent=11 // pred_check
        %p251 = pneg %p146
      $region30: #{proflow_forward.6} parent=11 // pred_check_branch
        %253 = sbr.rel (%p251) target = $region32
      $region31: #{proflow_forward.6} parent=11 // pred_region
        _
      $region32: #{proflow_forward.6} parent=11 // pred_fallthru
        _
    $region12: #{proflow_forward.6} parent=5 // pred_fallthru
      _
    %p254 = scmp.lt.s32.totalorder %s15, 2
    // Predicated region
    $region33: #{proflow_forward.6} parent=5 // pred_check
      %p255 = pneg %p254
    $region34: #{proflow_forward.6} parent=5 // pred_check_branch
      %257 = sbr.rel (%p255) target = $region36
    $region35: #{proflow_forward.6} parent=5 // pred_region
      // Predicated region
      $region37: #{proflow_forward.6} parent=35 // pred_check
        %p258 = pneg %p35
      $region38: #{proflow_forward.6} parent=35 // pred_check_branch
        %260 = sbr.rel (%p258) target = $region40
      $region39: #{proflow_forward.6} parent=35 // pred_region
        %s261 = smul.u32 8, %s15
        %p262 = scmp.lt.s32.totalorder %s261, 15
        %s263 = scalar_select %p262, %s261, 15
        %s264 = smul.addr %s263, 2
        %s265 = smul.addr %s264, 4
        %s266 = scalar_lea.vmem %s0, %s265
        %s267 = smul.u32 8, %s15
      $region40: #{proflow_forward.6} parent=35 // pred_fallthru
        _
    $region36: #{proflow_forward.6} parent=5 // pred_fallthru
      _
    %p268 = scmp.le.s32.totalorder 1, %s15
    %p269 = scmp.lt.s32.totalorder %s15, 3
    %p270 = pnand %p268, %p269
    %p271 = pneg %p270
    // Predicated region
    $region41: #{proflow_forward.6} parent=5 // pred_check
      _
    $region42: #{proflow_forward.6} parent=5 // pred_check_branch
      %273 = sbr.rel (%p270) target = $region44
    $region43: #{proflow_forward.6} parent=5 // pred_region
      %s274 = ssub.s32 %s15, 1
      %s275 = smul.u32 8, %s20
      %p276 = scmp.lt.s32.totalorder %s275, 15
      %s277 = scalar_select %p276, %s275, 15
      %s278 = smul.addr %s277, 2
      %s279 = smul.addr %s278, 4
      %s280 = scalar_lea.vmem %s0, %s279
      %p281 = pneg %p41
      %p282 = pneg %p38
      %p283 = pneg %p62
      %p284 = pneg %p59
      %p285 = pneg %p83
      %p286 = pneg %p80
      %p287 = pneg %p104
      %p288 = pneg %p101
      %p289 = pneg %p125
      %p290 = pneg %p122
      %p291 = pneg %p146
      %p292 = pneg %p143
      %p293 = pneg %p172
      %p294 = pneg %p169
      %s295 = smul.u32 8, %s20
      %p296 = scmp.lt.s32.totalorder %s295, 15
      %s297 = scalar_select %p296, %s295, 15
      %s298 = smul.addr %s297, 4
      %s299 = smul.addr %s298, 4
      %s300 = scalar_lea.vmem %s6, %s299
      %p301 = pneg %p198
      %p302 = pneg %p195
      %p303 = scmp.lt.s32.totalorder %s20, 1
      %s304 = scalar_select %p303, %s20, 1
      %s305 = smul.addr %s304, 4
      %s306 = scalar_lea.vmem %s7, %s305
      %p307 = pneg %p224
      %p308 = pneg %p221
      %p309 = scmp.lt.s32.totalorder %s20, 1
      %s310 = scalar_select %p309, %s20, 1
      %s311 = smul.addr %s310, 4
      %s312 = scalar_lea.vmem %s8, %s311
      %s313 = smul.u32 8, %s20
      %p314 = scmp.lt.s32.totalorder %s313, 15
      %s315 = scalar_select %p314, %s313, 15
      %s316 = smul.addr %s315, 2
      %s317 = smul.addr %s316, 4
      %s318 = scalar_lea.vmem %s0, %s317
      %s319 = smul.u32 8, %s20
      %s320 = smul.u32 8, %s20
      %p321 = scmp.lt.s32.totalorder %s320, 15
      %s322 = scalar_select %p321, %s320, 15
      %s323 = smul.addr %s322, 4
      %s324 = smul.addr %s323, 4
      %s325 = scalar_lea.vmem %s6, %s324
      %s326 = smul.u32 8, %s20
      %p327 = scmp.lt.s32.totalorder %s20, 1
      %s328 = scalar_select %p327, %s20, 1
      %s329 = smul.addr %s328, 4
      %s330 = scalar_lea.vmem %s7, %s329
      %p331 = scmp.lt.s32.totalorder %s20, 1
      %s332 = scalar_select %p331, %s20, 1
      %s333 = smul.addr %s332, 4
      %s334 = scalar_lea.vmem %s8, %s333
      %v335 = vld [vmem:[%s318] sm:$0xff]
      %v336 = vld [vmem:[%s318 + $0x8] sm:$0xff]
      %v337 = vld [vmem:[%s318 + $0x10] sm:$0xff]
      %v338 = vld [vmem:[%s318 + $0x18] sm:$0xff]
      %v339 = vld [vmem:[%s318 + $0x20] sm:$0xff]
      %v340 = vld [vmem:[%s318 + $0x28] sm:$0xff]
      %v341 = vld [vmem:[%s318 + $0x30] sm:$0xff]
      %v342 = vld [vmem:[%s318 + $0x38] sm:$0xff]
      %v343 = vunpack.c.l.bf16 %v335
      %v344 = vunpack.c.h.bf16 %v335
      %v345 = vunpack.c.l.bf16 %v336
      %v346 = vunpack.c.h.bf16 %v336
      %v347 = vunpack.c.l.bf16 %v337
      %v348 = vunpack.c.h.bf16 %v337
      %v349 = vunpack.c.l.bf16 %v338
      %v350 = vunpack.c.h.bf16 %v338
      %v351 = vunpack.c.l.bf16 %v339
      %v352 = vunpack.c.h.bf16 %v339
      %v353 = vunpack.c.l.bf16 %v340
      %v354 = vunpack.c.h.bf16 %v340
      %v355 = vunpack.c.l.bf16 %v341
      %v356 = vunpack.c.h.bf16 %v341
      %v357 = vunpack.c.l.bf16 %v342
      %v358 = vunpack.c.h.bf16 %v342
      %v359 = vld [vmem:[%s2] sm:$0x3]
      %v361 = vlaneseq
      %v362 = vshrl.u32 %v361, 7
      %v363 = vsub.s32 0, %v362
      %v364 = vrot.slane %v359, %v363
      %v365 = vlaneseq
      %v366 = vshrl.u32 %v365, 7
      %v367 = vsub.s32 1, %v366
      %v368 = vrot.slane %v359, %v367
      %v371 = vmul.f32 %v343, %v364
      %v372 = vmul.f32 %v344, %v368
      %v373 = vmul.f32 %v345, %v364
      %v374 = vmul.f32 %v346, %v368
      %v375 = vmul.f32 %v347, %v364
      %v376 = vmul.f32 %v348, %v368
      %v377 = vmul.f32 %v349, %v364
      %v378 = vmul.f32 %v350, %v368
      %v379 = vmul.f32 %v351, %v364
      %v380 = vmul.f32 %v352, %v368
      %v381 = vmul.f32 %v353, %v364
      %v382 = vmul.f32 %v354, %v368
      %v383 = vmul.f32 %v355, %v364
      %v384 = vmul.f32 %v356, %v368
      %v385 = vmul.f32 %v357, %v364
      %v386 = vmul.f32 %v358, %v368
      %v387 = vld [vmem:[%s3] sm:$0x3]
      %v389 = vlaneseq
      %v390 = vshrl.u32 %v389, 7
      %v391 = vsub.s32 0, %v390
      %v392 = vrot.slane %v387, %v391
      %v393 = vlaneseq
      %v394 = vshrl.u32 %v393, 7
      %v395 = vsub.s32 1, %v394
      %v396 = vrot.slane %v387, %v395
      %v399 = vadd.f32 %v371, %v392
      %v400 = vadd.f32 %v372, %v396
      %v401 = vadd.f32 %v373, %v392
      %v402 = vadd.f32 %v374, %v396
      %v403 = vadd.f32 %v375, %v392
      %v404 = vadd.f32 %v376, %v396
      %v405 = vadd.f32 %v377, %v392
      %v406 = vadd.f32 %v378, %v396
      %v407 = vadd.f32 %v379, %v392
      %v408 = vadd.f32 %v380, %v396
      %v409 = vadd.f32 %v381, %v392
      %v410 = vadd.f32 %v382, %v396
      %v411 = vadd.f32 %v383, %v392
      %v412 = vadd.f32 %v384, %v396
      %v413 = vadd.f32 %v385, %v392
      %v414 = vadd.f32 %v386, %v396
      %v415 = vmax.f32 %v399, 0.0
      %v416 = vmax.f32 %v400, 0.0
      %v417 = vmax.f32 %v401, 0.0
      %v418 = vmax.f32 %v402, 0.0
      %v419 = vmax.f32 %v403, 0.0
      %v420 = vmax.f32 %v404, 0.0
      %v421 = vmax.f32 %v405, 0.0
      %v422 = vmax.f32 %v406, 0.0
      %v423 = vmax.f32 %v407, 0.0
      %v424 = vmax.f32 %v408, 0.0
      %v425 = vmax.f32 %v409, 0.0
      %v426 = vmax.f32 %v410, 0.0
      %v427 = vmax.f32 %v411, 0.0
      %v428 = vmax.f32 %v412, 0.0
      %v429 = vmax.f32 %v413, 0.0
      %v430 = vmax.f32 %v414, 0.0
      %v431 = vld [vmem:[%s1] sm:$0xff]
      %v432 = vld [vmem:[%s1 + $0x8] sm:$0xff]
      %v433 = vld [vmem:[%s1 + $0x10] sm:$0xff]
      %v434 = vld [vmem:[%s1 + $0x18] sm:$0xff]
      %v435 = vld [vmem:[%s1 + $0x20] sm:$0xff]
      %v436 = vld [vmem:[%s1 + $0x28] sm:$0xff]
      %v437 = vld [vmem:[%s1 + $0x30] sm:$0xff]
      %v438 = vld [vmem:[%s1 + $0x38] sm:$0xff]
      %v439 = vrot.slane %v415, 7
      %v440 = vrot.slane %v416, 7
      %v441 = vrot.slane %v417, 7
      %v442 = vrot.slane %v418, 7
      %v443 = vrot.slane %v419, 7
      %v444 = vrot.slane %v420, 7
      %v445 = vrot.slane %v421, 7
      %v446 = vrot.slane %v422, 7
      %v447 = vrot.slane %v423, 7
      %v448 = vrot.slane %v424, 7
      %v449 = vrot.slane %v425, 7
      %v450 = vrot.slane %v426, 7
      %v451 = vrot.slane %v427, 7
      %v452 = vrot.slane %v428, 7
      %v453 = vrot.slane %v429, 7
      %v454 = vrot.slane %v430, 7
      %v455 = vlaneseq
      %v456 = vshrl.u32 %v455, 7
      %vm457 = vcmp.lt.s32.totalorder %v456, 1
      %v458 = vsel %vm457, %v451, %v453
      %v459 = vsel %vm457, %v452, %v454
      %v460 = vsel %vm457, %v449, %v451
      %v461 = vsel %vm457, %v450, %v452
      %v462 = vsel %vm457, %v447, %v449
      %v463 = vsel %vm457, %v448, %v450
      %v464 = vsel %vm457, %v445, %v447
      %v465 = vsel %vm457, %v446, %v448
      %v466 = vsel %vm457, %v443, %v445
      %v467 = vsel %vm457, %v444, %v446
      %v468 = vsel %vm457, %v441, %v443
      %v469 = vsel %vm457, %v442, %v444
      %v470 = vsel %vm457, %v439, %v441
      %v471 = vsel %vm457, %v440, %v442
      %v472 = vsel %vm457, %v453, %v439
      %v473 = vsel %vm457, %v454, %v440
      %475 = vset.pattern.permute.xlu0 2
      %476 = vperm.xlu0 %475, %v431
      %v477 = vpop.permute.xlu0 %476
      %480 = vset.pattern.permute.xlu0 2
      %481 = vperm.xlu0 %480, %v432
      %v482 = vpop.permute.xlu0 %481
      %485 = vset.pattern.permute.xlu0 2
      %486 = vperm.xlu0 %485, %v433
      %v487 = vpop.permute.xlu0 %486
      %490 = vset.pattern.permute.xlu0 2
      %491 = vperm.xlu0 %490, %v434
      %v492 = vpop.permute.xlu0 %491
      %495 = vset.pattern.permute.xlu0 2
      %496 = vperm.xlu0 %495, %v435
      %v497 = vpop.permute.xlu0 %496
      %500 = vset.pattern.permute.xlu0 2
      %501 = vperm.xlu0 %500, %v436
      %v502 = vpop.permute.xlu0 %501
      %505 = vset.pattern.permute.xlu0 2
      %506 = vperm.xlu0 %505, %v437
      %v507 = vpop.permute.xlu0 %506
      %510 = vset.pattern.permute.xlu0 2
      %511 = vperm.xlu0 %510, %v438
      %v512 = vpop.permute.xlu0 %511
      %v514 = vmul.f32 %v472, %v477
      %v515 = vmul.f32 %v473, %v477
      %v516 = vmul.f32 %v470, %v482
      %v517 = vmul.f32 %v471, %v482
      %v518 = vmul.f32 %v468, %v487
      %v519 = vmul.f32 %v469, %v487
      %v520 = vmul.f32 %v466, %v492
      %v521 = vmul.f32 %v467, %v492
      %v522 = vmul.f32 %v464, %v497
      %v523 = vmul.f32 %v465, %v497
      %v524 = vmul.f32 %v462, %v502
      %v525 = vmul.f32 %v463, %v502
      %v526 = vmul.f32 %v460, %v507
      %v527 = vmul.f32 %v461, %v507
      %v528 = vmul.f32 %v458, %v512
      %v529 = vmul.f32 %v459, %v512
      %v530 = vrot.slane %v415, 1
      %v531 = vrot.slane %v416, 1
      %v532 = vrot.slane %v417, 1
      %v533 = vrot.slane %v418, 1
      %v534 = vrot.slane %v419, 1
      %v535 = vrot.slane %v420, 1
      %v536 = vrot.slane %v421, 1
      %v537 = vrot.slane %v422, 1
      %v538 = vrot.slane %v423, 1
      %v539 = vrot.slane %v424, 1
      %v540 = vrot.slane %v425, 1
      %v541 = vrot.slane %v426, 1
      %v542 = vrot.slane %v427, 1
      %v543 = vrot.slane %v428, 1
      %v544 = vrot.slane %v429, 1
      %v545 = vrot.slane %v430, 1
      %vm546 = vcmp.lt.s32.totalorder %v456, 7
      %v547 = vsel %vm546, %v542, %v544
      %v548 = vsel %vm546, %v543, %v545
      %v549 = vsel %vm546, %v540, %v542
      %v550 = vsel %vm546, %v541, %v543
      %v551 = vsel %vm546, %v538, %v540
      %v552 = vsel %vm546, %v539, %v541
      %v553 = vsel %vm546, %v536, %v538
      %v554 = vsel %vm546, %v537, %v539
      %v555 = vsel %vm546, %v534, %v536
      %v556 = vsel %vm546, %v535, %v537
      %v557 = vsel %vm546, %v532, %v534
      %v558 = vsel %vm546, %v533, %v535
      %v559 = vsel %vm546, %v530, %v532
      %v560 = vsel %vm546, %v531, %v533
      %v561 = vsel %vm546, %v544, %v530
      %v562 = vsel %vm546, %v545, %v531
      %563 = vset.pattern.permute.xlu0 3
      %564 = vperm.xlu0 %563, %v431
      %v565 = vpop.permute.xlu0 %564
      %567 = vset.pattern.permute.xlu0 3
      %568 = vperm.xlu0 %567, %v432
      %v569 = vpop.permute.xlu0 %568
      %571 = vset.pattern.permute.xlu0 3
      %572 = vperm.xlu0 %571, %v433
      %v573 = vpop.permute.xlu0 %572
      %575 = vset.pattern.permute.xlu0 3
      %576 = vperm.xlu0 %575, %v434
      %v577 = vpop.permute.xlu0 %576
      %579 = vset.pattern.permute.xlu0 3
      %580 = vperm.xlu0 %579, %v435
      %v581 = vpop.permute.xlu0 %580
      %583 = vset.pattern.permute.xlu0 3
      %584 = vperm.xlu0 %583, %v436
      %v585 = vpop.permute.xlu0 %584
      %587 = vset.pattern.permute.xlu0 3
      %588 = vperm.xlu0 %587, %v437
      %v589 = vpop.permute.xlu0 %588
      %591 = vset.pattern.permute.xlu0 3
      %592 = vperm.xlu0 %591, %v438
      %v593 = vpop.permute.xlu0 %592
      %v595 = vmul.f32 %v559, %v565
      %v596 = vmul.f32 %v560, %v565
      %v597 = vmul.f32 %v557, %v569
      %v598 = vmul.f32 %v558, %v569
      %v599 = vmul.f32 %v555, %v573
      %v600 = vmul.f32 %v556, %v573
      %v601 = vmul.f32 %v553, %v577
      %v602 = vmul.f32 %v554, %v577
      %v603 = vmul.f32 %v551, %v581
      %v604 = vmul.f32 %v552, %v581
      %v605 = vmul.f32 %v549, %v585
      %v606 = vmul.f32 %v550, %v585
      %v607 = vmul.f32 %v547, %v589
      %v608 = vmul.f32 %v548, %v589
      %v609 = vmul.f32 %v561, %v593
      %v610 = vmul.f32 %v562, %v593
      %611 = vset.pattern.permute.xlu0 0
      %612 = vperm.xlu0 %611, %v431
      %v613 = vpop.permute.xlu0 %612
      %615 = vset.pattern.permute.xlu0 0
      %616 = vperm.xlu0 %615, %v432
      %v617 = vpop.permute.xlu0 %616
      %619 = vset.pattern.permute.xlu0 0
      %620 = vperm.xlu0 %619, %v433
      %v621 = vpop.permute.xlu0 %620
      %623 = vset.pattern.permute.xlu0 0
      %624 = vperm.xlu0 %623, %v434
      %v625 = vpop.permute.xlu0 %624
      %627 = vset.pattern.permute.xlu0 0
      %628 = vperm.xlu0 %627, %v435
      %v629 = vpop.permute.xlu0 %628
      %631 = vset.pattern.permute.xlu0 0
      %632 = vperm.xlu0 %631, %v436
      %v633 = vpop.permute.xlu0 %632
      %635 = vset.pattern.permute.xlu0 0
      %636 = vperm.xlu0 %635, %v437
      %v637 = vpop.permute.xlu0 %636
      %639 = vset.pattern.permute.xlu0 0
      %640 = vperm.xlu0 %639, %v438
      %v641 = vpop.permute.xlu0 %640
      %v643 = vmul.f32 %v528, %v613
      %v644 = vmul.f32 %v529, %v613
      %v645 = vmul.f32 %v429, %v613
      %v646 = vmul.f32 %v430, %v613
      %v647 = vmul.f32 %v609, %v613
      %v648 = vmul.f32 %v610, %v613
      %v649 = vmul.f32 %v514, %v617
      %v650 = vmul.f32 %v515, %v617
      %v651 = vmul.f32 %v415, %v617
      %v652 = vmul.f32 %v416, %v617
      %v653 = vmul.f32 %v595, %v617
      %v654 = vmul.f32 %v596, %v617
      %v655 = vmul.f32 %v516, %v621
      %v656 = vmul.f32 %v517, %v621
      %v657 = vmul.f32 %v417, %v621
      %v658 = vmul.f32 %v418, %v621
      %v659 = vmul.f32 %v597, %v621
      %v660 = vmul.f32 %v598, %v621
      %v661 = vmul.f32 %v518, %v625
      %v662 = vmul.f32 %v519, %v625
      %v663 = vmul.f32 %v419, %v625
      %v664 = vmul.f32 %v420, %v625
      %v665 = vmul.f32 %v599, %v625
      %v666 = vmul.f32 %v600, %v625
      %v667 = vmul.f32 %v520, %v629
      %v668 = vmul.f32 %v521, %v629
      %v669 = vmul.f32 %v421, %v629
      %v670 = vmul.f32 %v422, %v629
      %v671 = vmul.f32 %v601, %v629
      %v672 = vmul.f32 %v602, %v629
      %v673 = vmul.f32 %v522, %v633
      %v674 = vmul.f32 %v523, %v633
      %v675 = vmul.f32 %v423, %v633
      %v676 = vmul.f32 %v424, %v633
      %v677 = vmul.f32 %v603, %v633
      %v678 = vmul.f32 %v604, %v633
      %v679 = vmul.f32 %v524, %v637
      %v680 = vmul.f32 %v525, %v637
      %v681 = vmul.f32 %v425, %v637
      %v682 = vmul.f32 %v426, %v637
      %v683 = vmul.f32 %v605, %v637
      %v684 = vmul.f32 %v606, %v637
      %v685 = vmul.f32 %v526, %v641
      %v686 = vmul.f32 %v527, %v641
      %v687 = vmul.f32 %v427, %v641
      %v688 = vmul.f32 %v428, %v641
      %v689 = vmul.f32 %v607, %v641
      %v690 = vmul.f32 %v608, %v641
      %v691 = vpack.c.bf16 %v649, %v643
      %v692 = vpack.c.bf16 %v650, %v644
      %v693 = vpack.c.bf16 %v651, %v645
      %v694 = vpack.c.bf16 %v652, %v646
      %v695 = vpack.c.bf16 %v653, %v647
      %v696 = vpack.c.bf16 %v654, %v648
      %v697 = vpack.c.bf16 %v661, %v655
      %v698 = vpack.c.bf16 %v662, %v656
      %v699 = vpack.c.bf16 %v663, %v657
      %v700 = vpack.c.bf16 %v664, %v658
      %v701 = vpack.c.bf16 %v665, %v659
      %v702 = vpack.c.bf16 %v666, %v660
      %v703 = vpack.c.bf16 %v673, %v667
      %v704 = vpack.c.bf16 %v674, %v668
      %v705 = vpack.c.bf16 %v675, %v669
      %v706 = vpack.c.bf16 %v676, %v670
      %v707 = vpack.c.bf16 %v677, %v671
      %v708 = vpack.c.bf16 %v678, %v672
      %v709 = vpack.c.bf16 %v685, %v679
      %v710 = vpack.c.bf16 %v686, %v680
      %v711 = vpack.c.bf16 %v687, %v681
      %v712 = vpack.c.bf16 %v688, %v682
      %v713 = vpack.c.bf16 %v689, %v683
      %v714 = vpack.c.bf16 %v690, %v684
      %v715 = vpack.c.bf16 %v516, %v514
      %v716 = vpack.c.bf16 %v517, %v515
      %v717 = vpack.c.bf16 %v417, %v415
      %v718 = vpack.c.bf16 %v418, %v416
      %v719 = vpack.c.bf16 %v597, %v595
      %v720 = vpack.c.bf16 %v598, %v596
      %v721 = vpack.c.bf16 %v520, %v518
      %v722 = vpack.c.bf16 %v521, %v519
      %v723 = vpack.c.bf16 %v421, %v419
      %v724 = vpack.c.bf16 %v422, %v420
      %v725 = vpack.c.bf16 %v601, %v599
      %v726 = vpack.c.bf16 %v602, %v600
      %v727 = vpack.c.bf16 %v524, %v522
      %v728 = vpack.c.bf16 %v525, %v523
      %v729 = vpack.c.bf16 %v425, %v423
      %v730 = vpack.c.bf16 %v426, %v424
      %v731 = vpack.c.bf16 %v605, %v603
      %v732 = vpack.c.bf16 %v606, %v604
      %v733 = vpack.c.bf16 %v528, %v526
      %v734 = vpack.c.bf16 %v529, %v527
      %v735 = vpack.c.bf16 %v429, %v427
      %v736 = vpack.c.bf16 %v430, %v428
      %v737 = vpack.c.bf16 %v609, %v607
      %v738 = vpack.c.bf16 %v610, %v608
      %739 = vset.pattern.permute.xlu0 1
      %740 = vperm.xlu0 %739, %v431
      %v741 = vpop.permute.xlu0 %740
      %743 = vset.pattern.permute.xlu0 1
      %744 = vperm.xlu0 %743, %v432
      %v745 = vpop.permute.xlu0 %744
      %747 = vset.pattern.permute.xlu0 1
      %748 = vperm.xlu0 %747, %v433
      %v749 = vpop.permute.xlu0 %748
      %751 = vset.pattern.permute.xlu0 1
      %752 = vperm.xlu0 %751, %v434
      %v753 = vpop.permute.xlu0 %752
      %755 = vset.pattern.permute.xlu0 1
      %756 = vperm.xlu0 %755, %v435
      %v757 = vpop.permute.xlu0 %756
      %759 = vset.pattern.permute.xlu0 1
      %760 = vperm.xlu0 %759, %v436
      %v761 = vpop.permute.xlu0 %760
      %763 = vset.pattern.permute.xlu0 1
      %764 = vperm.xlu0 %763, %v437
      %v765 = vpop.permute.xlu0 %764
      %767 = vset.pattern.permute.xlu0 1
      %768 = vperm.xlu0 %767, %v438
      %v769 = vpop.permute.xlu0 %768
      %v771 = vmul.f32 %v516, %v741
      %v772 = vmul.f32 %v517, %v741
      %v773 = vmul.f32 %v417, %v741
      %v774 = vmul.f32 %v418, %v741
      %v775 = vmul.f32 %v597, %v741
      %v776 = vmul.f32 %v598, %v741
      %v777 = vmul.f32 %v518, %v745
      %v778 = vmul.f32 %v519, %v745
      %v779 = vmul.f32 %v419, %v745
      %v780 = vmul.f32 %v420, %v745
      %v781 = vmul.f32 %v599, %v745
      %v782 = vmul.f32 %v600, %v745
      %v783 = vmul.f32 %v520, %v749
      %v784 = vmul.f32 %v521, %v749
      %v785 = vmul.f32 %v421, %v749
      %v786 = vmul.f32 %v422, %v749
      %v787 = vmul.f32 %v601, %v749
      %v788 = vmul.f32 %v602, %v749
      %v789 = vmul.f32 %v522, %v753
      %v790 = vmul.f32 %v523, %v753
      %v791 = vmul.f32 %v423, %v753
      %v792 = vmul.f32 %v424, %v753
      %v793 = vmul.f32 %v603, %v753
      %v794 = vmul.f32 %v604, %v753
      %v795 = vmul.f32 %v524, %v757
      %v796 = vmul.f32 %v525, %v757
      %v797 = vmul.f32 %v425, %v757
      %v798 = vmul.f32 %v426, %v757
      %v799 = vmul.f32 %v605, %v757
      %v800 = vmul.f32 %v606, %v757
      %v801 = vmul.f32 %v526, %v761
      %v802 = vmul.f32 %v527, %v761
      %v803 = vmul.f32 %v427, %v761
      %v804 = vmul.f32 %v428, %v761
      %v805 = vmul.f32 %v607, %v761
      %v806 = vmul.f32 %v608, %v761
      %v807 = vmul.f32 %v528, %v765
      %v808 = vmul.f32 %v529, %v765
      %v809 = vmul.f32 %v429, %v765
      %v810 = vmul.f32 %v430, %v765
      %v811 = vmul.f32 %v609, %v765
      %v812 = vmul.f32 %v610, %v765
      %v813 = vmul.f32 %v514, %v769
      %v814 = vmul.f32 %v515, %v769
      %v815 = vmul.f32 %v415, %v769
      %v816 = vmul.f32 %v416, %v769
      %v817 = vmul.f32 %v595, %v769
      %v818 = vmul.f32 %v596, %v769
      %v819 = vpack.c.bf16 %v777, %v771
      %v820 = vpack.c.bf16 %v778, %v772
      %v821 = vpack.c.bf16 %v779, %v773
      %v822 = vpack.c.bf16 %v780, %v774
      %v823 = vpack.c.bf16 %v781, %v775
      %v824 = vpack.c.bf16 %v782, %v776
      %v825 = vpack.c.bf16 %v789, %v783
      %v826 = vpack.c.bf16 %v790, %v784
      %v827 = vpack.c.bf16 %v791, %v785
      %v828 = vpack.c.bf16 %v792, %v786
      %v829 = vpack.c.bf16 %v793, %v787
      %v830 = vpack.c.bf16 %v794, %v788
      %v831 = vpack.c.bf16 %v801, %v795
      %v832 = vpack.c.bf16 %v802, %v796
      %v833 = vpack.c.bf16 %v803, %v797
      %v834 = vpack.c.bf16 %v804, %v798
      %v835 = vpack.c.bf16 %v805, %v799
      %v836 = vpack.c.bf16 %v806, %v800
      %v837 = vpack.c.bf16 %v813, %v807
      %v838 = vpack.c.bf16 %v814, %v808
      %v839 = vpack.c.bf16 %v815, %v809
      %v840 = vpack.c.bf16 %v816, %v810
      %v841 = vpack.c.bf16 %v817, %v811
      %v842 = vpack.c.bf16 %v818, %v812
      %v843 = vld [vmem:[%s4] sm:$0xff]
      %v844 = vld [vmem:[%s4 + $0x8] sm:$0xff]
      %v845 = vld [vmem:[%s4 + $0x10] sm:$0xff]
      %v846 = vld [vmem:[%s4 + $0x18] sm:$0xff]
      %v847 = vld [vmem:[%s4 + $0x20] sm:$0xff]
      %v848 = vld [vmem:[%s4 + $0x28] sm:$0xff]
      %v849 = vld [vmem:[%s4 + $0x30] sm:$0xff]
      %v850 = vld [vmem:[%s4 + $0x38] sm:$0xff]
      %v851 = vld [vmem:[%s4 + $0x40] sm:$0xff]
      %v852 = vld [vmem:[%s4 + $0x48] sm:$0xff]
      %v853 = vld [vmem:[%s4 + $0x50] sm:$0xff]
      %v854 = vld [vmem:[%s4 + $0x58] sm:$0xff]
      %v855 = vld [vmem:[%s4 + $0x60] sm:$0xff]
      %v856 = vld [vmem:[%s4 + $0x68] sm:$0xff]
      %v857 = vld [vmem:[%s4 + $0x70] sm:$0xff]
      %v858 = vld [vmem:[%s4 + $0x78] sm:$0xff]
      %v859 = vld [vmem:[%s4 + $0x80] sm:$0xff]
      %v860 = vld [vmem:[%s4 + $0x88] sm:$0xff]
      %v861 = vld [vmem:[%s4 + $0x90] sm:$0xff]
      %v862 = vld [vmem:[%s4 + $0x98] sm:$0xff]
      %v863 = vld [vmem:[%s4 + $0xa0] sm:$0xff]
      %v864 = vld [vmem:[%s4 + $0xa8] sm:$0xff]
      %v865 = vld [vmem:[%s4 + $0xb0] sm:$0xff]
      %v866 = vld [vmem:[%s4 + $0xb8] sm:$0xff]
      %v867 = vld [vmem:[%s4 + $0xc0] sm:$0xff]
      %v868 = vld [vmem:[%s4 + $0xc8] sm:$0xff]
      %v869 = vld [vmem:[%s4 + $0xd0] sm:$0xff]
      %v870 = vld [vmem:[%s4 + $0xd8] sm:$0xff]
      %v871 = vld [vmem:[%s4 + $0xe0] sm:$0xff]
      %v872 = vld [vmem:[%s4 + $0xe8] sm:$0xff]
      %v873 = vld [vmem:[%s4 + $0xf0] sm:$0xff]
      %v874 = vld [vmem:[%s4 + $0xf8] sm:$0xff]
      %v875 = vld [vmem:[%s4 + $0x100] sm:$0xff]
      %v876 = vld [vmem:[%s4 + $0x108] sm:$0xff]
      %v877 = vld [vmem:[%s4 + $0x110] sm:$0xff]
      %v878 = vld [vmem:[%s4 + $0x118] sm:$0xff]
      %v879 = vld [vmem:[%s4 + $0x120] sm:$0xff]
      %v880 = vld [vmem:[%s4 + $0x128] sm:$0xff]
      %v881 = vld [vmem:[%s4 + $0x130] sm:$0xff]
      %v882 = vld [vmem:[%s4 + $0x138] sm:$0xff]
      %v883 = vld [vmem:[%s4 + $0x140] sm:$0xff]
      %v884 = vld [vmem:[%s4 + $0x148] sm:$0xff]
      %v885 = vld [vmem:[%s4 + $0x150] sm:$0xff]
      %v886 = vld [vmem:[%s4 + $0x158] sm:$0xff]
      %v887 = vld [vmem:[%s4 + $0x160] sm:$0xff]
      %v888 = vld [vmem:[%s4 + $0x168] sm:$0xff]
      %v889 = vld [vmem:[%s4 + $0x170] sm:$0xff]
      %v890 = vld [vmem:[%s4 + $0x178] sm:$0xff]
      %v891 = vld [vmem:[%s4 + $0x180] sm:$0xff]
      %v892 = vld [vmem:[%s4 + $0x188] sm:$0xff]
      %v893 = vld [vmem:[%s4 + $0x190] sm:$0xff]
      %v894 = vld [vmem:[%s4 + $0x198] sm:$0xff]
      %v895 = vld [vmem:[%s4 + $0x1a0] sm:$0xff]
      %v896 = vld [vmem:[%s4 + $0x1a8] sm:$0xff]
      %v897 = vld [vmem:[%s4 + $0x1b0] sm:$0xff]
      %v898 = vld [vmem:[%s4 + $0x1b8] sm:$0xff]
      %v899 = vld [vmem:[%s4 + $0x1c0] sm:$0xff]
      %v900 = vld [vmem:[%s4 + $0x1c8] sm:$0xff]
      %v901 = vld [vmem:[%s4 + $0x1d0] sm:$0xff]
      %v902 = vld [vmem:[%s4 + $0x1d8] sm:$0xff]
      %v903 = vld [vmem:[%s4 + $0x1e0] sm:$0xff]
      %v904 = vld [vmem:[%s4 + $0x1e8] sm:$0xff]
      %v905 = vld [vmem:[%s4 + $0x1f0] sm:$0xff]
      %v906 = vld [vmem:[%s4 + $0x1f8] sm:$0xff]
      %v907 = vld [vmem:[%s4 + $0x200] sm:$0xff]
      %v908 = vld [vmem:[%s4 + $0x208] sm:$0xff]
      %v909 = vld [vmem:[%s4 + $0x210] sm:$0xff]
      %v910 = vld [vmem:[%s4 + $0x218] sm:$0xff]
      %v911 = vld [vmem:[%s4 + $0x220] sm:$0xff]
      %v912 = vld [vmem:[%s4 + $0x228] sm:$0xff]
      %v913 = vld [vmem:[%s4 + $0x230] sm:$0xff]
      %v914 = vld [vmem:[%s4 + $0x238] sm:$0xff]
      %v915 = vld [vmem:[%s4 + $0x240] sm:$0xff]
      %v916 = vld [vmem:[%s4 + $0x248] sm:$0xff]
      %v917 = vld [vmem:[%s4 + $0x250] sm:$0xff]
      %v918 = vld [vmem:[%s4 + $0x258] sm:$0xff]
      %v919 = vld [vmem:[%s4 + $0x260] sm:$0xff]
      %v920 = vld [vmem:[%s4 + $0x268] sm:$0xff]
      %v921 = vld [vmem:[%s4 + $0x270] sm:$0xff]
      %v922 = vld [vmem:[%s4 + $0x278] sm:$0xff]
      %v923 = vld [vmem:[%s4 + $0x280] sm:$0xff]
      %v924 = vld [vmem:[%s4 + $0x288] sm:$0xff]
      %v925 = vld [vmem:[%s4 + $0x290] sm:$0xff]
      %v926 = vld [vmem:[%s4 + $0x298] sm:$0xff]
      %v927 = vld [vmem:[%s4 + $0x2a0] sm:$0xff]
      %v928 = vld [vmem:[%s4 + $0x2a8] sm:$0xff]
      %v929 = vld [vmem:[%s4 + $0x2b0] sm:$0xff]
      %v930 = vld [vmem:[%s4 + $0x2b8] sm:$0xff]
      %v931 = vld [vmem:[%s4 + $0x2c0] sm:$0xff]
      %v932 = vld [vmem:[%s4 + $0x2c8] sm:$0xff]
      %v933 = vld [vmem:[%s4 + $0x2d0] sm:$0xff]
      %v934 = vld [vmem:[%s4 + $0x2d8] sm:$0xff]
      %v935 = vld [vmem:[%s4 + $0x2e0] sm:$0xff]
      %v936 = vld [vmem:[%s4 + $0x2e8] sm:$0xff]
      %v937 = vld [vmem:[%s4 + $0x2f0] sm:$0xff]
      %v938 = vld [vmem:[%s4 + $0x2f8] sm:$0xff]
      %v939 = vld [vmem:[%s4 + $0x300] sm:$0xff]
      %v940 = vld [vmem:[%s4 + $0x308] sm:$0xff]
      %v941 = vld [vmem:[%s4 + $0x310] sm:$0xff]
      %v942 = vld [vmem:[%s4 + $0x318] sm:$0xff]
      %v943 = vld [vmem:[%s4 + $0x320] sm:$0xff]
      %v944 = vld [vmem:[%s4 + $0x328] sm:$0xff]
      %v945 = vld [vmem:[%s4 + $0x330] sm:$0xff]
      %v946 = vld [vmem:[%s4 + $0x338] sm:$0xff]
      %v947 = vld [vmem:[%s4 + $0x340] sm:$0xff]
      %v948 = vld [vmem:[%s4 + $0x348] sm:$0xff]
      %v949 = vld [vmem:[%s4 + $0x350] sm:$0xff]
      %v950 = vld [vmem:[%s4 + $0x358] sm:$0xff]
      %v951 = vld [vmem:[%s4 + $0x360] sm:$0xff]
      %v952 = vld [vmem:[%s4 + $0x368] sm:$0xff]
      %v953 = vld [vmem:[%s4 + $0x370] sm:$0xff]
      %v954 = vld [vmem:[%s4 + $0x378] sm:$0xff]
      %v955 = vld [vmem:[%s4 + $0x380] sm:$0xff]
      %v956 = vld [vmem:[%s4 + $0x388] sm:$0xff]
      %v957 = vld [vmem:[%s4 + $0x390] sm:$0xff]
      %v958 = vld [vmem:[%s4 + $0x398] sm:$0xff]
      %v959 = vld [vmem:[%s4 + $0x3a0] sm:$0xff]
      %v960 = vld [vmem:[%s4 + $0x3a8] sm:$0xff]
      %v961 = vld [vmem:[%s4 + $0x3b0] sm:$0xff]
      %v962 = vld [vmem:[%s4 + $0x3b8] sm:$0xff]
      %v963 = vld [vmem:[%s4 + $0x3c0] sm:$0xff]
      %v964 = vld [vmem:[%s4 + $0x3c8] sm:$0xff]
      %v965 = vld [vmem:[%s4 + $0x3d0] sm:$0xff]
      %v966 = vld [vmem:[%s4 + $0x3d8] sm:$0xff]
      %v967 = vld [vmem:[%s4 + $0x3e0] sm:$0xff]
      %v968 = vld [vmem:[%s4 + $0x3e8] sm:$0xff]
      %v969 = vld [vmem:[%s4 + $0x3f0] sm:$0xff]
      %v970 = vld [vmem:[%s4 + $0x3f8] sm:$0xff]
      %v971 = vld [vmem:[%s4 + $0x400] sm:$0xff]
      %v972 = vld [vmem:[%s4 + $0x408] sm:$0xff]
      %v973 = vld [vmem:[%s4 + $0x410] sm:$0xff]
      %v974 = vld [vmem:[%s4 + $0x418] sm:$0xff]
      %v975 = vld [vmem:[%s4 + $0x420] sm:$0xff]
      %v976 = vld [vmem:[%s4 + $0x428] sm:$0xff]
      %v977 = vld [vmem:[%s4 + $0x430] sm:$0xff]
      %v978 = vld [vmem:[%s4 + $0x438] sm:$0xff]
      %v979 = vld [vmem:[%s4 + $0x440] sm:$0xff]
      %v980 = vld [vmem:[%s4 + $0x448] sm:$0xff]
      %v981 = vld [vmem:[%s4 + $0x450] sm:$0xff]
      %v982 = vld [vmem:[%s4 + $0x458] sm:$0xff]
      %v983 = vld [vmem:[%s4 + $0x460] sm:$0xff]
      %v984 = vld [vmem:[%s4 + $0x468] sm:$0xff]
      %v985 = vld [vmem:[%s4 + $0x470] sm:$0xff]
      %v986 = vld [vmem:[%s4 + $0x478] sm:$0xff]
      %v987 = vld [vmem:[%s4 + $0x480] sm:$0xff]
      %v988 = vld [vmem:[%s4 + $0x488] sm:$0xff]
      %v989 = vld [vmem:[%s4 + $0x490] sm:$0xff]
      %v990 = vld [vmem:[%s4 + $0x498] sm:$0xff]
      %v991 = vld [vmem:[%s4 + $0x4a0] sm:$0xff]
      %v992 = vld [vmem:[%s4 + $0x4a8] sm:$0xff]
      %v993 = vld [vmem:[%s4 + $0x4b0] sm:$0xff]
      %v994 = vld [vmem:[%s4 + $0x4b8] sm:$0xff]
      %v995 = vld [vmem:[%s4 + $0x4c0] sm:$0xff]
      %v996 = vld [vmem:[%s4 + $0x4c8] sm:$0xff]
      %v997 = vld [vmem:[%s4 + $0x4d0] sm:$0xff]
      %v998 = vld [vmem:[%s4 + $0x4d8] sm:$0xff]
      %v999 = vld [vmem:[%s4 + $0x4e0] sm:$0xff]
      %v1000 = vld [vmem:[%s4 + $0x4e8] sm:$0xff]
      %v1001 = vld [vmem:[%s4 + $0x4f0] sm:$0xff]
      %v1002 = vld [vmem:[%s4 + $0x4f8] sm:$0xff]
      %v1003 = vld [vmem:[%s4 + $0x500] sm:$0xff]
      %v1004 = vld [vmem:[%s4 + $0x508] sm:$0xff]
      %v1005 = vld [vmem:[%s4 + $0x510] sm:$0xff]
      %v1006 = vld [vmem:[%s4 + $0x518] sm:$0xff]
      %v1007 = vld [vmem:[%s4 + $0x520] sm:$0xff]
      %v1008 = vld [vmem:[%s4 + $0x528] sm:$0xff]
      %v1009 = vld [vmem:[%s4 + $0x530] sm:$0xff]
      %v1010 = vld [vmem:[%s4 + $0x538] sm:$0xff]
      %v1011 = vld [vmem:[%s4 + $0x540] sm:$0xff]
      %v1012 = vld [vmem:[%s4 + $0x548] sm:$0xff]
      %v1013 = vld [vmem:[%s4 + $0x550] sm:$0xff]
      %v1014 = vld [vmem:[%s4 + $0x558] sm:$0xff]
      %v1015 = vld [vmem:[%s4 + $0x560] sm:$0xff]
      %v1016 = vld [vmem:[%s4 + $0x568] sm:$0xff]
      %v1017 = vld [vmem:[%s4 + $0x570] sm:$0xff]
      %v1018 = vld [vmem:[%s4 + $0x578] sm:$0xff]
      %v1019 = vld [vmem:[%s4 + $0x580] sm:$0xff]
      %v1020 = vld [vmem:[%s4 + $0x588] sm:$0xff]
      %v1021 = vld [vmem:[%s4 + $0x590] sm:$0xff]
      %v1022 = vld [vmem:[%s4 + $0x598] sm:$0xff]
      %v1023 = vld [vmem:[%s4 + $0x5a0] sm:$0xff]
      %v1024 = vld [vmem:[%s4 + $0x5a8] sm:$0xff]
      %v1025 = vld [vmem:[%s4 + $0x5b0] sm:$0xff]
      %v1026 = vld [vmem:[%s4 + $0x5b8] sm:$0xff]
      %v1027 = vld [vmem:[%s4 + $0x5c0] sm:$0xff]
      %v1028 = vld [vmem:[%s4 + $0x5c8] sm:$0xff]
      %v1029 = vld [vmem:[%s4 + $0x5d0] sm:$0xff]
      %v1030 = vld [vmem:[%s4 + $0x5d8] sm:$0xff]
      %v1031 = vld [vmem:[%s4 + $0x5e0] sm:$0xff]
      %v1032 = vld [vmem:[%s4 + $0x5e8] sm:$0xff]
      %v1033 = vld [vmem:[%s4 + $0x5f0] sm:$0xff]
      %v1034 = vld [vmem:[%s4 + $0x5f8] sm:$0xff]
      %v1035 = vld [vmem:[%s4 + $0x600] sm:$0xff]
      %v1036 = vld [vmem:[%s4 + $0x608] sm:$0xff]
      %v1037 = vld [vmem:[%s4 + $0x610] sm:$0xff]
      %v1038 = vld [vmem:[%s4 + $0x618] sm:$0xff]
      %v1039 = vld [vmem:[%s4 + $0x620] sm:$0xff]
      %v1040 = vld [vmem:[%s4 + $0x628] sm:$0xff]
      %v1041 = vld [vmem:[%s4 + $0x630] sm:$0xff]
      %v1042 = vld [vmem:[%s4 + $0x638] sm:$0xff]
      %v1043 = vld [vmem:[%s4 + $0x640] sm:$0xff]
      %v1044 = vld [vmem:[%s4 + $0x648] sm:$0xff]
      %v1045 = vld [vmem:[%s4 + $0x650] sm:$0xff]
      %v1046 = vld [vmem:[%s4 + $0x658] sm:$0xff]
      %v1047 = vld [vmem:[%s4 + $0x660] sm:$0xff]
      %v1048 = vld [vmem:[%s4 + $0x668] sm:$0xff]
      %v1049 = vld [vmem:[%s4 + $0x670] sm:$0xff]
      %v1050 = vld [vmem:[%s4 + $0x678] sm:$0xff]
      %v1051 = vld [vmem:[%s4 + $0x680] sm:$0xff]
      %v1052 = vld [vmem:[%s4 + $0x688] sm:$0xff]
      %v1053 = vld [vmem:[%s4 + $0x690] sm:$0xff]
      %v1054 = vld [vmem:[%s4 + $0x698] sm:$0xff]
      %v1055 = vld [vmem:[%s4 + $0x6a0] sm:$0xff]
      %v1056 = vld [vmem:[%s4 + $0x6a8] sm:$0xff]
      %v1057 = vld [vmem:[%s4 + $0x6b0] sm:$0xff]
      %v1058 = vld [vmem:[%s4 + $0x6b8] sm:$0xff]
      %v1059 = vld [vmem:[%s4 + $0x6c0] sm:$0xff]
      %v1060 = vld [vmem:[%s4 + $0x6c8] sm:$0xff]
      %v1061 = vld [vmem:[%s4 + $0x6d0] sm:$0xff]
      %v1062 = vld [vmem:[%s4 + $0x6d8] sm:$0xff]
      %v1063 = vld [vmem:[%s4 + $0x6e0] sm:$0xff]
      %v1064 = vld [vmem:[%s4 + $0x6e8] sm:$0xff]
      %v1065 = vld [vmem:[%s4 + $0x6f0] sm:$0xff]
      %v1066 = vld [vmem:[%s4 + $0x6f8] sm:$0xff]
      %v1067 = vld [vmem:[%s4 + $0x700] sm:$0xff]
      %v1068 = vld [vmem:[%s4 + $0x708] sm:$0xff]
      %v1069 = vld [vmem:[%s4 + $0x710] sm:$0xff]
      %v1070 = vld [vmem:[%s4 + $0x718] sm:$0xff]
      %v1071 = vld [vmem:[%s4 + $0x720] sm:$0xff]
      %v1072 = vld [vmem:[%s4 + $0x728] sm:$0xff]
      %v1073 = vld [vmem:[%s4 + $0x730] sm:$0xff]
      %v1074 = vld [vmem:[%s4 + $0x738] sm:$0xff]
      %v1075 = vld [vmem:[%s4 + $0x740] sm:$0xff]
      %v1076 = vld [vmem:[%s4 + $0x748] sm:$0xff]
      %v1077 = vld [vmem:[%s4 + $0x750] sm:$0xff]
      %v1078 = vld [vmem:[%s4 + $0x758] sm:$0xff]
      %v1079 = vld [vmem:[%s4 + $0x760] sm:$0xff]
      %v1080 = vld [vmem:[%s4 + $0x768] sm:$0xff]
      %v1081 = vld [vmem:[%s4 + $0x770] sm:$0xff]
      %v1082 = vld [vmem:[%s4 + $0x778] sm:$0xff]
      %v1083 = vld [vmem:[%s4 + $0x780] sm:$0xff]
      %v1084 = vld [vmem:[%s4 + $0x788] sm:$0xff]
      %v1085 = vld [vmem:[%s4 + $0x790] sm:$0xff]
      %v1086 = vld [vmem:[%s4 + $0x798] sm:$0xff]
      %v1087 = vld [vmem:[%s4 + $0x7a0] sm:$0xff]
      %v1088 = vld [vmem:[%s4 + $0x7a8] sm:$0xff]
      %v1089 = vld [vmem:[%s4 + $0x7b0] sm:$0xff]
      %v1090 = vld [vmem:[%s4 + $0x7b8] sm:$0xff]
      %v1091 = vld [vmem:[%s4 + $0x7c0] sm:$0xff]
      %v1092 = vld [vmem:[%s4 + $0x7c8] sm:$0xff]
      %v1093 = vld [vmem:[%s4 + $0x7d0] sm:$0xff]
      %v1094 = vld [vmem:[%s4 + $0x7d8] sm:$0xff]
      %v1095 = vld [vmem:[%s4 + $0x7e0] sm:$0xff]
      %v1096 = vld [vmem:[%s4 + $0x7e8] sm:$0xff]
      %v1097 = vld [vmem:[%s4 + $0x7f0] sm:$0xff]
      %v1098 = vld [vmem:[%s4 + $0x7f8] sm:$0xff]
      %v1099 = vld [vmem:[%s4 + $0x800] sm:$0xff]
      %v1100 = vld [vmem:[%s4 + $0x808] sm:$0xff]
      %v1101 = vld [vmem:[%s4 + $0x810] sm:$0xff]
      %v1102 = vld [vmem:[%s4 + $0x818] sm:$0xff]
      %v1103 = vld [vmem:[%s4 + $0x820] sm:$0xff]
      %v1104 = vld [vmem:[%s4 + $0x828] sm:$0xff]
      %v1105 = vld [vmem:[%s4 + $0x830] sm:$0xff]
      %v1106 = vld [vmem:[%s4 + $0x838] sm:$0xff]
      %v1107 = vld [vmem:[%s4 + $0x840] sm:$0xff]
      %v1108 = vld [vmem:[%s4 + $0x848] sm:$0xff]
      %v1109 = vld [vmem:[%s4 + $0x850] sm:$0xff]
      %v1110 = vld [vmem:[%s4 + $0x858] sm:$0xff]
      %v1111 = vld [vmem:[%s4 + $0x860] sm:$0xff]
      %v1112 = vld [vmem:[%s4 + $0x868] sm:$0xff]
      %v1113 = vld [vmem:[%s4 + $0x870] sm:$0xff]
      %v1114 = vld [vmem:[%s4 + $0x878] sm:$0xff]
      %v1115 = vld [vmem:[%s4 + $0x880] sm:$0xff]
      %v1116 = vld [vmem:[%s4 + $0x888] sm:$0xff]
      %v1117 = vld [vmem:[%s4 + $0x890] sm:$0xff]
      %v1118 = vld [vmem:[%s4 + $0x898] sm:$0xff]
      %v1119 = vld [vmem:[%s4 + $0x8a0] sm:$0xff]
      %v1120 = vld [vmem:[%s4 + $0x8a8] sm:$0xff]
      %v1121 = vld [vmem:[%s4 + $0x8b0] sm:$0xff]
      %v1122 = vld [vmem:[%s4 + $0x8b8] sm:$0xff]
      %v1123 = vld [vmem:[%s4 + $0x8c0] sm:$0xff]
      %v1124 = vld [vmem:[%s4 + $0x8c8] sm:$0xff]
      %v1125 = vld [vmem:[%s4 + $0x8d0] sm:$0xff]
      %v1126 = vld [vmem:[%s4 + $0x8d8] sm:$0xff]
      %v1127 = vld [vmem:[%s4 + $0x8e0] sm:$0xff]
      %v1128 = vld [vmem:[%s4 + $0x8e8] sm:$0xff]
      %v1129 = vld [vmem:[%s4 + $0x8f0] sm:$0xff]
      %v1130 = vld [vmem:[%s4 + $0x8f8] sm:$0xff]
      %v1131 = vld [vmem:[%s4 + $0x900] sm:$0xff]
      %v1132 = vld [vmem:[%s4 + $0x908] sm:$0xff]
      %v1133 = vld [vmem:[%s4 + $0x910] sm:$0xff]
      %v1134 = vld [vmem:[%s4 + $0x918] sm:$0xff]
      %v1135 = vld [vmem:[%s4 + $0x920] sm:$0xff]
      %v1136 = vld [vmem:[%s4 + $0x928] sm:$0xff]
      %v1137 = vld [vmem:[%s4 + $0x930] sm:$0xff]
      %v1138 = vld [vmem:[%s4 + $0x938] sm:$0xff]
      %v1139 = vld [vmem:[%s4 + $0x940] sm:$0xff]
      %v1140 = vld [vmem:[%s4 + $0x948] sm:$0xff]
      %v1141 = vld [vmem:[%s4 + $0x950] sm:$0xff]
      %v1142 = vld [vmem:[%s4 + $0x958] sm:$0xff]
      %v1143 = vld [vmem:[%s4 + $0x960] sm:$0xff]
      %v1144 = vld [vmem:[%s4 + $0x968] sm:$0xff]
      %v1145 = vld [vmem:[%s4 + $0x970] sm:$0xff]
      %v1146 = vld [vmem:[%s4 + $0x978] sm:$0xff]
      %v1147 = vld [vmem:[%s4 + $0x980] sm:$0xff]
      %v1148 = vld [vmem:[%s4 + $0x988] sm:$0xff]
      %v1149 = vld [vmem:[%s4 + $0x990] sm:$0xff]
      %v1150 = vld [vmem:[%s4 + $0x998] sm:$0xff]
      %v1151 = vld [vmem:[%s4 + $0x9a0] sm:$0xff]
      %v1152 = vld [vmem:[%s4 + $0x9a8] sm:$0xff]
      %v1153 = vld [vmem:[%s4 + $0x9b0] sm:$0xff]
      %v1154 = vld [vmem:[%s4 + $0x9b8] sm:$0xff]
      %v1155 = vld [vmem:[%s4 + $0x9c0] sm:$0xff]
      %v1156 = vld [vmem:[%s4 + $0x9c8] sm:$0xff]
      %v1157 = vld [vmem:[%s4 + $0x9d0] sm:$0xff]
      %v1158 = vld [vmem:[%s4 + $0x9d8] sm:$0xff]
      %v1159 = vld [vmem:[%s4 + $0x9e0] sm:$0xff]
      %v1160 = vld [vmem:[%s4 + $0x9e8] sm:$0xff]
      %v1161 = vld [vmem:[%s4 + $0x9f0] sm:$0xff]
      %v1162 = vld [vmem:[%s4 + $0x9f8] sm:$0xff]
      %v1163 = vld [vmem:[%s4 + $0xa00] sm:$0xff]
      %v1164 = vld [vmem:[%s4 + $0xa08] sm:$0xff]
      %v1165 = vld [vmem:[%s4 + $0xa10] sm:$0xff]
      %v1166 = vld [vmem:[%s4 + $0xa18] sm:$0xff]
      %v1167 = vld [vmem:[%s4 + $0xa20] sm:$0xff]
      %v1168 = vld [vmem:[%s4 + $0xa28] sm:$0xff]
      %v1169 = vld [vmem:[%s4 + $0xa30] sm:$0xff]
      %v1170 = vld [vmem:[%s4 + $0xa38] sm:$0xff]
      %v1171 = vld [vmem:[%s4 + $0xa40] sm:$0xff]
      %v1172 = vld [vmem:[%s4 + $0xa48] sm:$0xff]
      %v1173 = vld [vmem:[%s4 + $0xa50] sm:$0xff]
      %v1174 = vld [vmem:[%s4 + $0xa58] sm:$0xff]
      %v1175 = vld [vmem:[%s4 + $0xa60] sm:$0xff]
      %v1176 = vld [vmem:[%s4 + $0xa68] sm:$0xff]
      %v1177 = vld [vmem:[%s4 + $0xa70] sm:$0xff]
      %v1178 = vld [vmem:[%s4 + $0xa78] sm:$0xff]
      %v1179 = vld [vmem:[%s4 + $0xa80] sm:$0xff]
      %v1180 = vld [vmem:[%s4 + $0xa88] sm:$0xff]
      %v1181 = vld [vmem:[%s4 + $0xa90] sm:$0xff]
      %v1182 = vld [vmem:[%s4 + $0xa98] sm:$0xff]
      %v1183 = vld [vmem:[%s4 + $0xaa0] sm:$0xff]
      %v1184 = vld [vmem:[%s4 + $0xaa8] sm:$0xff]
      %v1185 = vld [vmem:[%s4 + $0xab0] sm:$0xff]
      %v1186 = vld [vmem:[%s4 + $0xab8] sm:$0xff]
      %v1187 = vld [vmem:[%s4 + $0xac0] sm:$0xff]
      %v1188 = vld [vmem:[%s4 + $0xac8] sm:$0xff]
      %v1189 = vld [vmem:[%s4 + $0xad0] sm:$0xff]
      %v1190 = vld [vmem:[%s4 + $0xad8] sm:$0xff]
      %v1191 = vld [vmem:[%s4 + $0xae0] sm:$0xff]
      %v1192 = vld [vmem:[%s4 + $0xae8] sm:$0xff]
      %v1193 = vld [vmem:[%s4 + $0xaf0] sm:$0xff]
      %v1194 = vld [vmem:[%s4 + $0xaf8] sm:$0xff]
      %v1195 = vld [vmem:[%s4 + $0xb00] sm:$0xff]
      %v1196 = vld [vmem:[%s4 + $0xb08] sm:$0xff]
      %v1197 = vld [vmem:[%s4 + $0xb10] sm:$0xff]
      %v1198 = vld [vmem:[%s4 + $0xb18] sm:$0xff]
      %v1199 = vld [vmem:[%s4 + $0xb20] sm:$0xff]
      %v1200 = vld [vmem:[%s4 + $0xb28] sm:$0xff]
      %v1201 = vld [vmem:[%s4 + $0xb30] sm:$0xff]
      %v1202 = vld [vmem:[%s4 + $0xb38] sm:$0xff]
      %v1203 = vld [vmem:[%s4 + $0xb40] sm:$0xff]
      %v1204 = vld [vmem:[%s4 + $0xb48] sm:$0xff]
      %v1205 = vld [vmem:[%s4 + $0xb50] sm:$0xff]
      %v1206 = vld [vmem:[%s4 + $0xb58] sm:$0xff]
      %v1207 = vld [vmem:[%s4 + $0xb60] sm:$0xff]
      %v1208 = vld [vmem:[%s4 + $0xb68] sm:$0xff]
      %v1209 = vld [vmem:[%s4 + $0xb70] sm:$0xff]
      %v1210 = vld [vmem:[%s4 + $0xb78] sm:$0xff]
      %v1211 = vld [vmem:[%s4 + $0xb80] sm:$0xff]
      %v1212 = vld [vmem:[%s4 + $0xb88] sm:$0xff]
      %v1213 = vld [vmem:[%s4 + $0xb90] sm:$0xff]
      %v1214 = vld [vmem:[%s4 + $0xb98] sm:$0xff]
      %v1215 = vld [vmem:[%s4 + $0xba0] sm:$0xff]
      %v1216 = vld [vmem:[%s4 + $0xba8] sm:$0xff]
      %v1217 = vld [vmem:[%s4 + $0xbb0] sm:$0xff]
      %v1218 = vld [vmem:[%s4 + $0xbb8] sm:$0xff]
      %v1219 = vld [vmem:[%s4 + $0xbc0] sm:$0xff]
      %v1220 = vld [vmem:[%s4 + $0xbc8] sm:$0xff]
      %v1221 = vld [vmem:[%s4 + $0xbd0] sm:$0xff]
      %v1222 = vld [vmem:[%s4 + $0xbd8] sm:$0xff]
      %v1223 = vld [vmem:[%s4 + $0xbe0] sm:$0xff]
      %v1224 = vld [vmem:[%s4 + $0xbe8] sm:$0xff]
      %v1225 = vld [vmem:[%s4 + $0xbf0] sm:$0xff]
      %v1226 = vld [vmem:[%s4 + $0xbf8] sm:$0xff]
      %v1227 = vld [vmem:[%s4 + $0xc00] sm:$0xff]
      %v1228 = vld [vmem:[%s4 + $0xc08] sm:$0xff]
      %v1229 = vld [vmem:[%s4 + $0xc10] sm:$0xff]
      %v1230 = vld [vmem:[%s4 + $0xc18] sm:$0xff]
      %v1231 = vld [vmem:[%s4 + $0xc20] sm:$0xff]
      %v1232 = vld [vmem:[%s4 + $0xc28] sm:$0xff]
      %v1233 = vld [vmem:[%s4 + $0xc30] sm:$0xff]
      %v1234 = vld [vmem:[%s4 + $0xc38] sm:$0xff]
      %v1235 = vld [vmem:[%s4 + $0xc40] sm:$0xff]
      %v1236 = vld [vmem:[%s4 + $0xc48] sm:$0xff]
      %v1237 = vld [vmem:[%s4 + $0xc50] sm:$0xff]
      %v1238 = vld [vmem:[%s4 + $0xc58] sm:$0xff]
      %v1239 = vld [vmem:[%s4 + $0xc60] sm:$0xff]
      %v1240 = vld [vmem:[%s4 + $0xc68] sm:$0xff]
      %v1241 = vld [vmem:[%s4 + $0xc70] sm:$0xff]
      %v1242 = vld [vmem:[%s4 + $0xc78] sm:$0xff]
      %v1243 = vld [vmem:[%s4 + $0xc80] sm:$0xff]
      %v1244 = vld [vmem:[%s4 + $0xc88] sm:$0xff]
      %v1245 = vld [vmem:[%s4 + $0xc90] sm:$0xff]
      %v1246 = vld [vmem:[%s4 + $0xc98] sm:$0xff]
      %v1247 = vld [vmem:[%s4 + $0xca0] sm:$0xff]
      %v1248 = vld [vmem:[%s4 + $0xca8] sm:$0xff]
      %v1249 = vld [vmem:[%s4 + $0xcb0] sm:$0xff]
      %v1250 = vld [vmem:[%s4 + $0xcb8] sm:$0xff]
      %v1251 = vld [vmem:[%s4 + $0xcc0] sm:$0xff]
      %v1252 = vld [vmem:[%s4 + $0xcc8] sm:$0xff]
      %v1253 = vld [vmem:[%s4 + $0xcd0] sm:$0xff]
      %v1254 = vld [vmem:[%s4 + $0xcd8] sm:$0xff]
      %v1255 = vld [vmem:[%s4 + $0xce0] sm:$0xff]
      %v1256 = vld [vmem:[%s4 + $0xce8] sm:$0xff]
      %v1257 = vld [vmem:[%s4 + $0xcf0] sm:$0xff]
      %v1258 = vld [vmem:[%s4 + $0xcf8] sm:$0xff]
      %v1259 = vld [vmem:[%s4 + $0xd00] sm:$0xff]
      %v1260 = vld [vmem:[%s4 + $0xd08] sm:$0xff]
      %v1261 = vld [vmem:[%s4 + $0xd10] sm:$0xff]
      %v1262 = vld [vmem:[%s4 + $0xd18] sm:$0xff]
      %v1263 = vld [vmem:[%s4 + $0xd20] sm:$0xff]
      %v1264 = vld [vmem:[%s4 + $0xd28] sm:$0xff]
      %v1265 = vld [vmem:[%s4 + $0xd30] sm:$0xff]
      %v1266 = vld [vmem:[%s4 + $0xd38] sm:$0xff]
      %v1267 = vld [vmem:[%s4 + $0xd40] sm:$0xff]
      %v1268 = vld [vmem:[%s4 + $0xd48] sm:$0xff]
      %v1269 = vld [vmem:[%s4 + $0xd50] sm:$0xff]
      %v1270 = vld [vmem:[%s4 + $0xd58] sm:$0xff]
      %v1271 = vld [vmem:[%s4 + $0xd60] sm:$0xff]
      %v1272 = vld [vmem:[%s4 + $0xd68] sm:$0xff]
      %v1273 = vld [vmem:[%s4 + $0xd70] sm:$0xff]
      %v1274 = vld [vmem:[%s4 + $0xd78] sm:$0xff]
      %v1275 = vld [vmem:[%s4 + $0xd80] sm:$0xff]
      %v1276 = vld [vmem:[%s4 + $0xd88] sm:$0xff]
      %v1277 = vld [vmem:[%s4 + $0xd90] sm:$0xff]
      %v1278 = vld [vmem:[%s4 + $0xd98] sm:$0xff]
      %v1279 = vld [vmem:[%s4 + $0xda0] sm:$0xff]
      %v1280 = vld [vmem:[%s4 + $0xda8] sm:$0xff]
      %v1281 = vld [vmem:[%s4 + $0xdb0] sm:$0xff]
      %v1282 = vld [vmem:[%s4 + $0xdb8] sm:$0xff]
      %v1283 = vld [vmem:[%s4 + $0xdc0] sm:$0xff]
      %v1284 = vld [vmem:[%s4 + $0xdc8] sm:$0xff]
      %v1285 = vld [vmem:[%s4 + $0xdd0] sm:$0xff]
      %v1286 = vld [vmem:[%s4 + $0xdd8] sm:$0xff]
      %v1287 = vld [vmem:[%s4 + $0xde0] sm:$0xff]
      %v1288 = vld [vmem:[%s4 + $0xde8] sm:$0xff]
      %v1289 = vld [vmem:[%s4 + $0xdf0] sm:$0xff]
      %v1290 = vld [vmem:[%s4 + $0xdf8] sm:$0xff]
      %v1291 = vld [vmem:[%s4 + $0xe00] sm:$0xff]
      %v1292 = vld [vmem:[%s4 + $0xe08] sm:$0xff]
      %v1293 = vld [vmem:[%s4 + $0xe10] sm:$0xff]
      %v1294 = vld [vmem:[%s4 + $0xe18] sm:$0xff]
      %v1295 = vld [vmem:[%s4 + $0xe20] sm:$0xff]
      %v1296 = vld [vmem:[%s4 + $0xe28] sm:$0xff]
      %v1297 = vld [vmem:[%s4 + $0xe30] sm:$0xff]
      %v1298 = vld [vmem:[%s4 + $0xe38] sm:$0xff]
      %v1299 = vld [vmem:[%s4 + $0xe40] sm:$0xff]
      %v1300 = vld [vmem:[%s4 + $0xe48] sm:$0xff]
      %v1301 = vld [vmem:[%s4 + $0xe50] sm:$0xff]
      %v1302 = vld [vmem:[%s4 + $0xe58] sm:$0xff]
      %v1303 = vld [vmem:[%s4 + $0xe60] sm:$0xff]
      %v1304 = vld [vmem:[%s4 + $0xe68] sm:$0xff]
      %v1305 = vld [vmem:[%s4 + $0xe70] sm:$0xff]
      %v1306 = vld [vmem:[%s4 + $0xe78] sm:$0xff]
      %v1307 = vld [vmem:[%s4 + $0xe80] sm:$0xff]
      %v1308 = vld [vmem:[%s4 + $0xe88] sm:$0xff]
      %v1309 = vld [vmem:[%s4 + $0xe90] sm:$0xff]
      %v1310 = vld [vmem:[%s4 + $0xe98] sm:$0xff]
      %v1311 = vld [vmem:[%s4 + $0xea0] sm:$0xff]
      %v1312 = vld [vmem:[%s4 + $0xea8] sm:$0xff]
      %v1313 = vld [vmem:[%s4 + $0xeb0] sm:$0xff]
      %v1314 = vld [vmem:[%s4 + $0xeb8] sm:$0xff]
      %v1315 = vld [vmem:[%s4 + $0xec0] sm:$0xff]
      %v1316 = vld [vmem:[%s4 + $0xec8] sm:$0xff]
      %v1317 = vld [vmem:[%s4 + $0xed0] sm:$0xff]
      %v1318 = vld [vmem:[%s4 + $0xed8] sm:$0xff]
      %v1319 = vld [vmem:[%s4 + $0xee0] sm:$0xff]
      %v1320 = vld [vmem:[%s4 + $0xee8] sm:$0xff]
      %v1321 = vld [vmem:[%s4 + $0xef0] sm:$0xff]
      %v1322 = vld [vmem:[%s4 + $0xef8] sm:$0xff]
      %v1323 = vld [vmem:[%s4 + $0xf00] sm:$0xff]
      %v1324 = vld [vmem:[%s4 + $0xf08] sm:$0xff]
      %v1325 = vld [vmem:[%s4 + $0xf10] sm:$0xff]
      %v1326 = vld [vmem:[%s4 + $0xf18] sm:$0xff]
      %v1327 = vld [vmem:[%s4 + $0xf20] sm:$0xff]
      %v1328 = vld [vmem:[%s4 + $0xf28] sm:$0xff]
      %v1329 = vld [vmem:[%s4 + $0xf30] sm:$0xff]
      %v1330 = vld [vmem:[%s4 + $0xf38] sm:$0xff]
      %v1331 = vld [vmem:[%s4 + $0xf40] sm:$0xff]
      %v1332 = vld [vmem:[%s4 + $0xf48] sm:$0xff]
      %v1333 = vld [vmem:[%s4 + $0xf50] sm:$0xff]
      %v1334 = vld [vmem:[%s4 + $0xf58] sm:$0xff]
      %v1335 = vld [vmem:[%s4 + $0xf60] sm:$0xff]
      %v1336 = vld [vmem:[%s4 + $0xf68] sm:$0xff]
      %v1337 = vld [vmem:[%s4 + $0xf70] sm:$0xff]
      %v1338 = vld [vmem:[%s4 + $0xf78] sm:$0xff]
      %v1339 = vld [vmem:[%s4 + $0xf80] sm:$0xff]
      %v1340 = vld [vmem:[%s4 + $0xf88] sm:$0xff]
      %v1341 = vld [vmem:[%s4 + $0xf90] sm:$0xff]
      %v1342 = vld [vmem:[%s4 + $0xf98] sm:$0xff]
      %v1343 = vld [vmem:[%s4 + $0xfa0] sm:$0xff]
      %v1344 = vld [vmem:[%s4 + $0xfa8] sm:$0xff]
      %v1345 = vld [vmem:[%s4 + $0xfb0] sm:$0xff]
      %v1346 = vld [vmem:[%s4 + $0xfb8] sm:$0xff]
      %v1347 = vld [vmem:[%s4 + $0xfc0] sm:$0xff]
      %v1348 = vld [vmem:[%s4 + $0xfc8] sm:$0xff]
      %v1349 = vld [vmem:[%s4 + $0xfd0] sm:$0xff]
      %v1350 = vld [vmem:[%s4 + $0xfd8] sm:$0xff]
      %v1351 = vld [vmem:[%s4 + $0xfe0] sm:$0xff]
      %v1352 = vld [vmem:[%s4 + $0xfe8] sm:$0xff]
      %v1353 = vld [vmem:[%s4 + $0xff0] sm:$0xff]
      %v1354 = vld [vmem:[%s4 + $0xff8] sm:$0xff]
      %v1355 = vld [vmem:[%s4 + $0x1000] sm:$0xff]
      %v1356 = vld [vmem:[%s4 + $0x1008] sm:$0xff]
      %v1357 = vld [vmem:[%s4 + $0x1010] sm:$0xff]
      %v1358 = vld [vmem:[%s4 + $0x1018] sm:$0xff]
      %v1359 = vld [vmem:[%s4 + $0x1020] sm:$0xff]
      %v1360 = vld [vmem:[%s4 + $0x1028] sm:$0xff]
      %v1361 = vld [vmem:[%s4 + $0x1030] sm:$0xff]
      %v1362 = vld [vmem:[%s4 + $0x1038] sm:$0xff]
      %v1363 = vld [vmem:[%s4 + $0x1040] sm:$0xff]
      %v1364 = vld [vmem:[%s4 + $0x1048] sm:$0xff]
      %v1365 = vld [vmem:[%s4 + $0x1050] sm:$0xff]
      %v1366 = vld [vmem:[%s4 + $0x1058] sm:$0xff]
      %v1367 = vld [vmem:[%s4 + $0x1060] sm:$0xff]
      %v1368 = vld [vmem:[%s4 + $0x1068] sm:$0xff]
      %v1369 = vld [vmem:[%s4 + $0x1070] sm:$0xff]
      %v1370 = vld [vmem:[%s4 + $0x1078] sm:$0xff]
      %v1371 = vld [vmem:[%s4 + $0x1080] sm:$0xff]
      %v1372 = vld [vmem:[%s4 + $0x1088] sm:$0xff]
      %v1373 = vld [vmem:[%s4 + $0x1090] sm:$0xff]
      %v1374 = vld [vmem:[%s4 + $0x1098] sm:$0xff]
      %v1375 = vld [vmem:[%s4 + $0x10a0] sm:$0xff]
      %v1376 = vld [vmem:[%s4 + $0x10a8] sm:$0xff]
      %v1377 = vld [vmem:[%s4 + $0x10b0] sm:$0xff]
      %v1378 = vld [vmem:[%s4 + $0x10b8] sm:$0xff]
      %v1379 = vld [vmem:[%s4 + $0x10c0] sm:$0xff]
      %v1380 = vld [vmem:[%s4 + $0x10c8] sm:$0xff]
      %v1381 = vld [vmem:[%s4 + $0x10d0] sm:$0xff]
      %v1382 = vld [vmem:[%s4 + $0x10d8] sm:$0xff]
      %v1383 = vld [vmem:[%s4 + $0x10e0] sm:$0xff]
      %v1384 = vld [vmem:[%s4 + $0x10e8] sm:$0xff]
      %v1385 = vld [vmem:[%s4 + $0x10f0] sm:$0xff]
      %v1386 = vld [vmem:[%s4 + $0x10f8] sm:$0xff]
      %v1387 = vld [vmem:[%s4 + $0x1100] sm:$0xff]
      %v1388 = vld [vmem:[%s4 + $0x1108] sm:$0xff]
      %v1389 = vld [vmem:[%s4 + $0x1110] sm:$0xff]
      %v1390 = vld [vmem:[%s4 + $0x1118] sm:$0xff]
      %v1391 = vld [vmem:[%s4 + $0x1120] sm:$0xff]
      %v1392 = vld [vmem:[%s4 + $0x1128] sm:$0xff]
      %v1393 = vld [vmem:[%s4 + $0x1130] sm:$0xff]
      %v1394 = vld [vmem:[%s4 + $0x1138] sm:$0xff]
      %v1395 = vld [vmem:[%s4 + $0x1140] sm:$0xff]
      %v1396 = vld [vmem:[%s4 + $0x1148] sm:$0xff]
      %v1397 = vld [vmem:[%s4 + $0x1150] sm:$0xff]
      %v1398 = vld [vmem:[%s4 + $0x1158] sm:$0xff]
      %v1399 = vld [vmem:[%s4 + $0x1160] sm:$0xff]
      %v1400 = vld [vmem:[%s4 + $0x1168] sm:$0xff]
      %v1401 = vld [vmem:[%s4 + $0x1170] sm:$0xff]
      %v1402 = vld [vmem:[%s4 + $0x1178] sm:$0xff]
      %v1403 = vld [vmem:[%s4 + $0x1180] sm:$0xff]
      %v1404 = vld [vmem:[%s4 + $0x1188] sm:$0xff]
      %v1405 = vld [vmem:[%s4 + $0x1190] sm:$0xff]
      %v1406 = vld [vmem:[%s4 + $0x1198] sm:$0xff]
      %v1407 = vld [vmem:[%s4 + $0x11a0] sm:$0xff]
      %v1408 = vld [vmem:[%s4 + $0x11a8] sm:$0xff]
      %v1409 = vld [vmem:[%s4 + $0x11b0] sm:$0xff]
      %v1410 = vld [vmem:[%s4 + $0x11b8] sm:$0xff]
      %v1411 = vld [vmem:[%s4 + $0x11c0] sm:$0xff]
      %v1412 = vld [vmem:[%s4 + $0x11c8] sm:$0xff]
      %v1413 = vld [vmem:[%s4 + $0x11d0] sm:$0xff]
      %v1414 = vld [vmem:[%s4 + $0x11d8] sm:$0xff]
      %v1415 = vld [vmem:[%s4 + $0x11e0] sm:$0xff]
      %v1416 = vld [vmem:[%s4 + $0x11e8] sm:$0xff]
      %v1417 = vld [vmem:[%s4 + $0x11f0] sm:$0xff]
      %v1418 = vld [vmem:[%s4 + $0x11f8] sm:$0xff]
      %v1419 = vld [vmem:[%s5] sm:$0xf]
      %v1421 = vlaneseq
      %v1422 = vshrl.u32 %v1421, 7
      %v1423 = vsub.s32 0, %v1422
      %v1424 = vrot.slane %v1419, %v1423
      %v1425 = vlaneseq
      %v1426 = vshrl.u32 %v1425, 7
      %v1427 = vsub.s32 1, %v1426
      %v1428 = vrot.slane %v1419, %v1427
      %v1429 = vlaneseq
      %v1430 = vshrl.u32 %v1429, 7
      %v1431 = vsub.s32 2, %v1430
      %v1432 = vrot.slane %v1419, %v1431
      %v1433 = vlaneseq
      %v1434 = vshrl.u32 %v1433, 7
      %v1435 = vsub.s32 3, %v1434
      %v1436 = vrot.slane %v1419, %v1435
      %v2017 = vunpack.c.l.b16 %v843
      %v2018 = vunpack.c.h.b16 %v843
      %v2019 = vunpack.c.l.b16 %v844
      %v2020 = vunpack.c.h.b16 %v844
      %v2021 = vunpack.c.l.b16 %v845
      %v2022 = vunpack.c.h.b16 %v845
      %v2023 = vunpack.c.l.b16 %v846
      %v2024 = vunpack.c.h.b16 %v846
      %v2025 = vunpack.c.l.b16 %v847
      %v2026 = vunpack.c.h.b16 %v847
      %v2027 = vunpack.c.l.b16 %v848
      %v2028 = vunpack.c.h.b16 %v848
      %v2029 = vunpack.c.l.b16 %v849
      %v2030 = vunpack.c.h.b16 %v849
      %v2031 = vunpack.c.l.b16 %v850
      %v2032 = vunpack.c.h.b16 %v850
      %v2033 = vunpack.c.l.b16 %v851
      %v2034 = vunpack.c.h.b16 %v851
      %v2035 = vunpack.c.l.b16 %v852
      %v2036 = vunpack.c.h.b16 %v852
      %v2037 = vunpack.c.l.b16 %v853
      %v2038 = vunpack.c.h.b16 %v853
      %v2039 = vunpack.c.l.b16 %v854
      %v2040 = vunpack.c.h.b16 %v854
      %v2041 = vunpack.c.l.b16 %v855
      %v2042 = vunpack.c.h.b16 %v855
      %v2043 = vunpack.c.l.b16 %v856
      %v2044 = vunpack.c.h.b16 %v856
      %v2045 = vunpack.c.l.b16 %v857
      %v2046 = vunpack.c.h.b16 %v857
      %v2047 = vunpack.c.l.b16 %v858
      %v2048 = vunpack.c.h.b16 %v858
      %v2049 = vunpack.c.l.b16 %v859
      %v2050 = vunpack.c.h.b16 %v859
      %v2051 = vunpack.c.l.b16 %v860
      %v2052 = vunpack.c.h.b16 %v860
      %v2053 = vunpack.c.l.b16 %v861
      %v2054 = vunpack.c.h.b16 %v861
      %v2055 = vunpack.c.l.b16 %v862
      %v2056 = vunpack.c.h.b16 %v862
      %v2057 = vunpack.c.l.b16 %v863
      %v2058 = vunpack.c.h.b16 %v863
      %v2059 = vunpack.c.l.b16 %v864
      %v2060 = vunpack.c.h.b16 %v864
      %v2061 = vunpack.c.l.b16 %v865
      %v2062 = vunpack.c.h.b16 %v865
      %v2063 = vunpack.c.l.b16 %v866
      %v2064 = vunpack.c.h.b16 %v866
      %v2065 = vunpack.c.l.b16 %v867
      %v2066 = vunpack.c.h.b16 %v867
      %v2067 = vunpack.c.l.b16 %v868
      %v2068 = vunpack.c.h.b16 %v868
      %v2069 = vunpack.c.l.b16 %v869
      %v2070 = vunpack.c.h.b16 %v869
      %v2071 = vunpack.c.l.b16 %v870
      %v2072 = vunpack.c.h.b16 %v870
      %v2073 = vunpack.c.l.b16 %v871
      %v2074 = vunpack.c.h.b16 %v871
      %v2075 = vunpack.c.l.b16 %v872
      %v2076 = vunpack.c.h.b16 %v872
      %v2077 = vunpack.c.l.b16 %v873
      %v2078 = vunpack.c.h.b16 %v873
      %v2079 = vunpack.c.l.b16 %v874
      %v2080 = vunpack.c.h.b16 %v874
      %v2081 = vunpack.c.l.b16 %v875
      %v2082 = vunpack.c.h.b16 %v875
      %v2083 = vunpack.c.l.b16 %v876
      %v2084 = vunpack.c.h.b16 %v876
      %v2085 = vunpack.c.l.b16 %v877
      %v2086 = vunpack.c.h.b16 %v877
      %v2087 = vunpack.c.l.b16 %v878
      %v2088 = vunpack.c.h.b16 %v878
      %v2089 = vunpack.c.l.b16 %v879
      %v2090 = vunpack.c.h.b16 %v879
      %v2091 = vunpack.c.l.b16 %v880
      %v2092 = vunpack.c.h.b16 %v880
      %v2093 = vunpack.c.l.b16 %v881
      %v2094 = vunpack.c.h.b16 %v881
      %v2095 = vunpack.c.l.b16 %v882
      %v2096 = vunpack.c.h.b16 %v882
      %v2097 = vunpack.c.l.b16 %v883
      %v2098 = vunpack.c.h.b16 %v883
      %v2099 = vunpack.c.l.b16 %v884
      %v2100 = vunpack.c.h.b16 %v884
      %v2101 = vunpack.c.l.b16 %v885
      %v2102 = vunpack.c.h.b16 %v885
      %v2103 = vunpack.c.l.b16 %v886
      %v2104 = vunpack.c.h.b16 %v886
      %v2105 = vunpack.c.l.b16 %v887
      %v2106 = vunpack.c.h.b16 %v887
      %v2107 = vunpack.c.l.b16 %v888
      %v2108 = vunpack.c.h.b16 %v888
      %v2109 = vunpack.c.l.b16 %v889
      %v2110 = vunpack.c.h.b16 %v889
      %v2111 = vunpack.c.l.b16 %v890
      %v2112 = vunpack.c.h.b16 %v890
      %v2113 = vunpack.c.l.b16 %v891
      %v2114 = vunpack.c.h.b16 %v891
      %v2115 = vunpack.c.l.b16 %v892
      %v2116 = vunpack.c.h.b16 %v892
      %v2117 = vunpack.c.l.b16 %v893
      %v2118 = vunpack.c.h.b16 %v893
      %v2119 = vunpack.c.l.b16 %v894
      %v2120 = vunpack.c.h.b16 %v894
      %v2121 = vunpack.c.l.b16 %v895
      %v2122 = vunpack.c.h.b16 %v895
      %v2123 = vunpack.c.l.b16 %v896
      %v2124 = vunpack.c.h.b16 %v896
      %v2125 = vunpack.c.l.b16 %v897
      %v2126 = vunpack.c.h.b16 %v897
      %v2127 = vunpack.c.l.b16 %v898
      %v2128 = vunpack.c.h.b16 %v898
      %v2129 = vunpack.c.l.b16 %v899
      %v2130 = vunpack.c.h.b16 %v899
      %v2131 = vunpack.c.l.b16 %v900
      %v2132 = vunpack.c.h.b16 %v900
      %v2133 = vunpack.c.l.b16 %v901
      %v2134 = vunpack.c.h.b16 %v901
      %v2135 = vunpack.c.l.b16 %v902
      %v2136 = vunpack.c.h.b16 %v902
      %v2137 = vunpack.c.l.b16 %v903
      %v2138 = vunpack.c.h.b16 %v903
      %v2139 = vunpack.c.l.b16 %v904
      %v2140 = vunpack.c.h.b16 %v904
      %v2141 = vunpack.c.l.b16 %v905
      %v2142 = vunpack.c.h.b16 %v905
      %v2143 = vunpack.c.l.b16 %v906
      %v2144 = vunpack.c.h.b16 %v906
      %v2145 = vunpack.c.l.b16 %v907
      %v2146 = vunpack.c.h.b16 %v907
      %v2147 = vunpack.c.l.b16 %v908
      %v2148 = vunpack.c.h.b16 %v908
      %v2149 = vunpack.c.l.b16 %v909
      %v2150 = vunpack.c.h.b16 %v909
      %v2151 = vunpack.c.l.b16 %v910
      %v2152 = vunpack.c.h.b16 %v910
      %v2153 = vunpack.c.l.b16 %v911
      %v2154 = vunpack.c.h.b16 %v911
      %v2155 = vunpack.c.l.b16 %v912
      %v2156 = vunpack.c.h.b16 %v912
      %v2157 = vunpack.c.l.b16 %v913
      %v2158 = vunpack.c.h.b16 %v913
      %v2159 = vunpack.c.l.b16 %v914
      %v2160 = vunpack.c.h.b16 %v914
      %v2161 = vunpack.c.l.b16 %v915
      %v2162 = vunpack.c.h.b16 %v915
      %v2163 = vunpack.c.l.b16 %v916
      %v2164 = vunpack.c.h.b16 %v916
      %v2165 = vunpack.c.l.b16 %v917
      %v2166 = vunpack.c.h.b16 %v917
      %v2167 = vunpack.c.l.b16 %v918
      %v2168 = vunpack.c.h.b16 %v918
      %v2169 = vunpack.c.l.b16 %v919
      %v2170 = vunpack.c.h.b16 %v919
      %v2171 = vunpack.c.l.b16 %v920
      %v2172 = vunpack.c.h.b16 %v920
      %v2173 = vunpack.c.l.b16 %v921
      %v2174 = vunpack.c.h.b16 %v921
      %v2175 = vunpack.c.l.b16 %v922
      %v2176 = vunpack.c.h.b16 %v922
      %v2177 = vunpack.c.l.b16 %v923
      %v2178 = vunpack.c.h.b16 %v923
      %v2179 = vunpack.c.l.b16 %v924
      %v2180 = vunpack.c.h.b16 %v924
      %v2181 = vunpack.c.l.b16 %v925
      %v2182 = vunpack.c.h.b16 %v925
      %v2183 = vunpack.c.l.b16 %v926
      %v2184 = vunpack.c.h.b16 %v926
      %v2185 = vunpack.c.l.b16 %v927
      %v2186 = vunpack.c.h.b16 %v927
      %v2187 = vunpack.c.l.b16 %v928
      %v2188 = vunpack.c.h.b16 %v928
      %v2189 = vunpack.c.l.b16 %v929
      %v2190 = vunpack.c.h.b16 %v929
      %v2191 = vunpack.c.l.b16 %v930
      %v2192 = vunpack.c.h.b16 %v930
      %v2193 = vunpack.c.l.b16 %v931
      %v2194 = vunpack.c.h.b16 %v931
      %v2195 = vunpack.c.l.b16 %v932
      %v2196 = vunpack.c.h.b16 %v932
      %v2197 = vunpack.c.l.b16 %v933
      %v2198 = vunpack.c.h.b16 %v933
      %v2199 = vunpack.c.l.b16 %v934
      %v2200 = vunpack.c.h.b16 %v934
      %v2201 = vunpack.c.l.b16 %v935
      %v2202 = vunpack.c.h.b16 %v935
      %v2203 = vunpack.c.l.b16 %v936
      %v2204 = vunpack.c.h.b16 %v936
      %v2205 = vunpack.c.l.b16 %v937
      %v2206 = vunpack.c.h.b16 %v937
      %v2207 = vunpack.c.l.b16 %v938
      %v2208 = vunpack.c.h.b16 %v938
      %v2209 = vunpack.c.l.b16 %v939
      %v2210 = vunpack.c.h.b16 %v939
      %v2211 = vunpack.c.l.b16 %v940
      %v2212 = vunpack.c.h.b16 %v940
      %v2213 = vunpack.c.l.b16 %v941
      %v2214 = vunpack.c.h.b16 %v941
      %v2215 = vunpack.c.l.b16 %v942
      %v2216 = vunpack.c.h.b16 %v942
      %v2217 = vunpack.c.l.b16 %v943
      %v2218 = vunpack.c.h.b16 %v943
      %v2219 = vunpack.c.l.b16 %v944
      %v2220 = vunpack.c.h.b16 %v944
      %v2221 = vunpack.c.l.b16 %v945
      %v2222 = vunpack.c.h.b16 %v945
      %v2223 = vunpack.c.l.b16 %v946
      %v2224 = vunpack.c.h.b16 %v946
      %v2225 = vunpack.c.l.b16 %v947
      %v2226 = vunpack.c.h.b16 %v947
      %v2227 = vunpack.c.l.b16 %v948
      %v2228 = vunpack.c.h.b16 %v948
      %v2229 = vunpack.c.l.b16 %v949
      %v2230 = vunpack.c.h.b16 %v949
      %v2231 = vunpack.c.l.b16 %v950
      %v2232 = vunpack.c.h.b16 %v950
      %v2233 = vunpack.c.l.b16 %v951
      %v2234 = vunpack.c.h.b16 %v951
      %v2235 = vunpack.c.l.b16 %v952
      %v2236 = vunpack.c.h.b16 %v952
      %v2237 = vunpack.c.l.b16 %v953
      %v2238 = vunpack.c.h.b16 %v953
      %v2239 = vunpack.c.l.b16 %v954
      %v2240 = vunpack.c.h.b16 %v954
      %v2241 = vunpack.c.l.b16 %v955
      %v2242 = vunpack.c.h.b16 %v955
      %v2243 = vunpack.c.l.b16 %v956
      %v2244 = vunpack.c.h.b16 %v956
      %v2245 = vunpack.c.l.b16 %v957
      %v2246 = vunpack.c.h.b16 %v957
      %v2247 = vunpack.c.l.b16 %v958
      %v2248 = vunpack.c.h.b16 %v958
      %v2249 = vunpack.c.l.b16 %v959
      %v2250 = vunpack.c.h.b16 %v959
      %v2251 = vunpack.c.l.b16 %v960
      %v2252 = vunpack.c.h.b16 %v960
      %v2253 = vunpack.c.l.b16 %v961
      %v2254 = vunpack.c.h.b16 %v961
      %v2255 = vunpack.c.l.b16 %v962
      %v2256 = vunpack.c.h.b16 %v962
      %v2257 = vunpack.c.l.b16 %v963
      %v2258 = vunpack.c.h.b16 %v963
      %v2259 = vunpack.c.l.b16 %v964
      %v2260 = vunpack.c.h.b16 %v964
      %v2261 = vunpack.c.l.b16 %v965
      %v2262 = vunpack.c.h.b16 %v965
      %v2263 = vunpack.c.l.b16 %v966
      %v2264 = vunpack.c.h.b16 %v966
      %v2265 = vunpack.c.l.b16 %v967
      %v2266 = vunpack.c.h.b16 %v967
      %v2267 = vunpack.c.l.b16 %v968
      %v2268 = vunpack.c.h.b16 %v968
      %v2269 = vunpack.c.l.b16 %v969
      %v2270 = vunpack.c.h.b16 %v969
      %v2271 = vunpack.c.l.b16 %v970
      %v2272 = vunpack.c.h.b16 %v970
      %v2273 = vunpack.c.l.b16 %v971
      %v2274 = vunpack.c.h.b16 %v971
      %v2275 = vunpack.c.l.b16 %v972
      %v2276 = vunpack.c.h.b16 %v972
      %v2277 = vunpack.c.l.b16 %v973
      %v2278 = vunpack.c.h.b16 %v973
      %v2279 = vunpack.c.l.b16 %v974
      %v2280 = vunpack.c.h.b16 %v974
      %v2281 = vunpack.c.l.b16 %v975
      %v2282 = vunpack.c.h.b16 %v975
      %v2283 = vunpack.c.l.b16 %v976
      %v2284 = vunpack.c.h.b16 %v976
      %v2285 = vunpack.c.l.b16 %v977
      %v2286 = vunpack.c.h.b16 %v977
      %v2287 = vunpack.c.l.b16 %v978
      %v2288 = vunpack.c.h.b16 %v978
      %v2289 = vunpack.c.l.b16 %v979
      %v2290 = vunpack.c.h.b16 %v979
      %v2291 = vunpack.c.l.b16 %v980
      %v2292 = vunpack.c.h.b16 %v980
      %v2293 = vunpack.c.l.b16 %v981
      %v2294 = vunpack.c.h.b16 %v981
      %v2295 = vunpack.c.l.b16 %v982
      %v2296 = vunpack.c.h.b16 %v982
      %v2297 = vunpack.c.l.b16 %v983
      %v2298 = vunpack.c.h.b16 %v983
      %v2299 = vunpack.c.l.b16 %v984
      %v2300 = vunpack.c.h.b16 %v984
      %v2301 = vunpack.c.l.b16 %v985
      %v2302 = vunpack.c.h.b16 %v985
      %v2303 = vunpack.c.l.b16 %v986
      %v2304 = vunpack.c.h.b16 %v986
      %v2305 = vunpack.c.l.b16 %v987
      %v2306 = vunpack.c.h.b16 %v987
      %v2307 = vunpack.c.l.b16 %v988
      %v2308 = vunpack.c.h.b16 %v988
      %v2309 = vunpack.c.l.b16 %v989
      %v2310 = vunpack.c.h.b16 %v989
      %v2311 = vunpack.c.l.b16 %v990
      %v2312 = vunpack.c.h.b16 %v990
      %v2313 = vunpack.c.l.b16 %v991
      %v2314 = vunpack.c.h.b16 %v991
      %v2315 = vunpack.c.l.b16 %v992
      %v2316 = vunpack.c.h.b16 %v992
      %v2317 = vunpack.c.l.b16 %v993
      %v2318 = vunpack.c.h.b16 %v993
      %v2319 = vunpack.c.l.b16 %v994
      %v2320 = vunpack.c.h.b16 %v994
      %v2321 = vunpack.c.l.b16 %v995
      %v2322 = vunpack.c.h.b16 %v995
      %v2323 = vunpack.c.l.b16 %v996
      %v2324 = vunpack.c.h.b16 %v996
      %v2325 = vunpack.c.l.b16 %v997
      %v2326 = vunpack.c.h.b16 %v997
      %v2327 = vunpack.c.l.b16 %v998
      %v2328 = vunpack.c.h.b16 %v998
      %v2329 = vunpack.c.l.b16 %v999
      %v2330 = vunpack.c.h.b16 %v999
      %v2331 = vunpack.c.l.b16 %v1000
      %v2332 = vunpack.c.h.b16 %v1000
      %v2333 = vunpack.c.l.b16 %v1001
      %v2334 = vunpack.c.h.b16 %v1001
      %v2335 = vunpack.c.l.b16 %v1002
      %v2336 = vunpack.c.h.b16 %v1002
      %v2337 = vunpack.c.l.b16 %v1003
      %v2338 = vunpack.c.h.b16 %v1003
      %v2339 = vunpack.c.l.b16 %v1004
      %v2340 = vunpack.c.h.b16 %v1004
      %v2341 = vunpack.c.l.b16 %v1005
      %v2342 = vunpack.c.h.b16 %v1005
      %v2343 = vunpack.c.l.b16 %v1006
      %v2344 = vunpack.c.h.b16 %v1006
      %v2345 = vunpack.c.l.b16 %v1007
      %v2346 = vunpack.c.h.b16 %v1007
      %v2347 = vunpack.c.l.b16 %v1008
      %v2348 = vunpack.c.h.b16 %v1008
      %v2349 = vunpack.c.l.b16 %v1009
      %v2350 = vunpack.c.h.b16 %v1009
      %v2351 = vunpack.c.l.b16 %v1010
      %v2352 = vunpack.c.h.b16 %v1010
      %v2353 = vunpack.c.l.b16 %v1011
      %v2354 = vunpack.c.h.b16 %v1011
      %v2355 = vunpack.c.l.b16 %v1012
      %v2356 = vunpack.c.h.b16 %v1012
      %v2357 = vunpack.c.l.b16 %v1013
      %v2358 = vunpack.c.h.b16 %v1013
      %v2359 = vunpack.c.l.b16 %v1014
      %v2360 = vunpack.c.h.b16 %v1014
      %v2361 = vunpack.c.l.b16 %v1015
      %v2362 = vunpack.c.h.b16 %v1015
      %v2363 = vunpack.c.l.b16 %v1016
      %v2364 = vunpack.c.h.b16 %v1016
      %v2365 = vunpack.c.l.b16 %v1017
      %v2366 = vunpack.c.h.b16 %v1017
      %v2367 = vunpack.c.l.b16 %v1018
      %v2368 = vunpack.c.h.b16 %v1018
      %v2369 = vunpack.c.l.b16 %v1019
      %v2370 = vunpack.c.h.b16 %v1019
      %v2371 = vunpack.c.l.b16 %v1020
      %v2372 = vunpack.c.h.b16 %v1020
      %v2373 = vunpack.c.l.b16 %v1021
      %v2374 = vunpack.c.h.b16 %v1021
      %v2375 = vunpack.c.l.b16 %v1022
      %v2376 = vunpack.c.h.b16 %v1022
      %v2377 = vunpack.c.l.b16 %v1023
      %v2378 = vunpack.c.h.b16 %v1023
      %v2379 = vunpack.c.l.b16 %v1024
      %v2380 = vunpack.c.h.b16 %v1024
      %v2381 = vunpack.c.l.b16 %v1025
      %v2382 = vunpack.c.h.b16 %v1025
      %v2383 = vunpack.c.l.b16 %v1026
      %v2384 = vunpack.c.h.b16 %v1026
      %v2385 = vunpack.c.l.b16 %v1027
      %v2386 = vunpack.c.h.b16 %v1027
      %v2387 = vunpack.c.l.b16 %v1028
      %v2388 = vunpack.c.h.b16 %v1028
      %v2389 = vunpack.c.l.b16 %v1029
      %v2390 = vunpack.c.h.b16 %v1029
      %v2391 = vunpack.c.l.b16 %v1030
      %v2392 = vunpack.c.h.b16 %v1030
      %v2393 = vunpack.c.l.b16 %v1031
      %v2394 = vunpack.c.h.b16 %v1031
      %v2395 = vunpack.c.l.b16 %v1032
      %v2396 = vunpack.c.h.b16 %v1032
      %v2397 = vunpack.c.l.b16 %v1033
      %v2398 = vunpack.c.h.b16 %v1033
      %v2399 = vunpack.c.l.b16 %v1034
      %v2400 = vunpack.c.h.b16 %v1034
      %v2401 = vunpack.c.l.b16 %v1035
      %v2402 = vunpack.c.h.b16 %v1035
      %v2403 = vunpack.c.l.b16 %v1036
      %v2404 = vunpack.c.h.b16 %v1036
      %v2405 = vunpack.c.l.b16 %v1037
      %v2406 = vunpack.c.h.b16 %v1037
      %v2407 = vunpack.c.l.b16 %v1038
      %v2408 = vunpack.c.h.b16 %v1038
      %v2409 = vunpack.c.l.b16 %v1039
      %v2410 = vunpack.c.h.b16 %v1039
      %v2411 = vunpack.c.l.b16 %v1040
      %v2412 = vunpack.c.h.b16 %v1040
      %v2413 = vunpack.c.l.b16 %v1041
      %v2414 = vunpack.c.h.b16 %v1041
      %v2415 = vunpack.c.l.b16 %v1042
      %v2416 = vunpack.c.h.b16 %v1042
      %v2417 = vunpack.c.l.b16 %v1043
      %v2418 = vunpack.c.h.b16 %v1043
      %v2419 = vunpack.c.l.b16 %v1044
      %v2420 = vunpack.c.h.b16 %v1044
      %v2421 = vunpack.c.l.b16 %v1045
      %v2422 = vunpack.c.h.b16 %v1045
      %v2423 = vunpack.c.l.b16 %v1046
      %v2424 = vunpack.c.h.b16 %v1046
      %v2425 = vunpack.c.l.b16 %v1047
      %v2426 = vunpack.c.h.b16 %v1047
      %v2427 = vunpack.c.l.b16 %v1048
      %v2428 = vunpack.c.h.b16 %v1048
      %v2429 = vunpack.c.l.b16 %v1049
      %v2430 = vunpack.c.h.b16 %v1049
      %v2431 = vunpack.c.l.b16 %v1050
      %v2432 = vunpack.c.h.b16 %v1050
      %v2433 = vunpack.c.l.b16 %v1051
      %v2434 = vunpack.c.h.b16 %v1051
      %v2435 = vunpack.c.l.b16 %v1052
      %v2436 = vunpack.c.h.b16 %v1052
      %v2437 = vunpack.c.l.b16 %v1053
      %v2438 = vunpack.c.h.b16 %v1053
      %v2439 = vunpack.c.l.b16 %v1054
      %v2440 = vunpack.c.h.b16 %v1054
      %v2441 = vunpack.c.l.b16 %v1055
      %v2442 = vunpack.c.h.b16 %v1055
      %v2443 = vunpack.c.l.b16 %v1056
      %v2444 = vunpack.c.h.b16 %v1056
      %v2445 = vunpack.c.l.b16 %v1057
      %v2446 = vunpack.c.h.b16 %v1057
      %v2447 = vunpack.c.l.b16 %v1058
      %v2448 = vunpack.c.h.b16 %v1058
      %v2449 = vunpack.c.l.b16 %v1059
      %v2450 = vunpack.c.h.b16 %v1059
      %v2451 = vunpack.c.l.b16 %v1060
      %v2452 = vunpack.c.h.b16 %v1060
      %v2453 = vunpack.c.l.b16 %v1061
      %v2454 = vunpack.c.h.b16 %v1061
      %v2455 = vunpack.c.l.b16 %v1062
      %v2456 = vunpack.c.h.b16 %v1062
      %v2457 = vunpack.c.l.b16 %v1063
      %v2458 = vunpack.c.h.b16 %v1063
      %v2459 = vunpack.c.l.b16 %v1064
      %v2460 = vunpack.c.h.b16 %v1064
      %v2461 = vunpack.c.l.b16 %v1065
      %v2462 = vunpack.c.h.b16 %v1065
      %v2463 = vunpack.c.l.b16 %v1066
      %v2464 = vunpack.c.h.b16 %v1066
      %v2465 = vunpack.c.l.b16 %v1067
      %v2466 = vunpack.c.h.b16 %v1067
      %v2467 = vunpack.c.l.b16 %v1068
      %v2468 = vunpack.c.h.b16 %v1068
      %v2469 = vunpack.c.l.b16 %v1069
      %v2470 = vunpack.c.h.b16 %v1069
      %v2471 = vunpack.c.l.b16 %v1070
      %v2472 = vunpack.c.h.b16 %v1070
      %v2473 = vunpack.c.l.b16 %v1071
      %v2474 = vunpack.c.h.b16 %v1071
      %v2475 = vunpack.c.l.b16 %v1072
      %v2476 = vunpack.c.h.b16 %v1072
      %v2477 = vunpack.c.l.b16 %v1073
      %v2478 = vunpack.c.h.b16 %v1073
      %v2479 = vunpack.c.l.b16 %v1074
      %v2480 = vunpack.c.h.b16 %v1074
      %v2481 = vunpack.c.l.b16 %v1075
      %v2482 = vunpack.c.h.b16 %v1075
      %v2483 = vunpack.c.l.b16 %v1076
      %v2484 = vunpack.c.h.b16 %v1076
      %v2485 = vunpack.c.l.b16 %v1077
      %v2486 = vunpack.c.h.b16 %v1077
      %v2487 = vunpack.c.l.b16 %v1078
      %v2488 = vunpack.c.h.b16 %v1078
      %v2489 = vunpack.c.l.b16 %v1079
      %v2490 = vunpack.c.h.b16 %v1079
      %v2491 = vunpack.c.l.b16 %v1080
      %v2492 = vunpack.c.h.b16 %v1080
      %v2493 = vunpack.c.l.b16 %v1081
      %v2494 = vunpack.c.h.b16 %v1081
      %v2495 = vunpack.c.l.b16 %v1082
      %v2496 = vunpack.c.h.b16 %v1082
      %v2497 = vunpack.c.l.b16 %v1083
      %v2498 = vunpack.c.h.b16 %v1083
      %v2499 = vunpack.c.l.b16 %v1084
      %v2500 = vunpack.c.h.b16 %v1084
      %v2501 = vunpack.c.l.b16 %v1085
      %v2502 = vunpack.c.h.b16 %v1085
      %v2503 = vunpack.c.l.b16 %v1086
      %v2504 = vunpack.c.h.b16 %v1086
      %v2505 = vunpack.c.l.b16 %v1087
      %v2506 = vunpack.c.h.b16 %v1087
      %v2507 = vunpack.c.l.b16 %v1088
      %v2508 = vunpack.c.h.b16 %v1088
      %v2509 = vunpack.c.l.b16 %v1089
      %v2510 = vunpack.c.h.b16 %v1089
      %v2511 = vunpack.c.l.b16 %v1090
      %v2512 = vunpack.c.h.b16 %v1090
      %v2513 = vunpack.c.l.b16 %v1091
      %v2514 = vunpack.c.h.b16 %v1091
      %v2515 = vunpack.c.l.b16 %v1092
      %v2516 = vunpack.c.h.b16 %v1092
      %v2517 = vunpack.c.l.b16 %v1093
      %v2518 = vunpack.c.h.b16 %v1093
      %v2519 = vunpack.c.l.b16 %v1094
      %v2520 = vunpack.c.h.b16 %v1094
      %v2521 = vunpack.c.l.b16 %v1095
      %v2522 = vunpack.c.h.b16 %v1095
      %v2523 = vunpack.c.l.b16 %v1096
      %v2524 = vunpack.c.h.b16 %v1096
      %v2525 = vunpack.c.l.b16 %v1097
      %v2526 = vunpack.c.h.b16 %v1097
      %v2527 = vunpack.c.l.b16 %v1098
      %v2528 = vunpack.c.h.b16 %v1098
      %v2529 = vunpack.c.l.b16 %v1099
      %v2530 = vunpack.c.h.b16 %v1099
      %v2531 = vunpack.c.l.b16 %v1100
      %v2532 = vunpack.c.h.b16 %v1100
      %v2533 = vunpack.c.l.b16 %v1101
      %v2534 = vunpack.c.h.b16 %v1101
      %v2535 = vunpack.c.l.b16 %v1102
      %v2536 = vunpack.c.h.b16 %v1102
      %v2537 = vunpack.c.l.b16 %v1103
      %v2538 = vunpack.c.h.b16 %v1103
      %v2539 = vunpack.c.l.b16 %v1104
      %v2540 = vunpack.c.h.b16 %v1104
      %v2541 = vunpack.c.l.b16 %v1105
      %v2542 = vunpack.c.h.b16 %v1105
      %v2543 = vunpack.c.l.b16 %v1106
      %v2544 = vunpack.c.h.b16 %v1106
      %v2545 = vunpack.c.l.b16 %v1107
      %v2546 = vunpack.c.h.b16 %v1107
      %v2547 = vunpack.c.l.b16 %v1108
      %v2548 = vunpack.c.h.b16 %v1108
      %v2549 = vunpack.c.l.b16 %v1109
      %v2550 = vunpack.c.h.b16 %v1109
      %v2551 = vunpack.c.l.b16 %v1110
      %v2552 = vunpack.c.h.b16 %v1110
      %v2553 = vunpack.c.l.b16 %v1111
      %v2554 = vunpack.c.h.b16 %v1111
      %v2555 = vunpack.c.l.b16 %v1112
      %v2556 = vunpack.c.h.b16 %v1112
      %v2557 = vunpack.c.l.b16 %v1113
      %v2558 = vunpack.c.h.b16 %v1113
      %v2559 = vunpack.c.l.b16 %v1114
      %v2560 = vunpack.c.h.b16 %v1114
      %v2561 = vunpack.c.l.b16 %v1115
      %v2562 = vunpack.c.h.b16 %v1115
      %v2563 = vunpack.c.l.b16 %v1116
      %v2564 = vunpack.c.h.b16 %v1116
      %v2565 = vunpack.c.l.b16 %v1117
      %v2566 = vunpack.c.h.b16 %v1117
      %v2567 = vunpack.c.l.b16 %v1118
      %v2568 = vunpack.c.h.b16 %v1118
      %v2569 = vunpack.c.l.b16 %v1119
      %v2570 = vunpack.c.h.b16 %v1119
      %v2571 = vunpack.c.l.b16 %v1120
      %v2572 = vunpack.c.h.b16 %v1120
      %v2573 = vunpack.c.l.b16 %v1121
      %v2574 = vunpack.c.h.b16 %v1121
      %v2575 = vunpack.c.l.b16 %v1122
      %v2576 = vunpack.c.h.b16 %v1122
      %v2577 = vunpack.c.l.b16 %v1123
      %v2578 = vunpack.c.h.b16 %v1123
      %v2579 = vunpack.c.l.b16 %v1124
      %v2580 = vunpack.c.h.b16 %v1124
      %v2581 = vunpack.c.l.b16 %v1125
      %v2582 = vunpack.c.h.b16 %v1125
      %v2583 = vunpack.c.l.b16 %v1126
      %v2584 = vunpack.c.h.b16 %v1126
      %v2585 = vunpack.c.l.b16 %v1127
      %v2586 = vunpack.c.h.b16 %v1127
      %v2587 = vunpack.c.l.b16 %v1128
      %v2588 = vunpack.c.h.b16 %v1128
      %v2589 = vunpack.c.l.b16 %v1129
      %v2590 = vunpack.c.h.b16 %v1129
      %v2591 = vunpack.c.l.b16 %v1130
      %v2592 = vunpack.c.h.b16 %v1130
      %v2593 = vunpack.c.l.b16 %v1131
      %v2594 = vunpack.c.h.b16 %v1131
      %v2595 = vunpack.c.l.b16 %v1132
      %v2596 = vunpack.c.h.b16 %v1132
      %v2597 = vunpack.c.l.b16 %v1133
      %v2598 = vunpack.c.h.b16 %v1133
      %v2599 = vunpack.c.l.b16 %v1134
      %v2600 = vunpack.c.h.b16 %v1134
      %v2601 = vunpack.c.l.b16 %v1135
      %v2602 = vunpack.c.h.b16 %v1135
      %v2603 = vunpack.c.l.b16 %v1136
      %v2604 = vunpack.c.h.b16 %v1136
      %v2605 = vunpack.c.l.b16 %v1137
      %v2606 = vunpack.c.h.b16 %v1137
      %v2607 = vunpack.c.l.b16 %v1138
      %v2608 = vunpack.c.h.b16 %v1138
      %v2609 = vunpack.c.l.b16 %v1139
      %v2610 = vunpack.c.h.b16 %v1139
      %v2611 = vunpack.c.l.b16 %v1140
      %v2612 = vunpack.c.h.b16 %v1140
      %v2613 = vunpack.c.l.b16 %v1141
      %v2614 = vunpack.c.h.b16 %v1141
      %v2615 = vunpack.c.l.b16 %v1142
      %v2616 = vunpack.c.h.b16 %v1142
      %v2617 = vunpack.c.l.b16 %v1143
      %v2618 = vunpack.c.h.b16 %v1143
      %v2619 = vunpack.c.l.b16 %v1144
      %v2620 = vunpack.c.h.b16 %v1144
      %v2621 = vunpack.c.l.b16 %v1145
      %v2622 = vunpack.c.h.b16 %v1145
      %v2623 = vunpack.c.l.b16 %v1146
      %v2624 = vunpack.c.h.b16 %v1146
      %v2625 = vunpack.c.l.b16 %v1147
      %v2626 = vunpack.c.h.b16 %v1147
      %v2627 = vunpack.c.l.b16 %v1148
      %v2628 = vunpack.c.h.b16 %v1148
      %v2629 = vunpack.c.l.b16 %v1149
      %v2630 = vunpack.c.h.b16 %v1149
      %v2631 = vunpack.c.l.b16 %v1150
      %v2632 = vunpack.c.h.b16 %v1150
      %v2633 = vunpack.c.l.b16 %v1151
      %v2634 = vunpack.c.h.b16 %v1151
      %v2635 = vunpack.c.l.b16 %v1152
      %v2636 = vunpack.c.h.b16 %v1152
      %v2637 = vunpack.c.l.b16 %v1153
      %v2638 = vunpack.c.h.b16 %v1153
      %v2639 = vunpack.c.l.b16 %v1154
      %v2640 = vunpack.c.h.b16 %v1154
      %v2641 = vunpack.c.l.b16 %v1155
      %v2642 = vunpack.c.h.b16 %v1155
      %v2643 = vunpack.c.l.b16 %v1156
      %v2644 = vunpack.c.h.b16 %v1156
      %v2645 = vunpack.c.l.b16 %v1157
      %v2646 = vunpack.c.h.b16 %v1157
      %v2647 = vunpack.c.l.b16 %v1158
      %v2648 = vunpack.c.h.b16 %v1158
      %v2649 = vunpack.c.l.b16 %v1159
      %v2650 = vunpack.c.h.b16 %v1159
      %v2651 = vunpack.c.l.b16 %v1160
      %v2652 = vunpack.c.h.b16 %v1160
      %v2653 = vunpack.c.l.b16 %v1161
      %v2654 = vunpack.c.h.b16 %v1161
      %v2655 = vunpack.c.l.b16 %v1162
      %v2656 = vunpack.c.h.b16 %v1162
      %v2657 = vunpack.c.l.b16 %v1163
      %v2658 = vunpack.c.h.b16 %v1163
      %v2659 = vunpack.c.l.b16 %v1164
      %v2660 = vunpack.c.h.b16 %v1164
      %v2661 = vunpack.c.l.b16 %v1165
      %v2662 = vunpack.c.h.b16 %v1165
      %v2663 = vunpack.c.l.b16 %v1166
      %v2664 = vunpack.c.h.b16 %v1166
      %v2665 = vunpack.c.l.b16 %v1167
      %v2666 = vunpack.c.h.b16 %v1167
      %v2667 = vunpack.c.l.b16 %v1168
      %v2668 = vunpack.c.h.b16 %v1168
      %v2669 = vunpack.c.l.b16 %v1169
      %v2670 = vunpack.c.h.b16 %v1169
      %v2671 = vunpack.c.l.b16 %v1170
      %v2672 = vunpack.c.h.b16 %v1170
      %v2673 = vunpack.c.l.b16 %v1171
      %v2674 = vunpack.c.h.b16 %v1171
      %v2675 = vunpack.c.l.b16 %v1172
      %v2676 = vunpack.c.h.b16 %v1172
      %v2677 = vunpack.c.l.b16 %v1173
      %v2678 = vunpack.c.h.b16 %v1173
      %v2679 = vunpack.c.l.b16 %v1174
      %v2680 = vunpack.c.h.b16 %v1174
      %v2681 = vunpack.c.l.b16 %v1175
      %v2682 = vunpack.c.h.b16 %v1175
      %v2683 = vunpack.c.l.b16 %v1176
      %v2684 = vunpack.c.h.b16 %v1176
      %v2685 = vunpack.c.l.b16 %v1177
      %v2686 = vunpack.c.h.b16 %v1177
      %v2687 = vunpack.c.l.b16 %v1178
      %v2688 = vunpack.c.h.b16 %v1178
      %v2689 = vunpack.c.l.b16 %v1179
      %v2690 = vunpack.c.h.b16 %v1179
      %v2691 = vunpack.c.l.b16 %v1180
      %v2692 = vunpack.c.h.b16 %v1180
      %v2693 = vunpack.c.l.b16 %v1181
      %v2694 = vunpack.c.h.b16 %v1181
      %v2695 = vunpack.c.l.b16 %v1182
      %v2696 = vunpack.c.h.b16 %v1182
      %v2697 = vunpack.c.l.b16 %v1183
      %v2698 = vunpack.c.h.b16 %v1183
      %v2699 = vunpack.c.l.b16 %v1184
      %v2700 = vunpack.c.h.b16 %v1184
      %v2701 = vunpack.c.l.b16 %v1185
      %v2702 = vunpack.c.h.b16 %v1185
      %v2703 = vunpack.c.l.b16 %v1186
      %v2704 = vunpack.c.h.b16 %v1186
      %v2705 = vunpack.c.l.b16 %v1187
      %v2706 = vunpack.c.h.b16 %v1187
      %v2707 = vunpack.c.l.b16 %v1188
      %v2708 = vunpack.c.h.b16 %v1188
      %v2709 = vunpack.c.l.b16 %v1189
      %v2710 = vunpack.c.h.b16 %v1189
      %v2711 = vunpack.c.l.b16 %v1190
      %v2712 = vunpack.c.h.b16 %v1190
      %v2713 = vunpack.c.l.b16 %v1191
      %v2714 = vunpack.c.h.b16 %v1191
      %v2715 = vunpack.c.l.b16 %v1192
      %v2716 = vunpack.c.h.b16 %v1192
      %v2717 = vunpack.c.l.b16 %v1193
      %v2718 = vunpack.c.h.b16 %v1193
      %v2719 = vunpack.c.l.b16 %v1194
      %v2720 = vunpack.c.h.b16 %v1194
      %v2721 = vunpack.c.l.b16 %v1195
      %v2722 = vunpack.c.h.b16 %v1195
      %v2723 = vunpack.c.l.b16 %v1196
      %v2724 = vunpack.c.h.b16 %v1196
      %v2725 = vunpack.c.l.b16 %v1197
      %v2726 = vunpack.c.h.b16 %v1197
      %v2727 = vunpack.c.l.b16 %v1198
      %v2728 = vunpack.c.h.b16 %v1198
      %v2729 = vunpack.c.l.b16 %v1199
      %v2730 = vunpack.c.h.b16 %v1199
      %v2731 = vunpack.c.l.b16 %v1200
      %v2732 = vunpack.c.h.b16 %v1200
      %v2733 = vunpack.c.l.b16 %v1201
      %v2734 = vunpack.c.h.b16 %v1201
      %v2735 = vunpack.c.l.b16 %v1202
      %v2736 = vunpack.c.h.b16 %v1202
      %v2737 = vunpack.c.l.b16 %v1203
      %v2738 = vunpack.c.h.b16 %v1203
      %v2739 = vunpack.c.l.b16 %v1204
      %v2740 = vunpack.c.h.b16 %v1204
      %v2741 = vunpack.c.l.b16 %v1205
      %v2742 = vunpack.c.h.b16 %v1205
      %v2743 = vunpack.c.l.b16 %v1206
      %v2744 = vunpack.c.h.b16 %v1206
      %v2745 = vunpack.c.l.b16 %v1207
      %v2746 = vunpack.c.h.b16 %v1207
      %v2747 = vunpack.c.l.b16 %v1208
      %v2748 = vunpack.c.h.b16 %v1208
      %v2749 = vunpack.c.l.b16 %v1209
      %v2750 = vunpack.c.h.b16 %v1209
      %v2751 = vunpack.c.l.b16 %v1210
      %v2752 = vunpack.c.h.b16 %v1210
      %v2753 = vunpack.c.l.b16 %v1211
      %v2754 = vunpack.c.h.b16 %v1211
      %v2755 = vunpack.c.l.b16 %v1212
      %v2756 = vunpack.c.h.b16 %v1212
      %v2757 = vunpack.c.l.b16 %v1213
      %v2758 = vunpack.c.h.b16 %v1213
      %v2759 = vunpack.c.l.b16 %v1214
      %v2760 = vunpack.c.h.b16 %v1214
      %v2761 = vunpack.c.l.b16 %v1215
      %v2762 = vunpack.c.h.b16 %v1215
      %v2763 = vunpack.c.l.b16 %v1216
      %v2764 = vunpack.c.h.b16 %v1216
      %v2765 = vunpack.c.l.b16 %v1217
      %v2766 = vunpack.c.h.b16 %v1217
      %v2767 = vunpack.c.l.b16 %v1218
      %v2768 = vunpack.c.h.b16 %v1218
      %v2769 = vunpack.c.l.b16 %v1219
      %v2770 = vunpack.c.h.b16 %v1219
      %v2771 = vunpack.c.l.b16 %v1220
      %v2772 = vunpack.c.h.b16 %v1220
      %v2773 = vunpack.c.l.b16 %v1221
      %v2774 = vunpack.c.h.b16 %v1221
      %v2775 = vunpack.c.l.b16 %v1222
      %v2776 = vunpack.c.h.b16 %v1222
      %v2777 = vunpack.c.l.b16 %v1223
      %v2778 = vunpack.c.h.b16 %v1223
      %v2779 = vunpack.c.l.b16 %v1224
      %v2780 = vunpack.c.h.b16 %v1224
      %v2781 = vunpack.c.l.b16 %v1225
      %v2782 = vunpack.c.h.b16 %v1225
      %v2783 = vunpack.c.l.b16 %v1226
      %v2784 = vunpack.c.h.b16 %v1226
      %v2785 = vunpack.c.l.b16 %v1227
      %v2786 = vunpack.c.h.b16 %v1227
      %v2787 = vunpack.c.l.b16 %v1228
      %v2788 = vunpack.c.h.b16 %v1228
      %v2789 = vunpack.c.l.b16 %v1229
      %v2790 = vunpack.c.h.b16 %v1229
      %v2791 = vunpack.c.l.b16 %v1230
      %v2792 = vunpack.c.h.b16 %v1230
      %v2793 = vunpack.c.l.b16 %v1231
      %v2794 = vunpack.c.h.b16 %v1231
      %v2795 = vunpack.c.l.b16 %v1232
      %v2796 = vunpack.c.h.b16 %v1232
      %v2797 = vunpack.c.l.b16 %v1233
      %v2798 = vunpack.c.h.b16 %v1233
      %v2799 = vunpack.c.l.b16 %v1234
      %v2800 = vunpack.c.h.b16 %v1234
      %v2801 = vunpack.c.l.b16 %v1235
      %v2802 = vunpack.c.h.b16 %v1235
      %v2803 = vunpack.c.l.b16 %v1236
      %v2804 = vunpack.c.h.b16 %v1236
      %v2805 = vunpack.c.l.b16 %v1237
      %v2806 = vunpack.c.h.b16 %v1237
      %v2807 = vunpack.c.l.b16 %v1238
      %v2808 = vunpack.c.h.b16 %v1238
      %v2809 = vunpack.c.l.b16 %v1239
      %v2810 = vunpack.c.h.b16 %v1239
      %v2811 = vunpack.c.l.b16 %v1240
      %v2812 = vunpack.c.h.b16 %v1240
      %v2813 = vunpack.c.l.b16 %v1241
      %v2814 = vunpack.c.h.b16 %v1241
      %v2815 = vunpack.c.l.b16 %v1242
      %v2816 = vunpack.c.h.b16 %v1242
      %v2817 = vunpack.c.l.b16 %v1243
      %v2818 = vunpack.c.h.b16 %v1243
      %v2819 = vunpack.c.l.b16 %v1244
      %v2820 = vunpack.c.h.b16 %v1244
      %v2821 = vunpack.c.l.b16 %v1245
      %v2822 = vunpack.c.h.b16 %v1245
      %v2823 = vunpack.c.l.b16 %v1246
      %v2824 = vunpack.c.h.b16 %v1246
      %v2825 = vunpack.c.l.b16 %v1247
      %v2826 = vunpack.c.h.b16 %v1247
      %v2827 = vunpack.c.l.b16 %v1248
      %v2828 = vunpack.c.h.b16 %v1248
      %v2829 = vunpack.c.l.b16 %v1249
      %v2830 = vunpack.c.h.b16 %v1249
      %v2831 = vunpack.c.l.b16 %v1250
      %v2832 = vunpack.c.h.b16 %v1250
      %v2833 = vunpack.c.l.b16 %v1251
      %v2834 = vunpack.c.h.b16 %v1251
      %v2835 = vunpack.c.l.b16 %v1252
      %v2836 = vunpack.c.h.b16 %v1252
      %v2837 = vunpack.c.l.b16 %v1253
      %v2838 = vunpack.c.h.b16 %v1253
      %v2839 = vunpack.c.l.b16 %v1254
      %v2840 = vunpack.c.h.b16 %v1254
      %v2841 = vunpack.c.l.b16 %v1255
      %v2842 = vunpack.c.h.b16 %v1255
      %v2843 = vunpack.c.l.b16 %v1256
      %v2844 = vunpack.c.h.b16 %v1256
      %v2845 = vunpack.c.l.b16 %v1257
      %v2846 = vunpack.c.h.b16 %v1257
      %v2847 = vunpack.c.l.b16 %v1258
      %v2848 = vunpack.c.h.b16 %v1258
      %v2849 = vunpack.c.l.b16 %v1259
      %v2850 = vunpack.c.h.b16 %v1259
      %v2851 = vunpack.c.l.b16 %v1260
      %v2852 = vunpack.c.h.b16 %v1260
      %v2853 = vunpack.c.l.b16 %v1261
      %v2854 = vunpack.c.h.b16 %v1261
      %v2855 = vunpack.c.l.b16 %v1262
      %v2856 = vunpack.c.h.b16 %v1262
      %v2857 = vunpack.c.l.b16 %v1263
      %v2858 = vunpack.c.h.b16 %v1263
      %v2859 = vunpack.c.l.b16 %v1264
      %v2860 = vunpack.c.h.b16 %v1264
      %v2861 = vunpack.c.l.b16 %v1265
      %v2862 = vunpack.c.h.b16 %v1265
      %v2863 = vunpack.c.l.b16 %v1266
      %v2864 = vunpack.c.h.b16 %v1266
      %v2865 = vunpack.c.l.b16 %v1267
      %v2866 = vunpack.c.h.b16 %v1267
      %v2867 = vunpack.c.l.b16 %v1268
      %v2868 = vunpack.c.h.b16 %v1268
      %v2869 = vunpack.c.l.b16 %v1269
      %v2870 = vunpack.c.h.b16 %v1269
      %v2871 = vunpack.c.l.b16 %v1270
      %v2872 = vunpack.c.h.b16 %v1270
      %v2873 = vunpack.c.l.b16 %v1271
      %v2874 = vunpack.c.h.b16 %v1271
      %v2875 = vunpack.c.l.b16 %v1272
      %v2876 = vunpack.c.h.b16 %v1272
      %v2877 = vunpack.c.l.b16 %v1273
      %v2878 = vunpack.c.h.b16 %v1273
      %v2879 = vunpack.c.l.b16 %v1274
      %v2880 = vunpack.c.h.b16 %v1274
      %v2881 = vunpack.c.l.b16 %v1275
      %v2882 = vunpack.c.h.b16 %v1275
      %v2883 = vunpack.c.l.b16 %v1276
      %v2884 = vunpack.c.h.b16 %v1276
      %v2885 = vunpack.c.l.b16 %v1277
      %v2886 = vunpack.c.h.b16 %v1277
      %v2887 = vunpack.c.l.b16 %v1278
      %v2888 = vunpack.c.h.b16 %v1278
      %v2889 = vunpack.c.l.b16 %v1279
      %v2890 = vunpack.c.h.b16 %v1279
      %v2891 = vunpack.c.l.b16 %v1280
      %v2892 = vunpack.c.h.b16 %v1280
      %v2893 = vunpack.c.l.b16 %v1281
      %v2894 = vunpack.c.h.b16 %v1281
      %v2895 = vunpack.c.l.b16 %v1282
      %v2896 = vunpack.c.h.b16 %v1282
      %v2897 = vunpack.c.l.b16 %v1283
      %v2898 = vunpack.c.h.b16 %v1283
      %v2899 = vunpack.c.l.b16 %v1284
      %v2900 = vunpack.c.h.b16 %v1284
      %v2901 = vunpack.c.l.b16 %v1285
      %v2902 = vunpack.c.h.b16 %v1285
      %v2903 = vunpack.c.l.b16 %v1286
      %v2904 = vunpack.c.h.b16 %v1286
      %v2905 = vunpack.c.l.b16 %v1287
      %v2906 = vunpack.c.h.b16 %v1287
      %v2907 = vunpack.c.l.b16 %v1288
      %v2908 = vunpack.c.h.b16 %v1288
      %v2909 = vunpack.c.l.b16 %v1289
      %v2910 = vunpack.c.h.b16 %v1289
      %v2911 = vunpack.c.l.b16 %v1290
      %v2912 = vunpack.c.h.b16 %v1290
      %v2913 = vunpack.c.l.b16 %v1291
      %v2914 = vunpack.c.h.b16 %v1291
      %v2915 = vunpack.c.l.b16 %v1292
      %v2916 = vunpack.c.h.b16 %v1292
      %v2917 = vunpack.c.l.b16 %v1293
      %v2918 = vunpack.c.h.b16 %v1293
      %v2919 = vunpack.c.l.b16 %v1294
      %v2920 = vunpack.c.h.b16 %v1294
      %v2921 = vunpack.c.l.b16 %v1295
      %v2922 = vunpack.c.h.b16 %v1295
      %v2923 = vunpack.c.l.b16 %v1296
      %v2924 = vunpack.c.h.b16 %v1296
      %v2925 = vunpack.c.l.b16 %v1297
      %v2926 = vunpack.c.h.b16 %v1297
      %v2927 = vunpack.c.l.b16 %v1298
      %v2928 = vunpack.c.h.b16 %v1298
      %v2929 = vunpack.c.l.b16 %v1299
      %v2930 = vunpack.c.h.b16 %v1299
      %v2931 = vunpack.c.l.b16 %v1300
      %v2932 = vunpack.c.h.b16 %v1300
      %v2933 = vunpack.c.l.b16 %v1301
      %v2934 = vunpack.c.h.b16 %v1301
      %v2935 = vunpack.c.l.b16 %v1302
      %v2936 = vunpack.c.h.b16 %v1302
      %v2937 = vunpack.c.l.b16 %v1303
      %v2938 = vunpack.c.h.b16 %v1303
      %v2939 = vunpack.c.l.b16 %v1304
      %v2940 = vunpack.c.h.b16 %v1304
      %v2941 = vunpack.c.l.b16 %v1305
      %v2942 = vunpack.c.h.b16 %v1305
      %v2943 = vunpack.c.l.b16 %v1306
      %v2944 = vunpack.c.h.b16 %v1306
      %v2945 = vunpack.c.l.b16 %v1307
      %v2946 = vunpack.c.h.b16 %v1307
      %v2947 = vunpack.c.l.b16 %v1308
      %v2948 = vunpack.c.h.b16 %v1308
      %v2949 = vunpack.c.l.b16 %v1309
      %v2950 = vunpack.c.h.b16 %v1309
      %v2951 = vunpack.c.l.b16 %v1310
      %v2952 = vunpack.c.h.b16 %v1310
      %v2953 = vunpack.c.l.b16 %v1311
      %v2954 = vunpack.c.h.b16 %v1311
      %v2955 = vunpack.c.l.b16 %v1312
      %v2956 = vunpack.c.h.b16 %v1312
      %v2957 = vunpack.c.l.b16 %v1313
      %v2958 = vunpack.c.h.b16 %v1313
      %v2959 = vunpack.c.l.b16 %v1314
      %v2960 = vunpack.c.h.b16 %v1314
      %v2961 = vunpack.c.l.b16 %v1315
      %v2962 = vunpack.c.h.b16 %v1315
      %v2963 = vunpack.c.l.b16 %v1316
      %v2964 = vunpack.c.h.b16 %v1316
      %v2965 = vunpack.c.l.b16 %v1317
      %v2966 = vunpack.c.h.b16 %v1317
      %v2967 = vunpack.c.l.b16 %v1318
      %v2968 = vunpack.c.h.b16 %v1318
      %v2969 = vunpack.c.l.b16 %v1319
      %v2970 = vunpack.c.h.b16 %v1319
      %v2971 = vunpack.c.l.b16 %v1320
      %v2972 = vunpack.c.h.b16 %v1320
      %v2973 = vunpack.c.l.b16 %v1321
      %v2974 = vunpack.c.h.b16 %v1321
      %v2975 = vunpack.c.l.b16 %v1322
      %v2976 = vunpack.c.h.b16 %v1322
      %v2977 = vunpack.c.l.b16 %v1323
      %v2978 = vunpack.c.h.b16 %v1323
      %v2979 = vunpack.c.l.b16 %v1324
      %v2980 = vunpack.c.h.b16 %v1324
      %v2981 = vunpack.c.l.b16 %v1325
      %v2982 = vunpack.c.h.b16 %v1325
      %v2983 = vunpack.c.l.b16 %v1326
      %v2984 = vunpack.c.h.b16 %v1326
      %v2985 = vunpack.c.l.b16 %v1327
      %v2986 = vunpack.c.h.b16 %v1327
      %v2987 = vunpack.c.l.b16 %v1328
      %v2988 = vunpack.c.h.b16 %v1328
      %v2989 = vunpack.c.l.b16 %v1329
      %v2990 = vunpack.c.h.b16 %v1329
      %v2991 = vunpack.c.l.b16 %v1330
      %v2992 = vunpack.c.h.b16 %v1330
      %v2993 = vunpack.c.l.b16 %v1331
      %v2994 = vunpack.c.h.b16 %v1331
      %v2995 = vunpack.c.l.b16 %v1332
      %v2996 = vunpack.c.h.b16 %v1332
      %v2997 = vunpack.c.l.b16 %v1333
      %v2998 = vunpack.c.h.b16 %v1333
      %v2999 = vunpack.c.l.b16 %v1334
      %v3000 = vunpack.c.h.b16 %v1334
      %v3001 = vunpack.c.l.b16 %v1335
      %v3002 = vunpack.c.h.b16 %v1335
      %v3003 = vunpack.c.l.b16 %v1336
      %v3004 = vunpack.c.h.b16 %v1336
      %v3005 = vunpack.c.l.b16 %v1337
      %v3006 = vunpack.c.h.b16 %v1337
      %v3007 = vunpack.c.l.b16 %v1338
      %v3008 = vunpack.c.h.b16 %v1338
      %v3009 = vunpack.c.l.b16 %v1339
      %v3010 = vunpack.c.h.b16 %v1339
      %v3011 = vunpack.c.l.b16 %v1340
      %v3012 = vunpack.c.h.b16 %v1340
      %v3013 = vunpack.c.l.b16 %v1341
      %v3014 = vunpack.c.h.b16 %v1341
      %v3015 = vunpack.c.l.b16 %v1342
      %v3016 = vunpack.c.h.b16 %v1342
      %v3017 = vunpack.c.l.b16 %v1343
      %v3018 = vunpack.c.h.b16 %v1343
      %v3019 = vunpack.c.l.b16 %v1344
      %v3020 = vunpack.c.h.b16 %v1344
      %v3021 = vunpack.c.l.b16 %v1345
      %v3022 = vunpack.c.h.b16 %v1345
      %v3023 = vunpack.c.l.b16 %v1346
      %v3024 = vunpack.c.h.b16 %v1346
      %v3025 = vunpack.c.l.b16 %v1347
      %v3026 = vunpack.c.h.b16 %v1347
      %v3027 = vunpack.c.l.b16 %v1348
      %v3028 = vunpack.c.h.b16 %v1348
      %v3029 = vunpack.c.l.b16 %v1349
      %v3030 = vunpack.c.h.b16 %v1349
      %v3031 = vunpack.c.l.b16 %v1350
      %v3032 = vunpack.c.h.b16 %v1350
      %v3033 = vunpack.c.l.b16 %v1351
      %v3034 = vunpack.c.h.b16 %v1351
      %v3035 = vunpack.c.l.b16 %v1352
      %v3036 = vunpack.c.h.b16 %v1352
      %v3037 = vunpack.c.l.b16 %v1353
      %v3038 = vunpack.c.h.b16 %v1353
      %v3039 = vunpack.c.l.b16 %v1354
      %v3040 = vunpack.c.h.b16 %v1354
      %v3041 = vunpack.c.l.b16 %v1355
      %v3042 = vunpack.c.h.b16 %v1355
      %v3043 = vunpack.c.l.b16 %v1356
      %v3044 = vunpack.c.h.b16 %v1356
      %v3045 = vunpack.c.l.b16 %v1357
      %v3046 = vunpack.c.h.b16 %v1357
      %v3047 = vunpack.c.l.b16 %v1358
      %v3048 = vunpack.c.h.b16 %v1358
      %v3049 = vunpack.c.l.b16 %v1359
      %v3050 = vunpack.c.h.b16 %v1359
      %v3051 = vunpack.c.l.b16 %v1360
      %v3052 = vunpack.c.h.b16 %v1360
      %v3053 = vunpack.c.l.b16 %v1361
      %v3054 = vunpack.c.h.b16 %v1361
      %v3055 = vunpack.c.l.b16 %v1362
      %v3056 = vunpack.c.h.b16 %v1362
      %v3057 = vunpack.c.l.b16 %v1363
      %v3058 = vunpack.c.h.b16 %v1363
      %v3059 = vunpack.c.l.b16 %v1364
      %v3060 = vunpack.c.h.b16 %v1364
      %v3061 = vunpack.c.l.b16 %v1365
      %v3062 = vunpack.c.h.b16 %v1365
      %v3063 = vunpack.c.l.b16 %v1366
      %v3064 = vunpack.c.h.b16 %v1366
      %v3065 = vunpack.c.l.b16 %v1367
      %v3066 = vunpack.c.h.b16 %v1367
      %v3067 = vunpack.c.l.b16 %v1368
      %v3068 = vunpack.c.h.b16 %v1368
      %v3069 = vunpack.c.l.b16 %v1369
      %v3070 = vunpack.c.h.b16 %v1369
      %v3071 = vunpack.c.l.b16 %v1370
      %v3072 = vunpack.c.h.b16 %v1370
      %v3073 = vunpack.c.l.b16 %v1371
      %v3074 = vunpack.c.h.b16 %v1371
      %v3075 = vunpack.c.l.b16 %v1372
      %v3076 = vunpack.c.h.b16 %v1372
      %v3077 = vunpack.c.l.b16 %v1373
      %v3078 = vunpack.c.h.b16 %v1373
      %v3079 = vunpack.c.l.b16 %v1374
      %v3080 = vunpack.c.h.b16 %v1374
      %v3081 = vunpack.c.l.b16 %v1375
      %v3082 = vunpack.c.h.b16 %v1375
      %v3083 = vunpack.c.l.b16 %v1376
      %v3084 = vunpack.c.h.b16 %v1376
      %v3085 = vunpack.c.l.b16 %v1377
      %v3086 = vunpack.c.h.b16 %v1377
      %v3087 = vunpack.c.l.b16 %v1378
      %v3088 = vunpack.c.h.b16 %v1378
      %v3089 = vunpack.c.l.b16 %v1379
      %v3090 = vunpack.c.h.b16 %v1379
      %v3091 = vunpack.c.l.b16 %v1380
      %v3092 = vunpack.c.h.b16 %v1380
      %v3093 = vunpack.c.l.b16 %v1381
      %v3094 = vunpack.c.h.b16 %v1381
      %v3095 = vunpack.c.l.b16 %v1382
      %v3096 = vunpack.c.h.b16 %v1382
      %v3097 = vunpack.c.l.b16 %v1383
      %v3098 = vunpack.c.h.b16 %v1383
      %v3099 = vunpack.c.l.b16 %v1384
      %v3100 = vunpack.c.h.b16 %v1384
      %v3101 = vunpack.c.l.b16 %v1385
      %v3102 = vunpack.c.h.b16 %v1385
      %v3103 = vunpack.c.l.b16 %v1386
      %v3104 = vunpack.c.h.b16 %v1386
      %v3105 = vunpack.c.l.b16 %v1387
      %v3106 = vunpack.c.h.b16 %v1387
      %v3107 = vunpack.c.l.b16 %v1388
      %v3108 = vunpack.c.h.b16 %v1388
      %v3109 = vunpack.c.l.b16 %v1389
      %v3110 = vunpack.c.h.b16 %v1389
      %v3111 = vunpack.c.l.b16 %v1390
      %v3112 = vunpack.c.h.b16 %v1390
      %v3113 = vunpack.c.l.b16 %v1391
      %v3114 = vunpack.c.h.b16 %v1391
      %v3115 = vunpack.c.l.b16 %v1392
      %v3116 = vunpack.c.h.b16 %v1392
      %v3117 = vunpack.c.l.b16 %v1393
      %v3118 = vunpack.c.h.b16 %v1393
      %v3119 = vunpack.c.l.b16 %v1394
      %v3120 = vunpack.c.h.b16 %v1394
      %v3121 = vunpack.c.l.b16 %v1395
      %v3122 = vunpack.c.h.b16 %v1395
      %v3123 = vunpack.c.l.b16 %v1396
      %v3124 = vunpack.c.h.b16 %v1396
      %v3125 = vunpack.c.l.b16 %v1397
      %v3126 = vunpack.c.h.b16 %v1397
      %v3127 = vunpack.c.l.b16 %v1398
      %v3128 = vunpack.c.h.b16 %v1398
      %v3129 = vunpack.c.l.b16 %v1399
      %v3130 = vunpack.c.h.b16 %v1399
      %v3131 = vunpack.c.l.b16 %v1400
      %v3132 = vunpack.c.h.b16 %v1400
      %v3133 = vunpack.c.l.b16 %v1401
      %v3134 = vunpack.c.h.b16 %v1401
      %v3135 = vunpack.c.l.b16 %v1402
      %v3136 = vunpack.c.h.b16 %v1402
      %v3137 = vunpack.c.l.b16 %v1403
      %v3138 = vunpack.c.h.b16 %v1403
      %v3139 = vunpack.c.l.b16 %v1404
      %v3140 = vunpack.c.h.b16 %v1404
      %v3141 = vunpack.c.l.b16 %v1405
      %v3142 = vunpack.c.h.b16 %v1405
      %v3143 = vunpack.c.l.b16 %v1406
      %v3144 = vunpack.c.h.b16 %v1406
      %v3145 = vunpack.c.l.b16 %v1407
      %v3146 = vunpack.c.h.b16 %v1407
      %v3147 = vunpack.c.l.b16 %v1408
      %v3148 = vunpack.c.h.b16 %v1408
      %v3149 = vunpack.c.l.b16 %v1409
      %v3150 = vunpack.c.h.b16 %v1409
      %v3151 = vunpack.c.l.b16 %v1410
      %v3152 = vunpack.c.h.b16 %v1410
      %v3153 = vunpack.c.l.b16 %v1411
      %v3154 = vunpack.c.h.b16 %v1411
      %v3155 = vunpack.c.l.b16 %v1412
      %v3156 = vunpack.c.h.b16 %v1412
      %v3157 = vunpack.c.l.b16 %v1413
      %v3158 = vunpack.c.h.b16 %v1413
      %v3159 = vunpack.c.l.b16 %v1414
      %v3160 = vunpack.c.h.b16 %v1414
      %v3161 = vunpack.c.l.b16 %v1415
      %v3162 = vunpack.c.h.b16 %v1415
      %v3163 = vunpack.c.l.b16 %v1416
      %v3164 = vunpack.c.h.b16 %v1416
      %v3165 = vunpack.c.l.b16 %v1417
      %v3166 = vunpack.c.h.b16 %v1417
      %v3167 = vunpack.c.l.b16 %v1418
      %v3168 = vunpack.c.h.b16 %v1418
      %v3169 = vpack.c.b16 %v2021, %v2017
      %v3170 = vpack.c.b16 %v2022, %v2018
      %v3171 = vpack.c.b16 %v2023, %v2019
      %v3172 = vpack.c.b16 %v2024, %v2020
      %v3173 = vpack.c.b16 %v2029, %v2025
      %v3174 = vpack.c.b16 %v2030, %v2026
      %v3175 = vpack.c.b16 %v2031, %v2027
      %v3176 = vpack.c.b16 %v2032, %v2028
      %v3177 = vpack.c.b16 %v2037, %v2033
      %v3178 = vpack.c.b16 %v2038, %v2034
      %v3179 = vpack.c.b16 %v2039, %v2035
      %v3180 = vpack.c.b16 %v2040, %v2036
      %v3181 = vpack.c.b16 %v2045, %v2041
      %v3182 = vpack.c.b16 %v2046, %v2042
      %v3183 = vpack.c.b16 %v2047, %v2043
      %v3184 = vpack.c.b16 %v2048, %v2044
      %v3185 = vpack.c.b16 %v2053, %v2049
      %v3186 = vpack.c.b16 %v2054, %v2050
      %v3187 = vpack.c.b16 %v2055, %v2051
      %v3188 = vpack.c.b16 %v2056, %v2052
      %v3189 = vpack.c.b16 %v2061, %v2057
      %v3190 = vpack.c.b16 %v2062, %v2058
      %v3191 = vpack.c.b16 %v2063, %v2059
      %v3192 = vpack.c.b16 %v2064, %v2060
      %v3193 = vpack.c.b16 %v2069, %v2065
      %v3194 = vpack.c.b16 %v2070, %v2066
      %v3195 = vpack.c.b16 %v2071, %v2067
      %v3196 = vpack.c.b16 %v2072, %v2068
      %v3197 = vpack.c.b16 %v2077, %v2073
      %v3198 = vpack.c.b16 %v2078, %v2074
      %v3199 = vpack.c.b16 %v2079, %v2075
      %v3200 = vpack.c.b16 %v2080, %v2076
      %v3201 = vpack.c.b16 %v2085, %v2081
      %v3202 = vpack.c.b16 %v2086, %v2082
      %v3203 = vpack.c.b16 %v2087, %v2083
      %v3204 = vpack.c.b16 %v2088, %v2084
      %v3205 = vpack.c.b16 %v2093, %v2089
      %v3206 = vpack.c.b16 %v2094, %v2090
      %v3207 = vpack.c.b16 %v2095, %v2091
      %v3208 = vpack.c.b16 %v2096, %v2092
      %v3209 = vpack.c.b16 %v2101, %v2097
      %v3210 = vpack.c.b16 %v2102, %v2098
      %v3211 = vpack.c.b16 %v2103, %v2099
      %v3212 = vpack.c.b16 %v2104, %v2100
      %v3213 = vpack.c.b16 %v2109, %v2105
      %v3214 = vpack.c.b16 %v2110, %v2106
      %v3215 = vpack.c.b16 %v2111, %v2107
      %v3216 = vpack.c.b16 %v2112, %v2108
      %v3217 = vpack.c.b16 %v2117, %v2113
      %v3218 = vpack.c.b16 %v2118, %v2114
      %v3219 = vpack.c.b16 %v2119, %v2115
      %v3220 = vpack.c.b16 %v2120, %v2116
      %v3221 = vpack.c.b16 %v2125, %v2121
      %v3222 = vpack.c.b16 %v2126, %v2122
      %v3223 = vpack.c.b16 %v2127, %v2123
      %v3224 = vpack.c.b16 %v2128, %v2124
      %v3225 = vpack.c.b16 %v2133, %v2129
      %v3226 = vpack.c.b16 %v2134, %v2130
      %v3227 = vpack.c.b16 %v2135, %v2131
      %v3228 = vpack.c.b16 %v2136, %v2132
      %v3229 = vpack.c.b16 %v2141, %v2137
      %v3230 = vpack.c.b16 %v2142, %v2138
      %v3231 = vpack.c.b16 %v2143, %v2139
      %v3232 = vpack.c.b16 %v2144, %v2140
      %v3233 = vpack.c.b16 %v2149, %v2145
      %v3234 = vpack.c.b16 %v2150, %v2146
      %v3235 = vpack.c.b16 %v2151, %v2147
      %v3236 = vpack.c.b16 %v2152, %v2148
      %v3237 = vpack.c.b16 %v2157, %v2153
      %v3238 = vpack.c.b16 %v2158, %v2154
      %v3239 = vpack.c.b16 %v2159, %v2155
      %v3240 = vpack.c.b16 %v2160, %v2156
      %v3241 = vpack.c.b16 %v2165, %v2161
      %v3242 = vpack.c.b16 %v2166, %v2162
      %v3243 = vpack.c.b16 %v2167, %v2163
      %v3244 = vpack.c.b16 %v2168, %v2164
      %v3245 = vpack.c.b16 %v2173, %v2169
      %v3246 = vpack.c.b16 %v2174, %v2170
      %v3247 = vpack.c.b16 %v2175, %v2171
      %v3248 = vpack.c.b16 %v2176, %v2172
      %v3249 = vpack.c.b16 %v2181, %v2177
      %v3250 = vpack.c.b16 %v2182, %v2178
      %v3251 = vpack.c.b16 %v2183, %v2179
      %v3252 = vpack.c.b16 %v2184, %v2180
      %v3253 = vpack.c.b16 %v2189, %v2185
      %v3254 = vpack.c.b16 %v2190, %v2186
      %v3255 = vpack.c.b16 %v2191, %v2187
      %v3256 = vpack.c.b16 %v2192, %v2188
      %v3257 = vpack.c.b16 %v2197, %v2193
      %v3258 = vpack.c.b16 %v2198, %v2194
      %v3259 = vpack.c.b16 %v2199, %v2195
      %v3260 = vpack.c.b16 %v2200, %v2196
      %v3261 = vpack.c.b16 %v2205, %v2201
      %v3262 = vpack.c.b16 %v2206, %v2202
      %v3263 = vpack.c.b16 %v2207, %v2203
      %v3264 = vpack.c.b16 %v2208, %v2204
      %v3265 = vpack.c.b16 %v2213, %v2209
      %v3266 = vpack.c.b16 %v2214, %v2210
      %v3267 = vpack.c.b16 %v2215, %v2211
      %v3268 = vpack.c.b16 %v2216, %v2212
      %v3269 = vpack.c.b16 %v2221, %v2217
      %v3270 = vpack.c.b16 %v2222, %v2218
      %v3271 = vpack.c.b16 %v2223, %v2219
      %v3272 = vpack.c.b16 %v2224, %v2220
      %v3273 = vpack.c.b16 %v2229, %v2225
      %v3274 = vpack.c.b16 %v2230, %v2226
      %v3275 = vpack.c.b16 %v2231, %v2227
      %v3276 = vpack.c.b16 %v2232, %v2228
      %v3277 = vpack.c.b16 %v2237, %v2233
      %v3278 = vpack.c.b16 %v2238, %v2234
      %v3279 = vpack.c.b16 %v2239, %v2235
      %v3280 = vpack.c.b16 %v2240, %v2236
      %v3281 = vpack.c.b16 %v2245, %v2241
      %v3282 = vpack.c.b16 %v2246, %v2242
      %v3283 = vpack.c.b16 %v2247, %v2243
      %v3284 = vpack.c.b16 %v2248, %v2244
      %v3285 = vpack.c.b16 %v2253, %v2249
      %v3286 = vpack.c.b16 %v2254, %v2250
      %v3287 = vpack.c.b16 %v2255, %v2251
      %v3288 = vpack.c.b16 %v2256, %v2252
      %v3289 = vpack.c.b16 %v2261, %v2257
      %v3290 = vpack.c.b16 %v2262, %v2258
      %v3291 = vpack.c.b16 %v2263, %v2259
      %v3292 = vpack.c.b16 %v2264, %v2260
      %v3293 = vpack.c.b16 %v2269, %v2265
      %v3294 = vpack.c.b16 %v2270, %v2266
      %v3295 = vpack.c.b16 %v2271, %v2267
      %v3296 = vpack.c.b16 %v2272, %v2268
      %v3297 = vpack.c.b16 %v2277, %v2273
      %v3298 = vpack.c.b16 %v2278, %v2274
      %v3299 = vpack.c.b16 %v2279, %v2275
      %v3300 = vpack.c.b16 %v2280, %v2276
      %v3301 = vpack.c.b16 %v2285, %v2281
      %v3302 = vpack.c.b16 %v2286, %v2282
      %v3303 = vpack.c.b16 %v2287, %v2283
      %v3304 = vpack.c.b16 %v2288, %v2284
      %v3305 = vpack.c.b16 %v2293, %v2289
      %v3306 = vpack.c.b16 %v2294, %v2290
      %v3307 = vpack.c.b16 %v2295, %v2291
      %v3308 = vpack.c.b16 %v2296, %v2292
      %v3309 = vpack.c.b16 %v2301, %v2297
      %v3310 = vpack.c.b16 %v2302, %v2298
      %v3311 = vpack.c.b16 %v2303, %v2299
      %v3312 = vpack.c.b16 %v2304, %v2300
      %v3313 = vpack.c.b16 %v2309, %v2305
      %v3314 = vpack.c.b16 %v2310, %v2306
      %v3315 = vpack.c.b16 %v2311, %v2307
      %v3316 = vpack.c.b16 %v2312, %v2308
      %v3317 = vpack.c.b16 %v2317, %v2313
      %v3318 = vpack.c.b16 %v2318, %v2314
      %v3319 = vpack.c.b16 %v2319, %v2315
      %v3320 = vpack.c.b16 %v2320, %v2316
      %v3321 = vpack.c.b16 %v2325, %v2321
      %v3322 = vpack.c.b16 %v2326, %v2322
      %v3323 = vpack.c.b16 %v2327, %v2323
      %v3324 = vpack.c.b16 %v2328, %v2324
      %v3325 = vpack.c.b16 %v2333, %v2329
      %v3326 = vpack.c.b16 %v2334, %v2330
      %v3327 = vpack.c.b16 %v2335, %v2331
      %v3328 = vpack.c.b16 %v2336, %v2332
      %v3329 = vpack.c.b16 %v2341, %v2337
      %v3330 = vpack.c.b16 %v2342, %v2338
      %v3331 = vpack.c.b16 %v2343, %v2339
      %v3332 = vpack.c.b16 %v2344, %v2340
      %v3333 = vpack.c.b16 %v2349, %v2345
      %v3334 = vpack.c.b16 %v2350, %v2346
      %v3335 = vpack.c.b16 %v2351, %v2347
      %v3336 = vpack.c.b16 %v2352, %v2348
      %v3337 = vpack.c.b16 %v2357, %v2353
      %v3338 = vpack.c.b16 %v2358, %v2354
      %v3339 = vpack.c.b16 %v2359, %v2355
      %v3340 = vpack.c.b16 %v2360, %v2356
      %v3341 = vpack.c.b16 %v2365, %v2361
      %v3342 = vpack.c.b16 %v2366, %v2362
      %v3343 = vpack.c.b16 %v2367, %v2363
      %v3344 = vpack.c.b16 %v2368, %v2364
      %v3345 = vpack.c.b16 %v2373, %v2369
      %v3346 = vpack.c.b16 %v2374, %v2370
      %v3347 = vpack.c.b16 %v2375, %v2371
      %v3348 = vpack.c.b16 %v2376, %v2372
      %v3349 = vpack.c.b16 %v2381, %v2377
      %v3350 = vpack.c.b16 %v2382, %v2378
      %v3351 = vpack.c.b16 %v2383, %v2379
      %v3352 = vpack.c.b16 %v2384, %v2380
      %v3353 = vpack.c.b16 %v2389, %v2385
      %v3354 = vpack.c.b16 %v2390, %v2386
      %v3355 = vpack.c.b16 %v2391, %v2387
      %v3356 = vpack.c.b16 %v2392, %v2388
      %v3357 = vpack.c.b16 %v2397, %v2393
      %v3358 = vpack.c.b16 %v2398, %v2394
      %v3359 = vpack.c.b16 %v2399, %v2395
      %v3360 = vpack.c.b16 %v2400, %v2396
      %v3361 = vpack.c.b16 %v2405, %v2401
      %v3362 = vpack.c.b16 %v2406, %v2402
      %v3363 = vpack.c.b16 %v2407, %v2403
      %v3364 = vpack.c.b16 %v2408, %v2404
      %v3365 = vpack.c.b16 %v2413, %v2409
      %v3366 = vpack.c.b16 %v2414, %v2410
      %v3367 = vpack.c.b16 %v2415, %v2411
      %v3368 = vpack.c.b16 %v2416, %v2412
      %v3369 = vpack.c.b16 %v2421, %v2417
      %v3370 = vpack.c.b16 %v2422, %v2418
      %v3371 = vpack.c.b16 %v2423, %v2419
      %v3372 = vpack.c.b16 %v2424, %v2420
      %v3373 = vpack.c.b16 %v2429, %v2425
      %v3374 = vpack.c.b16 %v2430, %v2426
      %v3375 = vpack.c.b16 %v2431, %v2427
      %v3376 = vpack.c.b16 %v2432, %v2428
      %v3377 = vpack.c.b16 %v2437, %v2433
      %v3378 = vpack.c.b16 %v2438, %v2434
      %v3379 = vpack.c.b16 %v2439, %v2435
      %v3380 = vpack.c.b16 %v2440, %v2436
      %v3381 = vpack.c.b16 %v2445, %v2441
      %v3382 = vpack.c.b16 %v2446, %v2442
      %v3383 = vpack.c.b16 %v2447, %v2443
      %v3384 = vpack.c.b16 %v2448, %v2444
      %v3385 = vpack.c.b16 %v2453, %v2449
      %v3386 = vpack.c.b16 %v2454, %v2450
      %v3387 = vpack.c.b16 %v2455, %v2451
      %v3388 = vpack.c.b16 %v2456, %v2452
      %v3389 = vpack.c.b16 %v2461, %v2457
      %v3390 = vpack.c.b16 %v2462, %v2458
      %v3391 = vpack.c.b16 %v2463, %v2459
      %v3392 = vpack.c.b16 %v2464, %v2460
      %v3393 = vpack.c.b16 %v2469, %v2465
      %v3394 = vpack.c.b16 %v2470, %v2466
      %v3395 = vpack.c.b16 %v2471, %v2467
      %v3396 = vpack.c.b16 %v2472, %v2468
      %v3397 = vpack.c.b16 %v2477, %v2473
      %v3398 = vpack.c.b16 %v2478, %v2474
      %v3399 = vpack.c.b16 %v2479, %v2475
      %v3400 = vpack.c.b16 %v2480, %v2476
      %v3401 = vpack.c.b16 %v2485, %v2481
      %v3402 = vpack.c.b16 %v2486, %v2482
      %v3403 = vpack.c.b16 %v2487, %v2483
      %v3404 = vpack.c.b16 %v2488, %v2484
      %v3405 = vpack.c.b16 %v2493, %v2489
      %v3406 = vpack.c.b16 %v2494, %v2490
      %v3407 = vpack.c.b16 %v2495, %v2491
      %v3408 = vpack.c.b16 %v2496, %v2492
      %v3409 = vpack.c.b16 %v2501, %v2497
      %v3410 = vpack.c.b16 %v2502, %v2498
      %v3411 = vpack.c.b16 %v2503, %v2499
      %v3412 = vpack.c.b16 %v2504, %v2500
      %v3413 = vpack.c.b16 %v2509, %v2505
      %v3414 = vpack.c.b16 %v2510, %v2506
      %v3415 = vpack.c.b16 %v2511, %v2507
      %v3416 = vpack.c.b16 %v2512, %v2508
      %v3417 = vpack.c.b16 %v2517, %v2513
      %v3418 = vpack.c.b16 %v2518, %v2514
      %v3419 = vpack.c.b16 %v2519, %v2515
      %v3420 = vpack.c.b16 %v2520, %v2516
      %v3421 = vpack.c.b16 %v2525, %v2521
      %v3422 = vpack.c.b16 %v2526, %v2522
      %v3423 = vpack.c.b16 %v2527, %v2523
      %v3424 = vpack.c.b16 %v2528, %v2524
      %v3425 = vpack.c.b16 %v2533, %v2529
      %v3426 = vpack.c.b16 %v2534, %v2530
      %v3427 = vpack.c.b16 %v2535, %v2531
      %v3428 = vpack.c.b16 %v2536, %v2532
      %v3429 = vpack.c.b16 %v2541, %v2537
      %v3430 = vpack.c.b16 %v2542, %v2538
      %v3431 = vpack.c.b16 %v2543, %v2539
      %v3432 = vpack.c.b16 %v2544, %v2540
      %v3433 = vpack.c.b16 %v2549, %v2545
      %v3434 = vpack.c.b16 %v2550, %v2546
      %v3435 = vpack.c.b16 %v2551, %v2547
      %v3436 = vpack.c.b16 %v2552, %v2548
      %v3437 = vpack.c.b16 %v2557, %v2553
      %v3438 = vpack.c.b16 %v2558, %v2554
      %v3439 = vpack.c.b16 %v2559, %v2555
      %v3440 = vpack.c.b16 %v2560, %v2556
      %v3441 = vpack.c.b16 %v2565, %v2561
      %v3442 = vpack.c.b16 %v2566, %v2562
      %v3443 = vpack.c.b16 %v2567, %v2563
      %v3444 = vpack.c.b16 %v2568, %v2564
      %v3445 = vpack.c.b16 %v2573, %v2569
      %v3446 = vpack.c.b16 %v2574, %v2570
      %v3447 = vpack.c.b16 %v2575, %v2571
      %v3448 = vpack.c.b16 %v2576, %v2572
      %v3449 = vpack.c.b16 %v2581, %v2577
      %v3450 = vpack.c.b16 %v2582, %v2578
      %v3451 = vpack.c.b16 %v2583, %v2579
      %v3452 = vpack.c.b16 %v2584, %v2580
      %v3453 = vpack.c.b16 %v2589, %v2585
      %v3454 = vpack.c.b16 %v2590, %v2586
      %v3455 = vpack.c.b16 %v2591, %v2587
      %v3456 = vpack.c.b16 %v2592, %v2588
      %v3457 = vpack.c.b16 %v2597, %v2593
      %v3458 = vpack.c.b16 %v2598, %v2594
      %v3459 = vpack.c.b16 %v2599, %v2595
      %v3460 = vpack.c.b16 %v2600, %v2596
      %v3461 = vpack.c.b16 %v2605, %v2601
      %v3462 = vpack.c.b16 %v2606, %v2602
      %v3463 = vpack.c.b16 %v2607, %v2603
      %v3464 = vpack.c.b16 %v2608, %v2604
      %v3465 = vpack.c.b16 %v2613, %v2609
      %v3466 = vpack.c.b16 %v2614, %v2610
      %v3467 = vpack.c.b16 %v2615, %v2611
      %v3468 = vpack.c.b16 %v2616, %v2612
      %v3469 = vpack.c.b16 %v2621, %v2617
      %v3470 = vpack.c.b16 %v2622, %v2618
      %v3471 = vpack.c.b16 %v2623, %v2619
      %v3472 = vpack.c.b16 %v2624, %v2620
      %v3473 = vpack.c.b16 %v2629, %v2625
      %v3474 = vpack.c.b16 %v2630, %v2626
      %v3475 = vpack.c.b16 %v2631, %v2627
      %v3476 = vpack.c.b16 %v2632, %v2628
      %v3477 = vpack.c.b16 %v2637, %v2633
      %v3478 = vpack.c.b16 %v2638, %v2634
      %v3479 = vpack.c.b16 %v2639, %v2635
      %v3480 = vpack.c.b16 %v2640, %v2636
      %v3481 = vpack.c.b16 %v2645, %v2641
      %v3482 = vpack.c.b16 %v2646, %v2642
      %v3483 = vpack.c.b16 %v2647, %v2643
      %v3484 = vpack.c.b16 %v2648, %v2644
      %v3485 = vpack.c.b16 %v2653, %v2649
      %v3486 = vpack.c.b16 %v2654, %v2650
      %v3487 = vpack.c.b16 %v2655, %v2651
      %v3488 = vpack.c.b16 %v2656, %v2652
      %v3489 = vpack.c.b16 %v2661, %v2657
      %v3490 = vpack.c.b16 %v2662, %v2658
      %v3491 = vpack.c.b16 %v2663, %v2659
      %v3492 = vpack.c.b16 %v2664, %v2660
      %v3493 = vpack.c.b16 %v2669, %v2665
      %v3494 = vpack.c.b16 %v2670, %v2666
      %v3495 = vpack.c.b16 %v2671, %v2667
      %v3496 = vpack.c.b16 %v2672, %v2668
      %v3497 = vpack.c.b16 %v2677, %v2673
      %v3498 = vpack.c.b16 %v2678, %v2674
      %v3499 = vpack.c.b16 %v2679, %v2675
      %v3500 = vpack.c.b16 %v2680, %v2676
      %v3501 = vpack.c.b16 %v2685, %v2681
      %v3502 = vpack.c.b16 %v2686, %v2682
      %v3503 = vpack.c.b16 %v2687, %v2683
      %v3504 = vpack.c.b16 %v2688, %v2684
      %v3505 = vpack.c.b16 %v2693, %v2689
      %v3506 = vpack.c.b16 %v2694, %v2690
      %v3507 = vpack.c.b16 %v2695, %v2691
      %v3508 = vpack.c.b16 %v2696, %v2692
      %v3509 = vpack.c.b16 %v2701, %v2697
      %v3510 = vpack.c.b16 %v2702, %v2698
      %v3511 = vpack.c.b16 %v2703, %v2699
      %v3512 = vpack.c.b16 %v2704, %v2700
      %v3513 = vpack.c.b16 %v2709, %v2705
      %v3514 = vpack.c.b16 %v2710, %v2706
      %v3515 = vpack.c.b16 %v2711, %v2707
      %v3516 = vpack.c.b16 %v2712, %v2708
      %v3517 = vpack.c.b16 %v2717, %v2713
      %v3518 = vpack.c.b16 %v2718, %v2714
      %v3519 = vpack.c.b16 %v2719, %v2715
      %v3520 = vpack.c.b16 %v2720, %v2716
      %v3521 = vpack.c.b16 %v2725, %v2721
      %v3522 = vpack.c.b16 %v2726, %v2722
      %v3523 = vpack.c.b16 %v2727, %v2723
      %v3524 = vpack.c.b16 %v2728, %v2724
      %v3525 = vpack.c.b16 %v2733, %v2729
      %v3526 = vpack.c.b16 %v2734, %v2730
      %v3527 = vpack.c.b16 %v2735, %v2731
      %v3528 = vpack.c.b16 %v2736, %v2732
      %v3529 = vpack.c.b16 %v2741, %v2737
      %v3530 = vpack.c.b16 %v2742, %v2738
      %v3531 = vpack.c.b16 %v2743, %v2739
      %v3532 = vpack.c.b16 %v2744, %v2740
      %v3533 = vpack.c.b16 %v2749, %v2745
      %v3534 = vpack.c.b16 %v2750, %v2746
      %v3535 = vpack.c.b16 %v2751, %v2747
      %v3536 = vpack.c.b16 %v2752, %v2748
      %v3537 = vpack.c.b16 %v2757, %v2753
      %v3538 = vpack.c.b16 %v2758, %v2754
      %v3539 = vpack.c.b16 %v2759, %v2755
      %v3540 = vpack.c.b16 %v2760, %v2756
      %v3541 = vpack.c.b16 %v2765, %v2761
      %v3542 = vpack.c.b16 %v2766, %v2762
      %v3543 = vpack.c.b16 %v2767, %v2763
      %v3544 = vpack.c.b16 %v2768, %v2764
      %v3545 = vpack.c.b16 %v2773, %v2769
      %v3546 = vpack.c.b16 %v2774, %v2770
      %v3547 = vpack.c.b16 %v2775, %v2771
      %v3548 = vpack.c.b16 %v2776, %v2772
      %v3549 = vpack.c.b16 %v2781, %v2777
      %v3550 = vpack.c.b16 %v2782, %v2778
      %v3551 = vpack.c.b16 %v2783, %v2779
      %v3552 = vpack.c.b16 %v2784, %v2780
      %v3553 = vpack.c.b16 %v2789, %v2785
      %v3554 = vpack.c.b16 %v2790, %v2786
      %v3555 = vpack.c.b16 %v2791, %v2787
      %v3556 = vpack.c.b16 %v2792, %v2788
      %v3557 = vpack.c.b16 %v2797, %v2793
      %v3558 = vpack.c.b16 %v2798, %v2794
      %v3559 = vpack.c.b16 %v2799, %v2795
      %v3560 = vpack.c.b16 %v2800, %v2796
      %v3561 = vpack.c.b16 %v2805, %v2801
      %v3562 = vpack.c.b16 %v2806, %v2802
      %v3563 = vpack.c.b16 %v2807, %v2803
      %v3564 = vpack.c.b16 %v2808, %v2804
      %v3565 = vpack.c.b16 %v2813, %v2809
      %v3566 = vpack.c.b16 %v2814, %v2810
      %v3567 = vpack.c.b16 %v2815, %v2811
      %v3568 = vpack.c.b16 %v2816, %v2812
      %v3569 = vpack.c.b16 %v2821, %v2817
      %v3570 = vpack.c.b16 %v2822, %v2818
      %v3571 = vpack.c.b16 %v2823, %v2819
      %v3572 = vpack.c.b16 %v2824, %v2820
      %v3573 = vpack.c.b16 %v2829, %v2825
      %v3574 = vpack.c.b16 %v2830, %v2826
      %v3575 = vpack.c.b16 %v2831, %v2827
      %v3576 = vpack.c.b16 %v2832, %v2828
      %v3577 = vpack.c.b16 %v2837, %v2833
      %v3578 = vpack.c.b16 %v2838, %v2834
      %v3579 = vpack.c.b16 %v2839, %v2835
      %v3580 = vpack.c.b16 %v2840, %v2836
      %v3581 = vpack.c.b16 %v2845, %v2841
      %v3582 = vpack.c.b16 %v2846, %v2842
      %v3583 = vpack.c.b16 %v2847, %v2843
      %v3584 = vpack.c.b16 %v2848, %v2844
      %v3585 = vpack.c.b16 %v2853, %v2849
      %v3586 = vpack.c.b16 %v2854, %v2850
      %v3587 = vpack.c.b16 %v2855, %v2851
      %v3588 = vpack.c.b16 %v2856, %v2852
      %v3589 = vpack.c.b16 %v2861, %v2857
      %v3590 = vpack.c.b16 %v2862, %v2858
      %v3591 = vpack.c.b16 %v2863, %v2859
      %v3592 = vpack.c.b16 %v2864, %v2860
      %v3593 = vpack.c.b16 %v2869, %v2865
      %v3594 = vpack.c.b16 %v2870, %v2866
      %v3595 = vpack.c.b16 %v2871, %v2867
      %v3596 = vpack.c.b16 %v2872, %v2868
      %v3597 = vpack.c.b16 %v2877, %v2873
      %v3598 = vpack.c.b16 %v2878, %v2874
      %v3599 = vpack.c.b16 %v2879, %v2875
      %v3600 = vpack.c.b16 %v2880, %v2876
      %v3601 = vpack.c.b16 %v2885, %v2881
      %v3602 = vpack.c.b16 %v2886, %v2882
      %v3603 = vpack.c.b16 %v2887, %v2883
      %v3604 = vpack.c.b16 %v2888, %v2884
      %v3605 = vpack.c.b16 %v2893, %v2889
      %v3606 = vpack.c.b16 %v2894, %v2890
      %v3607 = vpack.c.b16 %v2895, %v2891
      %v3608 = vpack.c.b16 %v2896, %v2892
      %v3609 = vpack.c.b16 %v2901, %v2897
      %v3610 = vpack.c.b16 %v2902, %v2898
      %v3611 = vpack.c.b16 %v2903, %v2899
      %v3612 = vpack.c.b16 %v2904, %v2900
      %v3613 = vpack.c.b16 %v2909, %v2905
      %v3614 = vpack.c.b16 %v2910, %v2906
      %v3615 = vpack.c.b16 %v2911, %v2907
      %v3616 = vpack.c.b16 %v2912, %v2908
      %v3617 = vpack.c.b16 %v2917, %v2913
      %v3618 = vpack.c.b16 %v2918, %v2914
      %v3619 = vpack.c.b16 %v2919, %v2915
      %v3620 = vpack.c.b16 %v2920, %v2916
      %v3621 = vpack.c.b16 %v2925, %v2921
      %v3622 = vpack.c.b16 %v2926, %v2922
      %v3623 = vpack.c.b16 %v2927, %v2923
      %v3624 = vpack.c.b16 %v2928, %v2924
      %v3625 = vpack.c.b16 %v2933, %v2929
      %v3626 = vpack.c.b16 %v2934, %v2930
      %v3627 = vpack.c.b16 %v2935, %v2931
      %v3628 = vpack.c.b16 %v2936, %v2932
      %v3629 = vpack.c.b16 %v2941, %v2937
      %v3630 = vpack.c.b16 %v2942, %v2938
      %v3631 = vpack.c.b16 %v2943, %v2939
      %v3632 = vpack.c.b16 %v2944, %v2940
      %v3633 = vpack.c.b16 %v2949, %v2945
      %v3634 = vpack.c.b16 %v2950, %v2946
      %v3635 = vpack.c.b16 %v2951, %v2947
      %v3636 = vpack.c.b16 %v2952, %v2948
      %v3637 = vpack.c.b16 %v2957, %v2953
      %v3638 = vpack.c.b16 %v2958, %v2954
      %v3639 = vpack.c.b16 %v2959, %v2955
      %v3640 = vpack.c.b16 %v2960, %v2956
      %v3641 = vpack.c.b16 %v2965, %v2961
      %v3642 = vpack.c.b16 %v2966, %v2962
      %v3643 = vpack.c.b16 %v2967, %v2963
      %v3644 = vpack.c.b16 %v2968, %v2964
      %v3645 = vpack.c.b16 %v2973, %v2969
      %v3646 = vpack.c.b16 %v2974, %v2970
      %v3647 = vpack.c.b16 %v2975, %v2971
      %v3648 = vpack.c.b16 %v2976, %v2972
      %v3649 = vpack.c.b16 %v2981, %v2977
      %v3650 = vpack.c.b16 %v2982, %v2978
      %v3651 = vpack.c.b16 %v2983, %v2979
      %v3652 = vpack.c.b16 %v2984, %v2980
      %v3653 = vpack.c.b16 %v2989, %v2985
      %v3654 = vpack.c.b16 %v2990, %v2986
      %v3655 = vpack.c.b16 %v2991, %v2987
      %v3656 = vpack.c.b16 %v2992, %v2988
      %v3657 = vpack.c.b16 %v2997, %v2993
      %v3658 = vpack.c.b16 %v2998, %v2994
      %v3659 = vpack.c.b16 %v2999, %v2995
      %v3660 = vpack.c.b16 %v3000, %v2996
      %v3661 = vpack.c.b16 %v3005, %v3001
      %v3662 = vpack.c.b16 %v3006, %v3002
      %v3663 = vpack.c.b16 %v3007, %v3003
      %v3664 = vpack.c.b16 %v3008, %v3004
      %v3665 = vpack.c.b16 %v3013, %v3009
      %v3666 = vpack.c.b16 %v3014, %v3010
      %v3667 = vpack.c.b16 %v3015, %v3011
      %v3668 = vpack.c.b16 %v3016, %v3012
      %v3669 = vpack.c.b16 %v3021, %v3017
      %v3670 = vpack.c.b16 %v3022, %v3018
      %v3671 = vpack.c.b16 %v3023, %v3019
      %v3672 = vpack.c.b16 %v3024, %v3020
      %v3673 = vpack.c.b16 %v3029, %v3025
      %v3674 = vpack.c.b16 %v3030, %v3026
      %v3675 = vpack.c.b16 %v3031, %v3027
      %v3676 = vpack.c.b16 %v3032, %v3028
      %v3677 = vpack.c.b16 %v3037, %v3033
      %v3678 = vpack.c.b16 %v3038, %v3034
      %v3679 = vpack.c.b16 %v3039, %v3035
      %v3680 = vpack.c.b16 %v3040, %v3036
      %v3681 = vpack.c.b16 %v3045, %v3041
      %v3682 = vpack.c.b16 %v3046, %v3042
      %v3683 = vpack.c.b16 %v3047, %v3043
      %v3684 = vpack.c.b16 %v3048, %v3044
      %v3685 = vpack.c.b16 %v3053, %v3049
      %v3686 = vpack.c.b16 %v3054, %v3050
      %v3687 = vpack.c.b16 %v3055, %v3051
      %v3688 = vpack.c.b16 %v3056, %v3052
      %v3689 = vpack.c.b16 %v3061, %v3057
      %v3690 = vpack.c.b16 %v3062, %v3058
      %v3691 = vpack.c.b16 %v3063, %v3059
      %v3692 = vpack.c.b16 %v3064, %v3060
      %v3693 = vpack.c.b16 %v3069, %v3065
      %v3694 = vpack.c.b16 %v3070, %v3066
      %v3695 = vpack.c.b16 %v3071, %v3067
      %v3696 = vpack.c.b16 %v3072, %v3068
      %v3697 = vpack.c.b16 %v3077, %v3073
      %v3698 = vpack.c.b16 %v3078, %v3074
      %v3699 = vpack.c.b16 %v3079, %v3075
      %v3700 = vpack.c.b16 %v3080, %v3076
      %v3701 = vpack.c.b16 %v3085, %v3081
      %v3702 = vpack.c.b16 %v3086, %v3082
      %v3703 = vpack.c.b16 %v3087, %v3083
      %v3704 = vpack.c.b16 %v3088, %v3084
      %v3705 = vpack.c.b16 %v3093, %v3089
      %v3706 = vpack.c.b16 %v3094, %v3090
      %v3707 = vpack.c.b16 %v3095, %v3091
      %v3708 = vpack.c.b16 %v3096, %v3092
      %v3709 = vpack.c.b16 %v3101, %v3097
      %v3710 = vpack.c.b16 %v3102, %v3098
      %v3711 = vpack.c.b16 %v3103, %v3099
      %v3712 = vpack.c.b16 %v3104, %v3100
      %v3713 = vpack.c.b16 %v3109, %v3105
      %v3714 = vpack.c.b16 %v3110, %v3106
      %v3715 = vpack.c.b16 %v3111, %v3107
      %v3716 = vpack.c.b16 %v3112, %v3108
      %v3717 = vpack.c.b16 %v3117, %v3113
      %v3718 = vpack.c.b16 %v3118, %v3114
      %v3719 = vpack.c.b16 %v3119, %v3115
      %v3720 = vpack.c.b16 %v3120, %v3116
      %v3721 = vpack.c.b16 %v3125, %v3121
      %v3722 = vpack.c.b16 %v3126, %v3122
      %v3723 = vpack.c.b16 %v3127, %v3123
      %v3724 = vpack.c.b16 %v3128, %v3124
      %v3725 = vpack.c.b16 %v3133, %v3129
      %v3726 = vpack.c.b16 %v3134, %v3130
      %v3727 = vpack.c.b16 %v3135, %v3131
      %v3728 = vpack.c.b16 %v3136, %v3132
      %v3729 = vpack.c.b16 %v3141, %v3137
      %v3730 = vpack.c.b16 %v3142, %v3138
      %v3731 = vpack.c.b16 %v3143, %v3139
      %v3732 = vpack.c.b16 %v3144, %v3140
      %v3733 = vpack.c.b16 %v3149, %v3145
      %v3734 = vpack.c.b16 %v3150, %v3146
      %v3735 = vpack.c.b16 %v3151, %v3147
      %v3736 = vpack.c.b16 %v3152, %v3148
      %v3737 = vpack.c.b16 %v3157, %v3153
      %v3738 = vpack.c.b16 %v3158, %v3154
      %v3739 = vpack.c.b16 %v3159, %v3155
      %v3740 = vpack.c.b16 %v3160, %v3156
      %v3741 = vpack.c.b16 %v3165, %v3161
      %v3742 = vpack.c.b16 %v3166, %v3162
      %v3743 = vpack.c.b16 %v3167, %v3163
      %v3744 = vpack.c.b16 %v3168, %v3164
      %4321 = vmatprep.subr.bf16.mxu0 %v3198
      %4322 = vmatpush1.bf16.msra.mxu0 %v3197
      %4323 = vmatprep.subr.bf16.mxu0 %v3194
      %4324 = vmatpush1.bf16.msra.mxu0 %v3193
      %4325 = vmatprep.subr.bf16.mxu0 %v3190
      %4326 = vmatpush1.bf16.msra.mxu0 %v3189
      %4327 = vmatprep.subr.bf16.mxu0 %v3186
      %4328 = vmatpush1.bf16.msra.mxu0 %v3185
      %4329 = vmatprep.subr.bf16.mxu0 %v3182
      %4330 = vmatpush1.bf16.msra.mxu0 %v3181
      %4331 = vmatprep.subr.bf16.mxu0 %v3178
      %4332 = vmatpush1.bf16.msra.mxu0 %v3177
      %4333 = vmatprep.subr.bf16.mxu0 %v3174
      %4334 = vmatpush1.bf16.msra.mxu0 %v3173
      %4335 = vmatprep.subr.bf16.mxu0 %v3170
      %4336 = vmatpush1.bf16.msra.mxu0 %v3169
      %4337 = vmatprep.subr.bf16.mxu0 %v3230
      %4338 = vmatpush2.bf16.msra.mxu0 %v3229
      %4339 = vmatprep.subr.bf16.mxu0 %v3226
      %4340 = vmatpush2.bf16.msra.mxu0 %v3225
      %4341 = vmatprep.subr.bf16.mxu0 %v3222
      %4342 = vmatpush2.bf16.msra.mxu0 %v3221
      %4343 = vmatprep.subr.bf16.mxu0 %v3218
      %4344 = vmatpush2.bf16.msra.mxu0 %v3217
      %4345 = vmatprep.subr.bf16.mxu0 %v3214
      %4346 = vmatpush2.bf16.msra.mxu0 %v3213
      %4347 = vmatprep.subr.bf16.mxu0 %v3210
      %4348 = vmatpush2.bf16.msra.mxu0 %v3209
      %4349 = vmatprep.subr.bf16.mxu0 %v3206
      %4350 = vmatpush2.bf16.msra.mxu0 %v3205
      %4351 = vmatprep.subr.bf16.mxu0 %v3202
      %4352 = vmatpush2.bf16.msra.mxu0 %v3201
      %4353 = vmatprep.mubr.bf16.mxu0 %v692
      %4354 = vmatmul.mubr.bf16.gmra.mxu0 %v691
      %v4355 = vpop.f32.mrf.mxu0
      %v4356 = vadd.f32 %v1424, %v4355
      %v4357 = vpop.f32.mrf.mxu0
      %v4358 = vadd.f32 %v1428, %v4357
      %v4359 = vpop.f32.mrf.mxu0
      %v4360 = vadd.f32 %v1424, %v4359
      %v4361 = vpop.f32.mrf.mxu0
      %v4362 = vadd.f32 %v1428, %v4361
      %4363 = vmatprep.mubr.bf16.mxu0 %v698
      %4364 = vmatmul.mubr.bf16.gmra.mxu0 %v697
      %v4365 = vpop.f32.mrf.mxu0
      %v4366 = vadd.f32 %v1424, %v4365
      %v4367 = vpop.f32.mrf.mxu0
      %v4368 = vadd.f32 %v1428, %v4367
      %v4369 = vpop.f32.mrf.mxu0
      %v4370 = vadd.f32 %v1424, %v4369
      %v4371 = vpop.f32.mrf.mxu0
      %v4372 = vadd.f32 %v1428, %v4371
      %4373 = vmatprep.mubr.bf16.mxu0 %v704
      %4374 = vmatmul.mubr.bf16.gmra.mxu0 %v703
      %v4375 = vpop.f32.mrf.mxu0
      %v4376 = vadd.f32 %v1424, %v4375
      %v4377 = vpop.f32.mrf.mxu0
      %v4378 = vadd.f32 %v1428, %v4377
      %v4379 = vpop.f32.mrf.mxu0
      %v4380 = vadd.f32 %v1424, %v4379
      %v4381 = vpop.f32.mrf.mxu0
      %v4382 = vadd.f32 %v1428, %v4381
      %4383 = vmatprep.mubr.bf16.mxu0 %v710
      %4384 = vmatmul.mubr.bf16.gmra.mxu0 %v709
      %v4385 = vpop.f32.mrf.mxu0
      %v4386 = vadd.f32 %v1424, %v4385
      %v4387 = vpop.f32.mrf.mxu0
      %v4388 = vadd.f32 %v1428, %v4387
      %v4389 = vpop.f32.mrf.mxu0
      %v4390 = vadd.f32 %v1424, %v4389
      %v4391 = vpop.f32.mrf.mxu0
      %v4392 = vadd.f32 %v1428, %v4391
      %4393 = vdwg.mxu0
      %4394 = vmatprep.subr.bf16.mxu0 %v3262
      %4395 = vmatpush1.bf16.msra.mxu0 %v3261
      %4396 = vmatprep.subr.bf16.mxu0 %v3258
      %4397 = vmatpush1.bf16.msra.mxu0 %v3257
      %4398 = vmatprep.subr.bf16.mxu0 %v3254
      %4399 = vmatpush1.bf16.msra.mxu0 %v3253
      %4400 = vmatprep.subr.bf16.mxu0 %v3250
      %4401 = vmatpush1.bf16.msra.mxu0 %v3249
      %4402 = vmatprep.subr.bf16.mxu0 %v3246
      %4403 = vmatpush1.bf16.msra.mxu0 %v3245
      %4404 = vmatprep.subr.bf16.mxu0 %v3242
      %4405 = vmatpush1.bf16.msra.mxu0 %v3241
      %4406 = vmatprep.subr.bf16.mxu0 %v3238
      %4407 = vmatpush1.bf16.msra.mxu0 %v3237
      %4408 = vmatprep.subr.bf16.mxu0 %v3234
      %4409 = vmatpush1.bf16.msra.mxu0 %v3233
      %4410 = vmatprep.subr.bf16.mxu0 %v3294
      %4411 = vmatpush2.bf16.msra.mxu0 %v3293
      %4412 = vmatprep.subr.bf16.mxu0 %v3290
      %4413 = vmatpush2.bf16.msra.mxu0 %v3289
      %4414 = vmatprep.subr.bf16.mxu0 %v3286
      %4415 = vmatpush2.bf16.msra.mxu0 %v3285
      %4416 = vmatprep.subr.bf16.mxu0 %v3282
      %4417 = vmatpush2.bf16.msra.mxu0 %v3281
      %4418 = vmatprep.subr.bf16.mxu0 %v3278
      %4419 = vmatpush2.bf16.msra.mxu0 %v3277
      %4420 = vmatprep.subr.bf16.mxu0 %v3274
      %4421 = vmatpush2.bf16.msra.mxu0 %v3273
      %4422 = vmatprep.subr.bf16.mxu0 %v3270
      %4423 = vmatpush2.bf16.msra.mxu0 %v3269
      %4424 = vmatprep.subr.bf16.mxu0 %v3266
      %4425 = vmatpush2.bf16.msra.mxu0 %v3265
      %4426 = vmatprep.mubr.bf16.mxu0 %v694
      %4427 = vmatmul.mubr.bf16.gmra.mxu0 %v693
      %v4428 = vpop.f32.mrf.mxu0
      %v4429 = vadd.f32 %v4356, %v4428
      %v4430 = vpop.f32.mrf.mxu0
      %v4431 = vadd.f32 %v4358, %v4430
      %v4432 = vpop.f32.mrf.mxu0
      %v4433 = vadd.f32 %v4360, %v4432
      %v4434 = vpop.f32.mrf.mxu0
      %v4435 = vadd.f32 %v4362, %v4434
      %4436 = vmatprep.mubr.bf16.mxu0 %v700
      %4437 = vmatmul.mubr.bf16.gmra.mxu0 %v699
      %v4438 = vpop.f32.mrf.mxu0
      %v4439 = vadd.f32 %v4366, %v4438
      %v4440 = vpop.f32.mrf.mxu0
      %v4441 = vadd.f32 %v4368, %v4440
      %v4442 = vpop.f32.mrf.mxu0
      %v4443 = vadd.f32 %v4370, %v4442
      %v4444 = vpop.f32.mrf.mxu0
      %v4445 = vadd.f32 %v4372, %v4444
      %4446 = vmatprep.mubr.bf16.mxu0 %v706
      %4447 = vmatmul.mubr.bf16.gmra.mxu0 %v705
      %v4448 = vpop.f32.mrf.mxu0
      %v4449 = vadd.f32 %v4376, %v4448
      %v4450 = vpop.f32.mrf.mxu0
      %v4451 = vadd.f32 %v4378, %v4450
      %v4452 = vpop.f32.mrf.mxu0
      %v4453 = vadd.f32 %v4380, %v4452
      %v4454 = vpop.f32.mrf.mxu0
      %v4455 = vadd.f32 %v4382, %v4454
      %4456 = vmatprep.mubr.bf16.mxu0 %v712
      %4457 = vmatmul.mubr.bf16.gmra.mxu0 %v711
      %v4458 = vpop.f32.mrf.mxu0
      %v4459 = vadd.f32 %v4386, %v4458
      %v4460 = vpop.f32.mrf.mxu0
      %v4461 = vadd.f32 %v4388, %v4460
      %v4462 = vpop.f32.mrf.mxu0
      %v4463 = vadd.f32 %v4390, %v4462
      %v4464 = vpop.f32.mrf.mxu0
      %v4465 = vadd.f32 %v4392, %v4464
      %4466 = vdwg.mxu0
      %4467 = vmatprep.subr.bf16.mxu0 %v3326
      %4468 = vmatpush1.bf16.msra.mxu0 %v3325
      %4469 = vmatprep.subr.bf16.mxu0 %v3322
      %4470 = vmatpush1.bf16.msra.mxu0 %v3321
      %4471 = vmatprep.subr.bf16.mxu0 %v3318
      %4472 = vmatpush1.bf16.msra.mxu0 %v3317
      %4473 = vmatprep.subr.bf16.mxu0 %v3314
      %4474 = vmatpush1.bf16.msra.mxu0 %v3313
      %4475 = vmatprep.subr.bf16.mxu0 %v3310
      %4476 = vmatpush1.bf16.msra.mxu0 %v3309
      %4477 = vmatprep.subr.bf16.mxu0 %v3306
      %4478 = vmatpush1.bf16.msra.mxu0 %v3305
      %4479 = vmatprep.subr.bf16.mxu0 %v3302
      %4480 = vmatpush1.bf16.msra.mxu0 %v3301
      %4481 = vmatprep.subr.bf16.mxu0 %v3298
      %4482 = vmatpush1.bf16.msra.mxu0 %v3297
      %4483 = vmatprep.subr.bf16.mxu0 %v3358
      %4484 = vmatpush2.bf16.msra.mxu0 %v3357
      %4485 = vmatprep.subr.bf16.mxu0 %v3354
      %4486 = vmatpush2.bf16.msra.mxu0 %v3353
      %4487 = vmatprep.subr.bf16.mxu0 %v3350
      %4488 = vmatpush2.bf16.msra.mxu0 %v3349
      %4489 = vmatprep.subr.bf16.mxu0 %v3346
      %4490 = vmatpush2.bf16.msra.mxu0 %v3345
      %4491 = vmatprep.subr.bf16.mxu0 %v3342
      %4492 = vmatpush2.bf16.msra.mxu0 %v3341
      %4493 = vmatprep.subr.bf16.mxu0 %v3338
      %4494 = vmatpush2.bf16.msra.mxu0 %v3337
      %4495 = vmatprep.subr.bf16.mxu0 %v3334
      %4496 = vmatpush2.bf16.msra.mxu0 %v3333
      %4497 = vmatprep.subr.bf16.mxu0 %v3330
      %4498 = vmatpush2.bf16.msra.mxu0 %v3329
      %4499 = vmatprep.mubr.bf16.mxu0 %v696
      %4500 = vmatmul.mubr.bf16.gmra.mxu0 %v695
      %v4501 = vpop.f32.mrf.mxu0
      %v4502 = vadd.f32 %v4429, %v4501
      %v4503 = vpop.f32.mrf.mxu0
      %v4504 = vadd.f32 %v4431, %v4503
      %v4505 = vpop.f32.mrf.mxu0
      %v4506 = vadd.f32 %v4433, %v4505
      %v4507 = vpop.f32.mrf.mxu0
      %v4508 = vadd.f32 %v4435, %v4507
      %4509 = vmatprep.mubr.bf16.mxu0 %v702
      %4510 = vmatmul.mubr.bf16.gmra.mxu0 %v701
      %v4511 = vpop.f32.mrf.mxu0
      %v4512 = vadd.f32 %v4439, %v4511
      %v4513 = vpop.f32.mrf.mxu0
      %v4514 = vadd.f32 %v4441, %v4513
      %v4515 = vpop.f32.mrf.mxu0
      %v4516 = vadd.f32 %v4443, %v4515
      %v4517 = vpop.f32.mrf.mxu0
      %v4518 = vadd.f32 %v4445, %v4517
      %4519 = vmatprep.mubr.bf16.mxu0 %v708
      %4520 = vmatmul.mubr.bf16.gmra.mxu0 %v707
      %v4521 = vpop.f32.mrf.mxu0
      %v4522 = vadd.f32 %v4449, %v4521
      %v4523 = vpop.f32.mrf.mxu0
      %v4524 = vadd.f32 %v4451, %v4523
      %v4525 = vpop.f32.mrf.mxu0
      %v4526 = vadd.f32 %v4453, %v4525
      %v4527 = vpop.f32.mrf.mxu0
      %v4528 = vadd.f32 %v4455, %v4527
      %4529 = vmatprep.mubr.bf16.mxu0 %v714
      %4530 = vmatmul.mubr.bf16.gmra.mxu0 %v713
      %v4531 = vpop.f32.mrf.mxu0
      %v4532 = vadd.f32 %v4459, %v4531
      %v4533 = vpop.f32.mrf.mxu0
      %v4534 = vadd.f32 %v4461, %v4533
      %v4535 = vpop.f32.mrf.mxu0
      %v4536 = vadd.f32 %v4463, %v4535
      %v4537 = vpop.f32.mrf.mxu0
      %v4538 = vadd.f32 %v4465, %v4537
      %4539 = vdwg.mxu0
      %4540 = vmatprep.subr.bf16.mxu0 %v3390
      %4541 = vmatpush1.bf16.msra.mxu0 %v3389
      %4542 = vmatprep.subr.bf16.mxu0 %v3386
      %4543 = vmatpush1.bf16.msra.mxu0 %v3385
      %4544 = vmatprep.subr.bf16.mxu0 %v3382
      %4545 = vmatpush1.bf16.msra.mxu0 %v3381
      %4546 = vmatprep.subr.bf16.mxu0 %v3378
      %4547 = vmatpush1.bf16.msra.mxu0 %v3377
      %4548 = vmatprep.subr.bf16.mxu0 %v3374
      %4549 = vmatpush1.bf16.msra.mxu0 %v3373
      %4550 = vmatprep.subr.bf16.mxu0 %v3370
      %4551 = vmatpush1.bf16.msra.mxu0 %v3369
      %4552 = vmatprep.subr.bf16.mxu0 %v3366
      %4553 = vmatpush1.bf16.msra.mxu0 %v3365
      %4554 = vmatprep.subr.bf16.mxu0 %v3362
      %4555 = vmatpush1.bf16.msra.mxu0 %v3361
      %4556 = vmatprep.subr.bf16.mxu0 %v3422
      %4557 = vmatpush2.bf16.msra.mxu0 %v3421
      %4558 = vmatprep.subr.bf16.mxu0 %v3418
      %4559 = vmatpush2.bf16.msra.mxu0 %v3417
      %4560 = vmatprep.subr.bf16.mxu0 %v3414
      %4561 = vmatpush2.bf16.msra.mxu0 %v3413
      %4562 = vmatprep.subr.bf16.mxu0 %v3410
      %4563 = vmatpush2.bf16.msra.mxu0 %v3409
      %4564 = vmatprep.subr.bf16.mxu0 %v3406
      %4565 = vmatpush2.bf16.msra.mxu0 %v3405
      %4566 = vmatprep.subr.bf16.mxu0 %v3402
      %4567 = vmatpush2.bf16.msra.mxu0 %v3401
      %4568 = vmatprep.subr.bf16.mxu0 %v3398
      %4569 = vmatpush2.bf16.msra.mxu0 %v3397
      %4570 = vmatprep.subr.bf16.mxu0 %v3394
      %4571 = vmatpush2.bf16.msra.mxu0 %v3393
      %4572 = vmatprep.mubr.bf16.mxu0 %v716
      %4573 = vmatmul.mubr.bf16.gmra.mxu0 %v715
      %v4574 = vpop.f32.mrf.mxu0
      %v4575 = vadd.f32 %v4502, %v4574
      %v4576 = vpop.f32.mrf.mxu0
      %v4577 = vadd.f32 %v4504, %v4576
      %v4578 = vpop.f32.mrf.mxu0
      %v4579 = vadd.f32 %v4506, %v4578
      %v4580 = vpop.f32.mrf.mxu0
      %v4581 = vadd.f32 %v4508, %v4580
      %4582 = vmatprep.mubr.bf16.mxu0 %v722
      %4583 = vmatmul.mubr.bf16.gmra.mxu0 %v721
      %v4584 = vpop.f32.mrf.mxu0
      %v4585 = vadd.f32 %v4512, %v4584
      %v4586 = vpop.f32.mrf.mxu0
      %v4587 = vadd.f32 %v4514, %v4586
      %v4588 = vpop.f32.mrf.mxu0
      %v4589 = vadd.f32 %v4516, %v4588
      %v4590 = vpop.f32.mrf.mxu0
      %v4591 = vadd.f32 %v4518, %v4590
      %4592 = vmatprep.mubr.bf16.mxu0 %v728
      %4593 = vmatmul.mubr.bf16.gmra.mxu0 %v727
      %v4594 = vpop.f32.mrf.mxu0
      %v4595 = vadd.f32 %v4522, %v4594
      %v4596 = vpop.f32.mrf.mxu0
      %v4597 = vadd.f32 %v4524, %v4596
      %v4598 = vpop.f32.mrf.mxu0
      %v4599 = vadd.f32 %v4526, %v4598
      %v4600 = vpop.f32.mrf.mxu0
      %v4601 = vadd.f32 %v4528, %v4600
      %4602 = vmatprep.mubr.bf16.mxu0 %v734
      %4603 = vmatmul.mubr.bf16.gmra.mxu0 %v733
      %v4604 = vpop.f32.mrf.mxu0
      %v4605 = vadd.f32 %v4532, %v4604
      %v4606 = vpop.f32.mrf.mxu0
      %v4607 = vadd.f32 %v4534, %v4606
      %v4608 = vpop.f32.mrf.mxu0
      %v4609 = vadd.f32 %v4536, %v4608
      %v4610 = vpop.f32.mrf.mxu0
      %v4611 = vadd.f32 %v4538, %v4610
      %4612 = vdwg.mxu0
      %4613 = vmatprep.subr.bf16.mxu0 %v3454
      %4614 = vmatpush1.bf16.msra.mxu0 %v3453
      %4615 = vmatprep.subr.bf16.mxu0 %v3450
      %4616 = vmatpush1.bf16.msra.mxu0 %v3449
      %4617 = vmatprep.subr.bf16.mxu0 %v3446
      %4618 = vmatpush1.bf16.msra.mxu0 %v3445
      %4619 = vmatprep.subr.bf16.mxu0 %v3442
      %4620 = vmatpush1.bf16.msra.mxu0 %v3441
      %4621 = vmatprep.subr.bf16.mxu0 %v3438
      %4622 = vmatpush1.bf16.msra.mxu0 %v3437
      %4623 = vmatprep.subr.bf16.mxu0 %v3434
      %4624 = vmatpush1.bf16.msra.mxu0 %v3433
      %4625 = vmatprep.subr.bf16.mxu0 %v3430
      %4626 = vmatpush1.bf16.msra.mxu0 %v3429
      %4627 = vmatprep.subr.bf16.mxu0 %v3426
      %4628 = vmatpush1.bf16.msra.mxu0 %v3425
      %4629 = vmatprep.subr.bf16.mxu0 %v3486
      %4630 = vmatpush2.bf16.msra.mxu0 %v3485
      %4631 = vmatprep.subr.bf16.mxu0 %v3482
      %4632 = vmatpush2.bf16.msra.mxu0 %v3481
      %4633 = vmatprep.subr.bf16.mxu0 %v3478
      %4634 = vmatpush2.bf16.msra.mxu0 %v3477
      %4635 = vmatprep.subr.bf16.mxu0 %v3474
      %4636 = vmatpush2.bf16.msra.mxu0 %v3473
      %4637 = vmatprep.subr.bf16.mxu0 %v3470
      %4638 = vmatpush2.bf16.msra.mxu0 %v3469
      %4639 = vmatprep.subr.bf16.mxu0 %v3466
      %4640 = vmatpush2.bf16.msra.mxu0 %v3465
      %4641 = vmatprep.subr.bf16.mxu0 %v3462
      %4642 = vmatpush2.bf16.msra.mxu0 %v3461
      %4643 = vmatprep.subr.bf16.mxu0 %v3458
      %4644 = vmatpush2.bf16.msra.mxu0 %v3457
      %4645 = vmatprep.mubr.bf16.mxu0 %v718
      %4646 = vmatmul.mubr.bf16.gmra.mxu0 %v717
      %v4647 = vpop.f32.mrf.mxu0
      %v4648 = vadd.f32 %v4575, %v4647
      %v4649 = vpop.f32.mrf.mxu0
      %v4650 = vadd.f32 %v4577, %v4649
      %v4651 = vpop.f32.mrf.mxu0
      %v4652 = vadd.f32 %v4579, %v4651
      %v4653 = vpop.f32.mrf.mxu0
      %v4654 = vadd.f32 %v4581, %v4653
      %4655 = vmatprep.mubr.bf16.mxu0 %v724
      %4656 = vmatmul.mubr.bf16.gmra.mxu0 %v723
      %v4657 = vpop.f32.mrf.mxu0
      %v4658 = vadd.f32 %v4585, %v4657
      %v4659 = vpop.f32.mrf.mxu0
      %v4660 = vadd.f32 %v4587, %v4659
      %v4661 = vpop.f32.mrf.mxu0
      %v4662 = vadd.f32 %v4589, %v4661
      %v4663 = vpop.f32.mrf.mxu0
      %v4664 = vadd.f32 %v4591, %v4663
      %4665 = vmatprep.mubr.bf16.mxu0 %v730
      %4666 = vmatmul.mubr.bf16.gmra.mxu0 %v729
      %v4667 = vpop.f32.mrf.mxu0
      %v4668 = vadd.f32 %v4595, %v4667
      %v4669 = vpop.f32.mrf.mxu0
      %v4670 = vadd.f32 %v4597, %v4669
      %v4671 = vpop.f32.mrf.mxu0
      %v4672 = vadd.f32 %v4599, %v4671
      %v4673 = vpop.f32.mrf.mxu0
      %v4674 = vadd.f32 %v4601, %v4673
      %4675 = vmatprep.mubr.bf16.mxu0 %v736
      %4676 = vmatmul.mubr.bf16.gmra.mxu0 %v735
      %v4677 = vpop.f32.mrf.mxu0
      %v4678 = vadd.f32 %v4605, %v4677
      %v4679 = vpop.f32.mrf.mxu0
      %v4680 = vadd.f32 %v4607, %v4679
      %v4681 = vpop.f32.mrf.mxu0
      %v4682 = vadd.f32 %v4609, %v4681
      %v4683 = vpop.f32.mrf.mxu0
      %v4684 = vadd.f32 %v4611, %v4683
      %4685 = vdwg.mxu0
      %4686 = vmatprep.subr.bf16.mxu0 %v3518
      %4687 = vmatpush1.bf16.msra.mxu0 %v3517
      %4688 = vmatprep.subr.bf16.mxu0 %v3514
      %4689 = vmatpush1.bf16.msra.mxu0 %v3513
      %4690 = vmatprep.subr.bf16.mxu0 %v3510
      %4691 = vmatpush1.bf16.msra.mxu0 %v3509
      %4692 = vmatprep.subr.bf16.mxu0 %v3506
      %4693 = vmatpush1.bf16.msra.mxu0 %v3505
      %4694 = vmatprep.subr.bf16.mxu0 %v3502
      %4695 = vmatpush1.bf16.msra.mxu0 %v3501
      %4696 = vmatprep.subr.bf16.mxu0 %v3498
      %4697 = vmatpush1.bf16.msra.mxu0 %v3497
      %4698 = vmatprep.subr.bf16.mxu0 %v3494
      %4699 = vmatpush1.bf16.msra.mxu0 %v3493
      %4700 = vmatprep.subr.bf16.mxu0 %v3490
      %4701 = vmatpush1.bf16.msra.mxu0 %v3489
      %4702 = vmatprep.subr.bf16.mxu0 %v3550
      %4703 = vmatpush2.bf16.msra.mxu0 %v3549
      %4704 = vmatprep.subr.bf16.mxu0 %v3546
      %4705 = vmatpush2.bf16.msra.mxu0 %v3545
      %4706 = vmatprep.subr.bf16.mxu0 %v3542
      %4707 = vmatpush2.bf16.msra.mxu0 %v3541
      %4708 = vmatprep.subr.bf16.mxu0 %v3538
      %4709 = vmatpush2.bf16.msra.mxu0 %v3537
      %4710 = vmatprep.subr.bf16.mxu0 %v3534
      %4711 = vmatpush2.bf16.msra.mxu0 %v3533
      %4712 = vmatprep.subr.bf16.mxu0 %v3530
      %4713 = vmatpush2.bf16.msra.mxu0 %v3529
      %4714 = vmatprep.subr.bf16.mxu0 %v3526
      %4715 = vmatpush2.bf16.msra.mxu0 %v3525
      %4716 = vmatprep.subr.bf16.mxu0 %v3522
      %4717 = vmatpush2.bf16.msra.mxu0 %v3521
      %4718 = vmatprep.mubr.bf16.mxu0 %v720
      %4719 = vmatmul.mubr.bf16.gmra.mxu0 %v719
      %v4720 = vpop.f32.mrf.mxu0
      %v4721 = vadd.f32 %v4648, %v4720
      %v4722 = vpop.f32.mrf.mxu0
      %v4723 = vadd.f32 %v4650, %v4722
      %v4724 = vpop.f32.mrf.mxu0
      %v4725 = vadd.f32 %v4652, %v4724
      %v4726 = vpop.f32.mrf.mxu0
      %v4727 = vadd.f32 %v4654, %v4726
      %4728 = vmatprep.mubr.bf16.mxu0 %v726
      %4729 = vmatmul.mubr.bf16.gmra.mxu0 %v725
      %v4730 = vpop.f32.mrf.mxu0
      %v4731 = vadd.f32 %v4658, %v4730
      %v4732 = vpop.f32.mrf.mxu0
      %v4733 = vadd.f32 %v4660, %v4732
      %v4734 = vpop.f32.mrf.mxu0
      %v4735 = vadd.f32 %v4662, %v4734
      %v4736 = vpop.f32.mrf.mxu0
      %v4737 = vadd.f32 %v4664, %v4736
      %4738 = vmatprep.mubr.bf16.mxu0 %v732
      %4739 = vmatmul.mubr.bf16.gmra.mxu0 %v731
      %v4740 = vpop.f32.mrf.mxu0
      %v4741 = vadd.f32 %v4668, %v4740
      %v4742 = vpop.f32.mrf.mxu0
      %v4743 = vadd.f32 %v4670, %v4742
      %v4744 = vpop.f32.mrf.mxu0
      %v4745 = vadd.f32 %v4672, %v4744
      %v4746 = vpop.f32.mrf.mxu0
      %v4747 = vadd.f32 %v4674, %v4746
      %4748 = vmatprep.mubr.bf16.mxu0 %v738
      %4749 = vmatmul.mubr.bf16.gmra.mxu0 %v737
      %v4750 = vpop.f32.mrf.mxu0
      %v4751 = vadd.f32 %v4678, %v4750
      %v4752 = vpop.f32.mrf.mxu0
      %v4753 = vadd.f32 %v4680, %v4752
      %v4754 = vpop.f32.mrf.mxu0
      %v4755 = vadd.f32 %v4682, %v4754
      %v4756 = vpop.f32.mrf.mxu0
      %v4757 = vadd.f32 %v4684, %v4756
      %4758 = vdwg.mxu0
      %4759 = vmatprep.subr.bf16.mxu0 %v3582
      %4760 = vmatpush1.bf16.msra.mxu0 %v3581
      %4761 = vmatprep.subr.bf16.mxu0 %v3578
      %4762 = vmatpush1.bf16.msra.mxu0 %v3577
      %4763 = vmatprep.subr.bf16.mxu0 %v3574
      %4764 = vmatpush1.bf16.msra.mxu0 %v3573
      %4765 = vmatprep.subr.bf16.mxu0 %v3570
      %4766 = vmatpush1.bf16.msra.mxu0 %v3569
      %4767 = vmatprep.subr.bf16.mxu0 %v3566
      %4768 = vmatpush1.bf16.msra.mxu0 %v3565
      %4769 = vmatprep.subr.bf16.mxu0 %v3562
      %4770 = vmatpush1.bf16.msra.mxu0 %v3561
      %4771 = vmatprep.subr.bf16.mxu0 %v3558
      %4772 = vmatpush1.bf16.msra.mxu0 %v3557
      %4773 = vmatprep.subr.bf16.mxu0 %v3554
      %4774 = vmatpush1.bf16.msra.mxu0 %v3553
      %4775 = vmatprep.subr.bf16.mxu0 %v3614
      %4776 = vmatpush2.bf16.msra.mxu0 %v3613
      %4777 = vmatprep.subr.bf16.mxu0 %v3610
      %4778 = vmatpush2.bf16.msra.mxu0 %v3609
      %4779 = vmatprep.subr.bf16.mxu0 %v3606
      %4780 = vmatpush2.bf16.msra.mxu0 %v3605
      %4781 = vmatprep.subr.bf16.mxu0 %v3602
      %4782 = vmatpush2.bf16.msra.mxu0 %v3601
      %4783 = vmatprep.subr.bf16.mxu0 %v3598
      %4784 = vmatpush2.bf16.msra.mxu0 %v3597
      %4785 = vmatprep.subr.bf16.mxu0 %v3594
      %4786 = vmatpush2.bf16.msra.mxu0 %v3593
      %4787 = vmatprep.subr.bf16.mxu0 %v3590
      %4788 = vmatpush2.bf16.msra.mxu0 %v3589
      %4789 = vmatprep.subr.bf16.mxu0 %v3586
      %4790 = vmatpush2.bf16.msra.mxu0 %v3585
      %4791 = vmatprep.mubr.bf16.mxu0 %v820
      %4792 = vmatmul.mubr.bf16.gmra.mxu0 %v819
      %v4793 = vpop.f32.mrf.mxu0
      %v4794 = vadd.f32 %v4721, %v4793
      %v4795 = vpop.f32.mrf.mxu0
      %v4796 = vadd.f32 %v4723, %v4795
      %v4797 = vpop.f32.mrf.mxu0
      %v4798 = vadd.f32 %v4725, %v4797
      %v4799 = vpop.f32.mrf.mxu0
      %v4800 = vadd.f32 %v4727, %v4799
      %4801 = vmatprep.mubr.bf16.mxu0 %v826
      %4802 = vmatmul.mubr.bf16.gmra.mxu0 %v825
      %v4803 = vpop.f32.mrf.mxu0
      %v4804 = vadd.f32 %v4731, %v4803
      %v4805 = vpop.f32.mrf.mxu0
      %v4806 = vadd.f32 %v4733, %v4805
      %v4807 = vpop.f32.mrf.mxu0
      %v4808 = vadd.f32 %v4735, %v4807
      %v4809 = vpop.f32.mrf.mxu0
      %v4810 = vadd.f32 %v4737, %v4809
      %4811 = vmatprep.mubr.bf16.mxu0 %v832
      %4812 = vmatmul.mubr.bf16.gmra.mxu0 %v831
      %v4813 = vpop.f32.mrf.mxu0
      %v4814 = vadd.f32 %v4741, %v4813
      %v4815 = vpop.f32.mrf.mxu0
      %v4816 = vadd.f32 %v4743, %v4815
      %v4817 = vpop.f32.mrf.mxu0
      %v4818 = vadd.f32 %v4745, %v4817
      %v4819 = vpop.f32.mrf.mxu0
      %v4820 = vadd.f32 %v4747, %v4819
      %4821 = vmatprep.mubr.bf16.mxu0 %v838
      %4822 = vmatmul.mubr.bf16.gmra.mxu0 %v837
      %v4823 = vpop.f32.mrf.mxu0
      %v4824 = vadd.f32 %v4751, %v4823
      %v4825 = vpop.f32.mrf.mxu0
      %v4826 = vadd.f32 %v4753, %v4825
      %v4827 = vpop.f32.mrf.mxu0
      %v4828 = vadd.f32 %v4755, %v4827
      %v4829 = vpop.f32.mrf.mxu0
      %v4830 = vadd.f32 %v4757, %v4829
      %4831 = vdwg.mxu0
      %4832 = vmatprep.subr.bf16.mxu0 %v3646
      %4833 = vmatpush1.bf16.msra.mxu0 %v3645
      %4834 = vmatprep.subr.bf16.mxu0 %v3642
      %4835 = vmatpush1.bf16.msra.mxu0 %v3641
      %4836 = vmatprep.subr.bf16.mxu0 %v3638
      %4837 = vmatpush1.bf16.msra.mxu0 %v3637
      %4838 = vmatprep.subr.bf16.mxu0 %v3634
      %4839 = vmatpush1.bf16.msra.mxu0 %v3633
      %4840 = vmatprep.subr.bf16.mxu0 %v3630
      %4841 = vmatpush1.bf16.msra.mxu0 %v3629
      %4842 = vmatprep.subr.bf16.mxu0 %v3626
      %4843 = vmatpush1.bf16.msra.mxu0 %v3625
      %4844 = vmatprep.subr.bf16.mxu0 %v3622
      %4845 = vmatpush1.bf16.msra.mxu0 %v3621
      %4846 = vmatprep.subr.bf16.mxu0 %v3618
      %4847 = vmatpush1.bf16.msra.mxu0 %v3617
      %4848 = vmatprep.subr.bf16.mxu0 %v3678
      %4849 = vmatpush2.bf16.msra.mxu0 %v3677
      %4850 = vmatprep.subr.bf16.mxu0 %v3674
      %4851 = vmatpush2.bf16.msra.mxu0 %v3673
      %4852 = vmatprep.subr.bf16.mxu0 %v3670
      %4853 = vmatpush2.bf16.msra.mxu0 %v3669
      %4854 = vmatprep.subr.bf16.mxu0 %v3666
      %4855 = vmatpush2.bf16.msra.mxu0 %v3665
      %4856 = vmatprep.subr.bf16.mxu0 %v3662
      %4857 = vmatpush2.bf16.msra.mxu0 %v3661
      %4858 = vmatprep.subr.bf16.mxu0 %v3658
      %4859 = vmatpush2.bf16.msra.mxu0 %v3657
      %4860 = vmatprep.subr.bf16.mxu0 %v3654
      %4861 = vmatpush2.bf16.msra.mxu0 %v3653
      %4862 = vmatprep.subr.bf16.mxu0 %v3650
      %4863 = vmatpush2.bf16.msra.mxu0 %v3649
      %4864 = vmatprep.mubr.bf16.mxu0 %v822
      %4865 = vmatmul.mubr.bf16.gmra.mxu0 %v821
      %v4866 = vpop.f32.mrf.mxu0
      %v4867 = vadd.f32 %v4794, %v4866
      %v4868 = vpop.f32.mrf.mxu0
      %v4869 = vadd.f32 %v4796, %v4868
      %v4870 = vpop.f32.mrf.mxu0
      %v4871 = vadd.f32 %v4798, %v4870
      %v4872 = vpop.f32.mrf.mxu0
      %v4873 = vadd.f32 %v4800, %v4872
      %4874 = vmatprep.mubr.bf16.mxu0 %v828
      %4875 = vmatmul.mubr.bf16.gmra.mxu0 %v827
      %v4876 = vpop.f32.mrf.mxu0
      %v4877 = vadd.f32 %v4804, %v4876
      %v4878 = vpop.f32.mrf.mxu0
      %v4879 = vadd.f32 %v4806, %v4878
      %v4880 = vpop.f32.mrf.mxu0
      %v4881 = vadd.f32 %v4808, %v4880
      %v4882 = vpop.f32.mrf.mxu0
      %v4883 = vadd.f32 %v4810, %v4882
      %4884 = vmatprep.mubr.bf16.mxu0 %v834
      %4885 = vmatmul.mubr.bf16.gmra.mxu0 %v833
      %v4886 = vpop.f32.mrf.mxu0
      %v4887 = vadd.f32 %v4814, %v4886
      %v4888 = vpop.f32.mrf.mxu0
      %v4889 = vadd.f32 %v4816, %v4888
      %v4890 = vpop.f32.mrf.mxu0
      %v4891 = vadd.f32 %v4818, %v4890
      %v4892 = vpop.f32.mrf.mxu0
      %v4893 = vadd.f32 %v4820, %v4892
      %4894 = vmatprep.mubr.bf16.mxu0 %v840
      %4895 = vmatmul.mubr.bf16.gmra.mxu0 %v839
      %v4896 = vpop.f32.mrf.mxu0
      %v4897 = vadd.f32 %v4824, %v4896
      %v4898 = vpop.f32.mrf.mxu0
      %v4899 = vadd.f32 %v4826, %v4898
      %v4900 = vpop.f32.mrf.mxu0
      %v4901 = vadd.f32 %v4828, %v4900
      %v4902 = vpop.f32.mrf.mxu0
      %v4903 = vadd.f32 %v4830, %v4902
      %4904 = vdwg.mxu0
      %4905 = vmatprep.subr.bf16.mxu0 %v3710
      %4906 = vmatpush1.bf16.msra.mxu0 %v3709
      %4907 = vmatprep.subr.bf16.mxu0 %v3706
      %4908 = vmatpush1.bf16.msra.mxu0 %v3705
      %4909 = vmatprep.subr.bf16.mxu0 %v3702
      %4910 = vmatpush1.bf16.msra.mxu0 %v3701
      %4911 = vmatprep.subr.bf16.mxu0 %v3698
      %4912 = vmatpush1.bf16.msra.mxu0 %v3697
      %4913 = vmatprep.subr.bf16.mxu0 %v3694
      %4914 = vmatpush1.bf16.msra.mxu0 %v3693
      %4915 = vmatprep.subr.bf16.mxu0 %v3690
      %4916 = vmatpush1.bf16.msra.mxu0 %v3689
      %4917 = vmatprep.subr.bf16.mxu0 %v3686
      %4918 = vmatpush1.bf16.msra.mxu0 %v3685
      %4919 = vmatprep.subr.bf16.mxu0 %v3682
      %4920 = vmatpush1.bf16.msra.mxu0 %v3681
      %4921 = vmatprep.subr.bf16.mxu0 %v3742
      %4922 = vmatpush2.bf16.msra.mxu0 %v3741
      %4923 = vmatprep.subr.bf16.mxu0 %v3738
      %4924 = vmatpush2.bf16.msra.mxu0 %v3737
      %4925 = vmatprep.subr.bf16.mxu0 %v3734
      %4926 = vmatpush2.bf16.msra.mxu0 %v3733
      %4927 = vmatprep.subr.bf16.mxu0 %v3730
      %4928 = vmatpush2.bf16.msra.mxu0 %v3729
      %4929 = vmatprep.subr.bf16.mxu0 %v3726
      %4930 = vmatpush2.bf16.msra.mxu0 %v3725
      %4931 = vmatprep.subr.bf16.mxu0 %v3722
      %4932 = vmatpush2.bf16.msra.mxu0 %v3721
      %4933 = vmatprep.subr.bf16.mxu0 %v3718
      %4934 = vmatpush2.bf16.msra.mxu0 %v3717
      %4935 = vmatprep.subr.bf16.mxu0 %v3714
      %4936 = vmatpush2.bf16.msra.mxu0 %v3713
      %4937 = vmatprep.mubr.bf16.mxu0 %v824
      %4938 = vmatmul.mubr.bf16.gmra.mxu0 %v823
      %v4939 = vpop.f32.mrf.mxu0
      %v4940 = vadd.f32 %v4867, %v4939
      %v4941 = vpop.f32.mrf.mxu0
      %v4942 = vadd.f32 %v4869, %v4941
      %v4943 = vpop.f32.mrf.mxu0
      %v4944 = vadd.f32 %v4871, %v4943
      %v4945 = vpop.f32.mrf.mxu0
      %v4946 = vadd.f32 %v4873, %v4945
      %4947 = vmatprep.mubr.bf16.mxu0 %v830
      %4948 = vmatmul.mubr.bf16.gmra.mxu0 %v829
      %v4949 = vpop.f32.mrf.mxu0
      %v4950 = vadd.f32 %v4877, %v4949
      %v4951 = vpop.f32.mrf.mxu0
      %v4952 = vadd.f32 %v4879, %v4951
      %v4953 = vpop.f32.mrf.mxu0
      %v4954 = vadd.f32 %v4881, %v4953
      %v4955 = vpop.f32.mrf.mxu0
      %v4956 = vadd.f32 %v4883, %v4955
      %4957 = vmatprep.mubr.bf16.mxu0 %v836
      %4958 = vmatmul.mubr.bf16.gmra.mxu0 %v835
      %v4959 = vpop.f32.mrf.mxu0
      %v4960 = vadd.f32 %v4887, %v4959
      %v4961 = vpop.f32.mrf.mxu0
      %v4962 = vadd.f32 %v4889, %v4961
      %v4963 = vpop.f32.mrf.mxu0
      %v4964 = vadd.f32 %v4891, %v4963
      %v4965 = vpop.f32.mrf.mxu0
      %v4966 = vadd.f32 %v4893, %v4965
      %4967 = vmatprep.mubr.bf16.mxu0 %v842
      %4968 = vmatmul.mubr.bf16.gmra.mxu0 %v841
      %v4969 = vpop.f32.mrf.mxu0
      %v4970 = vadd.f32 %v4897, %v4969
      %v4971 = vpop.f32.mrf.mxu0
      %v4972 = vadd.f32 %v4899, %v4971
      %v4973 = vpop.f32.mrf.mxu0
      %v4974 = vadd.f32 %v4901, %v4973
      %v4975 = vpop.f32.mrf.mxu0
      %v4976 = vadd.f32 %v4903, %v4975
      %4977 = vdwg.mxu0
      %4978 = vmatprep.subr.bf16.mxu0 %v3200
      %4979 = vmatpush1.bf16.msra.mxu0 %v3199
      %4980 = vmatprep.subr.bf16.mxu0 %v3196
      %4981 = vmatpush1.bf16.msra.mxu0 %v3195
      %4982 = vmatprep.subr.bf16.mxu0 %v3192
      %4983 = vmatpush1.bf16.msra.mxu0 %v3191
      %4984 = vmatprep.subr.bf16.mxu0 %v3188
      %4985 = vmatpush1.bf16.msra.mxu0 %v3187
      %4986 = vmatprep.subr.bf16.mxu0 %v3184
      %4987 = vmatpush1.bf16.msra.mxu0 %v3183
      %4988 = vmatprep.subr.bf16.mxu0 %v3180
      %4989 = vmatpush1.bf16.msra.mxu0 %v3179
      %4990 = vmatprep.subr.bf16.mxu0 %v3176
      %4991 = vmatpush1.bf16.msra.mxu0 %v3175
      %4992 = vmatprep.subr.bf16.mxu0 %v3172
      %4993 = vmatpush1.bf16.msra.mxu0 %v3171
      %4994 = vmatprep.subr.bf16.mxu0 %v3232
      %4995 = vmatpush2.bf16.msra.mxu0 %v3231
      %4996 = vmatprep.subr.bf16.mxu0 %v3228
      %4997 = vmatpush2.bf16.msra.mxu0 %v3227
      %4998 = vmatprep.subr.bf16.mxu0 %v3224
      %4999 = vmatpush2.bf16.msra.mxu0 %v3223
      %5000 = vmatprep.subr.bf16.mxu0 %v3220
      %5001 = vmatpush2.bf16.msra.mxu0 %v3219
      %5002 = vmatprep.subr.bf16.mxu0 %v3216
      %5003 = vmatpush2.bf16.msra.mxu0 %v3215
      %5004 = vmatprep.subr.bf16.mxu0 %v3212
      %5005 = vmatpush2.bf16.msra.mxu0 %v3211
      %5006 = vmatprep.subr.bf16.mxu0 %v3208
      %5007 = vmatpush2.bf16.msra.mxu0 %v3207
      %5008 = vmatprep.subr.bf16.mxu0 %v3204
      %5009 = vmatpush2.bf16.msra.mxu0 %v3203
      %5010 = vmatprep.mubr.bf16.mxu0 %v692
      %5011 = vmatmul.mubr.bf16.gmra.mxu0 %v691
      %v5012 = vpop.f32.mrf.mxu0
      %v5013 = vadd.f32 %v1432, %v5012
      %v5014 = vpop.f32.mrf.mxu0
      %v5015 = vadd.f32 %v1436, %v5014
      %v5016 = vpop.f32.mrf.mxu0
      %v5017 = vadd.f32 %v1432, %v5016
      %v5018 = vpop.f32.mrf.mxu0
      %v5019 = vadd.f32 %v1436, %v5018
      %5020 = vmatprep.mubr.bf16.mxu0 %v698
      %5021 = vmatmul.mubr.bf16.gmra.mxu0 %v697
      %v5022 = vpop.f32.mrf.mxu0
      %v5023 = vadd.f32 %v1432, %v5022
      %v5024 = vpop.f32.mrf.mxu0
      %v5025 = vadd.f32 %v1436, %v5024
      %v5026 = vpop.f32.mrf.mxu0
      %v5027 = vadd.f32 %v1432, %v5026
      %v5028 = vpop.f32.mrf.mxu0
      %v5029 = vadd.f32 %v1436, %v5028
      %5030 = vmatprep.mubr.bf16.mxu0 %v704
      %5031 = vmatmul.mubr.bf16.gmra.mxu0 %v703
      %v5032 = vpop.f32.mrf.mxu0
      %v5033 = vadd.f32 %v1432, %v5032
      %v5034 = vpop.f32.mrf.mxu0
      %v5035 = vadd.f32 %v1436, %v5034
      %v5036 = vpop.f32.mrf.mxu0
      %v5037 = vadd.f32 %v1432, %v5036
      %v5038 = vpop.f32.mrf.mxu0
      %v5039 = vadd.f32 %v1436, %v5038
      %5040 = vmatprep.mubr.bf16.mxu0 %v710
      %5041 = vmatmul.mubr.bf16.gmra.mxu0 %v709
      %v5042 = vpop.f32.mrf.mxu0
      %v5043 = vadd.f32 %v1432, %v5042
      %v5044 = vpop.f32.mrf.mxu0
      %v5045 = vadd.f32 %v1436, %v5044
      %v5046 = vpop.f32.mrf.mxu0
      %v5047 = vadd.f32 %v1432, %v5046
      %v5048 = vpop.f32.mrf.mxu0
      %v5049 = vadd.f32 %v1436, %v5048
      %5050 = vdwg.mxu0
      %5051 = vmatprep.subr.bf16.mxu0 %v3264
      %5052 = vmatpush1.bf16.msra.mxu0 %v3263
      %5053 = vmatprep.subr.bf16.mxu0 %v3260
      %5054 = vmatpush1.bf16.msra.mxu0 %v3259
      %5055 = vmatprep.subr.bf16.mxu0 %v3256
      %5056 = vmatpush1.bf16.msra.mxu0 %v3255
      %5057 = vmatprep.subr.bf16.mxu0 %v3252
      %5058 = vmatpush1.bf16.msra.mxu0 %v3251
      %5059 = vmatprep.subr.bf16.mxu0 %v3248
      %5060 = vmatpush1.bf16.msra.mxu0 %v3247
      %5061 = vmatprep.subr.bf16.mxu0 %v3244
      %5062 = vmatpush1.bf16.msra.mxu0 %v3243
      %5063 = vmatprep.subr.bf16.mxu0 %v3240
      %5064 = vmatpush1.bf16.msra.mxu0 %v3239
      %5065 = vmatprep.subr.bf16.mxu0 %v3236
      %5066 = vmatpush1.bf16.msra.mxu0 %v3235
      %5067 = vmatprep.subr.bf16.mxu0 %v3296
      %5068 = vmatpush2.bf16.msra.mxu0 %v3295
      %5069 = vmatprep.subr.bf16.mxu0 %v3292
      %5070 = vmatpush2.bf16.msra.mxu0 %v3291
      %5071 = vmatprep.subr.bf16.mxu0 %v3288
      %5072 = vmatpush2.bf16.msra.mxu0 %v3287
      %5073 = vmatprep.subr.bf16.mxu0 %v3284
      %5074 = vmatpush2.bf16.msra.mxu0 %v3283
      %5075 = vmatprep.subr.bf16.mxu0 %v3280
      %5076 = vmatpush2.bf16.msra.mxu0 %v3279
      %5077 = vmatprep.subr.bf16.mxu0 %v3276
      %5078 = vmatpush2.bf16.msra.mxu0 %v3275
      %5079 = vmatprep.subr.bf16.mxu0 %v3272
      %5080 = vmatpush2.bf16.msra.mxu0 %v3271
      %5081 = vmatprep.subr.bf16.mxu0 %v3268
      %5082 = vmatpush2.bf16.msra.mxu0 %v3267
      %5083 = vmatprep.mubr.bf16.mxu0 %v694
      %5084 = vmatmul.mubr.bf16.gmra.mxu0 %v693
      %v5085 = vpop.f32.mrf.mxu0
      %v5086 = vadd.f32 %v5013, %v5085
      %v5087 = vpop.f32.mrf.mxu0
      %v5088 = vadd.f32 %v5015, %v5087
      %v5089 = vpop.f32.mrf.mxu0
      %v5090 = vadd.f32 %v5017, %v5089
      %v5091 = vpop.f32.mrf.mxu0
      %v5092 = vadd.f32 %v5019, %v5091
      %5093 = vmatprep.mubr.bf16.mxu0 %v700
      %5094 = vmatmul.mubr.bf16.gmra.mxu0 %v699
      %v5095 = vpop.f32.mrf.mxu0
      %v5096 = vadd.f32 %v5023, %v5095
      %v5097 = vpop.f32.mrf.mxu0
      %v5098 = vadd.f32 %v5025, %v5097
      %v5099 = vpop.f32.mrf.mxu0
      %v5100 = vadd.f32 %v5027, %v5099
      %v5101 = vpop.f32.mrf.mxu0
      %v5102 = vadd.f32 %v5029, %v5101
      %5103 = vmatprep.mubr.bf16.mxu0 %v706
      %5104 = vmatmul.mubr.bf16.gmra.mxu0 %v705
      %v5105 = vpop.f32.mrf.mxu0
      %v5106 = vadd.f32 %v5033, %v5105
      %v5107 = vpop.f32.mrf.mxu0
      %v5108 = vadd.f32 %v5035, %v5107
      %v5109 = vpop.f32.mrf.mxu0
      %v5110 = vadd.f32 %v5037, %v5109
      %v5111 = vpop.f32.mrf.mxu0
      %v5112 = vadd.f32 %v5039, %v5111
      %5113 = vmatprep.mubr.bf16.mxu0 %v712
      %5114 = vmatmul.mubr.bf16.gmra.mxu0 %v711
      %v5115 = vpop.f32.mrf.mxu0
      %v5116 = vadd.f32 %v5043, %v5115
      %v5117 = vpop.f32.mrf.mxu0
      %v5118 = vadd.f32 %v5045, %v5117
      %v5119 = vpop.f32.mrf.mxu0
      %v5120 = vadd.f32 %v5047, %v5119
      %v5121 = vpop.f32.mrf.mxu0
      %v5122 = vadd.f32 %v5049, %v5121
      %5123 = vdwg.mxu0
      %5124 = vmatprep.subr.bf16.mxu0 %v3328
      %5125 = vmatpush1.bf16.msra.mxu0 %v3327
      %5126 = vmatprep.subr.bf16.mxu0 %v3324
      %5127 = vmatpush1.bf16.msra.mxu0 %v3323
      %5128 = vmatprep.subr.bf16.mxu0 %v3320
      %5129 = vmatpush1.bf16.msra.mxu0 %v3319
      %5130 = vmatprep.subr.bf16.mxu0 %v3316
      %5131 = vmatpush1.bf16.msra.mxu0 %v3315
      %5132 = vmatprep.subr.bf16.mxu0 %v3312
      %5133 = vmatpush1.bf16.msra.mxu0 %v3311
      %5134 = vmatprep.subr.bf16.mxu0 %v3308
      %5135 = vmatpush1.bf16.msra.mxu0 %v3307
      %5136 = vmatprep.subr.bf16.mxu0 %v3304
      %5137 = vmatpush1.bf16.msra.mxu0 %v3303
      %5138 = vmatprep.subr.bf16.mxu0 %v3300
      %5139 = vmatpush1.bf16.msra.mxu0 %v3299
      %5140 = vmatprep.subr.bf16.mxu0 %v3360
      %5141 = vmatpush2.bf16.msra.mxu0 %v3359
      %5142 = vmatprep.subr.bf16.mxu0 %v3356
      %5143 = vmatpush2.bf16.msra.mxu0 %v3355
      %5144 = vmatprep.subr.bf16.mxu0 %v3352
      %5145 = vmatpush2.bf16.msra.mxu0 %v3351
      %5146 = vmatprep.subr.bf16.mxu0 %v3348
      %5147 = vmatpush2.bf16.msra.mxu0 %v3347
      %5148 = vmatprep.subr.bf16.mxu0 %v3344
      %5149 = vmatpush2.bf16.msra.mxu0 %v3343
      %5150 = vmatprep.subr.bf16.mxu0 %v3340
      %5151 = vmatpush2.bf16.msra.mxu0 %v3339
      %5152 = vmatprep.subr.bf16.mxu0 %v3336
      %5153 = vmatpush2.bf16.msra.mxu0 %v3335
      %5154 = vmatprep.subr.bf16.mxu0 %v3332
      %5155 = vmatpush2.bf16.msra.mxu0 %v3331
      %5156 = vmatprep.mubr.bf16.mxu0 %v696
      %5157 = vmatmul.mubr.bf16.gmra.mxu0 %v695
      %v5158 = vpop.f32.mrf.mxu0
      %v5159 = vadd.f32 %v5086, %v5158
      %v5160 = vpop.f32.mrf.mxu0
      %v5161 = vadd.f32 %v5088, %v5160
      %v5162 = vpop.f32.mrf.mxu0
      %v5163 = vadd.f32 %v5090, %v5162
      %v5164 = vpop.f32.mrf.mxu0
      %v5165 = vadd.f32 %v5092, %v5164
      %5166 = vmatprep.mubr.bf16.mxu0 %v702
      %5167 = vmatmul.mubr.bf16.gmra.mxu0 %v701
      %v5168 = vpop.f32.mrf.mxu0
      %v5169 = vadd.f32 %v5096, %v5168
      %v5170 = vpop.f32.mrf.mxu0
      %v5171 = vadd.f32 %v5098, %v5170
      %v5172 = vpop.f32.mrf.mxu0
      %v5173 = vadd.f32 %v5100, %v5172
      %v5174 = vpop.f32.mrf.mxu0
      %v5175 = vadd.f32 %v5102, %v5174
      %5176 = vmatprep.mubr.bf16.mxu0 %v708
      %5177 = vmatmul.mubr.bf16.gmra.mxu0 %v707
      %v5178 = vpop.f32.mrf.mxu0
      %v5179 = vadd.f32 %v5106, %v5178
      %v5180 = vpop.f32.mrf.mxu0
      %v5181 = vadd.f32 %v5108, %v5180
      %v5182 = vpop.f32.mrf.mxu0
      %v5183 = vadd.f32 %v5110, %v5182
      %v5184 = vpop.f32.mrf.mxu0
      %v5185 = vadd.f32 %v5112, %v5184
      %5186 = vmatprep.mubr.bf16.mxu0 %v714
      %5187 = vmatmul.mubr.bf16.gmra.mxu0 %v713
      %v5188 = vpop.f32.mrf.mxu0
      %v5189 = vadd.f32 %v5116, %v5188
      %v5190 = vpop.f32.mrf.mxu0
      %v5191 = vadd.f32 %v5118, %v5190
      %v5192 = vpop.f32.mrf.mxu0
      %v5193 = vadd.f32 %v5120, %v5192
      %v5194 = vpop.f32.mrf.mxu0
      %v5195 = vadd.f32 %v5122, %v5194
      %5196 = vdwg.mxu0
      %5197 = vmatprep.subr.bf16.mxu0 %v3392
      %5198 = vmatpush1.bf16.msra.mxu0 %v3391
      %5199 = vmatprep.subr.bf16.mxu0 %v3388
      %5200 = vmatpush1.bf16.msra.mxu0 %v3387
      %5201 = vmatprep.subr.bf16.mxu0 %v3384
      %5202 = vmatpush1.bf16.msra.mxu0 %v3383
      %5203 = vmatprep.subr.bf16.mxu0 %v3380
      %5204 = vmatpush1.bf16.msra.mxu0 %v3379
      %5205 = vmatprep.subr.bf16.mxu0 %v3376
      %5206 = vmatpush1.bf16.msra.mxu0 %v3375
      %5207 = vmatprep.subr.bf16.mxu0 %v3372
      %5208 = vmatpush1.bf16.msra.mxu0 %v3371
      %5209 = vmatprep.subr.bf16.mxu0 %v3368
      %5210 = vmatpush1.bf16.msra.mxu0 %v3367
      %5211 = vmatprep.subr.bf16.mxu0 %v3364
      %5212 = vmatpush1.bf16.msra.mxu0 %v3363
      %5213 = vmatprep.subr.bf16.mxu0 %v3424
      %5214 = vmatpush2.bf16.msra.mxu0 %v3423
      %5215 = vmatprep.subr.bf16.mxu0 %v3420
      %5216 = vmatpush2.bf16.msra.mxu0 %v3419
      %5217 = vmatprep.subr.bf16.mxu0 %v3416
      %5218 = vmatpush2.bf16.msra.mxu0 %v3415
      %5219 = vmatprep.subr.bf16.mxu0 %v3412
      %5220 = vmatpush2.bf16.msra.mxu0 %v3411
      %5221 = vmatprep.subr.bf16.mxu0 %v3408
      %5222 = vmatpush2.bf16.msra.mxu0 %v3407
      %5223 = vmatprep.subr.bf16.mxu0 %v3404
      %5224 = vmatpush2.bf16.msra.mxu0 %v3403
      %5225 = vmatprep.subr.bf16.mxu0 %v3400
      %5226 = vmatpush2.bf16.msra.mxu0 %v3399
      %5227 = vmatprep.subr.bf16.mxu0 %v3396
      %5228 = vmatpush2.bf16.msra.mxu0 %v3395
      %5229 = vmatprep.mubr.bf16.mxu0 %v716
      %5230 = vmatmul.mubr.bf16.gmra.mxu0 %v715
      %v5231 = vpop.f32.mrf.mxu0
      %v5232 = vadd.f32 %v5159, %v5231
      %v5233 = vpop.f32.mrf.mxu0
      %v5234 = vadd.f32 %v5161, %v5233
      %v5235 = vpop.f32.mrf.mxu0
      %v5236 = vadd.f32 %v5163, %v5235
      %v5237 = vpop.f32.mrf.mxu0
      %v5238 = vadd.f32 %v5165, %v5237
      %5239 = vmatprep.mubr.bf16.mxu0 %v722
      %5240 = vmatmul.mubr.bf16.gmra.mxu0 %v721
      %v5241 = vpop.f32.mrf.mxu0
      %v5242 = vadd.f32 %v5169, %v5241
      %v5243 = vpop.f32.mrf.mxu0
      %v5244 = vadd.f32 %v5171, %v5243
      %v5245 = vpop.f32.mrf.mxu0
      %v5246 = vadd.f32 %v5173, %v5245
      %v5247 = vpop.f32.mrf.mxu0
      %v5248 = vadd.f32 %v5175, %v5247
      %5249 = vmatprep.mubr.bf16.mxu0 %v728
      %5250 = vmatmul.mubr.bf16.gmra.mxu0 %v727
      %v5251 = vpop.f32.mrf.mxu0
      %v5252 = vadd.f32 %v5179, %v5251
      %v5253 = vpop.f32.mrf.mxu0
      %v5254 = vadd.f32 %v5181, %v5253
      %v5255 = vpop.f32.mrf.mxu0
      %v5256 = vadd.f32 %v5183, %v5255
      %v5257 = vpop.f32.mrf.mxu0
      %v5258 = vadd.f32 %v5185, %v5257
      %5259 = vmatprep.mubr.bf16.mxu0 %v734
      %5260 = vmatmul.mubr.bf16.gmra.mxu0 %v733
      %v5261 = vpop.f32.mrf.mxu0
      %v5262 = vadd.f32 %v5189, %v5261
      %v5263 = vpop.f32.mrf.mxu0
      %v5264 = vadd.f32 %v5191, %v5263
      %v5265 = vpop.f32.mrf.mxu0
      %v5266 = vadd.f32 %v5193, %v5265
      %v5267 = vpop.f32.mrf.mxu0
      %v5268 = vadd.f32 %v5195, %v5267
      %5269 = vdwg.mxu0
      %5270 = vmatprep.subr.bf16.mxu0 %v3456
      %5271 = vmatpush1.bf16.msra.mxu0 %v3455
      %5272 = vmatprep.subr.bf16.mxu0 %v3452
      %5273 = vmatpush1.bf16.msra.mxu0 %v3451
      %5274 = vmatprep.subr.bf16.mxu0 %v3448
      %5275 = vmatpush1.bf16.msra.mxu0 %v3447
      %5276 = vmatprep.subr.bf16.mxu0 %v3444
      %5277 = vmatpush1.bf16.msra.mxu0 %v3443
      %5278 = vmatprep.subr.bf16.mxu0 %v3440
      %5279 = vmatpush1.bf16.msra.mxu0 %v3439
      %5280 = vmatprep.subr.bf16.mxu0 %v3436
      %5281 = vmatpush1.bf16.msra.mxu0 %v3435
      %5282 = vmatprep.subr.bf16.mxu0 %v3432
      %5283 = vmatpush1.bf16.msra.mxu0 %v3431
      %5284 = vmatprep.subr.bf16.mxu0 %v3428
      %5285 = vmatpush1.bf16.msra.mxu0 %v3427
      %5286 = vmatprep.subr.bf16.mxu0 %v3488
      %5287 = vmatpush2.bf16.msra.mxu0 %v3487
      %5288 = vmatprep.subr.bf16.mxu0 %v3484
      %5289 = vmatpush2.bf16.msra.mxu0 %v3483
      %5290 = vmatprep.subr.bf16.mxu0 %v3480
      %5291 = vmatpush2.bf16.msra.mxu0 %v3479
      %5292 = vmatprep.subr.bf16.mxu0 %v3476
      %5293 = vmatpush2.bf16.msra.mxu0 %v3475
      %5294 = vmatprep.subr.bf16.mxu0 %v3472
      %5295 = vmatpush2.bf16.msra.mxu0 %v3471
      %5296 = vmatprep.subr.bf16.mxu0 %v3468
      %5297 = vmatpush2.bf16.msra.mxu0 %v3467
      %5298 = vmatprep.subr.bf16.mxu0 %v3464
      %5299 = vmatpush2.bf16.msra.mxu0 %v3463
      %5300 = vmatprep.subr.bf16.mxu0 %v3460
      %5301 = vmatpush2.bf16.msra.mxu0 %v3459
      %5302 = vmatprep.mubr.bf16.mxu0 %v718
      %5303 = vmatmul.mubr.bf16.gmra.mxu0 %v717
      %v5304 = vpop.f32.mrf.mxu0
      %v5305 = vadd.f32 %v5232, %v5304
      %v5306 = vpop.f32.mrf.mxu0
      %v5307 = vadd.f32 %v5234, %v5306
      %v5308 = vpop.f32.mrf.mxu0
      %v5309 = vadd.f32 %v5236, %v5308
      %v5310 = vpop.f32.mrf.mxu0
      %v5311 = vadd.f32 %v5238, %v5310
      %5312 = vmatprep.mubr.bf16.mxu0 %v724
      %5313 = vmatmul.mubr.bf16.gmra.mxu0 %v723
      %v5314 = vpop.f32.mrf.mxu0
      %v5315 = vadd.f32 %v5242, %v5314
      %v5316 = vpop.f32.mrf.mxu0
      %v5317 = vadd.f32 %v5244, %v5316
      %v5318 = vpop.f32.mrf.mxu0
      %v5319 = vadd.f32 %v5246, %v5318
      %v5320 = vpop.f32.mrf.mxu0
      %v5321 = vadd.f32 %v5248, %v5320
      %5322 = vmatprep.mubr.bf16.mxu0 %v730
      %5323 = vmatmul.mubr.bf16.gmra.mxu0 %v729
      %v5324 = vpop.f32.mrf.mxu0
      %v5325 = vadd.f32 %v5252, %v5324
      %v5326 = vpop.f32.mrf.mxu0
      %v5327 = vadd.f32 %v5254, %v5326
      %v5328 = vpop.f32.mrf.mxu0
      %v5329 = vadd.f32 %v5256, %v5328
      %v5330 = vpop.f32.mrf.mxu0
      %v5331 = vadd.f32 %v5258, %v5330
      %5332 = vmatprep.mubr.bf16.mxu0 %v736
      %5333 = vmatmul.mubr.bf16.gmra.mxu0 %v735
      %v5334 = vpop.f32.mrf.mxu0
      %v5335 = vadd.f32 %v5262, %v5334
      %v5336 = vpop.f32.mrf.mxu0
      %v5337 = vadd.f32 %v5264, %v5336
      %v5338 = vpop.f32.mrf.mxu0
      %v5339 = vadd.f32 %v5266, %v5338
      %v5340 = vpop.f32.mrf.mxu0
      %v5341 = vadd.f32 %v5268, %v5340
      %5342 = vdwg.mxu0
      %5343 = vmatprep.subr.bf16.mxu0 %v3520
      %5344 = vmatpush1.bf16.msra.mxu0 %v3519
      %5345 = vmatprep.subr.bf16.mxu0 %v3516
      %5346 = vmatpush1.bf16.msra.mxu0 %v3515
      %5347 = vmatprep.subr.bf16.mxu0 %v3512
      %5348 = vmatpush1.bf16.msra.mxu0 %v3511
      %5349 = vmatprep.subr.bf16.mxu0 %v3508
      %5350 = vmatpush1.bf16.msra.mxu0 %v3507
      %5351 = vmatprep.subr.bf16.mxu0 %v3504
      %5352 = vmatpush1.bf16.msra.mxu0 %v3503
      %5353 = vmatprep.subr.bf16.mxu0 %v3500
      %5354 = vmatpush1.bf16.msra.mxu0 %v3499
      %5355 = vmatprep.subr.bf16.mxu0 %v3496
      %5356 = vmatpush1.bf16.msra.mxu0 %v3495
      %5357 = vmatprep.subr.bf16.mxu0 %v3492
      %5358 = vmatpush1.bf16.msra.mxu0 %v3491
      %5359 = vmatprep.subr.bf16.mxu0 %v3552
      %5360 = vmatpush2.bf16.msra.mxu0 %v3551
      %5361 = vmatprep.subr.bf16.mxu0 %v3548
      %5362 = vmatpush2.bf16.msra.mxu0 %v3547
      %5363 = vmatprep.subr.bf16.mxu0 %v3544
      %5364 = vmatpush2.bf16.msra.mxu0 %v3543
      %5365 = vmatprep.subr.bf16.mxu0 %v3540
      %5366 = vmatpush2.bf16.msra.mxu0 %v3539
      %5367 = vmatprep.subr.bf16.mxu0 %v3536
      %5368 = vmatpush2.bf16.msra.mxu0 %v3535
      %5369 = vmatprep.subr.bf16.mxu0 %v3532
      %5370 = vmatpush2.bf16.msra.mxu0 %v3531
      %5371 = vmatprep.subr.bf16.mxu0 %v3528
      %5372 = vmatpush2.bf16.msra.mxu0 %v3527
      %5373 = vmatprep.subr.bf16.mxu0 %v3524
      %5374 = vmatpush2.bf16.msra.mxu0 %v3523
      %5375 = vmatprep.mubr.bf16.mxu0 %v720
      %5376 = vmatmul.mubr.bf16.gmra.mxu0 %v719
      %v5377 = vpop.f32.mrf.mxu0
      %v5378 = vadd.f32 %v5305, %v5377
      %v5379 = vpop.f32.mrf.mxu0
      %v5380 = vadd.f32 %v5307, %v5379
      %v5381 = vpop.f32.mrf.mxu0
      %v5382 = vadd.f32 %v5309, %v5381
      %v5383 = vpop.f32.mrf.mxu0
      %v5384 = vadd.f32 %v5311, %v5383
      %5385 = vmatprep.mubr.bf16.mxu0 %v726
      %5386 = vmatmul.mubr.bf16.gmra.mxu0 %v725
      %v5387 = vpop.f32.mrf.mxu0
      %v5388 = vadd.f32 %v5315, %v5387
      %v5389 = vpop.f32.mrf.mxu0
      %v5390 = vadd.f32 %v5317, %v5389
      %v5391 = vpop.f32.mrf.mxu0
      %v5392 = vadd.f32 %v5319, %v5391
      %v5393 = vpop.f32.mrf.mxu0
      %v5394 = vadd.f32 %v5321, %v5393
      %5395 = vmatprep.mubr.bf16.mxu0 %v732
      %5396 = vmatmul.mubr.bf16.gmra.mxu0 %v731
      %v5397 = vpop.f32.mrf.mxu0
      %v5398 = vadd.f32 %v5325, %v5397
      %v5399 = vpop.f32.mrf.mxu0
      %v5400 = vadd.f32 %v5327, %v5399
      %v5401 = vpop.f32.mrf.mxu0
      %v5402 = vadd.f32 %v5329, %v5401
      %v5403 = vpop.f32.mrf.mxu0
      %v5404 = vadd.f32 %v5331, %v5403
      %5405 = vmatprep.mubr.bf16.mxu0 %v738
      %5406 = vmatmul.mubr.bf16.gmra.mxu0 %v737
      %v5407 = vpop.f32.mrf.mxu0
      %v5408 = vadd.f32 %v5335, %v5407
      %v5409 = vpop.f32.mrf.mxu0
      %v5410 = vadd.f32 %v5337, %v5409
      %v5411 = vpop.f32.mrf.mxu0
      %v5412 = vadd.f32 %v5339, %v5411
      %v5413 = vpop.f32.mrf.mxu0
      %v5414 = vadd.f32 %v5341, %v5413
      %5415 = vdwg.mxu0
      %5416 = vmatprep.subr.bf16.mxu0 %v3584
      %5417 = vmatpush1.bf16.msra.mxu0 %v3583
      %5418 = vmatprep.subr.bf16.mxu0 %v3580
      %5419 = vmatpush1.bf16.msra.mxu0 %v3579
      %5420 = vmatprep.subr.bf16.mxu0 %v3576
      %5421 = vmatpush1.bf16.msra.mxu0 %v3575
      %5422 = vmatprep.subr.bf16.mxu0 %v3572
      %5423 = vmatpush1.bf16.msra.mxu0 %v3571
      %5424 = vmatprep.subr.bf16.mxu0 %v3568
      %5425 = vmatpush1.bf16.msra.mxu0 %v3567
      %5426 = vmatprep.subr.bf16.mxu0 %v3564
      %5427 = vmatpush1.bf16.msra.mxu0 %v3563
      %5428 = vmatprep.subr.bf16.mxu0 %v3560
      %5429 = vmatpush1.bf16.msra.mxu0 %v3559
      %5430 = vmatprep.subr.bf16.mxu0 %v3556
      %5431 = vmatpush1.bf16.msra.mxu0 %v3555
      %5432 = vmatprep.subr.bf16.mxu0 %v3616
      %5433 = vmatpush2.bf16.msra.mxu0 %v3615
      %5434 = vmatprep.subr.bf16.mxu0 %v3612
      %5435 = vmatpush2.bf16.msra.mxu0 %v3611
      %5436 = vmatprep.subr.bf16.mxu0 %v3608
      %5437 = vmatpush2.bf16.msra.mxu0 %v3607
      %5438 = vmatprep.subr.bf16.mxu0 %v3604
      %5439 = vmatpush2.bf16.msra.mxu0 %v3603
      %5440 = vmatprep.subr.bf16.mxu0 %v3600
      %5441 = vmatpush2.bf16.msra.mxu0 %v3599
      %5442 = vmatprep.subr.bf16.mxu0 %v3596
      %5443 = vmatpush2.bf16.msra.mxu0 %v3595
      %5444 = vmatprep.subr.bf16.mxu0 %v3592
      %5445 = vmatpush2.bf16.msra.mxu0 %v3591
      %5446 = vmatprep.subr.bf16.mxu0 %v3588
      %5447 = vmatpush2.bf16.msra.mxu0 %v3587
      %5448 = vmatprep.mubr.bf16.mxu0 %v820
      %5449 = vmatmul.mubr.bf16.gmra.mxu0 %v819
      %v5450 = vpop.f32.mrf.mxu0
      %v5451 = vadd.f32 %v5378, %v5450
      %v5452 = vpop.f32.mrf.mxu0
      %v5453 = vadd.f32 %v5380, %v5452
      %v5454 = vpop.f32.mrf.mxu0
      %v5455 = vadd.f32 %v5382, %v5454
      %v5456 = vpop.f32.mrf.mxu0
      %v5457 = vadd.f32 %v5384, %v5456
      %5458 = vmatprep.mubr.bf16.mxu0 %v826
      %5459 = vmatmul.mubr.bf16.gmra.mxu0 %v825
      %v5460 = vpop.f32.mrf.mxu0
      %v5461 = vadd.f32 %v5388, %v5460
      %v5462 = vpop.f32.mrf.mxu0
      %v5463 = vadd.f32 %v5390, %v5462
      %v5464 = vpop.f32.mrf.mxu0
      %v5465 = vadd.f32 %v5392, %v5464
      %v5466 = vpop.f32.mrf.mxu0
      %v5467 = vadd.f32 %v5394, %v5466
      %5468 = vmatprep.mubr.bf16.mxu0 %v832
      %5469 = vmatmul.mubr.bf16.gmra.mxu0 %v831
      %v5470 = vpop.f32.mrf.mxu0
      %v5471 = vadd.f32 %v5398, %v5470
      %v5472 = vpop.f32.mrf.mxu0
      %v5473 = vadd.f32 %v5400, %v5472
      %v5474 = vpop.f32.mrf.mxu0
      %v5475 = vadd.f32 %v5402, %v5474
      %v5476 = vpop.f32.mrf.mxu0
      %v5477 = vadd.f32 %v5404, %v5476
      %5478 = vmatprep.mubr.bf16.mxu0 %v838
      %5479 = vmatmul.mubr.bf16.gmra.mxu0 %v837
      %v5480 = vpop.f32.mrf.mxu0
      %v5481 = vadd.f32 %v5408, %v5480
      %v5482 = vpop.f32.mrf.mxu0
      %v5483 = vadd.f32 %v5410, %v5482
      %v5484 = vpop.f32.mrf.mxu0
      %v5485 = vadd.f32 %v5412, %v5484
      %v5486 = vpop.f32.mrf.mxu0
      %v5487 = vadd.f32 %v5414, %v5486
      %5488 = vdwg.mxu0
      %5489 = vmatprep.subr.bf16.mxu0 %v3648
      %5490 = vmatpush1.bf16.msra.mxu0 %v3647
      %5491 = vmatprep.subr.bf16.mxu0 %v3644
      %5492 = vmatpush1.bf16.msra.mxu0 %v3643
      %5493 = vmatprep.subr.bf16.mxu0 %v3640
      %5494 = vmatpush1.bf16.msra.mxu0 %v3639
      %5495 = vmatprep.subr.bf16.mxu0 %v3636
      %5496 = vmatpush1.bf16.msra.mxu0 %v3635
      %5497 = vmatprep.subr.bf16.mxu0 %v3632
      %5498 = vmatpush1.bf16.msra.mxu0 %v3631
      %5499 = vmatprep.subr.bf16.mxu0 %v3628
      %5500 = vmatpush1.bf16.msra.mxu0 %v3627
      %5501 = vmatprep.subr.bf16.mxu0 %v3624
      %5502 = vmatpush1.bf16.msra.mxu0 %v3623
      %5503 = vmatprep.subr.bf16.mxu0 %v3620
      %5504 = vmatpush1.bf16.msra.mxu0 %v3619
      %5505 = vmatprep.subr.bf16.mxu0 %v3680
      %5506 = vmatpush2.bf16.msra.mxu0 %v3679
      %5507 = vmatprep.subr.bf16.mxu0 %v3676
      %5508 = vmatpush2.bf16.msra.mxu0 %v3675
      %5509 = vmatprep.subr.bf16.mxu0 %v3672
      %5510 = vmatpush2.bf16.msra.mxu0 %v3671
      %5511 = vmatprep.subr.bf16.mxu0 %v3668
      %5512 = vmatpush2.bf16.msra.mxu0 %v3667
      %5513 = vmatprep.subr.bf16.mxu0 %v3664
      %5514 = vmatpush2.bf16.msra.mxu0 %v3663
      %5515 = vmatprep.subr.bf16.mxu0 %v3660
      %5516 = vmatpush2.bf16.msra.mxu0 %v3659
      %5517 = vmatprep.subr.bf16.mxu0 %v3656
      %5518 = vmatpush2.bf16.msra.mxu0 %v3655
      %5519 = vmatprep.subr.bf16.mxu0 %v3652
      %5520 = vmatpush2.bf16.msra.mxu0 %v3651
      %5521 = vmatprep.mubr.bf16.mxu0 %v822
      %5522 = vmatmul.mubr.bf16.gmra.mxu0 %v821
      %v5523 = vpop.f32.mrf.mxu0
      %v5524 = vadd.f32 %v5451, %v5523
      %v5525 = vpop.f32.mrf.mxu0
      %v5526 = vadd.f32 %v5453, %v5525
      %v5527 = vpop.f32.mrf.mxu0
      %v5528 = vadd.f32 %v5455, %v5527
      %v5529 = vpop.f32.mrf.mxu0
      %v5530 = vadd.f32 %v5457, %v5529
      %5531 = vmatprep.mubr.bf16.mxu0 %v828
      %5532 = vmatmul.mubr.bf16.gmra.mxu0 %v827
      %v5533 = vpop.f32.mrf.mxu0
      %v5534 = vadd.f32 %v5461, %v5533
      %v5535 = vpop.f32.mrf.mxu0
      %v5536 = vadd.f32 %v5463, %v5535
      %v5537 = vpop.f32.mrf.mxu0
      %v5538 = vadd.f32 %v5465, %v5537
      %v5539 = vpop.f32.mrf.mxu0
      %v5540 = vadd.f32 %v5467, %v5539
      %5541 = vmatprep.mubr.bf16.mxu0 %v834
      %5542 = vmatmul.mubr.bf16.gmra.mxu0 %v833
      %v5543 = vpop.f32.mrf.mxu0
      %v5544 = vadd.f32 %v5471, %v5543
      %v5545 = vpop.f32.mrf.mxu0
      %v5546 = vadd.f32 %v5473, %v5545
      %v5547 = vpop.f32.mrf.mxu0
      %v5548 = vadd.f32 %v5475, %v5547
      %v5549 = vpop.f32.mrf.mxu0
      %v5550 = vadd.f32 %v5477, %v5549
      %5551 = vmatprep.mubr.bf16.mxu0 %v840
      %5552 = vmatmul.mubr.bf16.gmra.mxu0 %v839
      %v5553 = vpop.f32.mrf.mxu0
      %v5554 = vadd.f32 %v5481, %v5553
      %v5555 = vpop.f32.mrf.mxu0
      %v5556 = vadd.f32 %v5483, %v5555
      %v5557 = vpop.f32.mrf.mxu0
      %v5558 = vadd.f32 %v5485, %v5557
      %v5559 = vpop.f32.mrf.mxu0
      %v5560 = vadd.f32 %v5487, %v5559
      %5561 = vdwg.mxu0
      %5562 = vmatprep.subr.bf16.mxu0 %v3712
      %5563 = vmatpush1.bf16.msra.mxu0 %v3711
      %5564 = vmatprep.subr.bf16.mxu0 %v3708
      %5565 = vmatpush1.bf16.msra.mxu0 %v3707
      %5566 = vmatprep.subr.bf16.mxu0 %v3704
      %5567 = vmatpush1.bf16.msra.mxu0 %v3703
      %5568 = vmatprep.subr.bf16.mxu0 %v3700
      %5569 = vmatpush1.bf16.msra.mxu0 %v3699
      %5570 = vmatprep.subr.bf16.mxu0 %v3696
      %5571 = vmatpush1.bf16.msra.mxu0 %v3695
      %5572 = vmatprep.subr.bf16.mxu0 %v3692
      %5573 = vmatpush1.bf16.msra.mxu0 %v3691
      %5574 = vmatprep.subr.bf16.mxu0 %v3688
      %5575 = vmatpush1.bf16.msra.mxu0 %v3687
      %5576 = vmatprep.subr.bf16.mxu0 %v3684
      %5577 = vmatpush1.bf16.msra.mxu0 %v3683
      %5578 = vmatprep.subr.bf16.mxu0 %v3744
      %5579 = vmatpush2.bf16.msra.mxu0 %v3743
      %5580 = vmatprep.subr.bf16.mxu0 %v3740
      %5581 = vmatpush2.bf16.msra.mxu0 %v3739
      %5582 = vmatprep.subr.bf16.mxu0 %v3736
      %5583 = vmatpush2.bf16.msra.mxu0 %v3735
      %5584 = vmatprep.subr.bf16.mxu0 %v3732
      %5585 = vmatpush2.bf16.msra.mxu0 %v3731
      %5586 = vmatprep.subr.bf16.mxu0 %v3728
      %5587 = vmatpush2.bf16.msra.mxu0 %v3727
      %5588 = vmatprep.subr.bf16.mxu0 %v3724
      %5589 = vmatpush2.bf16.msra.mxu0 %v3723
      %5590 = vmatprep.subr.bf16.mxu0 %v3720
      %5591 = vmatpush2.bf16.msra.mxu0 %v3719
      %5592 = vmatprep.subr.bf16.mxu0 %v3716
      %5593 = vmatpush2.bf16.msra.mxu0 %v3715
      %5594 = vmatprep.mubr.bf16.mxu0 %v824
      %5595 = vmatmul.mubr.bf16.gmra.mxu0 %v823
      %v5596 = vpop.f32.mrf.mxu0
      %v5597 = vadd.f32 %v5524, %v5596
      %v5598 = vpop.f32.mrf.mxu0
      %v5599 = vadd.f32 %v5526, %v5598
      %v5600 = vpop.f32.mrf.mxu0
      %v5601 = vadd.f32 %v5528, %v5600
      %v5602 = vpop.f32.mrf.mxu0
      %v5603 = vadd.f32 %v5530, %v5602
      %5604 = vmatprep.mubr.bf16.mxu0 %v830
      %5605 = vmatmul.mubr.bf16.gmra.mxu0 %v829
      %v5606 = vpop.f32.mrf.mxu0
      %v5607 = vadd.f32 %v5534, %v5606
      %v5608 = vpop.f32.mrf.mxu0
      %v5609 = vadd.f32 %v5536, %v5608
      %v5610 = vpop.f32.mrf.mxu0
      %v5611 = vadd.f32 %v5538, %v5610
      %v5612 = vpop.f32.mrf.mxu0
      %v5613 = vadd.f32 %v5540, %v5612
      %5614 = vmatprep.mubr.bf16.mxu0 %v836
      %5615 = vmatmul.mubr.bf16.gmra.mxu0 %v835
      %v5616 = vpop.f32.mrf.mxu0
      %v5617 = vadd.f32 %v5544, %v5616
      %v5618 = vpop.f32.mrf.mxu0
      %v5619 = vadd.f32 %v5546, %v5618
      %v5620 = vpop.f32.mrf.mxu0
      %v5621 = vadd.f32 %v5548, %v5620
      %v5622 = vpop.f32.mrf.mxu0
      %v5623 = vadd.f32 %v5550, %v5622
      %5624 = vmatprep.mubr.bf16.mxu0 %v842
      %5625 = vmatmul.mubr.bf16.gmra.mxu0 %v841
      %v5626 = vpop.f32.mrf.mxu0
      %v5627 = vadd.f32 %v5554, %v5626
      %v5628 = vpop.f32.mrf.mxu0
      %v5629 = vadd.f32 %v5556, %v5628
      %v5630 = vpop.f32.mrf.mxu0
      %v5631 = vadd.f32 %v5558, %v5630
      %v5632 = vpop.f32.mrf.mxu0
      %v5633 = vadd.f32 %v5560, %v5632
      %5634 = vdwg.mxu0
      %v5635 = vadd.f32 %v4940, %v4944
      %v5636 = vadd.f32 %v5635, %v4950
      %v5637 = vadd.f32 %v5636, %v4954
      %v5638 = vadd.f32 %v5637, %v4960
      %v5639 = vadd.f32 %v5638, %v4964
      %v5640 = vadd.f32 %v5639, %v4970
      %v5641 = vadd.f32 %v5640, %v4974
      %v5642 = vrot.slane %v5641, 4
      %v5643 = vadd.f32 %v5641, %v5642
      %v5644 = vrot.slane %v5643, 2
      %v5645 = vadd.f32 %v5643, %v5644
      %v5646 = vrot.slane %v5645, 1
      %v5647 = vadd.f32 %v5645, %v5646
      %v5648 = vadd.f32 %v4942, %v4946
      %v5649 = vadd.f32 %v5648, %v4952
      %v5650 = vadd.f32 %v5649, %v4956
      %v5651 = vadd.f32 %v5650, %v4962
      %v5652 = vadd.f32 %v5651, %v4966
      %v5653 = vadd.f32 %v5652, %v4972
      %v5654 = vadd.f32 %v5653, %v4976
      %v5655 = vrot.slane %v5654, 4
      %v5656 = vadd.f32 %v5654, %v5655
      %v5657 = vrot.slane %v5656, 2
      %v5658 = vadd.f32 %v5656, %v5657
      %v5659 = vrot.slane %v5658, 1
      %v5660 = vadd.f32 %v5658, %v5659
      %v5661 = vadd.f32 %v5597, %v5601
      %v5662 = vadd.f32 %v5661, %v5607
      %v5663 = vadd.f32 %v5662, %v5611
      %v5664 = vadd.f32 %v5663, %v5617
      %v5665 = vadd.f32 %v5664, %v5621
      %v5666 = vadd.f32 %v5665, %v5627
      %v5667 = vadd.f32 %v5666, %v5631
      %v5668 = vrot.slane %v5667, 4
      %v5669 = vadd.f32 %v5667, %v5668
      %v5670 = vrot.slane %v5669, 2
      %v5671 = vadd.f32 %v5669, %v5670
      %v5672 = vrot.slane %v5671, 1
      %v5673 = vadd.f32 %v5671, %v5672
      %v5674 = vadd.f32 %v5599, %v5603
      %v5675 = vadd.f32 %v5674, %v5609
      %v5676 = vadd.f32 %v5675, %v5613
      %v5677 = vadd.f32 %v5676, %v5619
      %v5678 = vadd.f32 %v5677, %v5623
      %v5679 = vadd.f32 %v5678, %v5629
      %v5680 = vadd.f32 %v5679, %v5633
      %v5681 = vrot.slane %v5680, 4
      %v5682 = vadd.f32 %v5680, %v5681
      %v5683 = vrot.slane %v5682, 2
      %v5684 = vadd.f32 %v5682, %v5683
      %v5685 = vrot.slane %v5684, 1
      %v5686 = vadd.f32 %v5684, %v5685
      %v5687 = vmul.f32 %v4940, %v4940
      %v5688 = vmul.f32 %v4942, %v4942
      %v5689 = vmul.f32 %v5597, %v5597
      %v5690 = vmul.f32 %v5599, %v5599
      %v5691 = vmul.f32 %v4944, %v4944
      %v5692 = vmul.f32 %v4946, %v4946
      %v5693 = vmul.f32 %v5601, %v5601
      %v5694 = vmul.f32 %v5603, %v5603
      %v5695 = vmul.f32 %v4950, %v4950
      %v5696 = vmul.f32 %v4952, %v4952
      %v5697 = vmul.f32 %v5607, %v5607
      %v5698 = vmul.f32 %v5609, %v5609
      %v5699 = vmul.f32 %v4954, %v4954
      %v5700 = vmul.f32 %v4956, %v4956
      %v5701 = vmul.f32 %v5611, %v5611
      %v5702 = vmul.f32 %v5613, %v5613
      %v5703 = vmul.f32 %v4960, %v4960
      %v5704 = vmul.f32 %v4962, %v4962
      %v5705 = vmul.f32 %v5617, %v5617
      %v5706 = vmul.f32 %v5619, %v5619
      %v5707 = vmul.f32 %v4964, %v4964
      %v5708 = vmul.f32 %v4966, %v4966
      %v5709 = vmul.f32 %v5621, %v5621
      %v5710 = vmul.f32 %v5623, %v5623
      %v5711 = vmul.f32 %v4970, %v4970
      %v5712 = vmul.f32 %v4972, %v4972
      %v5713 = vmul.f32 %v5627, %v5627
      %v5714 = vmul.f32 %v5629, %v5629
      %v5715 = vmul.f32 %v4974, %v4974
      %v5716 = vmul.f32 %v4976, %v4976
      %v5717 = vmul.f32 %v5631, %v5631
      %v5718 = vmul.f32 %v5633, %v5633
      %v5719 = vadd.f32 %v5687, %v5691
      %v5720 = vadd.f32 %v5719, %v5695
      %v5721 = vadd.f32 %v5720, %v5699
      %v5722 = vadd.f32 %v5721, %v5703
      %v5723 = vadd.f32 %v5722, %v5707
      %v5724 = vadd.f32 %v5723, %v5711
      %v5725 = vadd.f32 %v5724, %v5715
      %v5726 = vrot.slane %v5725, 4
      %v5727 = vadd.f32 %v5725, %v5726
      %v5728 = vrot.slane %v5727, 2
      %v5729 = vadd.f32 %v5727, %v5728
      %v5730 = vrot.slane %v5729, 1
      %v5731 = vadd.f32 %v5729, %v5730
      %v5732 = vadd.f32 %v5688, %v5692
      %v5733 = vadd.f32 %v5732, %v5696
      %v5734 = vadd.f32 %v5733, %v5700
      %v5735 = vadd.f32 %v5734, %v5704
      %v5736 = vadd.f32 %v5735, %v5708
      %v5737 = vadd.f32 %v5736, %v5712
      %v5738 = vadd.f32 %v5737, %v5716
      %v5739 = vrot.slane %v5738, 4
      %v5740 = vadd.f32 %v5738, %v5739
      %v5741 = vrot.slane %v5740, 2
      %v5742 = vadd.f32 %v5740, %v5741
      %v5743 = vrot.slane %v5742, 1
      %v5744 = vadd.f32 %v5742, %v5743
      %v5745 = vadd.f32 %v5689, %v5693
      %v5746 = vadd.f32 %v5745, %v5697
      %v5747 = vadd.f32 %v5746, %v5701
      %v5748 = vadd.f32 %v5747, %v5705
      %v5749 = vadd.f32 %v5748, %v5709
      %v5750 = vadd.f32 %v5749, %v5713
      %v5751 = vadd.f32 %v5750, %v5717
      %v5752 = vrot.slane %v5751, 4
      %v5753 = vadd.f32 %v5751, %v5752
      %v5754 = vrot.slane %v5753, 2
      %v5755 = vadd.f32 %v5753, %v5754
      %v5756 = vrot.slane %v5755, 1
      %v5757 = vadd.f32 %v5755, %v5756
      %v5758 = vadd.f32 %v5690, %v5694
      %v5759 = vadd.f32 %v5758, %v5698
      %v5760 = vadd.f32 %v5759, %v5702
      %v5761 = vadd.f32 %v5760, %v5706
      %v5762 = vadd.f32 %v5761, %v5710
      %v5763 = vadd.f32 %v5762, %v5714
      %v5764 = vadd.f32 %v5763, %v5718
      %v5765 = vrot.slane %v5764, 4
      %v5766 = vadd.f32 %v5764, %v5765
      %v5767 = vrot.slane %v5766, 2
      %v5768 = vadd.f32 %v5766, %v5767
      %v5769 = vrot.slane %v5768, 1
      %v5770 = vadd.f32 %v5768, %v5769
      %v5775 = vcombine.low %v5647, %v5660
      %v5776 = vcombine.low %v5673, %v5686
      %v5778 = vunpack.c.l.s4 1966171168
      %v5779 = vunpack.c.0.s8 %v5778
      %v5780 = vlaneseq
      %v5781 = vshrl.u32 %v5780, 7
      %v5782 = vsub.s32 %v5779, %v5781
      %v5783 = vrot.slane %v5775, %v5782
      %v5785 = vunpack.c.l.s4 1966171168
      %v5786 = vunpack.c.0.s8 %v5785
      %v5787 = vlaneseq
      %v5788 = vshrl.u32 %v5787, 7
      %v5789 = vsub.s32 %v5786, %v5788
      %v5790 = vrot.slane %v5776, %v5789
      %v5791 = vcombine.low %v5783, %v5790
      %v5793 = vunpack.c.l.s4 1966171168
      %v5794 = vunpack.c.0.s8 %v5793
      %v5795 = vlaneseq
      %v5796 = vshrl.u32 %v5795, 7
      %v5797 = vsub.s32 %v5794, %v5796
      %v5798 = vrot.slane %v5791, %v5797
      %v5800 = vlaneseq
      %vm5801 = vcmp.ge.s32.totalorder %v5800, 0
      %vm5802 = vcmp.lt.s32.totalorder %v5800, 512
      %vm5803 = vmand %vm5801, %vm5802
      %5804 = vst.msk [vmem:[%s330] sm:$0xf] %vm5803, %v5798
      %v5809 = vcombine.low %v5731, %v5744
      %v5810 = vcombine.low %v5757, %v5770
      %v5812 = vunpack.c.l.s4 1966171168
      %v5813 = vunpack.c.0.s8 %v5812
      %v5814 = vlaneseq
      %v5815 = vshrl.u32 %v5814, 7
      %v5816 = vsub.s32 %v5813, %v5815
      %v5817 = vrot.slane %v5809, %v5816
      %v5819 = vunpack.c.l.s4 1966171168
      %v5820 = vunpack.c.0.s8 %v5819
      %v5821 = vlaneseq
      %v5822 = vshrl.u32 %v5821, 7
      %v5823 = vsub.s32 %v5820, %v5822
      %v5824 = vrot.slane %v5810, %v5823
      %v5825 = vcombine.low %v5817, %v5824
      %v5827 = vunpack.c.l.s4 1966171168
      %v5828 = vunpack.c.0.s8 %v5827
      %v5829 = vlaneseq
      %v5830 = vshrl.u32 %v5829, 7
      %v5831 = vsub.s32 %v5828, %v5830
      %v5832 = vrot.slane %v5825, %v5831
      %5834 = vst.msk [vmem:[%s334] sm:$0xf] %vm5803, %v5832
      %v5835 = vpack.c.bf16 %v4944, %v4940
      %v5836 = vpack.c.bf16 %v4946, %v4942
      %v5837 = vpack.c.bf16 %v5601, %v5597
      %v5838 = vpack.c.bf16 %v5603, %v5599
      %v5839 = vpack.c.bf16 %v4954, %v4950
      %v5840 = vpack.c.bf16 %v4956, %v4952
      %v5841 = vpack.c.bf16 %v5611, %v5607
      %v5842 = vpack.c.bf16 %v5613, %v5609
      %v5843 = vpack.c.bf16 %v4964, %v4960
      %v5844 = vpack.c.bf16 %v4966, %v4962
      %v5845 = vpack.c.bf16 %v5621, %v5617
      %v5846 = vpack.c.bf16 %v5623, %v5619
      %v5847 = vpack.c.bf16 %v4974, %v4970
      %v5848 = vpack.c.bf16 %v4976, %v4972
      %v5849 = vpack.c.bf16 %v5631, %v5627
      %v5850 = vpack.c.bf16 %v5633, %v5629
      %v5867 = vunpack.c.l.b16 %v5835
      %v5868 = vunpack.c.l.b16 %v5836
      %v5869 = vunpack.c.l.b16 %v5837
      %v5870 = vunpack.c.l.b16 %v5838
      %v5871 = vunpack.c.h.b16 %v5835
      %v5872 = vunpack.c.h.b16 %v5836
      %v5873 = vunpack.c.h.b16 %v5837
      %v5874 = vunpack.c.h.b16 %v5838
      %v5875 = vunpack.c.l.b16 %v5839
      %v5876 = vunpack.c.l.b16 %v5840
      %v5877 = vunpack.c.l.b16 %v5841
      %v5878 = vunpack.c.l.b16 %v5842
      %v5879 = vunpack.c.h.b16 %v5839
      %v5880 = vunpack.c.h.b16 %v5840
      %v5881 = vunpack.c.h.b16 %v5841
      %v5882 = vunpack.c.h.b16 %v5842
      %v5883 = vunpack.c.l.b16 %v5843
      %v5884 = vunpack.c.l.b16 %v5844
      %v5885 = vunpack.c.l.b16 %v5845
      %v5886 = vunpack.c.l.b16 %v5846
      %v5887 = vunpack.c.h.b16 %v5843
      %v5888 = vunpack.c.h.b16 %v5844
      %v5889 = vunpack.c.h.b16 %v5845
      %v5890 = vunpack.c.h.b16 %v5846
      %v5891 = vunpack.c.l.b16 %v5847
      %v5892 = vunpack.c.l.b16 %v5848
      %v5893 = vunpack.c.l.b16 %v5849
      %v5894 = vunpack.c.l.b16 %v5850
      %v5895 = vunpack.c.h.b16 %v5847
      %v5896 = vunpack.c.h.b16 %v5848
      %v5897 = vunpack.c.h.b16 %v5849
      %v5898 = vunpack.c.h.b16 %v5850
      %v5899 = vpack.c.b16 %v5868, %v5867
      %v5900 = vpack.c.b16 %v5870, %v5869
      %v5901 = vpack.c.b16 %v5872, %v5871
      %v5902 = vpack.c.b16 %v5874, %v5873
      %v5903 = vpack.c.b16 %v5876, %v5875
      %v5904 = vpack.c.b16 %v5878, %v5877
      %v5905 = vpack.c.b16 %v5880, %v5879
      %v5906 = vpack.c.b16 %v5882, %v5881
      %v5907 = vpack.c.b16 %v5884, %v5883
      %v5908 = vpack.c.b16 %v5886, %v5885
      %v5909 = vpack.c.b16 %v5888, %v5887
      %v5910 = vpack.c.b16 %v5890, %v5889
      %v5911 = vpack.c.b16 %v5892, %v5891
      %v5912 = vpack.c.b16 %v5894, %v5893
      %v5913 = vpack.c.b16 %v5896, %v5895
      %v5914 = vpack.c.b16 %v5898, %v5897
      %5931 = vst [vmem:[%s325] sm:$0xff] %v5899
      %5932 = vst [vmem:[%s325 + $0x8] sm:$0xff] %v5900
      %5933 = vst [vmem:[%s325 + $0x10] sm:$0xff] %v5901
      %5934 = vst [vmem:[%s325 + $0x18] sm:$0xff] %v5902
      %5935 = vst [vmem:[%s325 + $0x20] sm:$0xff] %v5903
      %5936 = vst [vmem:[%s325 + $0x28] sm:$0xff] %v5904
      %5937 = vst [vmem:[%s325 + $0x30] sm:$0xff] %v5905
      %5938 = vst [vmem:[%s325 + $0x38] sm:$0xff] %v5906
      %5939 = vst [vmem:[%s325 + $0x40] sm:$0xff] %v5907
      %5940 = vst [vmem:[%s325 + $0x48] sm:$0xff] %v5908
      %5941 = vst [vmem:[%s325 + $0x50] sm:$0xff] %v5909
      %5942 = vst [vmem:[%s325 + $0x58] sm:$0xff] %v5910
      %5943 = vst [vmem:[%s325 + $0x60] sm:$0xff] %v5911
      %5944 = vst [vmem:[%s325 + $0x68] sm:$0xff] %v5912
      %5945 = vst [vmem:[%s325 + $0x70] sm:$0xff] %v5913
      %5946 = vst [vmem:[%s325 + $0x78] sm:$0xff] %v5914
      %s5947 = smul.u32 8, %s20
      %p5948 = scmp.lt.s32.totalorder %s5947, 15
      %s5949 = scalar_select %p5948, %s5947, 15
      %s5950 = smul.addr %s5949, 4
      %s5951 = smul.addr %s5950, 4
      %s5952 = scalar_lea.vmem %s6, %s5951
      %p5953 = scmp.lt.s32.totalorder %s20, 1
      %s5954 = scalar_select %p5953, %s20, 1
      %s5955 = smul.addr %s5954, 4
      %s5956 = scalar_lea.vmem %s7, %s5955
      %p5957 = scmp.lt.s32.totalorder %s20, 1
      %s5958 = scalar_select %p5957, %s20, 1
      %s5959 = smul.addr %s5958, 4
      %s5960 = scalar_lea.vmem %s8, %s5959
      // Predicated region
      $region45: #{proflow_forward.6} parent=43 // pred_check
        %p5961 = pneg %p169
      $region46: #{proflow_forward.6} parent=43 // pred_check_branch
        %5963 = sbr.rel (%p5961) target = $region48
      $region47: #{proflow_forward.6} parent=43 // pred_region
        %s5964 = smul.u32 8, %s20
      $region48: #{proflow_forward.6} parent=43 // pred_fallthru
        _
      // Predicated region
      $region49: #{proflow_forward.6} parent=43 // pred_check
        %p5965 = pneg %p195
      $region50: #{proflow_forward.6} parent=43 // pred_check_branch
        %5967 = sbr.rel (%p5965) target = $region52
      $region51: #{proflow_forward.6} parent=43 // pred_region
        _
      $region52: #{proflow_forward.6} parent=43 // pred_fallthru
        _
      // Predicated region
      $region53: #{proflow_forward.6} parent=43 // pred_check
        %p5968 = pneg %p221
      $region54: #{proflow_forward.6} parent=43 // pred_check_branch
        %5970 = sbr.rel (%p5968) target = $region56
      $region55: #{proflow_forward.6} parent=43 // pred_region
        _
      $region56: #{proflow_forward.6} parent=43 // pred_fallthru
        _
    $region44: #{proflow_forward.6} parent=5 // pred_fallthru
      _
    %p5971 = scmp.le.s32.totalorder 2, %s15
    // Predicated region
    $region57: #{proflow_forward.6} parent=5 // pred_check
      %p5972 = pneg %p5971
    $region58: #{proflow_forward.6} parent=5 // pred_check_branch
      %5974 = sbr.rel (%p5972) target = $region60
    $region59: #{proflow_forward.6} parent=5 // pred_region
      %s5975 = ssub.s32 %s15, 2
      // Predicated region
      $region61: #{proflow_forward.6} parent=59 // pred_check
        %p5976 = pneg %p175
      $region62: #{proflow_forward.6} parent=59 // pred_check_branch
        %5978 = sbr.rel (%p5976) target = $region64
      $region63: #{proflow_forward.6} parent=59 // pred_region
        %s5979 = smul.u32 8, %s21
        %p5980 = scmp.lt.s32.totalorder %s5979, 15
        %s5981 = scalar_select %p5980, %s5979, 15
        %s5982 = smul.addr %s5981, 4
        %s5983 = smul.addr %s5982, 4
        %s5984 = scalar_lea.vmem %s6, %s5983
      $region64: #{proflow_forward.6} parent=59 // pred_fallthru
        _
      // Predicated region
      $region65: #{proflow_forward.6} parent=59 // pred_check
        %p5985 = pneg %p201
      $region66: #{proflow_forward.6} parent=59 // pred_check_branch
        %5987 = sbr.rel (%p5985) target = $region68
      $region67: #{proflow_forward.6} parent=59 // pred_region
        %p5988 = scmp.lt.s32.totalorder %s21, 1
        %s5989 = scalar_select %p5988, %s21, 1
        %s5990 = smul.addr %s5989, 4
        %s5991 = scalar_lea.vmem %s7, %s5990
      $region68: #{proflow_forward.6} parent=59 // pred_fallthru
        _
      // Predicated region
      $region69: #{proflow_forward.6} parent=59 // pred_check
        %p5992 = pneg %p227
      $region70: #{proflow_forward.6} parent=59 // pred_check_branch
        %5994 = sbr.rel (%p5992) target = $region72
      $region71: #{proflow_forward.6} parent=59 // pred_region
        %p5995 = scmp.lt.s32.totalorder %s21, 1
        %s5996 = scalar_select %p5995, %s21, 1
        %s5997 = smul.addr %s5996, 4
        %s5998 = scalar_lea.vmem %s8, %s5997
      $region72: #{proflow_forward.6} parent=59 // pred_fallthru
        _
    $region60: #{proflow_forward.6} parent=5 // pred_fallthru
      _
  $region6: #{proflow_forward.6} parent=0 // loop_footer
    %s19 = sadd.s32 1, %s15
  $region7: #{proflow_forward.6} parent=0 // loop_footer_branch
    %14 = sbr.rel target = $region3
  $region8: #{proflow_forward.6} parent=0 // loop_exit
    _

</llo_original>
